<compile_context>
chip_gen: v7x
topology: tpu7x:2x2x1
jax: 0.10.0
libtpu: 0.0.40
codegen_flags: <defaults>
</compile_context>

<pallas_src>
import functools

import jax
import jax.numpy as jnp
from jax.experimental import pallas as pl
from jax.experimental.pallas import tpu as pltpu


def _round_up(x, m):
    return ((x + m - 1) // m) * m


# ----------------------------------------------------------------------------
# Kernel 1: tiled matmul + bias + optional ReLU (conv1-as-GEMM)
# ----------------------------------------------------------------------------
def _matmul_bias_act_kernel(x_ref, w_ref, b_ref, o_ref, *, act, single_k):
    if single_k:
        # One K block: compute and store directly (no init/accumulate pass),
        # output dtype may be bf16.
        y = jnp.dot(x_ref[...], w_ref[...], preferred_element_type=jnp.float32)
        y = y + b_ref[...]
        if act == "relu":
            y = jnp.maximum(y, 0.0)
        o_ref[...] = y.astype(o_ref.dtype)
    else:
        k = pl.program_id(1)

        @pl.when(k == 0)
        def _():
            o_ref[...] = jnp.zeros_like(o_ref)

        o_ref[...] += jnp.dot(
            x_ref[...], w_ref[...], preferred_element_type=jnp.float32
        )

        @pl.when(k == pl.num_programs(1) - 1)
        def _():
            y = o_ref[...] + b_ref[...]
            if act == "relu":
                y = jnp.maximum(y, 0.0)
            o_ref[...] = y


def matmul_bias_act(x, w, b, act="none", tm=512, tk=512, out_dtype=jnp.float32):
    """y = act(x @ w + b); bf16 MXU matmul, f32 accumulation."""
    M, K = x.shape
    K2, N = w.shape
    assert K == K2
    single_k = K <= tk
    if single_k:
        tk = K                       # full-K block, no contraction padding
    else:
        out_dtype = jnp.float32      # multi-K accumulates in the f32 output block
    Kp = pl.cdiv(K, tk) * tk
    if M <= tm:
        Mp = _round_up(M, 16)
        tm = Mp
    else:
        Mp = _round_up(M, tm)
    if Mp != M or Kp != K:
        x = jnp.pad(x, ((0, Mp - M), (0, Kp - K)))
    if Kp != K:
        w = jnp.pad(w, ((0, Kp - K), (0, 0)))
    b2 = b.reshape(1, N).astype(jnp.float32)

    kernel = functools.partial(_matmul_bias_act_kernel, act=act, single_k=single_k)
    out = pl.pallas_call(
        kernel,
        out_shape=jax.ShapeDtypeStruct((Mp, N), out_dtype),
        grid_spec=pltpu.PrefetchScalarGridSpec(
            num_scalar_prefetch=0,
            grid=(Mp // tm, Kp // tk),
            in_specs=[
                pl.BlockSpec((tm, tk), lambda i, k: (i, k)),
                pl.BlockSpec((tk, N), lambda i, k: (k, 0)),
                pl.BlockSpec((1, N), lambda i, k: (0, 0)),
            ],
            out_specs=pl.BlockSpec((tm, N), lambda i, k: (i, 0)),
        ),
        compiler_params=pltpu.CompilerParams(
            dimension_semantics=("parallel", "arbitrary")
        ),
    )(x.astype(jnp.bfloat16), w.astype(jnp.bfloat16), b2)
    return out[:M] if Mp != M else out


# ----------------------------------------------------------------------------
# Kernel 2: conv2 GEMM + bias + ReLU + 2x2 maxpool, fully fused (per image)
# ----------------------------------------------------------------------------
def _conv2_pool_kernel(p_ref, w_ref, b_ref, o_ref):
    # p_ref rows are ordered (s_h, s_w, j_h, j_w): the 4 pooling-window members
    # of output pixel (j_h, j_w) sit at the same offset in 4 row groups of 144.
    acc = jnp.dot(p_ref[...], w_ref[...],
                  preferred_element_type=jnp.float32)        # (576, 64) f32
    a = acc.reshape(4, 144, 64)                              # leading-dim split
    pooled = jnp.maximum(jnp.maximum(a[0], a[1]),
                         jnp.maximum(a[2], a[3]))            # 2x2 max pool
    # Pool before bias+ReLU (both monotonic, so the result is identical).
    o_ref[...] = jnp.maximum(pooled + b_ref[...], 0.0).astype(o_ref.dtype)


def conv2_relu_pool(p, w, b):
    """p: (N*576, 288) bf16 patches in pooling row order -> (N*144, 64) bf16."""
    M, K = p.shape
    n_img = M // 576
    assert M == n_img * 576 and w.shape == (K, 64)
    return pl.pallas_call(
        _conv2_pool_kernel,
        out_shape=jax.ShapeDtypeStruct((n_img * 144, 64), jnp.bfloat16),
        grid_spec=pltpu.PrefetchScalarGridSpec(
            num_scalar_prefetch=0,
            grid=(n_img,),
            in_specs=[
                pl.BlockSpec((576, K), lambda n: (n, 0)),
                pl.BlockSpec((K, 64), lambda n: (0, 0)),
                pl.BlockSpec((1, 64), lambda n: (0, 0)),
            ],
            out_specs=pl.BlockSpec((144, 64), lambda n: (n, 0)),
        ),
        compiler_params=pltpu.CompilerParams(dimension_semantics=("parallel",)),
    )(p.astype(jnp.bfloat16), w.astype(jnp.bfloat16),
      b.reshape(1, 64).astype(jnp.float32))


# ----------------------------------------------------------------------------
# Kernel 3: fc1 (+bias, ReLU) + fc2 (+bias) + log_softmax fused
# ----------------------------------------------------------------------------
def _fc_head_kernel(x_ref, w1_ref, b1_ref, w2_ref, b2_ref, o_ref, acc_ref):
    k = pl.program_id(1)

    @pl.when(k == 0)
    def _():
        acc_ref[...] = jnp.zeros_like(acc_ref)

    acc_ref[...] += jnp.dot(
        x_ref[...], w1_ref[...], preferred_element_type=jnp.float32
    )

    @pl.when(k == pl.num_programs(1) - 1)
    def _():
        h = jnp.maximum(acc_ref[...] + b1_ref[...], 0.0)          # fc1 + ReLU
        logits = (
            jnp.dot(h.astype(w2_ref.dtype), w2_ref[...],
                    preferred_element_type=jnp.float32)
            + b2_ref[...]
        )
        m = jnp.max(logits, axis=-1, keepdims=True)
        s = logits - m
        lse = jnp.log(jnp.sum(jnp.exp(s), axis=-1, keepdims=True))
        o_ref[...] = s - lse


def fc_head(x, w1, b1, w2, b2, tm=512, tk=4608):
    """log_softmax(fc2(relu(fc1(x)))) in a single pallas_call."""
    M, K = x.shape
    K2, H = w1.shape
    H2, C = w2.shape
    assert K == K2 and H == H2
    Kp = pl.cdiv(K, tk) * tk
    if M <= tm:
        Mp = _round_up(M, 16)
        tm = Mp
    else:
        Mp = _round_up(M, tm)
    if Mp != M or Kp != K:
        x = jnp.pad(x, ((0, Mp - M), (0, Kp - K)))
    if Kp != K:
        w1 = jnp.pad(w1, ((0, Kp - K), (0, 0)))

    out = pl.pallas_call(
        _fc_head_kernel,
        out_shape=jax.ShapeDtypeStruct((Mp, C), jnp.float32),
        grid_spec=pltpu.PrefetchScalarGridSpec(
            num_scalar_prefetch=0,
            grid=(Mp // tm, Kp // tk),
            in_specs=[
                pl.BlockSpec((tm, tk), lambda i, k: (i, k)),
                pl.BlockSpec((tk, H), lambda i, k: (k, 0)),
                pl.BlockSpec((1, H), lambda i, k: (0, 0)),
                pl.BlockSpec((H, C), lambda i, k: (0, 0)),
                pl.BlockSpec((1, C), lambda i, k: (0, 0)),
            ],
            out_specs=pl.BlockSpec((tm, C), lambda i, k: (i, 0)),
            scratch_shapes=[pltpu.VMEM((tm, H), jnp.float32)],
        ),
        compiler_params=pltpu.CompilerParams(
            dimension_semantics=("parallel", "arbitrary")
        ),
    )(
        x.astype(jnp.bfloat16),
        w1.astype(jnp.bfloat16),
        b1.reshape(1, H).astype(jnp.float32),
        w2.astype(jnp.bfloat16),
        b2.reshape(1, C).astype(jnp.float32),
    )
    return out[:M] if Mp != M else out


# ----------------------------------------------------------------------------
# Glue: im2col patch extraction and parameter setup (plain JAX / XLA)
# ----------------------------------------------------------------------------
def im2col_3x3(x_nhwc):
    """3x3 / stride-1 / valid patches; row order (n, h, w), feature (kh, kw, ci)."""
    N, H, W, C = x_nhwc.shape
    OH, OW = H - 2, W - 2
    cols = [x_nhwc[:, kh:kh + OH, kw:kw + OW, :]
            for kh in range(3) for kw in range(3)]
    patches = jnp.concatenate(cols, axis=-1)              # [N, OH, OW, 9*C]
    return patches.reshape(N * OH * OW, 9 * C), (OH, OW)


def im2col_3x3_pool_order(x_nhwc):
    """Same patches, but rows permuted to (n, s_h, s_w, j_h, j_w) where the conv
    output pixel is (2*j_h + s_h, 2*j_w + s_w) — so a 2x2 maxpool becomes a
    max over 4 contiguous 144-row groups per image inside the conv2 kernel."""
    N, H, W, C = x_nhwc.shape
    OH, OW = H - 2, W - 2                                  # 24, 24
    cols = [x_nhwc[:, kh:kh + OH, kw:kw + OW, :]
            for kh in range(3) for kw in range(3)]
    patches = jnp.concatenate(cols, axis=-1)               # [N, OH, OW, 9*C]
    patches = patches.reshape(N, OH // 2, 2, OW // 2, 2, 9 * C)
    patches = jnp.transpose(patches, (0, 2, 4, 1, 3, 5))   # (n,s_h,s_w,j_h,j_w,f)
    return patches.reshape(N * OH * OW, 9 * C)


def conv_weight_to_mat(w_oihw):
    """[Cout, Cin, 3, 3] -> [9*Cin, Cout] matching (kh, kw, cin) patch order."""
    cout, cin, kh, kw = w_oihw.shape
    return jnp.transpose(w_oihw, (2, 3, 1, 0)).reshape(kh * kw * cin, cout)


def init_params(key):
    """PyTorch-style random init, converted ONCE to the kernel-friendly layout:
    conv weights as [9*Cin, Cout] mats, fc weights as [in, out] with the
    NCHW-flatten permutation folded into fc1's row order (all bf16)."""
    ks = jax.random.split(key, 8)

    def u(k, shape, fan_in):
        bound = 1.0 / jnp.sqrt(float(fan_in))
        return jax.random.uniform(k, shape, jnp.float32, -bound, bound)

    conv1_w = u(ks[0], (32, 1, 3, 3), 1 * 3 * 3)
    conv2_w = u(ks[2], (64, 32, 3, 3), 32 * 3 * 3)
    fc1_w = u(ks[4], (128, 9216), 9216)               # PyTorch Linear: [out, in]
    fc2_w = u(ks[6], (10, 128), 128)

    # fc1 rows reordered from (c, h, w) [torch flatten] to (h, w, c) [NHWC flatten].
    fc1_w_nhwc = jnp.transpose(
        fc1_w.reshape(128, 64, 12, 12), (2, 3, 1, 0)
    ).reshape(9216, 128)

    return {
        "conv1_w": conv_weight_to_mat(conv1_w).astype(jnp.bfloat16),   # (9, 32)
        "conv1_b": u(ks[1], (32,), 1 * 3 * 3),
        "conv2_w": conv_weight_to_mat(conv2_w).astype(jnp.bfloat16),   # (288, 64)
        "conv2_b": u(ks[3], (64,), 32 * 3 * 3),
        "fc1_w": fc1_w_nhwc.astype(jnp.bfloat16),                      # (9216, 128)
        "fc1_b": u(ks[5], (128,), 9216),
        "fc2_w": jnp.transpose(fc2_w).astype(jnp.bfloat16),            # (128, 10)
        "fc2_b": u(ks[7], (10,), 128),
    }


def net_forward(params, x_nchw):
    N = x_nchw.shape[0]
    x = jnp.transpose(x_nchw, (0, 2, 3, 1)).astype(jnp.bfloat16)  # NCHW -> NHWC

    # conv1 (1->32, 3x3) + ReLU: im2col GEMM (full K=9 block), bf16 output.
    p1, (oh1, ow1) = im2col_3x3(x)
    y1 = matmul_bias_act(p1, params["conv1_w"], params["conv1_b"],
                         act="relu", tm=4096, out_dtype=jnp.bfloat16)
    y1 = y1.reshape(N, oh1, ow1, 32)                   # (N, 26, 26, 32) bf16

    # conv2 (32->64, 3x3) + ReLU + max_pool2d(2), fused in one kernel.
    p2 = im2col_3x3_pool_order(y1)                     # (N*576, 288) bf16
    pooled = conv2_relu_pool(p2, params["conv2_w"], params["conv2_b"])
    # pooled: (N*144, 64) bf16 in (n, h, w, c) order -> NHWC flatten is free.

    # dropout1 / dropout2: identity (eval mode).
    flat = pooled.reshape(N, 12 * 12 * 64)             # (N, 9216) bf16

    # fc1 + ReLU + fc2 + log_softmax, fused in one kernel.
    return fc_head(flat, params["fc1_w"], params["fc1_b"],
                   params["fc2_w"], params["fc2_b"])


if __name__ == "__main__":
    key = jax.random.PRNGKey(0)
    pkey, xkey = jax.random.split(key)
    params = init_params(pkey)
    # Spatial size fixed by the module (fc1 expects 9216 = 64*12*12 -> 28x28 in).
    x = jax.random.normal(xkey, (2, 1, 28, 28), jnp.float32)
    fwd = jax.jit(net_forward)
    out = jax.block_until_ready(fwd(params, x))
    assert out.shape == (2, 10), out.shape
    assert out.dtype == jnp.float32
    # log_softmax rows must sum to ~1 in probability space.
    assert jnp.allclose(jnp.sum(jnp.exp(out), axis=1), 1.0, atol=1e-4)
    print("KERNEL_OK")
</pallas_src>

<mosaic_0001>
module attributes {stable_mosaic.version = 11 : i64} {
  func.func @_matmul_bias_act_kernel(%arg0: i32, %arg1: i32, %arg2: memref<1360x9xbf16, #tpu.memory_space<vmem>>, %arg3: memref<9x32xbf16, #tpu.memory_space<vmem>>, %arg4: memref<1x32xf32, #tpu.memory_space<vmem>>, %arg5: memref<1360x32xbf16, #tpu.memory_space<vmem>>) attributes {dimension_semantics = [#tpu.dimension_semantics<parallel>, #tpu.dimension_semantics<arbitrary>], iteration_bounds = array<i64: 1, 1>, scalar_prefetch = 0 : i64, scratch_operands = 0 : i64, tpu.core_type = #tpu.core_type<tc>, window_params = [{transform_indices = @transform_0, window_bounds = array<i64: 1360, 9>}, {transform_indices = @transform_1, window_bounds = array<i64: 9, 32>}, {pipeline_mode = #tpu.pipeline_mode<synchronous>, transform_indices = @transform_2, window_bounds = array<i64: 1, 32>}, {transform_indices = @transform_3, window_bounds = array<i64: 1360, 32>}]} {
    %c0 = arith.constant 0 : index
    %c0_0 = arith.constant 0 : index
    %0 = vector.load %arg2[%c0, %c0_0] : memref<1360x9xbf16, #tpu.memory_space<vmem>>, vector<1360x9xbf16>
    %c0_1 = arith.constant 0 : index
    %c0_2 = arith.constant 0 : index
    %1 = vector.load %arg3[%c0_1, %c0_2] : memref<9x32xbf16, #tpu.memory_space<vmem>>, vector<9x32xbf16>
    %cst = arith.constant dense<0.000000e+00> : vector<1360x32xf32>
    %2 = tpu.matmul %0, %1, %cst {dimension_numbers = #tpu.dot_dimension_numbers<[1], [0], [0], [1], [0, 0, 1, 1], [], []>} : vector<1360x9xbf16>, vector<9x32xbf16>, vector<1360x32xf32> -> vector<1360x32xf32>
    %c0_3 = arith.constant 0 : index
    %c0_4 = arith.constant 0 : index
    %3 = vector.load %arg4[%c0_3, %c0_4] : memref<1x32xf32, #tpu.memory_space<vmem>>, vector<1x32xf32>
    %4 = vector.broadcast %3 : vector<1x32xf32> to vector<1360x32xf32>
    %5 = arith.addf %2, %4 : vector<1360x32xf32>
    %cst_5 = arith.constant 0.000000e+00 : f32
    %6 = vector.broadcast %cst_5 : f32 to vector<1360x32xf32>
    %7 = arith.maximumf %5, %6 : vector<1360x32xf32>
    %8 = arith.truncf %7 : vector<1360x32xf32> to vector<1360x32xbf16>
    %c0_6 = arith.constant 0 : index
    %c0_7 = arith.constant 0 : index
    %9 = vector.load %arg5[%c0_6, %c0_7] : memref<1360x32xbf16, #tpu.memory_space<vmem>>, vector<1360x32xbf16>
    tpu.vector_store %arg5[%c0_6, %c0_7], %8 {strides = array<i32>} : memref<1360x32xbf16, #tpu.memory_space<vmem>>, vector<1360x32xbf16>,
    return
  }
  func.func @transform_0(%arg0: i32, %arg1: i32) -> (i32, i32) {
    %c0_i32 = arith.constant 0 : i32
    return %arg0, %arg1 : i32, i32
  }
  func.func @transform_1(%arg0: i32, %arg1: i32) -> (i32, i32) {
    %c0_i32 = arith.constant 0 : i32
    %c0_i32_0 = arith.constant 0 : i32
    return %arg1, %c0_i32 : i32, i32
  }
  func.func @transform_2(%arg0: i32, %arg1: i32) -> (i32, i32) {
    %c0_i32 = arith.constant 0 : i32
    %c0_i32_0 = arith.constant 0 : i32
    %c0_i32_1 = arith.constant 0 : i32
    return %c0_i32, %c0_i32_0 : i32, i32
  }
  func.func @transform_3(%arg0: i32, %arg1: i32) -> (i32, i32) {
    %c0_i32 = arith.constant 0 : i32
    %c0_i32_0 = arith.constant 0 : i32
    return %arg0, %c0_i32 : i32, i32
  }
}

module attributes {stable_mosaic.version = 11 : i64} {
  func.func @_conv2_pool_kernel(%arg0: i32, %arg1: memref<576x288xbf16, #tpu.memory_space<vmem>>, %arg2: memref<288x64xbf16, #tpu.memory_space<vmem>>, %arg3: memref<1x64xf32, #tpu.memory_space<vmem>>, %arg4: memref<144x64xbf16, #tpu.memory_space<vmem>>) attributes {dimension_semantics = [#tpu.dimension_semantics<parallel>], iteration_bounds = array<i64: 2>, scalar_prefetch = 0 : i64, scratch_operands = 0 : i64, tpu.core_type = #tpu.core_type<tc>, window_params = [{transform_indices = @transform_0, window_bounds = array<i64: 576, 288>}, {pipeline_mode = #tpu.pipeline_mode<synchronous>, transform_indices = @transform_1, window_bounds = array<i64: 288, 64>}, {pipeline_mode = #tpu.pipeline_mode<synchronous>, transform_indices = @transform_2, window_bounds = array<i64: 1, 64>}, {transform_indices = @transform_3, window_bounds = array<i64: 144, 64>}]} {
    %c0 = arith.constant 0 : index
    %c0_0 = arith.constant 0 : index
    %0 = vector.load %arg1[%c0, %c0_0] : memref<576x288xbf16, #tpu.memory_space<vmem>>, vector<576x288xbf16>
    %c0_1 = arith.constant 0 : index
    %c0_2 = arith.constant 0 : index
    %1 = vector.load %arg2[%c0_1, %c0_2] : memref<288x64xbf16, #tpu.memory_space<vmem>>, vector<288x64xbf16>
    %cst = arith.constant dense<0.000000e+00> : vector<576x64xf32>
    %2 = tpu.matmul %0, %1, %cst {dimension_numbers = #tpu.dot_dimension_numbers<[1], [0], [0], [1], [0, 0, 1, 1], [], []>} : vector<576x288xbf16>, vector<288x64xbf16>, vector<576x64xf32> -> vector<576x64xf32>
    %3 = vector.shape_cast %2 : vector<576x64xf32> to vector<4x144x64xf32>
    %4 = vector.extract_strided_slice %3 {offsets = [0, 0, 0], sizes = [1, 144, 64], strides = [1, 1, 1]} : vector<4x144x64xf32> to vector<1x144x64xf32>
    %5 = vector.shape_cast %4 : vector<1x144x64xf32> to vector<144x64xf32>
    %6 = vector.extract_strided_slice %3 {offsets = [1, 0, 0], sizes = [1, 144, 64], strides = [1, 1, 1]} : vector<4x144x64xf32> to vector<1x144x64xf32>
    %7 = vector.shape_cast %6 : vector<1x144x64xf32> to vector<144x64xf32>
    %8 = arith.maximumf %5, %7 : vector<144x64xf32>
    %9 = vector.extract_strided_slice %3 {offsets = [2, 0, 0], sizes = [1, 144, 64], strides = [1, 1, 1]} : vector<4x144x64xf32> to vector<1x144x64xf32>
    %10 = vector.shape_cast %9 : vector<1x144x64xf32> to vector<144x64xf32>
    %11 = vector.extract_strided_slice %3 {offsets = [3, 0, 0], sizes = [1, 144, 64], strides = [1, 1, 1]} : vector<4x144x64xf32> to vector<1x144x64xf32>
    %12 = vector.shape_cast %11 : vector<1x144x64xf32> to vector<144x64xf32>
    %13 = arith.maximumf %10, %12 : vector<144x64xf32>
    %14 = arith.maximumf %8, %13 : vector<144x64xf32>
    %c0_3 = arith.constant 0 : index
    %c0_4 = arith.constant 0 : index
    %15 = vector.load %arg3[%c0_3, %c0_4] : memref<1x64xf32, #tpu.memory_space<vmem>>, vector<1x64xf32>
    %16 = vector.broadcast %15 : vector<1x64xf32> to vector<144x64xf32>
    %17 = arith.addf %14, %16 : vector<144x64xf32>
    %cst_5 = arith.constant 0.000000e+00 : f32
    %18 = vector.broadcast %cst_5 : f32 to vector<144x64xf32>
    %19 = arith.maximumf %17, %18 : vector<144x64xf32>
    %20 = arith.truncf %19 : vector<144x64xf32> to vector<144x64xbf16>
    %c0_6 = arith.constant 0 : index
    %c0_7 = arith.constant 0 : index
    %21 = vector.load %arg4[%c0_6, %c0_7] : memref<144x64xbf16, #tpu.memory_space<vmem>>, vector<144x64xbf16>
    tpu.vector_store %arg4[%c0_6, %c0_7], %20 {strides = array<i32>} : memref<144x64xbf16, #tpu.memory_space<vmem>>, vector<144x64xbf16>,
    return
  }
  func.func @transform_0(%arg0: i32) -> (i32, i32) {
    %c0_i32 = arith.constant 0 : i32
    %c0_i32_0 = arith.constant 0 : i32
    return %arg0, %c0_i32 : i32, i32
  }
  func.func @transform_1(%arg0: i32) -> (i32, i32) {
    %c0_i32 = arith.constant 0 : i32
    %c0_i32_0 = arith.constant 0 : i32
    %c0_i32_1 = arith.constant 0 : i32
    return %c0_i32, %c0_i32_0 : i32, i32
  }
  func.func @transform_2(%arg0: i32) -> (i32, i32) {
    %c0_i32 = arith.constant 0 : i32
    %c0_i32_0 = arith.constant 0 : i32
    %c0_i32_1 = arith.constant 0 : i32
    return %c0_i32, %c0_i32_0 : i32, i32
  }
  func.func @transform_3(%arg0: i32) -> (i32, i32) {
    %c0_i32 = arith.constant 0 : i32
    %c0_i32_0 = arith.constant 0 : i32
    return %arg0, %c0_i32 : i32, i32
  }
}

module attributes {stable_mosaic.version = 11 : i64} {
  func.func @_fc_head_kernel(%arg0: i32, %arg1: i32, %arg2: memref<16x4608xbf16, #tpu.memory_space<vmem>>, %arg3: memref<4608x128xbf16, #tpu.memory_space<vmem>>, %arg4: memref<1x128xf32, #tpu.memory_space<vmem>>, %arg5: memref<128x10xbf16, #tpu.memory_space<vmem>>, %arg6: memref<1x10xf32, #tpu.memory_space<vmem>>, %arg7: memref<16x10xf32, #tpu.memory_space<vmem>>, %arg8: memref<16x128xf32, #tpu.memory_space<vmem>>) attributes {dimension_semantics = [#tpu.dimension_semantics<parallel>, #tpu.dimension_semantics<arbitrary>], iteration_bounds = array<i64: 1, 2>, scalar_prefetch = 0 : i64, scratch_operands = 1 : i64, tpu.core_type = #tpu.core_type<tc>, window_params = [{transform_indices = @transform_0, window_bounds = array<i64: 16, 4608>}, {transform_indices = @transform_1, window_bounds = array<i64: 4608, 128>}, {pipeline_mode = #tpu.pipeline_mode<synchronous>, transform_indices = @transform_2, window_bounds = array<i64: 1, 128>}, {pipeline_mode = #tpu.pipeline_mode<synchronous>, transform_indices = @transform_3, window_bounds = array<i64: 128, 10>}, {pipeline_mode = #tpu.pipeline_mode<synchronous>, transform_indices = @transform_4, window_bounds = array<i64: 1, 10>}, {transform_indices = @transform_5, window_bounds = array<i64: 16, 10>}]} {
    %c0_i32 = arith.constant 0 : i32
    %0 = arith.cmpi eq, %arg1, %c0_i32 : i32
    %1 = arith.extui %0 : i1 to i32
    %c0_i32_0 = arith.constant 0 : i32
    %2 = arith.cmpi ne, %1, %c0_i32_0 : i32
    scf.if %2 {
      %cst_9 = arith.constant 0.000000e+00 : f32
      %12 = vector.broadcast %cst_9 : f32 to vector<16x128xf32>
      %c0_10 = arith.constant 0 : index
      %c0_11 = arith.constant 0 : index
      %13 = vector.load %arg8[%c0_10, %c0_11] : memref<16x128xf32, #tpu.memory_space<vmem>>, vector<16x128xf32>
      tpu.vector_store %arg8[%c0_10, %c0_11], %12 {strides = array<i32>} : memref<16x128xf32, #tpu.memory_space<vmem>>, vector<16x128xf32>,
    } else {
    }
    %c0 = arith.constant 0 : index
    %c0_1 = arith.constant 0 : index
    %3 = vector.load %arg8[%c0, %c0_1] : memref<16x128xf32, #tpu.memory_space<vmem>>, vector<16x128xf32>
    %c0_2 = arith.constant 0 : index
    %c0_3 = arith.constant 0 : index
    %4 = vector.load %arg2[%c0_2, %c0_3] : memref<16x4608xbf16, #tpu.memory_space<vmem>>, vector<16x4608xbf16>
    %c0_4 = arith.constant 0 : index
    %c0_5 = arith.constant 0 : index
    %5 = vector.load %arg3[%c0_4, %c0_5] : memref<4608x128xbf16, #tpu.memory_space<vmem>>, vector<4608x128xbf16>
    %cst = arith.constant dense<0.000000e+00> : vector<16x128xf32>
    %6 = tpu.matmul %4, %5, %cst {dimension_numbers = #tpu.dot_dimension_numbers<[1], [0], [0], [1], [0, 0, 1, 1], [], []>} : vector<16x4608xbf16>, vector<4608x128xbf16>, vector<16x128xf32> -> vector<16x128xf32>
    %7 = arith.addf %3, %6 : vector<16x128xf32>
    %c0_6 = arith.constant 0 : index
    %c0_7 = arith.constant 0 : index
    %8 = vector.load %arg8[%c0_6, %c0_7] : memref<16x128xf32, #tpu.memory_space<vmem>>, vector<16x128xf32>
    tpu.vector_store %arg8[%c0_6, %c0_7], %7 {strides = array<i32>} : memref<16x128xf32, #tpu.memory_space<vmem>>, vector<16x128xf32>,
    %c1_i32 = arith.constant 1 : i32
    %9 = arith.cmpi eq, %arg1, %c1_i32 : i32
    %10 = arith.extui %9 : i1 to i32
    %c0_i32_8 = arith.constant 0 : i32
    %11 = arith.cmpi ne, %10, %c0_i32_8 : i32
    scf.if %11 {
      %c0_9 = arith.constant 0 : index
      %c0_10 = arith.constant 0 : index
      %12 = vector.load %arg8[%c0_9, %c0_10] : memref<16x128xf32, #tpu.memory_space<vmem>>, vector<16x128xf32>
      %c0_11 = arith.constant 0 : index
      %c0_12 = arith.constant 0 : index
      %13 = vector.load %arg4[%c0_11, %c0_12] : memref<1x128xf32, #tpu.memory_space<vmem>>, vector<1x128xf32>
      %14 = vector.broadcast %13 : vector<1x128xf32> to vector<16x128xf32>
      %15 = arith.addf %12, %14 : vector<16x128xf32>
      %cst_13 = arith.constant 0.000000e+00 : f32
      %16 = vector.broadcast %cst_13 : f32 to vector<16x128xf32>
      %17 = arith.maximumf %15, %16 : vector<16x128xf32>
      %18 = arith.truncf %17 : vector<16x128xf32> to vector<16x128xbf16>
      %c0_14 = arith.constant 0 : index
      %c0_15 = arith.constant 0 : index
      %19 = vector.load %arg5[%c0_14, %c0_15] : memref<128x10xbf16, #tpu.memory_space<vmem>>, vector<128x10xbf16>
      %cst_16 = arith.constant dense<0.000000e+00> : vector<16x10xf32>
      %20 = tpu.matmul %18, %19, %cst_16 {dimension_numbers = #tpu.dot_dimension_numbers<[1], [0], [0], [1], [0, 0, 1, 1], [], []>} : vector<16x128xbf16>, vector<128x10xbf16>, vector<16x10xf32> -> vector<16x10xf32>
      %c0_17 = arith.constant 0 : index
      %c0_18 = arith.constant 0 : index
      %21 = vector.load %arg6[%c0_17, %c0_18] : memref<1x10xf32, #tpu.memory_space<vmem>>, vector<1x10xf32>
      %22 = vector.broadcast %21 : vector<1x10xf32> to vector<16x10xf32>
      %23 = arith.addf %20, %22 : vector<16x10xf32>
      %cst_19 = arith.constant dense<0xFF800000> : vector<16xf32>
      %24 = vector.multi_reduction <maximumf>, %23, %cst_19 [1] : vector<16x10xf32> to vector<16xf32>
      %25 = vector.shape_cast %24 : vector<16xf32> to vector<16x1xf32>
      %26 = vector.broadcast %25 : vector<16x1xf32> to vector<16x10xf32>
      %27 = arith.subf %23, %26 : vector<16x10xf32>
      %28 = math.exp %27 : vector<16x10xf32>
      %cst_20 = arith.constant dense<0.000000e+00> : vector<16xf32>
      %29 = vector.multi_reduction <add>, %28, %cst_20 [1] : vector<16x10xf32> to vector<16xf32>
      %30 = vector.shape_cast %29 : vector<16xf32> to vector<16x1xf32>
      %31 = math.log %30 : vector<16x1xf32>
      %32 = vector.broadcast %31 : vector<16x1xf32> to vector<16x10xf32>
      %33 = arith.subf %27, %32 : vector<16x10xf32>
      %c0_21 = arith.constant 0 : index
      %c0_22 = arith.constant 0 : index
      %34 = vector.load %arg7[%c0_21, %c0_22] : memref<16x10xf32, #tpu.memory_space<vmem>>, vector<16x10xf32>
      tpu.vector_store %arg7[%c0_21, %c0_22], %33 {strides = array<i32>} : memref<16x10xf32, #tpu.memory_space<vmem>>, vector<16x10xf32>,
    } else {
    }
    return
  }
  func.func @transform_0(%arg0: i32, %arg1: i32) -> (i32, i32) {
    %c0_i32 = arith.constant 0 : i32
    return %arg0, %arg1 : i32, i32
  }
  func.func @transform_1(%arg0: i32, %arg1: i32) -> (i32, i32) {
    %c0_i32 = arith.constant 0 : i32
    %c0_i32_0 = arith.constant 0 : i32
    return %arg1, %c0_i32 : i32, i32
  }
  func.func @transform_2(%arg0: i32, %arg1: i32) -> (i32, i32) {
    %c0_i32 = arith.constant 0 : i32
    %c0_i32_0 = arith.constant 0 : i32
    %c0_i32_1 = arith.constant 0 : i32
    return %c0_i32, %c0_i32_0 : i32, i32
  }
  func.func @transform_3(%arg0: i32, %arg1: i32) -> (i32, i32) {
    %c0_i32 = arith.constant 0 : i32
    %c0_i32_0 = arith.constant 0 : i32
    %c0_i32_1 = arith.constant 0 : i32
    return %c0_i32, %c0_i32_0 : i32, i32
  }
  func.func @transform_4(%arg0: i32, %arg1: i32) -> (i32, i32) {
    %c0_i32 = arith.constant 0 : i32
    %c0_i32_0 = arith.constant 0 : i32
    %c0_i32_1 = arith.constant 0 : i32
    return %c0_i32, %c0_i32_0 : i32, i32
  }
  func.func @transform_5(%arg0: i32, %arg1: i32) -> (i32, i32) {
    %c0_i32 = arith.constant 0 : i32
    %c0_i32_0 = arith.constant 0 : i32
    return %arg0, %c0_i32 : i32, i32
  }
}

</mosaic_0001>

<llo_original>
// kernel: net_forward.3
$region0: #{net_forward.3}
  #allocation0 [shape = 'u32[]', space=smem, size = 0x4, offset = 0x4, fixed_abs, tag = 'smem constant byte address 0x4 - core index']
  #allocation1 [shape = 'u32[144,128]{1,0:T(1,128)}', space=vmem, size = 0x12000, scoped, tag = 'internal scratch']
  %s0 = inlined_call_operand.vmem [shape: bf16[1360,9], index: 0, kind: input, shape index: {}]
  %s1 = inlined_call_operand.hbm [shape: bf16[9,32], index: 1, kind: input, shape index: {}]
  %s2 = inlined_call_operand.hbm [shape: f32[1,32], index: 2, kind: input, shape index: {}]
  %s3 = inlined_call_operand.vmem [shape: bf16[1360,32], index: 3, kind: output, shape index: {}]
  %s4 = sld [smem:[#allocation0]]
  $region30: #{net_forward.3} parent=0
    _
  %s6 = ssub.s32 1, %s4
  %s7 = scalar_select 0, %s6, %s4
  $region1: #{net_forward.3} parent=0
    #allocation2 [shape = 'u8[4096]{0}', space=vmem, size = 0x1000, scoped, tag = 'input window, operand 1, single buffered']
    #allocation3 [shape = 's32[1]{0}', space=sflag, size = 0x4, scoped, tag = 'scoped memory for net_forward.3']
    #allocation4 [shape = 'u8[512]{0}', space=vmem, size = 0x400, scoped, tag = 'input window, operand 2, single buffered']
    #allocation5 [shape = 's32[1]{0}', space=sflag, size = 0x4, scoped, tag = 'scoped memory for net_forward.3']
    %8 = vsyncpa [#allocation3], 0
    %9 = vsyncpa [#allocation5], 0
    // Predicated region
    $region2: #{net_forward.3} parent=1 // pred_check
      _
    $region3: #{net_forward.3} parent=1 // pred_check_branch
      %11 = sbr.rel (0) target = $region5
    $region4: #{net_forward.3} parent=1 // pred_region
      _
    $region5: #{net_forward.3} parent=1 // pred_fallthru
      _
    // Predicated region
    $region6: #{net_forward.3} parent=1 // pred_check
      _
    $region7: #{net_forward.3} parent=1 // pred_check_branch
      %13 = sbr.rel (0) target = $region9
    $region8: #{net_forward.3} parent=1 // pred_region
      %s15 = ssub.s32 128, 128
      %16 = vsyncadd [#allocation3], %s15
      %s17 = sshll.u32 [#allocation2], 4
      %s18 = int_to_ptr.vmem [resolvable:$true] %s17
      %23 = dma.hbm_to_vmem [thread:$0]  %s1, 128, %s18, [#allocation3], 64, 64, 4
    $region9: #{net_forward.3} parent=1 // pred_fallthru
      _
    // Predicated region
    $region10: #{net_forward.3} parent=1 // pred_check
      _
    $region11: #{net_forward.3} parent=1 // pred_check_branch
      %25 = sbr.rel (0) target = $region13
    $region12: #{net_forward.3} parent=1 // pred_region
      %s27 = ssub.s32 16, 16
      %28 = vsyncadd [#allocation5], %s27
      %s30 = sshll.u32 [#allocation4], 4
      %s31 = int_to_ptr.vmem [resolvable:$true] %s30
      %33 = dma.hbm_to_vmem [thread:$0]  %s2, 16, %s31, [#allocation5]
    $region13: #{net_forward.3} parent=1 // pred_fallthru
      _
    // Predicated region
    $region14: #{net_forward.3} parent=1 // pred_check
      _
    $region15: #{net_forward.3} parent=1 // pred_check_branch
      %35 = sbr.rel (0) target = $region17
    $region16: #{net_forward.3} parent=1 // pred_region
      %36 = dma.done [#allocation3], 128
    $region17: #{net_forward.3} parent=1 // pred_fallthru
      _
    // Predicated region
    $region18: #{net_forward.3} parent=1 // pred_check
      _
    $region19: #{net_forward.3} parent=1 // pred_check_branch
      %38 = sbr.rel (0) target = $region21
    $region20: #{net_forward.3} parent=1 // pred_region
      %39 = dma.done [#allocation5], 16
    $region21: #{net_forward.3} parent=1 // pred_fallthru
      _
    %v41 = vld [vmem:[%s0] sm:$0xf]
    %v42 = vld [vmem:[%s0 + $0x4] sm:$0xf]
    %v43 = vld [vmem:[%s0 + $0x8] sm:$0xf]
    %v44 = vld [vmem:[%s0 + $0xc] sm:$0xf]
    %v45 = vld [vmem:[%s0 + $0x10] sm:$0xf]
    %v46 = vld [vmem:[%s0 + $0x14] sm:$0xf]
    %v47 = vld [vmem:[%s0 + $0x18] sm:$0xf]
    %v48 = vld [vmem:[%s0 + $0x1c] sm:$0xf]
    %v49 = vld [vmem:[%s0 + $0x20] sm:$0xf]
    %v50 = vld [vmem:[%s0 + $0x24] sm:$0xf]
    %v51 = vld [vmem:[%s0 + $0x28] sm:$0xf]
    %v52 = vld [vmem:[%s0 + $0x2c] sm:$0xf]
    %v53 = vld [vmem:[%s0 + $0x30] sm:$0xf]
    %v54 = vld [vmem:[%s0 + $0x34] sm:$0xf]
    %v55 = vld [vmem:[%s0 + $0x38] sm:$0xf]
    %v56 = vld [vmem:[%s0 + $0x3c] sm:$0xf]
    %v57 = vld [vmem:[%s0 + $0x40] sm:$0xf]
    %v58 = vld [vmem:[%s0 + $0x44] sm:$0xf]
    %v59 = vld [vmem:[%s0 + $0x48] sm:$0xf]
    %v60 = vld [vmem:[%s0 + $0x4c] sm:$0xf]
    %v61 = vld [vmem:[%s0 + $0x50] sm:$0xf]
    %v62 = vld [vmem:[%s0 + $0x54] sm:$0xf]
    %v63 = vld [vmem:[%s0 + $0x58] sm:$0xf]
    %v64 = vld [vmem:[%s0 + $0x5c] sm:$0xf]
    %v65 = vld [vmem:[%s0 + $0x60] sm:$0xf]
    %v66 = vld [vmem:[%s0 + $0x64] sm:$0xf]
    %v67 = vld [vmem:[%s0 + $0x68] sm:$0xf]
    %v68 = vld [vmem:[%s0 + $0x6c] sm:$0xf]
    %v69 = vld [vmem:[%s0 + $0x70] sm:$0xf]
    %v70 = vld [vmem:[%s0 + $0x74] sm:$0xf]
    %v71 = vld [vmem:[%s0 + $0x78] sm:$0xf]
    %v72 = vld [vmem:[%s0 + $0x7c] sm:$0xf]
    %v73 = vld [vmem:[%s0 + $0x80] sm:$0xf]
    %v74 = vld [vmem:[%s0 + $0x84] sm:$0xf]
    %v75 = vld [vmem:[%s0 + $0x88] sm:$0xf]
    %v76 = vld [vmem:[%s0 + $0x8c] sm:$0xf]
    %v77 = vld [vmem:[%s0 + $0x90] sm:$0xf]
    %v78 = vld [vmem:[%s0 + $0x94] sm:$0xf]
    %v79 = vld [vmem:[%s0 + $0x98] sm:$0xf]
    %v80 = vld [vmem:[%s0 + $0x9c] sm:$0xf]
    %v81 = vld [vmem:[%s0 + $0xa0] sm:$0xf]
    %v82 = vld [vmem:[%s0 + $0xa4] sm:$0xf]
    %v83 = vld [vmem:[%s0 + $0xa8] sm:$0xf]
    %v84 = vld [vmem:[%s0 + $0xac] sm:$0xf]
    %v85 = vld [vmem:[%s0 + $0xb0] sm:$0xf]
    %v86 = vld [vmem:[%s0 + $0xb4] sm:$0xf]
    %v87 = vld [vmem:[%s0 + $0xb8] sm:$0xf]
    %v88 = vld [vmem:[%s0 + $0xbc] sm:$0xf]
    %v89 = vld [vmem:[%s0 + $0xc0] sm:$0xf]
    %v90 = vld [vmem:[%s0 + $0xc4] sm:$0xf]
    %v91 = vld [vmem:[%s0 + $0xc8] sm:$0xf]
    %v92 = vld [vmem:[%s0 + $0xcc] sm:$0xf]
    %v93 = vld [vmem:[%s0 + $0xd0] sm:$0xf]
    %v94 = vld [vmem:[%s0 + $0xd4] sm:$0xf]
    %v95 = vld [vmem:[%s0 + $0xd8] sm:$0xf]
    %v96 = vld [vmem:[%s0 + $0xdc] sm:$0xf]
    %v97 = vld [vmem:[%s0 + $0xe0] sm:$0xf]
    %v98 = vld [vmem:[%s0 + $0xe4] sm:$0xf]
    %v99 = vld [vmem:[%s0 + $0xe8] sm:$0xf]
    %v100 = vld [vmem:[%s0 + $0xec] sm:$0xf]
    %v101 = vld [vmem:[%s0 + $0xf0] sm:$0xf]
    %v102 = vld [vmem:[%s0 + $0xf4] sm:$0xf]
    %v103 = vld [vmem:[%s0 + $0xf8] sm:$0xf]
    %v104 = vld [vmem:[%s0 + $0xfc] sm:$0xf]
    %v105 = vld [vmem:[%s0 + $0x100] sm:$0xf]
    %v106 = vld [vmem:[%s0 + $0x104] sm:$0xf]
    %v107 = vld [vmem:[%s0 + $0x108] sm:$0xf]
    %v108 = vld [vmem:[%s0 + $0x10c] sm:$0xf]
    %v109 = vld [vmem:[%s0 + $0x110] sm:$0xf]
    %v110 = vld [vmem:[%s0 + $0x114] sm:$0xf]
    %v111 = vld [vmem:[%s0 + $0x118] sm:$0xf]
    %v112 = vld [vmem:[%s0 + $0x11c] sm:$0xf]
    %v113 = vld [vmem:[%s0 + $0x120] sm:$0xf]
    %v114 = vld [vmem:[%s0 + $0x124] sm:$0xf]
    %v115 = vld [vmem:[%s0 + $0x128] sm:$0xf]
    %v116 = vld [vmem:[%s0 + $0x12c] sm:$0xf]
    %v117 = vld [vmem:[%s0 + $0x130] sm:$0xf]
    %v118 = vld [vmem:[%s0 + $0x134] sm:$0xf]
    %v119 = vld [vmem:[%s0 + $0x138] sm:$0xf]
    %v120 = vld [vmem:[%s0 + $0x13c] sm:$0xf]
    %v121 = vld [vmem:[%s0 + $0x140] sm:$0xf]
    %v122 = vld [vmem:[%s0 + $0x144] sm:$0xf]
    %v123 = vld [vmem:[%s0 + $0x148] sm:$0xf]
    %v124 = vld [vmem:[%s0 + $0x14c] sm:$0xf]
    %v125 = vld [vmem:[%s0 + $0x150] sm:$0xf]
    %v126 = vld [vmem:[%s0 + $0x154] sm:$0xf]
    %v127 = vld [vmem:[%s0 + $0x158] sm:$0xf]
    %v128 = vld [vmem:[%s0 + $0x15c] sm:$0xf]
    %v129 = vld [vmem:[%s0 + $0x160] sm:$0xf]
    %v130 = vld [vmem:[%s0 + $0x164] sm:$0xf]
    %v131 = vld [vmem:[%s0 + $0x168] sm:$0xf]
    %v132 = vld [vmem:[%s0 + $0x16c] sm:$0xf]
    %v133 = vld [vmem:[%s0 + $0x170] sm:$0xf]
    %v134 = vld [vmem:[%s0 + $0x174] sm:$0xf]
    %v135 = vld [vmem:[%s0 + $0x178] sm:$0xf]
    %v136 = vld [vmem:[%s0 + $0x17c] sm:$0xf]
    %v137 = vld [vmem:[%s0 + $0x180] sm:$0xf]
    %v138 = vld [vmem:[%s0 + $0x184] sm:$0xf]
    %v139 = vld [vmem:[%s0 + $0x188] sm:$0xf]
    %v140 = vld [vmem:[%s0 + $0x18c] sm:$0xf]
    %v141 = vld [vmem:[%s0 + $0x190] sm:$0xf]
    %v142 = vld [vmem:[%s0 + $0x194] sm:$0xf]
    %v143 = vld [vmem:[%s0 + $0x198] sm:$0xf]
    %v144 = vld [vmem:[%s0 + $0x19c] sm:$0xf]
    %v145 = vld [vmem:[%s0 + $0x1a0] sm:$0xf]
    %v146 = vld [vmem:[%s0 + $0x1a4] sm:$0xf]
    %v147 = vld [vmem:[%s0 + $0x1a8] sm:$0xf]
    %v148 = vld [vmem:[%s0 + $0x1ac] sm:$0xf]
    %v149 = vld [vmem:[%s0 + $0x1b0] sm:$0xf]
    %v150 = vld [vmem:[%s0 + $0x1b4] sm:$0xf]
    %v151 = vld [vmem:[%s0 + $0x1b8] sm:$0xf]
    %v152 = vld [vmem:[%s0 + $0x1bc] sm:$0xf]
    %v153 = vld [vmem:[%s0 + $0x1c0] sm:$0xf]
    %v154 = vld [vmem:[%s0 + $0x1c4] sm:$0xf]
    %v155 = vld [vmem:[%s0 + $0x1c8] sm:$0xf]
    %v156 = vld [vmem:[%s0 + $0x1cc] sm:$0xf]
    %v157 = vld [vmem:[%s0 + $0x1d0] sm:$0xf]
    %v158 = vld [vmem:[%s0 + $0x1d4] sm:$0xf]
    %v159 = vld [vmem:[%s0 + $0x1d8] sm:$0xf]
    %v160 = vld [vmem:[%s0 + $0x1dc] sm:$0xf]
    %v161 = vld [vmem:[%s0 + $0x1e0] sm:$0xf]
    %v162 = vld [vmem:[%s0 + $0x1e4] sm:$0xf]
    %v163 = vld [vmem:[%s0 + $0x1e8] sm:$0xf]
    %v164 = vld [vmem:[%s0 + $0x1ec] sm:$0xf]
    %v165 = vld [vmem:[%s0 + $0x1f0] sm:$0xf]
    %v166 = vld [vmem:[%s0 + $0x1f4] sm:$0xf]
    %v167 = vld [vmem:[%s0 + $0x1f8] sm:$0xf]
    %v168 = vld [vmem:[%s0 + $0x1fc] sm:$0xf]
    %v169 = vld [vmem:[%s0 + $0x200] sm:$0xf]
    %v170 = vld [vmem:[%s0 + $0x204] sm:$0xf]
    %v171 = vld [vmem:[%s0 + $0x208] sm:$0xf]
    %v172 = vld [vmem:[%s0 + $0x20c] sm:$0xf]
    %v173 = vld [vmem:[%s0 + $0x210] sm:$0xf]
    %v174 = vld [vmem:[%s0 + $0x214] sm:$0xf]
    %v175 = vld [vmem:[%s0 + $0x218] sm:$0xf]
    %v176 = vld [vmem:[%s0 + $0x21c] sm:$0xf]
    %v177 = vld [vmem:[%s0 + $0x220] sm:$0xf]
    %v178 = vld [vmem:[%s0 + $0x224] sm:$0xf]
    %v179 = vld [vmem:[%s0 + $0x228] sm:$0xf]
    %v180 = vld [vmem:[%s0 + $0x22c] sm:$0xf]
    %v181 = vld [vmem:[%s0 + $0x230] sm:$0xf]
    %v182 = vld [vmem:[%s0 + $0x234] sm:$0xf]
    %v183 = vld [vmem:[%s0 + $0x238] sm:$0xf]
    %v184 = vld [vmem:[%s0 + $0x23c] sm:$0xf]
    %v185 = vld [vmem:[%s0 + $0x240] sm:$0xf]
    %v186 = vld [vmem:[%s0 + $0x244] sm:$0xf]
    %v187 = vld [vmem:[%s0 + $0x248] sm:$0xf]
    %v188 = vld [vmem:[%s0 + $0x24c] sm:$0xf]
    %v189 = vld [vmem:[%s0 + $0x250] sm:$0xf]
    %v190 = vld [vmem:[%s0 + $0x254] sm:$0xf]
    %v191 = vld [vmem:[%s0 + $0x258] sm:$0xf]
    %v192 = vld [vmem:[%s0 + $0x25c] sm:$0xf]
    %v193 = vld [vmem:[%s0 + $0x260] sm:$0xf]
    %v194 = vld [vmem:[%s0 + $0x264] sm:$0xf]
    %v195 = vld [vmem:[%s0 + $0x268] sm:$0xf]
    %v196 = vld [vmem:[%s0 + $0x26c] sm:$0xf]
    %v197 = vld [vmem:[%s0 + $0x270] sm:$0xf]
    %v198 = vld [vmem:[%s0 + $0x274] sm:$0xf]
    %v199 = vld [vmem:[%s0 + $0x278] sm:$0xf]
    %v200 = vld [vmem:[%s0 + $0x27c] sm:$0xf]
    %v201 = vld [vmem:[%s0 + $0x280] sm:$0xf]
    %v202 = vld [vmem:[%s0 + $0x284] sm:$0xf]
    %v203 = vld [vmem:[%s0 + $0x288] sm:$0xf]
    %v204 = vld [vmem:[%s0 + $0x28c] sm:$0xf]
    %v205 = vld [vmem:[%s0 + $0x290] sm:$0xf]
    %v206 = vld [vmem:[%s0 + $0x294] sm:$0xf]
    %v207 = vld [vmem:[%s0 + $0x298] sm:$0xf]
    %v208 = vld [vmem:[%s0 + $0x29c] sm:$0xf]
    %v209 = vld [vmem:[%s0 + $0x2a0] sm:$0xf]
    %v210 = vld [vmem:[%s0 + $0x2a4] sm:$0xf]
    %v211 = vld [vmem:[#allocation2] sm:$0xf]
    %v212 = vld [vmem:[#allocation2 + $0x4] sm:$0x1]
    %v213 = vld [vmem:[#allocation4] sm:$0x1]
    %v215 = vlaneseq
    %v216 = vshrl.u32 %v215, 7
    %v217 = vsub.s32 0, %v216
    %v218 = vrot.slane %v213, %v217
    %v390 = vunpack.c.l.b16 %v41
    %v391 = vunpack.c.l.b16 %v42
    %v392 = vunpack.c.l.b16 %v43
    %v393 = vunpack.c.l.b16 %v44
    %v394 = vunpack.c.l.b16 %v45
    %v395 = vunpack.c.l.b16 %v46
    %v396 = vunpack.c.l.b16 %v47
    %v397 = vunpack.c.l.b16 %v48
    %v398 = vunpack.c.l.b16 %v49
    %v399 = vunpack.c.l.b16 %v50
    %v400 = vunpack.c.l.b16 %v51
    %v401 = vunpack.c.l.b16 %v52
    %v402 = vunpack.c.l.b16 %v53
    %v403 = vunpack.c.l.b16 %v54
    %v404 = vunpack.c.l.b16 %v55
    %v405 = vunpack.c.l.b16 %v56
    %v406 = vunpack.c.l.b16 %v57
    %v407 = vunpack.c.l.b16 %v58
    %v408 = vunpack.c.l.b16 %v59
    %v409 = vunpack.c.l.b16 %v60
    %v410 = vunpack.c.l.b16 %v61
    %v411 = vunpack.c.l.b16 %v62
    %v412 = vunpack.c.l.b16 %v63
    %v413 = vunpack.c.l.b16 %v64
    %v414 = vunpack.c.l.b16 %v65
    %v415 = vunpack.c.l.b16 %v66
    %v416 = vunpack.c.l.b16 %v67
    %v417 = vunpack.c.l.b16 %v68
    %v418 = vunpack.c.l.b16 %v69
    %v419 = vunpack.c.l.b16 %v70
    %v420 = vunpack.c.l.b16 %v71
    %v421 = vunpack.c.l.b16 %v72
    %v422 = vunpack.c.l.b16 %v73
    %v423 = vunpack.c.l.b16 %v74
    %v424 = vunpack.c.l.b16 %v75
    %v425 = vunpack.c.l.b16 %v76
    %v426 = vunpack.c.l.b16 %v77
    %v427 = vunpack.c.l.b16 %v78
    %v428 = vunpack.c.l.b16 %v79
    %v429 = vunpack.c.l.b16 %v80
    %v430 = vunpack.c.l.b16 %v81
    %v431 = vunpack.c.l.b16 %v82
    %v432 = vunpack.c.l.b16 %v83
    %v433 = vunpack.c.l.b16 %v84
    %v434 = vunpack.c.l.b16 %v85
    %v435 = vunpack.c.l.b16 %v86
    %v436 = vunpack.c.l.b16 %v87
    %v437 = vunpack.c.l.b16 %v88
    %v438 = vunpack.c.l.b16 %v89
    %v439 = vunpack.c.l.b16 %v90
    %v440 = vunpack.c.l.b16 %v91
    %v441 = vunpack.c.l.b16 %v92
    %v442 = vunpack.c.l.b16 %v93
    %v443 = vunpack.c.l.b16 %v94
    %v444 = vunpack.c.l.b16 %v95
    %v445 = vunpack.c.l.b16 %v96
    %v446 = vunpack.c.l.b16 %v97
    %v447 = vunpack.c.l.b16 %v98
    %v448 = vunpack.c.l.b16 %v99
    %v449 = vunpack.c.l.b16 %v100
    %v450 = vunpack.c.l.b16 %v101
    %v451 = vunpack.c.l.b16 %v102
    %v452 = vunpack.c.l.b16 %v103
    %v453 = vunpack.c.l.b16 %v104
    %v454 = vunpack.c.l.b16 %v105
    %v455 = vunpack.c.l.b16 %v106
    %v456 = vunpack.c.l.b16 %v107
    %v457 = vunpack.c.l.b16 %v108
    %v458 = vunpack.c.l.b16 %v109
    %v459 = vunpack.c.l.b16 %v110
    %v460 = vunpack.c.l.b16 %v111
    %v461 = vunpack.c.l.b16 %v112
    %v462 = vunpack.c.l.b16 %v113
    %v463 = vunpack.c.l.b16 %v114
    %v464 = vunpack.c.l.b16 %v115
    %v465 = vunpack.c.l.b16 %v116
    %v466 = vunpack.c.l.b16 %v117
    %v467 = vunpack.c.l.b16 %v118
    %v468 = vunpack.c.l.b16 %v119
    %v469 = vunpack.c.l.b16 %v120
    %v470 = vunpack.c.l.b16 %v121
    %v471 = vunpack.c.l.b16 %v122
    %v472 = vunpack.c.l.b16 %v123
    %v473 = vunpack.c.l.b16 %v124
    %v474 = vunpack.c.l.b16 %v125
    %v475 = vunpack.c.l.b16 %v126
    %v476 = vunpack.c.l.b16 %v127
    %v477 = vunpack.c.l.b16 %v128
    %v478 = vunpack.c.l.b16 %v129
    %v479 = vunpack.c.l.b16 %v130
    %v480 = vunpack.c.l.b16 %v131
    %v481 = vunpack.c.l.b16 %v132
    %v482 = vunpack.c.l.b16 %v133
    %v483 = vunpack.c.l.b16 %v134
    %v484 = vunpack.c.l.b16 %v135
    %v485 = vunpack.c.l.b16 %v136
    %v486 = vunpack.c.l.b16 %v137
    %v487 = vunpack.c.l.b16 %v138
    %v488 = vunpack.c.l.b16 %v139
    %v489 = vunpack.c.l.b16 %v140
    %v490 = vunpack.c.l.b16 %v141
    %v491 = vunpack.c.l.b16 %v142
    %v492 = vunpack.c.l.b16 %v143
    %v493 = vunpack.c.l.b16 %v144
    %v494 = vunpack.c.l.b16 %v145
    %v495 = vunpack.c.l.b16 %v146
    %v496 = vunpack.c.l.b16 %v147
    %v497 = vunpack.c.l.b16 %v148
    %v498 = vunpack.c.l.b16 %v149
    %v499 = vunpack.c.l.b16 %v150
    %v500 = vunpack.c.l.b16 %v151
    %v501 = vunpack.c.l.b16 %v152
    %v502 = vunpack.c.l.b16 %v153
    %v503 = vunpack.c.l.b16 %v154
    %v504 = vunpack.c.l.b16 %v155
    %v505 = vunpack.c.l.b16 %v156
    %v506 = vunpack.c.l.b16 %v157
    %v507 = vunpack.c.l.b16 %v158
    %v508 = vunpack.c.l.b16 %v159
    %v509 = vunpack.c.l.b16 %v160
    %v510 = vunpack.c.l.b16 %v161
    %v511 = vunpack.c.l.b16 %v162
    %v512 = vunpack.c.l.b16 %v163
    %v513 = vunpack.c.l.b16 %v164
    %v514 = vunpack.c.l.b16 %v165
    %v515 = vunpack.c.l.b16 %v166
    %v516 = vunpack.c.l.b16 %v167
    %v517 = vunpack.c.l.b16 %v168
    %v518 = vunpack.c.l.b16 %v169
    %v519 = vunpack.c.l.b16 %v170
    %v520 = vunpack.c.l.b16 %v171
    %v521 = vunpack.c.l.b16 %v172
    %v522 = vunpack.c.l.b16 %v173
    %v523 = vunpack.c.l.b16 %v174
    %v524 = vunpack.c.l.b16 %v175
    %v525 = vunpack.c.l.b16 %v176
    %v526 = vunpack.c.l.b16 %v177
    %v527 = vunpack.c.l.b16 %v178
    %v528 = vunpack.c.l.b16 %v179
    %v529 = vunpack.c.l.b16 %v180
    %v530 = vunpack.c.l.b16 %v181
    %v531 = vunpack.c.l.b16 %v182
    %v532 = vunpack.c.l.b16 %v183
    %v533 = vunpack.c.l.b16 %v184
    %v534 = vunpack.c.l.b16 %v185
    %v535 = vunpack.c.l.b16 %v186
    %v536 = vunpack.c.l.b16 %v187
    %v537 = vunpack.c.l.b16 %v188
    %v538 = vunpack.c.l.b16 %v189
    %v539 = vunpack.c.l.b16 %v190
    %v540 = vunpack.c.l.b16 %v191
    %v541 = vunpack.c.l.b16 %v192
    %v542 = vunpack.c.l.b16 %v193
    %v543 = vunpack.c.l.b16 %v194
    %v544 = vunpack.c.l.b16 %v195
    %v545 = vunpack.c.l.b16 %v196
    %v546 = vunpack.c.l.b16 %v197
    %v547 = vunpack.c.l.b16 %v198
    %v548 = vunpack.c.l.b16 %v199
    %v549 = vunpack.c.l.b16 %v200
    %v550 = vunpack.c.l.b16 %v201
    %v551 = vunpack.c.l.b16 %v202
    %v552 = vunpack.c.l.b16 %v203
    %v553 = vunpack.c.l.b16 %v204
    %v554 = vunpack.c.l.b16 %v205
    %v555 = vunpack.c.l.b16 %v206
    %v556 = vunpack.c.l.b16 %v207
    %v557 = vunpack.c.l.b16 %v208
    %v558 = vunpack.c.l.b16 %v209
    %v559 = vunpack.c.l.b16 %v210
    %v560 = vpack.c.b16 %v391, %v390
    %v561 = vpack.c.b16 %v393, %v392
    %v562 = vpack.c.b16 %v395, %v394
    %v563 = vpack.c.b16 %v397, %v396
    %v564 = vpack.c.b16 %v399, %v398
    %v565 = vpack.c.b16 %v401, %v400
    %v566 = vpack.c.b16 %v403, %v402
    %v567 = vpack.c.b16 %v405, %v404
    %v568 = vpack.c.b16 %v407, %v406
    %v569 = vpack.c.b16 %v409, %v408
    %v570 = vpack.c.b16 %v411, %v410
    %v571 = vpack.c.b16 %v413, %v412
    %v572 = vpack.c.b16 %v415, %v414
    %v573 = vpack.c.b16 %v417, %v416
    %v574 = vpack.c.b16 %v419, %v418
    %v575 = vpack.c.b16 %v421, %v420
    %v576 = vpack.c.b16 %v423, %v422
    %v577 = vpack.c.b16 %v425, %v424
    %v578 = vpack.c.b16 %v427, %v426
    %v579 = vpack.c.b16 %v429, %v428
    %v580 = vpack.c.b16 %v431, %v430
    %v581 = vpack.c.b16 %v433, %v432
    %v582 = vpack.c.b16 %v435, %v434
    %v583 = vpack.c.b16 %v437, %v436
    %v584 = vpack.c.b16 %v439, %v438
    %v585 = vpack.c.b16 %v441, %v440
    %v586 = vpack.c.b16 %v443, %v442
    %v587 = vpack.c.b16 %v445, %v444
    %v588 = vpack.c.b16 %v447, %v446
    %v589 = vpack.c.b16 %v449, %v448
    %v590 = vpack.c.b16 %v451, %v450
    %v591 = vpack.c.b16 %v453, %v452
    %v592 = vpack.c.b16 %v455, %v454
    %v593 = vpack.c.b16 %v457, %v456
    %v594 = vpack.c.b16 %v459, %v458
    %v595 = vpack.c.b16 %v461, %v460
    %v596 = vpack.c.b16 %v463, %v462
    %v597 = vpack.c.b16 %v465, %v464
    %v598 = vpack.c.b16 %v467, %v466
    %v599 = vpack.c.b16 %v469, %v468
    %v600 = vpack.c.b16 %v471, %v470
    %v601 = vpack.c.b16 %v473, %v472
    %v602 = vpack.c.b16 %v475, %v474
    %v603 = vpack.c.b16 %v477, %v476
    %v604 = vpack.c.b16 %v479, %v478
    %v605 = vpack.c.b16 %v481, %v480
    %v606 = vpack.c.b16 %v483, %v482
    %v607 = vpack.c.b16 %v485, %v484
    %v608 = vpack.c.b16 %v487, %v486
    %v609 = vpack.c.b16 %v489, %v488
    %v610 = vpack.c.b16 %v491, %v490
    %v611 = vpack.c.b16 %v493, %v492
    %v612 = vpack.c.b16 %v495, %v494
    %v613 = vpack.c.b16 %v497, %v496
    %v614 = vpack.c.b16 %v499, %v498
    %v615 = vpack.c.b16 %v501, %v500
    %v616 = vpack.c.b16 %v503, %v502
    %v617 = vpack.c.b16 %v505, %v504
    %v618 = vpack.c.b16 %v507, %v506
    %v619 = vpack.c.b16 %v509, %v508
    %v620 = vpack.c.b16 %v511, %v510
    %v621 = vpack.c.b16 %v513, %v512
    %v622 = vpack.c.b16 %v515, %v514
    %v623 = vpack.c.b16 %v517, %v516
    %v624 = vpack.c.b16 %v519, %v518
    %v625 = vpack.c.b16 %v521, %v520
    %v626 = vpack.c.b16 %v523, %v522
    %v627 = vpack.c.b16 %v525, %v524
    %v628 = vpack.c.b16 %v527, %v526
    %v629 = vpack.c.b16 %v529, %v528
    %v630 = vpack.c.b16 %v531, %v530
    %v631 = vpack.c.b16 %v533, %v532
    %v632 = vpack.c.b16 %v535, %v534
    %v633 = vpack.c.b16 %v537, %v536
    %v634 = vpack.c.b16 %v539, %v538
    %v635 = vpack.c.b16 %v541, %v540
    %v636 = vpack.c.b16 %v543, %v542
    %v637 = vpack.c.b16 %v545, %v544
    %v638 = vpack.c.b16 %v547, %v546
    %v639 = vpack.c.b16 %v549, %v548
    %v640 = vpack.c.b16 %v551, %v550
    %v641 = vpack.c.b16 %v553, %v552
    %v642 = vpack.c.b16 %v555, %v554
    %v643 = vpack.c.b16 %v557, %v556
    %v644 = vpack.c.b16 %v559, %v558
    %v647 = vunpack.c.l.b16 %v211
    %v648 = vunpack.c.l.b16 %v212
    %v649 = vpack.c.b16 %v648, %v647
    %vm650 = vcmask 72704
    %v652 = vsel %vm650, %v560, 0
    %v655 = vsel %vm650, %v561, 0
    %v658 = vsel %vm650, %v562, 0
    %v661 = vsel %vm650, %v563, 0
    %v664 = vsel %vm650, %v564, 0
    %v667 = vsel %vm650, %v565, 0
    %v670 = vsel %vm650, %v566, 0
    %v673 = vsel %vm650, %v567, 0
    %v676 = vsel %vm650, %v568, 0
    %v679 = vsel %vm650, %v569, 0
    %v682 = vsel %vm650, %v570, 0
    %v685 = vsel %vm650, %v571, 0
    %v688 = vsel %vm650, %v572, 0
    %v691 = vsel %vm650, %v573, 0
    %v694 = vsel %vm650, %v574, 0
    %v697 = vsel %vm650, %v575, 0
    %v700 = vsel %vm650, %v576, 0
    %v703 = vsel %vm650, %v577, 0
    %v706 = vsel %vm650, %v578, 0
    %v709 = vsel %vm650, %v579, 0
    %v712 = vsel %vm650, %v580, 0
    %v715 = vsel %vm650, %v581, 0
    %v718 = vsel %vm650, %v582, 0
    %v721 = vsel %vm650, %v583, 0
    %v724 = vsel %vm650, %v584, 0
    %v727 = vsel %vm650, %v585, 0
    %v730 = vsel %vm650, %v586, 0
    %v733 = vsel %vm650, %v587, 0
    %v736 = vsel %vm650, %v588, 0
    %v739 = vsel %vm650, %v589, 0
    %v742 = vsel %vm650, %v590, 0
    %v745 = vsel %vm650, %v591, 0
    %v748 = vsel %vm650, %v592, 0
    %v751 = vsel %vm650, %v593, 0
    %v754 = vsel %vm650, %v594, 0
    %v757 = vsel %vm650, %v595, 0
    %v760 = vsel %vm650, %v596, 0
    %v763 = vsel %vm650, %v597, 0
    %v766 = vsel %vm650, %v598, 0
    %v769 = vsel %vm650, %v599, 0
    %v772 = vsel %vm650, %v600, 0
    %v775 = vsel %vm650, %v601, 0
    %v778 = vsel %vm650, %v602, 0
    %v781 = vsel %vm650, %v603, 0
    %v784 = vsel %vm650, %v604, 0
    %v787 = vsel %vm650, %v605, 0
    %v790 = vsel %vm650, %v606, 0
    %v793 = vsel %vm650, %v607, 0
    %v796 = vsel %vm650, %v608, 0
    %v799 = vsel %vm650, %v609, 0
    %v802 = vsel %vm650, %v610, 0
    %v805 = vsel %vm650, %v611, 0
    %v808 = vsel %vm650, %v612, 0
    %v811 = vsel %vm650, %v613, 0
    %v814 = vsel %vm650, %v614, 0
    %v817 = vsel %vm650, %v615, 0
    %v820 = vsel %vm650, %v616, 0
    %v823 = vsel %vm650, %v617, 0
    %v826 = vsel %vm650, %v618, 0
    %v829 = vsel %vm650, %v619, 0
    %v832 = vsel %vm650, %v620, 0
    %v835 = vsel %vm650, %v621, 0
    %v838 = vsel %vm650, %v622, 0
    %v841 = vsel %vm650, %v623, 0
    %v844 = vsel %vm650, %v624, 0
    %v847 = vsel %vm650, %v625, 0
    %v850 = vsel %vm650, %v626, 0
    %v853 = vsel %vm650, %v627, 0
    %v856 = vsel %vm650, %v628, 0
    %v859 = vsel %vm650, %v629, 0
    %v862 = vsel %vm650, %v630, 0
    %v865 = vsel %vm650, %v631, 0
    %v868 = vsel %vm650, %v632, 0
    %v871 = vsel %vm650, %v633, 0
    %v874 = vsel %vm650, %v634, 0
    %v877 = vsel %vm650, %v635, 0
    %v880 = vsel %vm650, %v636, 0
    %v883 = vsel %vm650, %v637, 0
    %v886 = vsel %vm650, %v638, 0
    %v889 = vsel %vm650, %v639, 0
    %v892 = vsel %vm650, %v640, 0
    %v895 = vsel %vm650, %v641, 0
    %v898 = vsel %vm650, %v642, 0
    %v901 = vsel %vm650, %v643, 0
    %v904 = vsel %vm650, %v644, 0
    %vm906 = vcmask 1043456
    %vm907 = vcmask 1044480
    %v908 = vsel %vm906, 4294967295, 65535
    %v909 = vsel %vm907, %v908, 0
    %v911 = vand.u32 %v649, %v909
    %913 = vmatprep.subr.bf16.mxu0 0
    %914 = vmatpush1.bf16.msra.mxu0 %v911
    %915 = vmatprep.subr.bf16.mxu0 0
    %916 = vmatpush1.bf16.msra.mxu0 0
    %917 = vmatprep.subr.bf16.mxu0 0
    %918 = vmatpush1.bf16.msra.mxu0 0
    %919 = vmatprep.subr.bf16.mxu0 0
    %920 = vmatpush1.bf16.msra.mxu0 0
    %921 = vmatprep.subr.bf16.mxu0 0
    %922 = vmatpush1.bf16.msra.mxu0 0
    %923 = vmatprep.subr.bf16.mxu0 0
    %924 = vmatpush1.bf16.msra.mxu0 0
    %925 = vmatprep.subr.bf16.mxu0 0
    %926 = vmatpush1.bf16.msra.mxu0 0
    %927 = vmatprep.subr.bf16.mxu0 0
    %928 = vmatpush1.bf16.msra.mxu0 0
    %929 = vmatprep.subr.bf16.mxu0 0
    %930 = vmatpush1.bf16.msra.mxu0 0
    %931 = vmatprep.subr.bf16.mxu0 0
    %932 = vmatpush1.bf16.msra.mxu0 0
    %933 = vmatprep.subr.bf16.mxu0 0
    %934 = vmatpush1.bf16.msra.mxu0 0
    %935 = vmatprep.subr.bf16.mxu0 0
    %936 = vmatpush1.bf16.msra.mxu0 0
    %937 = vmatprep.subr.bf16.mxu0 0
    %938 = vmatpush1.bf16.msra.mxu0 0
    %939 = vmatprep.subr.bf16.mxu0 0
    %940 = vmatpush1.bf16.msra.mxu0 0
    %941 = vmatprep.subr.bf16.mxu0 0
    %942 = vmatpush1.bf16.msra.mxu0 0
    %943 = vmatprep.subr.bf16.mxu0 0
    %944 = vmatpush1.bf16.msra.mxu0 0
    %945 = vmatprep.mubr.bf16.mxu0 0
    %946 = vmatmul.mubr.bf16.gmra.mrb[0].mxu0 %v652
    %v947 = vpop.f32.mrb[0].mxu0
    %v948 = vadd.f32 %v218, %v947
    %v949 = vpop.f32.mrb[0].mxu0
    %v950 = vpop.f32.mrb[0].mxu0
    %v951 = vadd.f32 %v218, %v950
    %v952 = vpop.f32.mrb[0].mxu0
    %953 = vmatprep.mubr.bf16.mxu0 0
    %954 = vmatmul.mubr.bf16.gmra.mrb[0].mxu0 %v655
    %v955 = vpop.f32.mrb[0].mxu0
    %v956 = vadd.f32 %v218, %v955
    %v957 = vpop.f32.mrb[0].mxu0
    %v958 = vpop.f32.mrb[0].mxu0
    %v959 = vadd.f32 %v218, %v958
    %v960 = vpop.f32.mrb[0].mxu0
    %961 = vmatprep.mubr.bf16.mxu0 0
    %962 = vmatmul.mubr.bf16.gmra.mrb[0].mxu0 %v658
    %v963 = vpop.f32.mrb[0].mxu0
    %v964 = vadd.f32 %v218, %v963
    %v965 = vpop.f32.mrb[0].mxu0
    %v966 = vpop.f32.mrb[0].mxu0
    %v967 = vadd.f32 %v218, %v966
    %v968 = vpop.f32.mrb[0].mxu0
    %969 = vmatprep.mubr.bf16.mxu0 0
    %970 = vmatmul.mubr.bf16.gmra.mrb[0].mxu0 %v661
    %v971 = vpop.f32.mrb[0].mxu0
    %v972 = vadd.f32 %v218, %v971
    %v973 = vpop.f32.mrb[0].mxu0
    %v974 = vpop.f32.mrb[0].mxu0
    %v975 = vadd.f32 %v218, %v974
    %v976 = vpop.f32.mrb[0].mxu0
    %977 = vmatprep.mubr.bf16.mxu0 0
    %978 = vmatmul.mubr.bf16.gmra.mrb[0].mxu0 %v664
    %v979 = vpop.f32.mrb[0].mxu0
    %v980 = vadd.f32 %v218, %v979
    %v981 = vpop.f32.mrb[0].mxu0
    %v982 = vpop.f32.mrb[0].mxu0
    %v983 = vadd.f32 %v218, %v982
    %v984 = vpop.f32.mrb[0].mxu0
    %985 = vmatprep.mubr.bf16.mxu0 0
    %986 = vmatmul.mubr.bf16.gmra.mrb[0].mxu0 %v667
    %v987 = vpop.f32.mrb[0].mxu0
    %v988 = vadd.f32 %v218, %v987
    %v989 = vpop.f32.mrb[0].mxu0
    %v990 = vpop.f32.mrb[0].mxu0
    %v991 = vadd.f32 %v218, %v990
    %v992 = vpop.f32.mrb[0].mxu0
    %993 = vmatprep.mubr.bf16.mxu0 0
    %994 = vmatmul.mubr.bf16.gmra.mrb[0].mxu0 %v670
    %v995 = vpop.f32.mrb[0].mxu0
    %v996 = vadd.f32 %v218, %v995
    %v997 = vpop.f32.mrb[0].mxu0
    %v998 = vpop.f32.mrb[0].mxu0
    %v999 = vadd.f32 %v218, %v998
    %v1000 = vpop.f32.mrb[0].mxu0
    %1001 = vmatprep.mubr.bf16.mxu0 0
    %1002 = vmatmul.mubr.bf16.gmra.mrb[0].mxu0 %v673
    %v1003 = vpop.f32.mrb[0].mxu0
    %v1004 = vadd.f32 %v218, %v1003
    %v1005 = vpop.f32.mrb[0].mxu0
    %v1006 = vpop.f32.mrb[0].mxu0
    %v1007 = vadd.f32 %v218, %v1006
    %v1008 = vpop.f32.mrb[0].mxu0
    %1009 = vmatprep.mubr.bf16.mxu0 0
    %1010 = vmatmul.mubr.bf16.gmra.mrb[0].mxu0 %v676
    %v1011 = vpop.f32.mrb[0].mxu0
    %v1012 = vadd.f32 %v218, %v1011
    %v1013 = vpop.f32.mrb[0].mxu0
    %v1014 = vpop.f32.mrb[0].mxu0
    %v1015 = vadd.f32 %v218, %v1014
    %v1016 = vpop.f32.mrb[0].mxu0
    %1017 = vmatprep.mubr.bf16.mxu0 0
    %1018 = vmatmul.mubr.bf16.gmra.mrb[0].mxu0 %v679
    %v1019 = vpop.f32.mrb[0].mxu0
    %v1020 = vadd.f32 %v218, %v1019
    %v1021 = vpop.f32.mrb[0].mxu0
    %v1022 = vpop.f32.mrb[0].mxu0
    %v1023 = vadd.f32 %v218, %v1022
    %v1024 = vpop.f32.mrb[0].mxu0
    %1025 = vmatprep.mubr.bf16.mxu0 0
    %1026 = vmatmul.mubr.bf16.gmra.mrb[0].mxu0 %v682
    %v1027 = vpop.f32.mrb[0].mxu0
    %v1028 = vadd.f32 %v218, %v1027
    %v1029 = vpop.f32.mrb[0].mxu0
    %v1030 = vpop.f32.mrb[0].mxu0
    %v1031 = vadd.f32 %v218, %v1030
    %v1032 = vpop.f32.mrb[0].mxu0
    %1033 = vmatprep.mubr.bf16.mxu0 0
    %1034 = vmatmul.mubr.bf16.gmra.mrb[0].mxu0 %v685
    %v1035 = vpop.f32.mrb[0].mxu0
    %v1036 = vadd.f32 %v218, %v1035
    %v1037 = vpop.f32.mrb[0].mxu0
    %v1038 = vpop.f32.mrb[0].mxu0
    %v1039 = vadd.f32 %v218, %v1038
    %v1040 = vpop.f32.mrb[0].mxu0
    %1041 = vmatprep.mubr.bf16.mxu0 0
    %1042 = vmatmul.mubr.bf16.gmra.mrb[0].mxu0 %v688
    %v1043 = vpop.f32.mrb[0].mxu0
    %v1044 = vadd.f32 %v218, %v1043
    %v1045 = vpop.f32.mrb[0].mxu0
    %v1046 = vpop.f32.mrb[0].mxu0
    %v1047 = vadd.f32 %v218, %v1046
    %v1048 = vpop.f32.mrb[0].mxu0
    %1049 = vmatprep.mubr.bf16.mxu0 0
    %1050 = vmatmul.mubr.bf16.gmra.mrb[0].mxu0 %v691
    %v1051 = vpop.f32.mrb[0].mxu0
    %v1052 = vadd.f32 %v218, %v1051
    %v1053 = vpop.f32.mrb[0].mxu0
    %v1054 = vpop.f32.mrb[0].mxu0
    %v1055 = vadd.f32 %v218, %v1054
    %v1056 = vpop.f32.mrb[0].mxu0
    %1057 = vmatprep.mubr.bf16.mxu0 0
    %1058 = vmatmul.mubr.bf16.gmra.mrb[0].mxu0 %v694
    %v1059 = vpop.f32.mrb[0].mxu0
    %v1060 = vadd.f32 %v218, %v1059
    %v1061 = vpop.f32.mrb[0].mxu0
    %v1062 = vpop.f32.mrb[0].mxu0
    %v1063 = vadd.f32 %v218, %v1062
    %v1064 = vpop.f32.mrb[0].mxu0
    %1065 = vmatprep.mubr.bf16.mxu0 0
    %1066 = vmatmul.mubr.bf16.gmra.mrb[0].mxu0 %v697
    %v1067 = vpop.f32.mrb[0].mxu0
    %v1068 = vadd.f32 %v218, %v1067
    %v1069 = vpop.f32.mrb[0].mxu0
    %v1070 = vpop.f32.mrb[0].mxu0
    %v1071 = vadd.f32 %v218, %v1070
    %v1072 = vpop.f32.mrb[0].mxu0
    %1073 = vmatprep.mubr.bf16.mxu0 0
    %1074 = vmatmul.mubr.bf16.gmra.mrb[0].mxu0 %v700
    %v1075 = vpop.f32.mrb[0].mxu0
    %v1076 = vadd.f32 %v218, %v1075
    %v1077 = vpop.f32.mrb[0].mxu0
    %v1078 = vpop.f32.mrb[0].mxu0
    %v1079 = vadd.f32 %v218, %v1078
    %v1080 = vpop.f32.mrb[0].mxu0
    %1081 = vmatprep.mubr.bf16.mxu0 0
    %1082 = vmatmul.mubr.bf16.gmra.mrb[0].mxu0 %v703
    %v1083 = vpop.f32.mrb[0].mxu0
    %v1084 = vadd.f32 %v218, %v1083
    %v1085 = vpop.f32.mrb[0].mxu0
    %v1086 = vpop.f32.mrb[0].mxu0
    %v1087 = vadd.f32 %v218, %v1086
    %v1088 = vpop.f32.mrb[0].mxu0
    %1089 = vmatprep.mubr.bf16.mxu0 0
    %1090 = vmatmul.mubr.bf16.gmra.mrb[0].mxu0 %v706
    %v1091 = vpop.f32.mrb[0].mxu0
    %v1092 = vadd.f32 %v218, %v1091
    %v1093 = vpop.f32.mrb[0].mxu0
    %v1094 = vpop.f32.mrb[0].mxu0
    %v1095 = vadd.f32 %v218, %v1094
    %v1096 = vpop.f32.mrb[0].mxu0
    %1097 = vmatprep.mubr.bf16.mxu0 0
    %1098 = vmatmul.mubr.bf16.gmra.mrb[0].mxu0 %v709
    %v1099 = vpop.f32.mrb[0].mxu0
    %v1100 = vadd.f32 %v218, %v1099
    %v1101 = vpop.f32.mrb[0].mxu0
    %v1102 = vpop.f32.mrb[0].mxu0
    %v1103 = vadd.f32 %v218, %v1102
    %v1104 = vpop.f32.mrb[0].mxu0
    %1105 = vmatprep.mubr.bf16.mxu0 0
    %1106 = vmatmul.mubr.bf16.gmra.mrb[0].mxu0 %v712
    %v1107 = vpop.f32.mrb[0].mxu0
    %v1108 = vadd.f32 %v218, %v1107
    %v1109 = vpop.f32.mrb[0].mxu0
    %v1110 = vpop.f32.mrb[0].mxu0
    %v1111 = vadd.f32 %v218, %v1110
    %v1112 = vpop.f32.mrb[0].mxu0
    %1113 = vmatprep.mubr.bf16.mxu0 0
    %1114 = vmatmul.mubr.bf16.gmra.mrb[0].mxu0 %v715
    %v1115 = vpop.f32.mrb[0].mxu0
    %v1116 = vadd.f32 %v218, %v1115
    %v1117 = vpop.f32.mrb[0].mxu0
    %v1118 = vpop.f32.mrb[0].mxu0
    %v1119 = vadd.f32 %v218, %v1118
    %v1120 = vpop.f32.mrb[0].mxu0
    %1121 = vmatprep.mubr.bf16.mxu0 0
    %1122 = vmatmul.mubr.bf16.gmra.mrb[0].mxu0 %v718
    %v1123 = vpop.f32.mrb[0].mxu0
    %v1124 = vadd.f32 %v218, %v1123
    %v1125 = vpop.f32.mrb[0].mxu0
    %v1126 = vpop.f32.mrb[0].mxu0
    %v1127 = vadd.f32 %v218, %v1126
    %v1128 = vpop.f32.mrb[0].mxu0
    %1129 = vmatprep.mubr.bf16.mxu0 0
    %1130 = vmatmul.mubr.bf16.gmra.mrb[0].mxu0 %v721
    %v1131 = vpop.f32.mrb[0].mxu0
    %v1132 = vadd.f32 %v218, %v1131
    %v1133 = vpop.f32.mrb[0].mxu0
    %v1134 = vpop.f32.mrb[0].mxu0
    %v1135 = vadd.f32 %v218, %v1134
    %v1136 = vpop.f32.mrb[0].mxu0
    %1137 = vmatprep.mubr.bf16.mxu0 0
    %1138 = vmatmul.mubr.bf16.gmra.mrb[0].mxu0 %v724
    %v1139 = vpop.f32.mrb[0].mxu0
    %v1140 = vadd.f32 %v218, %v1139
    %v1141 = vpop.f32.mrb[0].mxu0
    %v1142 = vpop.f32.mrb[0].mxu0
    %v1143 = vadd.f32 %v218, %v1142
    %v1144 = vpop.f32.mrb[0].mxu0
    %1145 = vmatprep.mubr.bf16.mxu0 0
    %1146 = vmatmul.mubr.bf16.gmra.mrb[0].mxu0 %v727
    %v1147 = vpop.f32.mrb[0].mxu0
    %v1148 = vadd.f32 %v218, %v1147
    %v1149 = vpop.f32.mrb[0].mxu0
    %v1150 = vpop.f32.mrb[0].mxu0
    %v1151 = vadd.f32 %v218, %v1150
    %v1152 = vpop.f32.mrb[0].mxu0
    %1153 = vmatprep.mubr.bf16.mxu0 0
    %1154 = vmatmul.mubr.bf16.gmra.mrb[0].mxu0 %v730
    %v1155 = vpop.f32.mrb[0].mxu0
    %v1156 = vadd.f32 %v218, %v1155
    %v1157 = vpop.f32.mrb[0].mxu0
    %v1158 = vpop.f32.mrb[0].mxu0
    %v1159 = vadd.f32 %v218, %v1158
    %v1160 = vpop.f32.mrb[0].mxu0
    %1161 = vmatprep.mubr.bf16.mxu0 0
    %1162 = vmatmul.mubr.bf16.gmra.mrb[0].mxu0 %v733
    %v1163 = vpop.f32.mrb[0].mxu0
    %v1164 = vadd.f32 %v218, %v1163
    %v1165 = vpop.f32.mrb[0].mxu0
    %v1166 = vpop.f32.mrb[0].mxu0
    %v1167 = vadd.f32 %v218, %v1166
    %v1168 = vpop.f32.mrb[0].mxu0
    %1169 = vmatprep.mubr.bf16.mxu0 0
    %1170 = vmatmul.mubr.bf16.gmra.mrb[0].mxu0 %v736
    %v1171 = vpop.f32.mrb[0].mxu0
    %v1172 = vadd.f32 %v218, %v1171
    %v1173 = vpop.f32.mrb[0].mxu0
    %v1174 = vpop.f32.mrb[0].mxu0
    %v1175 = vadd.f32 %v218, %v1174
    %v1176 = vpop.f32.mrb[0].mxu0
    %1177 = vmatprep.mubr.bf16.mxu0 0
    %1178 = vmatmul.mubr.bf16.gmra.mrb[0].mxu0 %v739
    %v1179 = vpop.f32.mrb[0].mxu0
    %v1180 = vadd.f32 %v218, %v1179
    %v1181 = vpop.f32.mrb[0].mxu0
    %v1182 = vpop.f32.mrb[0].mxu0
    %v1183 = vadd.f32 %v218, %v1182
    %v1184 = vpop.f32.mrb[0].mxu0
    %1185 = vmatprep.mubr.bf16.mxu0 0
    %1186 = vmatmul.mubr.bf16.gmra.mrb[0].mxu0 %v742
    %v1187 = vpop.f32.mrb[0].mxu0
    %v1188 = vadd.f32 %v218, %v1187
    %v1189 = vpop.f32.mrb[0].mxu0
    %v1190 = vpop.f32.mrb[0].mxu0
    %v1191 = vadd.f32 %v218, %v1190
    %v1192 = vpop.f32.mrb[0].mxu0
    %1193 = vmatprep.mubr.bf16.mxu0 0
    %1194 = vmatmul.mubr.bf16.gmra.mrb[0].mxu0 %v745
    %v1195 = vpop.f32.mrb[0].mxu0
    %v1196 = vadd.f32 %v218, %v1195
    %v1197 = vpop.f32.mrb[0].mxu0
    %v1198 = vpop.f32.mrb[0].mxu0
    %v1199 = vadd.f32 %v218, %v1198
    %v1200 = vpop.f32.mrb[0].mxu0
    %1201 = vmatprep.mubr.bf16.mxu0 0
    %1202 = vmatmul.mubr.bf16.gmra.mrb[0].mxu0 %v748
    %v1203 = vpop.f32.mrb[0].mxu0
    %v1204 = vadd.f32 %v218, %v1203
    %v1205 = vpop.f32.mrb[0].mxu0
    %v1206 = vpop.f32.mrb[0].mxu0
    %v1207 = vadd.f32 %v218, %v1206
    %v1208 = vpop.f32.mrb[0].mxu0
    %1209 = vmatprep.mubr.bf16.mxu0 0
    %1210 = vmatmul.mubr.bf16.gmra.mrb[0].mxu0 %v751
    %v1211 = vpop.f32.mrb[0].mxu0
    %v1212 = vadd.f32 %v218, %v1211
    %v1213 = vpop.f32.mrb[0].mxu0
    %v1214 = vpop.f32.mrb[0].mxu0
    %v1215 = vadd.f32 %v218, %v1214
    %v1216 = vpop.f32.mrb[0].mxu0
    %1217 = vmatprep.mubr.bf16.mxu0 0
    %1218 = vmatmul.mubr.bf16.gmra.mrb[0].mxu0 %v754
    %v1219 = vpop.f32.mrb[0].mxu0
    %v1220 = vadd.f32 %v218, %v1219
    %v1221 = vpop.f32.mrb[0].mxu0
    %v1222 = vpop.f32.mrb[0].mxu0
    %v1223 = vadd.f32 %v218, %v1222
    %v1224 = vpop.f32.mrb[0].mxu0
    %1225 = vmatprep.mubr.bf16.mxu0 0
    %1226 = vmatmul.mubr.bf16.gmra.mrb[0].mxu0 %v757
    %v1227 = vpop.f32.mrb[0].mxu0
    %v1228 = vadd.f32 %v218, %v1227
    %v1229 = vpop.f32.mrb[0].mxu0
    %v1230 = vpop.f32.mrb[0].mxu0
    %v1231 = vadd.f32 %v218, %v1230
    %v1232 = vpop.f32.mrb[0].mxu0
    %1233 = vmatprep.mubr.bf16.mxu0 0
    %1234 = vmatmul.mubr.bf16.gmra.mrb[0].mxu0 %v760
    %v1235 = vpop.f32.mrb[0].mxu0
    %v1236 = vadd.f32 %v218, %v1235
    %v1237 = vpop.f32.mrb[0].mxu0
    %v1238 = vpop.f32.mrb[0].mxu0
    %v1239 = vadd.f32 %v218, %v1238
    %v1240 = vpop.f32.mrb[0].mxu0
    %1241 = vmatprep.mubr.bf16.mxu0 0
    %1242 = vmatmul.mubr.bf16.gmra.mrb[0].mxu0 %v763
    %v1243 = vpop.f32.mrb[0].mxu0
    %v1244 = vadd.f32 %v218, %v1243
    %v1245 = vpop.f32.mrb[0].mxu0
    %v1246 = vpop.f32.mrb[0].mxu0
    %v1247 = vadd.f32 %v218, %v1246
    %v1248 = vpop.f32.mrb[0].mxu0
    %1249 = vmatprep.mubr.bf16.mxu0 0
    %1250 = vmatmul.mubr.bf16.gmra.mrb[0].mxu0 %v766
    %v1251 = vpop.f32.mrb[0].mxu0
    %v1252 = vadd.f32 %v218, %v1251
    %v1253 = vpop.f32.mrb[0].mxu0
    %v1254 = vpop.f32.mrb[0].mxu0
    %v1255 = vadd.f32 %v218, %v1254
    %v1256 = vpop.f32.mrb[0].mxu0
    %1257 = vmatprep.mubr.bf16.mxu0 0
    %1258 = vmatmul.mubr.bf16.gmra.mrb[0].mxu0 %v769
    %v1259 = vpop.f32.mrb[0].mxu0
    %v1260 = vadd.f32 %v218, %v1259
    %v1261 = vpop.f32.mrb[0].mxu0
    %v1262 = vpop.f32.mrb[0].mxu0
    %v1263 = vadd.f32 %v218, %v1262
    %v1264 = vpop.f32.mrb[0].mxu0
    %1265 = vmatprep.mubr.bf16.mxu0 0
    %1266 = vmatmul.mubr.bf16.gmra.mrb[0].mxu0 %v772
    %v1267 = vpop.f32.mrb[0].mxu0
    %v1268 = vadd.f32 %v218, %v1267
    %v1269 = vpop.f32.mrb[0].mxu0
    %v1270 = vpop.f32.mrb[0].mxu0
    %v1271 = vadd.f32 %v218, %v1270
    %v1272 = vpop.f32.mrb[0].mxu0
    %1273 = vmatprep.mubr.bf16.mxu0 0
    %1274 = vmatmul.mubr.bf16.gmra.mrb[0].mxu0 %v775
    %v1275 = vpop.f32.mrb[0].mxu0
    %v1276 = vadd.f32 %v218, %v1275
    %v1277 = vpop.f32.mrb[0].mxu0
    %v1278 = vpop.f32.mrb[0].mxu0
    %v1279 = vadd.f32 %v218, %v1278
    %v1280 = vpop.f32.mrb[0].mxu0
    %1281 = vmatprep.mubr.bf16.mxu0 0
    %1282 = vmatmul.mubr.bf16.gmra.mrb[0].mxu0 %v778
    %v1283 = vpop.f32.mrb[0].mxu0
    %v1284 = vadd.f32 %v218, %v1283
    %v1285 = vpop.f32.mrb[0].mxu0
    %v1286 = vpop.f32.mrb[0].mxu0
    %v1287 = vadd.f32 %v218, %v1286
    %v1288 = vpop.f32.mrb[0].mxu0
    %1289 = vmatprep.mubr.bf16.mxu0 0
    %1290 = vmatmul.mubr.bf16.gmra.mrb[0].mxu0 %v781
    %v1291 = vpop.f32.mrb[0].mxu0
    %v1292 = vadd.f32 %v218, %v1291
    %v1293 = vpop.f32.mrb[0].mxu0
    %v1294 = vpop.f32.mrb[0].mxu0
    %v1295 = vadd.f32 %v218, %v1294
    %v1296 = vpop.f32.mrb[0].mxu0
    %1297 = vmatprep.mubr.bf16.mxu0 0
    %1298 = vmatmul.mubr.bf16.gmra.mrb[0].mxu0 %v784
    %v1299 = vpop.f32.mrb[0].mxu0
    %v1300 = vadd.f32 %v218, %v1299
    %v1301 = vpop.f32.mrb[0].mxu0
    %v1302 = vpop.f32.mrb[0].mxu0
    %v1303 = vadd.f32 %v218, %v1302
    %v1304 = vpop.f32.mrb[0].mxu0
    %1305 = vmatprep.mubr.bf16.mxu0 0
    %1306 = vmatmul.mubr.bf16.gmra.mrb[0].mxu0 %v787
    %v1307 = vpop.f32.mrb[0].mxu0
    %v1308 = vadd.f32 %v218, %v1307
    %v1309 = vpop.f32.mrb[0].mxu0
    %v1310 = vpop.f32.mrb[0].mxu0
    %v1311 = vadd.f32 %v218, %v1310
    %v1312 = vpop.f32.mrb[0].mxu0
    %1313 = vmatprep.mubr.bf16.mxu0 0
    %1314 = vmatmul.mubr.bf16.gmra.mrb[0].mxu0 %v790
    %v1315 = vpop.f32.mrb[0].mxu0
    %v1316 = vadd.f32 %v218, %v1315
    %v1317 = vpop.f32.mrb[0].mxu0
    %v1318 = vpop.f32.mrb[0].mxu0
    %v1319 = vadd.f32 %v218, %v1318
    %v1320 = vpop.f32.mrb[0].mxu0
    %1321 = vmatprep.mubr.bf16.mxu0 0
    %1322 = vmatmul.mubr.bf16.gmra.mrb[0].mxu0 %v793
    %v1323 = vpop.f32.mrb[0].mxu0
    %v1324 = vadd.f32 %v218, %v1323
    %v1325 = vpop.f32.mrb[0].mxu0
    %v1326 = vpop.f32.mrb[0].mxu0
    %v1327 = vadd.f32 %v218, %v1326
    %v1328 = vpop.f32.mrb[0].mxu0
    %1329 = vmatprep.mubr.bf16.mxu0 0
    %1330 = vmatmul.mubr.bf16.gmra.mrb[0].mxu0 %v796
    %v1331 = vpop.f32.mrb[0].mxu0
    %v1332 = vadd.f32 %v218, %v1331
    %v1333 = vpop.f32.mrb[0].mxu0
    %v1334 = vpop.f32.mrb[0].mxu0
    %v1335 = vadd.f32 %v218, %v1334
    %v1336 = vpop.f32.mrb[0].mxu0
    %1337 = vmatprep.mubr.bf16.mxu0 0
    %1338 = vmatmul.mubr.bf16.gmra.mrb[0].mxu0 %v799
    %v1339 = vpop.f32.mrb[0].mxu0
    %v1340 = vadd.f32 %v218, %v1339
    %v1341 = vpop.f32.mrb[0].mxu0
    %v1342 = vpop.f32.mrb[0].mxu0
    %v1343 = vadd.f32 %v218, %v1342
    %v1344 = vpop.f32.mrb[0].mxu0
    %1345 = vmatprep.mubr.bf16.mxu0 0
    %1346 = vmatmul.mubr.bf16.gmra.mrb[0].mxu0 %v802
    %v1347 = vpop.f32.mrb[0].mxu0
    %v1348 = vadd.f32 %v218, %v1347
    %v1349 = vpop.f32.mrb[0].mxu0
    %v1350 = vpop.f32.mrb[0].mxu0
    %v1351 = vadd.f32 %v218, %v1350
    %v1352 = vpop.f32.mrb[0].mxu0
    %1353 = vmatprep.mubr.bf16.mxu0 0
    %1354 = vmatmul.mubr.bf16.gmra.mrb[0].mxu0 %v805
    %v1355 = vpop.f32.mrb[0].mxu0
    %v1356 = vadd.f32 %v218, %v1355
    %v1357 = vpop.f32.mrb[0].mxu0
    %v1358 = vpop.f32.mrb[0].mxu0
    %v1359 = vadd.f32 %v218, %v1358
    %v1360 = vpop.f32.mrb[0].mxu0
    %1361 = vmatprep.mubr.bf16.mxu0 0
    %1362 = vmatmul.mubr.bf16.gmra.mrb[0].mxu0 %v808
    %v1363 = vpop.f32.mrb[0].mxu0
    %v1364 = vadd.f32 %v218, %v1363
    %v1365 = vpop.f32.mrb[0].mxu0
    %v1366 = vpop.f32.mrb[0].mxu0
    %v1367 = vadd.f32 %v218, %v1366
    %v1368 = vpop.f32.mrb[0].mxu0
    %1369 = vmatprep.mubr.bf16.mxu0 0
    %1370 = vmatmul.mubr.bf16.gmra.mrb[0].mxu0 %v811
    %v1371 = vpop.f32.mrb[0].mxu0
    %v1372 = vadd.f32 %v218, %v1371
    %v1373 = vpop.f32.mrb[0].mxu0
    %v1374 = vpop.f32.mrb[0].mxu0
    %v1375 = vadd.f32 %v218, %v1374
    %v1376 = vpop.f32.mrb[0].mxu0
    %1377 = vmatprep.mubr.bf16.mxu0 0
    %1378 = vmatmul.mubr.bf16.gmra.mrb[0].mxu0 %v814
    %v1379 = vpop.f32.mrb[0].mxu0
    %v1380 = vadd.f32 %v218, %v1379
    %v1381 = vpop.f32.mrb[0].mxu0
    %v1382 = vpop.f32.mrb[0].mxu0
    %v1383 = vadd.f32 %v218, %v1382
    %v1384 = vpop.f32.mrb[0].mxu0
    %1385 = vmatprep.mubr.bf16.mxu0 0
    %1386 = vmatmul.mubr.bf16.gmra.mrb[0].mxu0 %v817
    %v1387 = vpop.f32.mrb[0].mxu0
    %v1388 = vadd.f32 %v218, %v1387
    %v1389 = vpop.f32.mrb[0].mxu0
    %v1390 = vpop.f32.mrb[0].mxu0
    %v1391 = vadd.f32 %v218, %v1390
    %v1392 = vpop.f32.mrb[0].mxu0
    %1393 = vmatprep.mubr.bf16.mxu0 0
    %1394 = vmatmul.mubr.bf16.gmra.mrb[0].mxu0 %v820
    %v1395 = vpop.f32.mrb[0].mxu0
    %v1396 = vadd.f32 %v218, %v1395
    %v1397 = vpop.f32.mrb[0].mxu0
    %v1398 = vpop.f32.mrb[0].mxu0
    %v1399 = vadd.f32 %v218, %v1398
    %v1400 = vpop.f32.mrb[0].mxu0
    %1401 = vmatprep.mubr.bf16.mxu0 0
    %1402 = vmatmul.mubr.bf16.gmra.mrb[0].mxu0 %v823
    %v1403 = vpop.f32.mrb[0].mxu0
    %v1404 = vadd.f32 %v218, %v1403
    %v1405 = vpop.f32.mrb[0].mxu0
    %v1406 = vpop.f32.mrb[0].mxu0
    %v1407 = vadd.f32 %v218, %v1406
    %v1408 = vpop.f32.mrb[0].mxu0
    %1409 = vmatprep.mubr.bf16.mxu0 0
    %1410 = vmatmul.mubr.bf16.gmra.mrb[0].mxu0 %v826
    %v1411 = vpop.f32.mrb[0].mxu0
    %v1412 = vadd.f32 %v218, %v1411
    %v1413 = vpop.f32.mrb[0].mxu0
    %v1414 = vpop.f32.mrb[0].mxu0
    %v1415 = vadd.f32 %v218, %v1414
    %v1416 = vpop.f32.mrb[0].mxu0
    %1417 = vmatprep.mubr.bf16.mxu0 0
    %1418 = vmatmul.mubr.bf16.gmra.mrb[0].mxu0 %v829
    %v1419 = vpop.f32.mrb[0].mxu0
    %v1420 = vadd.f32 %v218, %v1419
    %v1421 = vpop.f32.mrb[0].mxu0
    %v1422 = vpop.f32.mrb[0].mxu0
    %v1423 = vadd.f32 %v218, %v1422
    %v1424 = vpop.f32.mrb[0].mxu0
    %1425 = vmatprep.mubr.bf16.mxu0 0
    %1426 = vmatmul.mubr.bf16.gmra.mrb[0].mxu0 %v832
    %v1427 = vpop.f32.mrb[0].mxu0
    %v1428 = vadd.f32 %v218, %v1427
    %v1429 = vpop.f32.mrb[0].mxu0
    %v1430 = vpop.f32.mrb[0].mxu0
    %v1431 = vadd.f32 %v218, %v1430
    %v1432 = vpop.f32.mrb[0].mxu0
    %1433 = vmatprep.mubr.bf16.mxu0 0
    %1434 = vmatmul.mubr.bf16.gmra.mrb[0].mxu0 %v835
    %v1435 = vpop.f32.mrb[0].mxu0
    %v1436 = vadd.f32 %v218, %v1435
    %v1437 = vpop.f32.mrb[0].mxu0
    %v1438 = vpop.f32.mrb[0].mxu0
    %v1439 = vadd.f32 %v218, %v1438
    %v1440 = vpop.f32.mrb[0].mxu0
    %1441 = vmatprep.mubr.bf16.mxu0 0
    %1442 = vmatmul.mubr.bf16.gmra.mrb[0].mxu0 %v838
    %v1443 = vpop.f32.mrb[0].mxu0
    %v1444 = vadd.f32 %v218, %v1443
    %v1445 = vpop.f32.mrb[0].mxu0
    %v1446 = vpop.f32.mrb[0].mxu0
    %v1447 = vadd.f32 %v218, %v1446
    %v1448 = vpop.f32.mrb[0].mxu0
    %1449 = vmatprep.mubr.bf16.mxu0 0
    %1450 = vmatmul.mubr.bf16.gmra.mrb[0].mxu0 %v841
    %v1451 = vpop.f32.mrb[0].mxu0
    %v1452 = vadd.f32 %v218, %v1451
    %v1453 = vpop.f32.mrb[0].mxu0
    %v1454 = vpop.f32.mrb[0].mxu0
    %v1455 = vadd.f32 %v218, %v1454
    %v1456 = vpop.f32.mrb[0].mxu0
    %1457 = vmatprep.mubr.bf16.mxu0 0
    %1458 = vmatmul.mubr.bf16.gmra.mrb[0].mxu0 %v844
    %v1459 = vpop.f32.mrb[0].mxu0
    %v1460 = vadd.f32 %v218, %v1459
    %v1461 = vpop.f32.mrb[0].mxu0
    %v1462 = vpop.f32.mrb[0].mxu0
    %v1463 = vadd.f32 %v218, %v1462
    %v1464 = vpop.f32.mrb[0].mxu0
    %1465 = vmatprep.mubr.bf16.mxu0 0
    %1466 = vmatmul.mubr.bf16.gmra.mrb[0].mxu0 %v847
    %v1467 = vpop.f32.mrb[0].mxu0
    %v1468 = vadd.f32 %v218, %v1467
    %v1469 = vpop.f32.mrb[0].mxu0
    %v1470 = vpop.f32.mrb[0].mxu0
    %v1471 = vadd.f32 %v218, %v1470
    %v1472 = vpop.f32.mrb[0].mxu0
    %1473 = vmatprep.mubr.bf16.mxu0 0
    %1474 = vmatmul.mubr.bf16.gmra.mrb[0].mxu0 %v850
    %v1475 = vpop.f32.mrb[0].mxu0
    %v1476 = vadd.f32 %v218, %v1475
    %v1477 = vpop.f32.mrb[0].mxu0
    %v1478 = vpop.f32.mrb[0].mxu0
    %v1479 = vadd.f32 %v218, %v1478
    %v1480 = vpop.f32.mrb[0].mxu0
    %1481 = vmatprep.mubr.bf16.mxu0 0
    %1482 = vmatmul.mubr.bf16.gmra.mrb[0].mxu0 %v853
    %v1483 = vpop.f32.mrb[0].mxu0
    %v1484 = vadd.f32 %v218, %v1483
    %v1485 = vpop.f32.mrb[0].mxu0
    %v1486 = vpop.f32.mrb[0].mxu0
    %v1487 = vadd.f32 %v218, %v1486
    %v1488 = vpop.f32.mrb[0].mxu0
    %1489 = vmatprep.mubr.bf16.mxu0 0
    %1490 = vmatmul.mubr.bf16.gmra.mrb[0].mxu0 %v856
    %v1491 = vpop.f32.mrb[0].mxu0
    %v1492 = vadd.f32 %v218, %v1491
    %v1493 = vpop.f32.mrb[0].mxu0
    %v1494 = vpop.f32.mrb[0].mxu0
    %v1495 = vadd.f32 %v218, %v1494
    %v1496 = vpop.f32.mrb[0].mxu0
    %1497 = vmatprep.mubr.bf16.mxu0 0
    %1498 = vmatmul.mubr.bf16.gmra.mrb[0].mxu0 %v859
    %v1499 = vpop.f32.mrb[0].mxu0
    %v1500 = vadd.f32 %v218, %v1499
    %v1501 = vpop.f32.mrb[0].mxu0
    %v1502 = vpop.f32.mrb[0].mxu0
    %v1503 = vadd.f32 %v218, %v1502
    %v1504 = vpop.f32.mrb[0].mxu0
    %1505 = vmatprep.mubr.bf16.mxu0 0
    %1506 = vmatmul.mubr.bf16.gmra.mrb[0].mxu0 %v862
    %v1507 = vpop.f32.mrb[0].mxu0
    %v1508 = vadd.f32 %v218, %v1507
    %v1509 = vpop.f32.mrb[0].mxu0
    %v1510 = vpop.f32.mrb[0].mxu0
    %v1511 = vadd.f32 %v218, %v1510
    %v1512 = vpop.f32.mrb[0].mxu0
    %1513 = vmatprep.mubr.bf16.mxu0 0
    %1514 = vmatmul.mubr.bf16.gmra.mrb[0].mxu0 %v865
    %v1515 = vpop.f32.mrb[0].mxu0
    %v1516 = vadd.f32 %v218, %v1515
    %v1517 = vpop.f32.mrb[0].mxu0
    %v1518 = vpop.f32.mrb[0].mxu0
    %v1519 = vadd.f32 %v218, %v1518
    %v1520 = vpop.f32.mrb[0].mxu0
    %1521 = vmatprep.mubr.bf16.mxu0 0
    %1522 = vmatmul.mubr.bf16.gmra.mrb[0].mxu0 %v868
    %v1523 = vpop.f32.mrb[0].mxu0
    %v1524 = vadd.f32 %v218, %v1523
    %v1525 = vpop.f32.mrb[0].mxu0
    %v1526 = vpop.f32.mrb[0].mxu0
    %v1527 = vadd.f32 %v218, %v1526
    %v1528 = vpop.f32.mrb[0].mxu0
    %1529 = vmatprep.mubr.bf16.mxu0 0
    %1530 = vmatmul.mubr.bf16.gmra.mrb[0].mxu0 %v871
    %v1531 = vpop.f32.mrb[0].mxu0
    %v1532 = vadd.f32 %v218, %v1531
    %v1533 = vpop.f32.mrb[0].mxu0
    %v1534 = vpop.f32.mrb[0].mxu0
    %v1535 = vadd.f32 %v218, %v1534
    %v1536 = vpop.f32.mrb[0].mxu0
    %1537 = vmatprep.mubr.bf16.mxu0 0
    %1538 = vmatmul.mubr.bf16.gmra.mrb[0].mxu0 %v874
    %v1539 = vpop.f32.mrb[0].mxu0
    %v1540 = vadd.f32 %v218, %v1539
    %v1541 = vpop.f32.mrb[0].mxu0
    %v1542 = vpop.f32.mrb[0].mxu0
    %v1543 = vadd.f32 %v218, %v1542
    %v1544 = vpop.f32.mrb[0].mxu0
    %1545 = vmatprep.mubr.bf16.mxu0 0
    %1546 = vmatmul.mubr.bf16.gmra.mrb[0].mxu0 %v877
    %v1547 = vpop.f32.mrb[0].mxu0
    %v1548 = vadd.f32 %v218, %v1547
    %v1549 = vpop.f32.mrb[0].mxu0
    %v1550 = vpop.f32.mrb[0].mxu0
    %v1551 = vadd.f32 %v218, %v1550
    %v1552 = vpop.f32.mrb[0].mxu0
    %1553 = vmatprep.mubr.bf16.mxu0 0
    %1554 = vmatmul.mubr.bf16.gmra.mrb[0].mxu0 %v880
    %v1555 = vpop.f32.mrb[0].mxu0
    %v1556 = vadd.f32 %v218, %v1555
    %v1557 = vpop.f32.mrb[0].mxu0
    %v1558 = vpop.f32.mrb[0].mxu0
    %v1559 = vadd.f32 %v218, %v1558
    %v1560 = vpop.f32.mrb[0].mxu0
    %1561 = vmatprep.mubr.bf16.mxu0 0
    %1562 = vmatmul.mubr.bf16.gmra.mrb[0].mxu0 %v883
    %v1563 = vpop.f32.mrb[0].mxu0
    %v1564 = vadd.f32 %v218, %v1563
    %v1565 = vpop.f32.mrb[0].mxu0
    %v1566 = vpop.f32.mrb[0].mxu0
    %v1567 = vadd.f32 %v218, %v1566
    %v1568 = vpop.f32.mrb[0].mxu0
    %1569 = vmatprep.mubr.bf16.mxu0 0
    %1570 = vmatmul.mubr.bf16.gmra.mrb[0].mxu0 %v886
    %v1571 = vpop.f32.mrb[0].mxu0
    %v1572 = vadd.f32 %v218, %v1571
    %v1573 = vpop.f32.mrb[0].mxu0
    %v1574 = vpop.f32.mrb[0].mxu0
    %v1575 = vadd.f32 %v218, %v1574
    %v1576 = vpop.f32.mrb[0].mxu0
    %1577 = vmatprep.mubr.bf16.mxu0 0
    %1578 = vmatmul.mubr.bf16.gmra.mrb[0].mxu0 %v889
    %v1579 = vpop.f32.mrb[0].mxu0
    %v1580 = vadd.f32 %v218, %v1579
    %v1581 = vpop.f32.mrb[0].mxu0
    %v1582 = vpop.f32.mrb[0].mxu0
    %v1583 = vadd.f32 %v218, %v1582
    %v1584 = vpop.f32.mrb[0].mxu0
    %1585 = vmatprep.mubr.bf16.mxu0 0
    %1586 = vmatmul.mubr.bf16.gmra.mrb[0].mxu0 %v892
    %v1587 = vpop.f32.mrb[0].mxu0
    %v1588 = vadd.f32 %v218, %v1587
    %v1589 = vpop.f32.mrb[0].mxu0
    %v1590 = vpop.f32.mrb[0].mxu0
    %v1591 = vadd.f32 %v218, %v1590
    %v1592 = vpop.f32.mrb[0].mxu0
    %1593 = vmatprep.mubr.bf16.mxu0 0
    %1594 = vmatmul.mubr.bf16.gmra.mrb[0].mxu0 %v895
    %v1595 = vpop.f32.mrb[0].mxu0
    %v1596 = vadd.f32 %v218, %v1595
    %v1597 = vpop.f32.mrb[0].mxu0
    %v1598 = vpop.f32.mrb[0].mxu0
    %v1599 = vadd.f32 %v218, %v1598
    %v1600 = vpop.f32.mrb[0].mxu0
    %1601 = vmatprep.mubr.bf16.mxu0 0
    %1602 = vmatmul.mubr.bf16.gmra.mrb[0].mxu0 %v898
    %v1603 = vpop.f32.mrb[0].mxu0
    %v1604 = vadd.f32 %v218, %v1603
    %v1605 = vpop.f32.mrb[0].mxu0
    %v1606 = vpop.f32.mrb[0].mxu0
    %v1607 = vadd.f32 %v218, %v1606
    %v1608 = vpop.f32.mrb[0].mxu0
    %1609 = vmatprep.mubr.bf16.mxu0 0
    %1610 = vmatmul.mubr.bf16.gmra.mrb[0].mxu0 %v901
    %v1611 = vpop.f32.mrb[0].mxu0
    %v1612 = vadd.f32 %v218, %v1611
    %v1613 = vpop.f32.mrb[0].mxu0
    %v1614 = vpop.f32.mrb[0].mxu0
    %v1615 = vadd.f32 %v218, %v1614
    %v1616 = vpop.f32.mrb[0].mxu0
    %1617 = vmatprep.mubr.bf16.mxu0 0
    %1618 = vmatmul.mubr.bf16.gmra.mrb[0].mxu0 %v904
    %v1619 = vpop.f32.mrb[0].mxu0
    %v1620 = vadd.f32 %v218, %v1619
    %v1621 = vpop.f32.mrb[0].mxu0
    %v1622 = vpop.f32.mrb[0].mxu0
    %v1623 = vadd.f32 %v218, %v1622
    %v1624 = vpop.f32.mrb[0].mxu0
    %1625 = vdwg.mxu0
    %v1626 = vmax.f32 %v948, 0.0
    %v1627 = vmax.f32 %v951, 0.0
    %v1628 = vmax.f32 %v956, 0.0
    %v1629 = vmax.f32 %v959, 0.0
    %v1630 = vmax.f32 %v964, 0.0
    %v1631 = vmax.f32 %v967, 0.0
    %v1632 = vmax.f32 %v972, 0.0
    %v1633 = vmax.f32 %v975, 0.0
    %v1634 = vmax.f32 %v980, 0.0
    %v1635 = vmax.f32 %v983, 0.0
    %v1636 = vmax.f32 %v988, 0.0
    %v1637 = vmax.f32 %v991, 0.0
    %v1638 = vmax.f32 %v996, 0.0
    %v1639 = vmax.f32 %v999, 0.0
    %v1640 = vmax.f32 %v1004, 0.0
    %v1641 = vmax.f32 %v1007, 0.0
    %v1642 = vmax.f32 %v1012, 0.0
    %v1643 = vmax.f32 %v1015, 0.0
    %v1644 = vmax.f32 %v1020, 0.0
    %v1645 = vmax.f32 %v1023, 0.0
    %v1646 = vmax.f32 %v1028, 0.0
    %v1647 = vmax.f32 %v1031, 0.0
    %v1648 = vmax.f32 %v1036, 0.0
    %v1649 = vmax.f32 %v1039, 0.0
    %v1650 = vmax.f32 %v1044, 0.0
    %v1651 = vmax.f32 %v1047, 0.0
    %v1652 = vmax.f32 %v1052, 0.0
    %v1653 = vmax.f32 %v1055, 0.0
    %v1654 = vmax.f32 %v1060, 0.0
    %v1655 = vmax.f32 %v1063, 0.0
    %v1656 = vmax.f32 %v1068, 0.0
    %v1657 = vmax.f32 %v1071, 0.0
    %v1658 = vmax.f32 %v1076, 0.0
    %v1659 = vmax.f32 %v1079, 0.0
    %v1660 = vmax.f32 %v1084, 0.0
    %v1661 = vmax.f32 %v1087, 0.0
    %v1662 = vmax.f32 %v1092, 0.0
    %v1663 = vmax.f32 %v1095, 0.0
    %v1664 = vmax.f32 %v1100, 0.0
    %v1665 = vmax.f32 %v1103, 0.0
    %v1666 = vmax.f32 %v1108, 0.0
    %v1667 = vmax.f32 %v1111, 0.0
    %v1668 = vmax.f32 %v1116, 0.0
    %v1669 = vmax.f32 %v1119, 0.0
    %v1670 = vmax.f32 %v1124, 0.0
    %v1671 = vmax.f32 %v1127, 0.0
    %v1672 = vmax.f32 %v1132, 0.0
    %v1673 = vmax.f32 %v1135, 0.0
    %v1674 = vmax.f32 %v1140, 0.0
    %v1675 = vmax.f32 %v1143, 0.0
    %v1676 = vmax.f32 %v1148, 0.0
    %v1677 = vmax.f32 %v1151, 0.0
    %v1678 = vmax.f32 %v1156, 0.0
    %v1679 = vmax.f32 %v1159, 0.0
    %v1680 = vmax.f32 %v1164, 0.0
    %v1681 = vmax.f32 %v1167, 0.0
    %v1682 = vmax.f32 %v1172, 0.0
    %v1683 = vmax.f32 %v1175, 0.0
    %v1684 = vmax.f32 %v1180, 0.0
    %v1685 = vmax.f32 %v1183, 0.0
    %v1686 = vmax.f32 %v1188, 0.0
    %v1687 = vmax.f32 %v1191, 0.0
    %v1688 = vmax.f32 %v1196, 0.0
    %v1689 = vmax.f32 %v1199, 0.0
    %v1690 = vmax.f32 %v1204, 0.0
    %v1691 = vmax.f32 %v1207, 0.0
    %v1692 = vmax.f32 %v1212, 0.0
    %v1693 = vmax.f32 %v1215, 0.0
    %v1694 = vmax.f32 %v1220, 0.0
    %v1695 = vmax.f32 %v1223, 0.0
    %v1696 = vmax.f32 %v1228, 0.0
    %v1697 = vmax.f32 %v1231, 0.0
    %v1698 = vmax.f32 %v1236, 0.0
    %v1699 = vmax.f32 %v1239, 0.0
    %v1700 = vmax.f32 %v1244, 0.0
    %v1701 = vmax.f32 %v1247, 0.0
    %v1702 = vmax.f32 %v1252, 0.0
    %v1703 = vmax.f32 %v1255, 0.0
    %v1704 = vmax.f32 %v1260, 0.0
    %v1705 = vmax.f32 %v1263, 0.0
    %v1706 = vmax.f32 %v1268, 0.0
    %v1707 = vmax.f32 %v1271, 0.0
    %v1708 = vmax.f32 %v1276, 0.0
    %v1709 = vmax.f32 %v1279, 0.0
    %v1710 = vmax.f32 %v1284, 0.0
    %v1711 = vmax.f32 %v1287, 0.0
    %v1712 = vmax.f32 %v1292, 0.0
    %v1713 = vmax.f32 %v1295, 0.0
    %v1714 = vmax.f32 %v1300, 0.0
    %v1715 = vmax.f32 %v1303, 0.0
    %v1716 = vmax.f32 %v1308, 0.0
    %v1717 = vmax.f32 %v1311, 0.0
    %v1718 = vmax.f32 %v1316, 0.0
    %v1719 = vmax.f32 %v1319, 0.0
    %v1720 = vmax.f32 %v1324, 0.0
    %v1721 = vmax.f32 %v1327, 0.0
    %v1722 = vmax.f32 %v1332, 0.0
    %v1723 = vmax.f32 %v1335, 0.0
    %v1724 = vmax.f32 %v1340, 0.0
    %v1725 = vmax.f32 %v1343, 0.0
    %v1726 = vmax.f32 %v1348, 0.0
    %v1727 = vmax.f32 %v1351, 0.0
    %v1728 = vmax.f32 %v1356, 0.0
    %v1729 = vmax.f32 %v1359, 0.0
    %v1730 = vmax.f32 %v1364, 0.0
    %v1731 = vmax.f32 %v1367, 0.0
    %v1732 = vmax.f32 %v1372, 0.0
    %v1733 = vmax.f32 %v1375, 0.0
    %v1734 = vmax.f32 %v1380, 0.0
    %v1735 = vmax.f32 %v1383, 0.0
    %v1736 = vmax.f32 %v1388, 0.0
    %v1737 = vmax.f32 %v1391, 0.0
    %v1738 = vmax.f32 %v1396, 0.0
    %v1739 = vmax.f32 %v1399, 0.0
    %v1740 = vmax.f32 %v1404, 0.0
    %v1741 = vmax.f32 %v1407, 0.0
    %v1742 = vmax.f32 %v1412, 0.0
    %v1743 = vmax.f32 %v1415, 0.0
    %v1744 = vmax.f32 %v1420, 0.0
    %v1745 = vmax.f32 %v1423, 0.0
    %v1746 = vmax.f32 %v1428, 0.0
    %v1747 = vmax.f32 %v1431, 0.0
    %v1748 = vmax.f32 %v1436, 0.0
    %v1749 = vmax.f32 %v1439, 0.0
    %v1750 = vmax.f32 %v1444, 0.0
    %v1751 = vmax.f32 %v1447, 0.0
    %v1752 = vmax.f32 %v1452, 0.0
    %v1753 = vmax.f32 %v1455, 0.0
    %v1754 = vmax.f32 %v1460, 0.0
    %v1755 = vmax.f32 %v1463, 0.0
    %v1756 = vmax.f32 %v1468, 0.0
    %v1757 = vmax.f32 %v1471, 0.0
    %v1758 = vmax.f32 %v1476, 0.0
    %v1759 = vmax.f32 %v1479, 0.0
    %v1760 = vmax.f32 %v1484, 0.0
    %v1761 = vmax.f32 %v1487, 0.0
    %v1762 = vmax.f32 %v1492, 0.0
    %v1763 = vmax.f32 %v1495, 0.0
    %v1764 = vmax.f32 %v1500, 0.0
    %v1765 = vmax.f32 %v1503, 0.0
    %v1766 = vmax.f32 %v1508, 0.0
    %v1767 = vmax.f32 %v1511, 0.0
    %v1768 = vmax.f32 %v1516, 0.0
    %v1769 = vmax.f32 %v1519, 0.0
    %v1770 = vmax.f32 %v1524, 0.0
    %v1771 = vmax.f32 %v1527, 0.0
    %v1772 = vmax.f32 %v1532, 0.0
    %v1773 = vmax.f32 %v1535, 0.0
    %v1774 = vmax.f32 %v1540, 0.0
    %v1775 = vmax.f32 %v1543, 0.0
    %v1776 = vmax.f32 %v1548, 0.0
    %v1777 = vmax.f32 %v1551, 0.0
    %v1778 = vmax.f32 %v1556, 0.0
    %v1779 = vmax.f32 %v1559, 0.0
    %v1780 = vmax.f32 %v1564, 0.0
    %v1781 = vmax.f32 %v1567, 0.0
    %v1782 = vmax.f32 %v1572, 0.0
    %v1783 = vmax.f32 %v1575, 0.0
    %v1784 = vmax.f32 %v1580, 0.0
    %v1785 = vmax.f32 %v1583, 0.0
    %v1786 = vmax.f32 %v1588, 0.0
    %v1787 = vmax.f32 %v1591, 0.0
    %v1788 = vmax.f32 %v1596, 0.0
    %v1789 = vmax.f32 %v1599, 0.0
    %v1790 = vmax.f32 %v1604, 0.0
    %v1791 = vmax.f32 %v1607, 0.0
    %v1792 = vmax.f32 %v1612, 0.0
    %v1793 = vmax.f32 %v1615, 0.0
    %v1794 = vmax.f32 %v1620, 0.0
    %v1795 = vmax.f32 %v1623, 0.0
    %v1796 = vpack.c.bf16 %v1627, %v1626
    %v1797 = vpack.c.bf16 %v1629, %v1628
    %v1798 = vpack.c.bf16 %v1631, %v1630
    %v1799 = vpack.c.bf16 %v1633, %v1632
    %v1800 = vpack.c.bf16 %v1635, %v1634
    %v1801 = vpack.c.bf16 %v1637, %v1636
    %v1802 = vpack.c.bf16 %v1639, %v1638
    %v1803 = vpack.c.bf16 %v1641, %v1640
    %v1804 = vpack.c.bf16 %v1643, %v1642
    %v1805 = vpack.c.bf16 %v1645, %v1644
    %v1806 = vpack.c.bf16 %v1647, %v1646
    %v1807 = vpack.c.bf16 %v1649, %v1648
    %v1808 = vpack.c.bf16 %v1651, %v1650
    %v1809 = vpack.c.bf16 %v1653, %v1652
    %v1810 = vpack.c.bf16 %v1655, %v1654
    %v1811 = vpack.c.bf16 %v1657, %v1656
    %v1812 = vpack.c.bf16 %v1659, %v1658
    %v1813 = vpack.c.bf16 %v1661, %v1660
    %v1814 = vpack.c.bf16 %v1663, %v1662
    %v1815 = vpack.c.bf16 %v1665, %v1664
    %v1816 = vpack.c.bf16 %v1667, %v1666
    %v1817 = vpack.c.bf16 %v1669, %v1668
    %v1818 = vpack.c.bf16 %v1671, %v1670
    %v1819 = vpack.c.bf16 %v1673, %v1672
    %v1820 = vpack.c.bf16 %v1675, %v1674
    %v1821 = vpack.c.bf16 %v1677, %v1676
    %v1822 = vpack.c.bf16 %v1679, %v1678
    %v1823 = vpack.c.bf16 %v1681, %v1680
    %v1824 = vpack.c.bf16 %v1683, %v1682
    %v1825 = vpack.c.bf16 %v1685, %v1684
    %v1826 = vpack.c.bf16 %v1687, %v1686
    %v1827 = vpack.c.bf16 %v1689, %v1688
    %v1828 = vpack.c.bf16 %v1691, %v1690
    %v1829 = vpack.c.bf16 %v1693, %v1692
    %v1830 = vpack.c.bf16 %v1695, %v1694
    %v1831 = vpack.c.bf16 %v1697, %v1696
    %v1832 = vpack.c.bf16 %v1699, %v1698
    %v1833 = vpack.c.bf16 %v1701, %v1700
    %v1834 = vpack.c.bf16 %v1703, %v1702
    %v1835 = vpack.c.bf16 %v1705, %v1704
    %v1836 = vpack.c.bf16 %v1707, %v1706
    %v1837 = vpack.c.bf16 %v1709, %v1708
    %v1838 = vpack.c.bf16 %v1711, %v1710
    %v1839 = vpack.c.bf16 %v1713, %v1712
    %v1840 = vpack.c.bf16 %v1715, %v1714
    %v1841 = vpack.c.bf16 %v1717, %v1716
    %v1842 = vpack.c.bf16 %v1719, %v1718
    %v1843 = vpack.c.bf16 %v1721, %v1720
    %v1844 = vpack.c.bf16 %v1723, %v1722
    %v1845 = vpack.c.bf16 %v1725, %v1724
    %v1846 = vpack.c.bf16 %v1727, %v1726
    %v1847 = vpack.c.bf16 %v1729, %v1728
    %v1848 = vpack.c.bf16 %v1731, %v1730
    %v1849 = vpack.c.bf16 %v1733, %v1732
    %v1850 = vpack.c.bf16 %v1735, %v1734
    %v1851 = vpack.c.bf16 %v1737, %v1736
    %v1852 = vpack.c.bf16 %v1739, %v1738
    %v1853 = vpack.c.bf16 %v1741, %v1740
    %v1854 = vpack.c.bf16 %v1743, %v1742
    %v1855 = vpack.c.bf16 %v1745, %v1744
    %v1856 = vpack.c.bf16 %v1747, %v1746
    %v1857 = vpack.c.bf16 %v1749, %v1748
    %v1858 = vpack.c.bf16 %v1751, %v1750
    %v1859 = vpack.c.bf16 %v1753, %v1752
    %v1860 = vpack.c.bf16 %v1755, %v1754
    %v1861 = vpack.c.bf16 %v1757, %v1756
    %v1862 = vpack.c.bf16 %v1759, %v1758
    %v1863 = vpack.c.bf16 %v1761, %v1760
    %v1864 = vpack.c.bf16 %v1763, %v1762
    %v1865 = vpack.c.bf16 %v1765, %v1764
    %v1866 = vpack.c.bf16 %v1767, %v1766
    %v1867 = vpack.c.bf16 %v1769, %v1768
    %v1868 = vpack.c.bf16 %v1771, %v1770
    %v1869 = vpack.c.bf16 %v1773, %v1772
    %v1870 = vpack.c.bf16 %v1775, %v1774
    %v1871 = vpack.c.bf16 %v1777, %v1776
    %v1872 = vpack.c.bf16 %v1779, %v1778
    %v1873 = vpack.c.bf16 %v1781, %v1780
    %v1874 = vpack.c.bf16 %v1783, %v1782
    %v1875 = vpack.c.bf16 %v1785, %v1784
    %v1876 = vpack.c.bf16 %v1787, %v1786
    %v1877 = vpack.c.bf16 %v1789, %v1788
    %v1878 = vpack.c.bf16 %v1791, %v1790
    %v1879 = vpack.c.bf16 %v1793, %v1792
    %v1880 = vpack.c.bf16 %v1795, %v1794
    %v1966 = vunpack.c.l.b16 %v1796
    %v1967 = vunpack.c.h.b16 %v1796
    %v1968 = vunpack.c.l.b16 %v1797
    %v1969 = vunpack.c.h.b16 %v1797
    %v1970 = vunpack.c.l.b16 %v1798
    %v1971 = vunpack.c.h.b16 %v1798
    %v1972 = vunpack.c.l.b16 %v1799
    %v1973 = vunpack.c.h.b16 %v1799
    %v1974 = vunpack.c.l.b16 %v1800
    %v1975 = vunpack.c.h.b16 %v1800
    %v1976 = vunpack.c.l.b16 %v1801
    %v1977 = vunpack.c.h.b16 %v1801
    %v1978 = vunpack.c.l.b16 %v1802
    %v1979 = vunpack.c.h.b16 %v1802
    %v1980 = vunpack.c.l.b16 %v1803
    %v1981 = vunpack.c.h.b16 %v1803
    %v1982 = vunpack.c.l.b16 %v1804
    %v1983 = vunpack.c.h.b16 %v1804
    %v1984 = vunpack.c.l.b16 %v1805
    %v1985 = vunpack.c.h.b16 %v1805
    %v1986 = vunpack.c.l.b16 %v1806
    %v1987 = vunpack.c.h.b16 %v1806
    %v1988 = vunpack.c.l.b16 %v1807
    %v1989 = vunpack.c.h.b16 %v1807
    %v1990 = vunpack.c.l.b16 %v1808
    %v1991 = vunpack.c.h.b16 %v1808
    %v1992 = vunpack.c.l.b16 %v1809
    %v1993 = vunpack.c.h.b16 %v1809
    %v1994 = vunpack.c.l.b16 %v1810
    %v1995 = vunpack.c.h.b16 %v1810
    %v1996 = vunpack.c.l.b16 %v1811
    %v1997 = vunpack.c.h.b16 %v1811
    %v1998 = vunpack.c.l.b16 %v1812
    %v1999 = vunpack.c.h.b16 %v1812
    %v2000 = vunpack.c.l.b16 %v1813
    %v2001 = vunpack.c.h.b16 %v1813
    %v2002 = vunpack.c.l.b16 %v1814
    %v2003 = vunpack.c.h.b16 %v1814
    %v2004 = vunpack.c.l.b16 %v1815
    %v2005 = vunpack.c.h.b16 %v1815
    %v2006 = vunpack.c.l.b16 %v1816
    %v2007 = vunpack.c.h.b16 %v1816
    %v2008 = vunpack.c.l.b16 %v1817
    %v2009 = vunpack.c.h.b16 %v1817
    %v2010 = vunpack.c.l.b16 %v1818
    %v2011 = vunpack.c.h.b16 %v1818
    %v2012 = vunpack.c.l.b16 %v1819
    %v2013 = vunpack.c.h.b16 %v1819
    %v2014 = vunpack.c.l.b16 %v1820
    %v2015 = vunpack.c.h.b16 %v1820
    %v2016 = vunpack.c.l.b16 %v1821
    %v2017 = vunpack.c.h.b16 %v1821
    %v2018 = vunpack.c.l.b16 %v1822
    %v2019 = vunpack.c.h.b16 %v1822
    %v2020 = vunpack.c.l.b16 %v1823
    %v2021 = vunpack.c.h.b16 %v1823
    %v2022 = vunpack.c.l.b16 %v1824
    %v2023 = vunpack.c.h.b16 %v1824
    %v2024 = vunpack.c.l.b16 %v1825
    %v2025 = vunpack.c.h.b16 %v1825
    %v2026 = vunpack.c.l.b16 %v1826
    %v2027 = vunpack.c.h.b16 %v1826
    %v2028 = vunpack.c.l.b16 %v1827
    %v2029 = vunpack.c.h.b16 %v1827
    %v2030 = vunpack.c.l.b16 %v1828
    %v2031 = vunpack.c.h.b16 %v1828
    %v2032 = vunpack.c.l.b16 %v1829
    %v2033 = vunpack.c.h.b16 %v1829
    %v2034 = vunpack.c.l.b16 %v1830
    %v2035 = vunpack.c.h.b16 %v1830
    %v2036 = vunpack.c.l.b16 %v1831
    %v2037 = vunpack.c.h.b16 %v1831
    %v2038 = vunpack.c.l.b16 %v1832
    %v2039 = vunpack.c.h.b16 %v1832
    %v2040 = vunpack.c.l.b16 %v1833
    %v2041 = vunpack.c.h.b16 %v1833
    %v2042 = vunpack.c.l.b16 %v1834
    %v2043 = vunpack.c.h.b16 %v1834
    %v2044 = vunpack.c.l.b16 %v1835
    %v2045 = vunpack.c.h.b16 %v1835
    %v2046 = vunpack.c.l.b16 %v1836
    %v2047 = vunpack.c.h.b16 %v1836
    %v2048 = vunpack.c.l.b16 %v1837
    %v2049 = vunpack.c.h.b16 %v1837
    %v2050 = vunpack.c.l.b16 %v1838
    %v2051 = vunpack.c.h.b16 %v1838
    %v2052 = vunpack.c.l.b16 %v1839
    %v2053 = vunpack.c.h.b16 %v1839
    %v2054 = vunpack.c.l.b16 %v1840
    %v2055 = vunpack.c.h.b16 %v1840
    %v2056 = vunpack.c.l.b16 %v1841
    %v2057 = vunpack.c.h.b16 %v1841
    %v2058 = vunpack.c.l.b16 %v1842
    %v2059 = vunpack.c.h.b16 %v1842
    %v2060 = vunpack.c.l.b16 %v1843
    %v2061 = vunpack.c.h.b16 %v1843
    %v2062 = vunpack.c.l.b16 %v1844
    %v2063 = vunpack.c.h.b16 %v1844
    %v2064 = vunpack.c.l.b16 %v1845
    %v2065 = vunpack.c.h.b16 %v1845
    %v2066 = vunpack.c.l.b16 %v1846
    %v2067 = vunpack.c.h.b16 %v1846
    %v2068 = vunpack.c.l.b16 %v1847
    %v2069 = vunpack.c.h.b16 %v1847
    %v2070 = vunpack.c.l.b16 %v1848
    %v2071 = vunpack.c.h.b16 %v1848
    %v2072 = vunpack.c.l.b16 %v1849
    %v2073 = vunpack.c.h.b16 %v1849
    %v2074 = vunpack.c.l.b16 %v1850
    %v2075 = vunpack.c.h.b16 %v1850
    %v2076 = vunpack.c.l.b16 %v1851
    %v2077 = vunpack.c.h.b16 %v1851
    %v2078 = vunpack.c.l.b16 %v1852
    %v2079 = vunpack.c.h.b16 %v1852
    %v2080 = vunpack.c.l.b16 %v1853
    %v2081 = vunpack.c.h.b16 %v1853
    %v2082 = vunpack.c.l.b16 %v1854
    %v2083 = vunpack.c.h.b16 %v1854
    %v2084 = vunpack.c.l.b16 %v1855
    %v2085 = vunpack.c.h.b16 %v1855
    %v2086 = vunpack.c.l.b16 %v1856
    %v2087 = vunpack.c.h.b16 %v1856
    %v2088 = vunpack.c.l.b16 %v1857
    %v2089 = vunpack.c.h.b16 %v1857
    %v2090 = vunpack.c.l.b16 %v1858
    %v2091 = vunpack.c.h.b16 %v1858
    %v2092 = vunpack.c.l.b16 %v1859
    %v2093 = vunpack.c.h.b16 %v1859
    %v2094 = vunpack.c.l.b16 %v1860
    %v2095 = vunpack.c.h.b16 %v1860
    %v2096 = vunpack.c.l.b16 %v1861
    %v2097 = vunpack.c.h.b16 %v1861
    %v2098 = vunpack.c.l.b16 %v1862
    %v2099 = vunpack.c.h.b16 %v1862
    %v2100 = vunpack.c.l.b16 %v1863
    %v2101 = vunpack.c.h.b16 %v1863
    %v2102 = vunpack.c.l.b16 %v1864
    %v2103 = vunpack.c.h.b16 %v1864
    %v2104 = vunpack.c.l.b16 %v1865
    %v2105 = vunpack.c.h.b16 %v1865
    %v2106 = vunpack.c.l.b16 %v1866
    %v2107 = vunpack.c.h.b16 %v1866
    %v2108 = vunpack.c.l.b16 %v1867
    %v2109 = vunpack.c.h.b16 %v1867
    %v2110 = vunpack.c.l.b16 %v1868
    %v2111 = vunpack.c.h.b16 %v1868
    %v2112 = vunpack.c.l.b16 %v1869
    %v2113 = vunpack.c.h.b16 %v1869
    %v2114 = vunpack.c.l.b16 %v1870
    %v2115 = vunpack.c.h.b16 %v1870
    %v2116 = vunpack.c.l.b16 %v1871
    %v2117 = vunpack.c.h.b16 %v1871
    %v2118 = vunpack.c.l.b16 %v1872
    %v2119 = vunpack.c.h.b16 %v1872
    %v2120 = vunpack.c.l.b16 %v1873
    %v2121 = vunpack.c.h.b16 %v1873
    %v2122 = vunpack.c.l.b16 %v1874
    %v2123 = vunpack.c.h.b16 %v1874
    %v2124 = vunpack.c.l.b16 %v1875
    %v2125 = vunpack.c.h.b16 %v1875
    %v2126 = vunpack.c.l.b16 %v1876
    %v2127 = vunpack.c.h.b16 %v1876
    %v2128 = vunpack.c.l.b16 %v1877
    %v2129 = vunpack.c.h.b16 %v1877
    %v2130 = vunpack.c.l.b16 %v1878
    %v2131 = vunpack.c.h.b16 %v1878
    %v2132 = vunpack.c.l.b16 %v1879
    %v2133 = vunpack.c.h.b16 %v1879
    %v2134 = vunpack.c.l.b16 %v1880
    %v2135 = vunpack.c.h.b16 %v1880
    %v2136 = vpack.c.b16 %v1966, %v1966
    %v2137 = vpack.c.b16 %v1967, %v1967
    %v2138 = vpack.c.b16 %v1968, %v1968
    %v2139 = vpack.c.b16 %v1969, %v1969
    %v2140 = vpack.c.b16 %v1970, %v1970
    %v2141 = vpack.c.b16 %v1971, %v1971
    %v2142 = vpack.c.b16 %v1972, %v1972
    %v2143 = vpack.c.b16 %v1973, %v1973
    %v2144 = vpack.c.b16 %v1974, %v1974
    %v2145 = vpack.c.b16 %v1975, %v1975
    %v2146 = vpack.c.b16 %v1976, %v1976
    %v2147 = vpack.c.b16 %v1977, %v1977
    %v2148 = vpack.c.b16 %v1978, %v1978
    %v2149 = vpack.c.b16 %v1979, %v1979
    %v2150 = vpack.c.b16 %v1980, %v1980
    %v2151 = vpack.c.b16 %v1981, %v1981
    %v2152 = vpack.c.b16 %v1982, %v1982
    %v2153 = vpack.c.b16 %v1983, %v1983
    %v2154 = vpack.c.b16 %v1984, %v1984
    %v2155 = vpack.c.b16 %v1985, %v1985
    %v2156 = vpack.c.b16 %v1986, %v1986
    %v2157 = vpack.c.b16 %v1987, %v1987
    %v2158 = vpack.c.b16 %v1988, %v1988
    %v2159 = vpack.c.b16 %v1989, %v1989
    %v2160 = vpack.c.b16 %v1990, %v1990
    %v2161 = vpack.c.b16 %v1991, %v1991
    %v2162 = vpack.c.b16 %v1992, %v1992
    %v2163 = vpack.c.b16 %v1993, %v1993
    %v2164 = vpack.c.b16 %v1994, %v1994
    %v2165 = vpack.c.b16 %v1995, %v1995
    %v2166 = vpack.c.b16 %v1996, %v1996
    %v2167 = vpack.c.b16 %v1997, %v1997
    %v2168 = vpack.c.b16 %v1998, %v1998
    %v2169 = vpack.c.b16 %v1999, %v1999
    %v2170 = vpack.c.b16 %v2000, %v2000
    %v2171 = vpack.c.b16 %v2001, %v2001
    %v2172 = vpack.c.b16 %v2002, %v2002
    %v2173 = vpack.c.b16 %v2003, %v2003
    %v2174 = vpack.c.b16 %v2004, %v2004
    %v2175 = vpack.c.b16 %v2005, %v2005
    %v2176 = vpack.c.b16 %v2006, %v2006
    %v2177 = vpack.c.b16 %v2007, %v2007
    %v2178 = vpack.c.b16 %v2008, %v2008
    %v2179 = vpack.c.b16 %v2009, %v2009
    %v2180 = vpack.c.b16 %v2010, %v2010
    %v2181 = vpack.c.b16 %v2011, %v2011
    %v2182 = vpack.c.b16 %v2012, %v2012
    %v2183 = vpack.c.b16 %v2013, %v2013
    %v2184 = vpack.c.b16 %v2014, %v2014
    %v2185 = vpack.c.b16 %v2015, %v2015
    %v2186 = vpack.c.b16 %v2016, %v2016
    %v2187 = vpack.c.b16 %v2017, %v2017
    %v2188 = vpack.c.b16 %v2018, %v2018
    %v2189 = vpack.c.b16 %v2019, %v2019
    %v2190 = vpack.c.b16 %v2020, %v2020
    %v2191 = vpack.c.b16 %v2021, %v2021
    %v2192 = vpack.c.b16 %v2022, %v2022
    %v2193 = vpack.c.b16 %v2023, %v2023
    %v2194 = vpack.c.b16 %v2024, %v2024
    %v2195 = vpack.c.b16 %v2025, %v2025
    %v2196 = vpack.c.b16 %v2026, %v2026
    %v2197 = vpack.c.b16 %v2027, %v2027
    %v2198 = vpack.c.b16 %v2028, %v2028
    %v2199 = vpack.c.b16 %v2029, %v2029
    %v2200 = vpack.c.b16 %v2030, %v2030
    %v2201 = vpack.c.b16 %v2031, %v2031
    %v2202 = vpack.c.b16 %v2032, %v2032
    %v2203 = vpack.c.b16 %v2033, %v2033
    %v2204 = vpack.c.b16 %v2034, %v2034
    %v2205 = vpack.c.b16 %v2035, %v2035
    %v2206 = vpack.c.b16 %v2036, %v2036
    %v2207 = vpack.c.b16 %v2037, %v2037
    %v2208 = vpack.c.b16 %v2038, %v2038
    %v2209 = vpack.c.b16 %v2039, %v2039
    %v2210 = vpack.c.b16 %v2040, %v2040
    %v2211 = vpack.c.b16 %v2041, %v2041
    %v2212 = vpack.c.b16 %v2042, %v2042
    %v2213 = vpack.c.b16 %v2043, %v2043
    %v2214 = vpack.c.b16 %v2044, %v2044
    %v2215 = vpack.c.b16 %v2045, %v2045
    %v2216 = vpack.c.b16 %v2046, %v2046
    %v2217 = vpack.c.b16 %v2047, %v2047
    %v2218 = vpack.c.b16 %v2048, %v2048
    %v2219 = vpack.c.b16 %v2049, %v2049
    %v2220 = vpack.c.b16 %v2050, %v2050
    %v2221 = vpack.c.b16 %v2051, %v2051
    %v2222 = vpack.c.b16 %v2052, %v2052
    %v2223 = vpack.c.b16 %v2053, %v2053
    %v2224 = vpack.c.b16 %v2054, %v2054
    %v2225 = vpack.c.b16 %v2055, %v2055
    %v2226 = vpack.c.b16 %v2056, %v2056
    %v2227 = vpack.c.b16 %v2057, %v2057
    %v2228 = vpack.c.b16 %v2058, %v2058
    %v2229 = vpack.c.b16 %v2059, %v2059
    %v2230 = vpack.c.b16 %v2060, %v2060
    %v2231 = vpack.c.b16 %v2061, %v2061
    %v2232 = vpack.c.b16 %v2062, %v2062
    %v2233 = vpack.c.b16 %v2063, %v2063
    %v2234 = vpack.c.b16 %v2064, %v2064
    %v2235 = vpack.c.b16 %v2065, %v2065
    %v2236 = vpack.c.b16 %v2066, %v2066
    %v2237 = vpack.c.b16 %v2067, %v2067
    %v2238 = vpack.c.b16 %v2068, %v2068
    %v2239 = vpack.c.b16 %v2069, %v2069
    %v2240 = vpack.c.b16 %v2070, %v2070
    %v2241 = vpack.c.b16 %v2071, %v2071
    %v2242 = vpack.c.b16 %v2072, %v2072
    %v2243 = vpack.c.b16 %v2073, %v2073
    %v2244 = vpack.c.b16 %v2074, %v2074
    %v2245 = vpack.c.b16 %v2075, %v2075
    %v2246 = vpack.c.b16 %v2076, %v2076
    %v2247 = vpack.c.b16 %v2077, %v2077
    %v2248 = vpack.c.b16 %v2078, %v2078
    %v2249 = vpack.c.b16 %v2079, %v2079
    %v2250 = vpack.c.b16 %v2080, %v2080
    %v2251 = vpack.c.b16 %v2081, %v2081
    %v2252 = vpack.c.b16 %v2082, %v2082
    %v2253 = vpack.c.b16 %v2083, %v2083
    %v2254 = vpack.c.b16 %v2084, %v2084
    %v2255 = vpack.c.b16 %v2085, %v2085
    %v2256 = vpack.c.b16 %v2086, %v2086
    %v2257 = vpack.c.b16 %v2087, %v2087
    %v2258 = vpack.c.b16 %v2088, %v2088
    %v2259 = vpack.c.b16 %v2089, %v2089
    %v2260 = vpack.c.b16 %v2090, %v2090
    %v2261 = vpack.c.b16 %v2091, %v2091
    %v2262 = vpack.c.b16 %v2092, %v2092
    %v2263 = vpack.c.b16 %v2093, %v2093
    %v2264 = vpack.c.b16 %v2094, %v2094
    %v2265 = vpack.c.b16 %v2095, %v2095
    %v2266 = vpack.c.b16 %v2096, %v2096
    %v2267 = vpack.c.b16 %v2097, %v2097
    %v2268 = vpack.c.b16 %v2098, %v2098
    %v2269 = vpack.c.b16 %v2099, %v2099
    %v2270 = vpack.c.b16 %v2100, %v2100
    %v2271 = vpack.c.b16 %v2101, %v2101
    %v2272 = vpack.c.b16 %v2102, %v2102
    %v2273 = vpack.c.b16 %v2103, %v2103
    %v2274 = vpack.c.b16 %v2104, %v2104
    %v2275 = vpack.c.b16 %v2105, %v2105
    %v2276 = vpack.c.b16 %v2106, %v2106
    %v2277 = vpack.c.b16 %v2107, %v2107
    %v2278 = vpack.c.b16 %v2108, %v2108
    %v2279 = vpack.c.b16 %v2109, %v2109
    %v2280 = vpack.c.b16 %v2110, %v2110
    %v2281 = vpack.c.b16 %v2111, %v2111
    %v2282 = vpack.c.b16 %v2112, %v2112
    %v2283 = vpack.c.b16 %v2113, %v2113
    %v2284 = vpack.c.b16 %v2114, %v2114
    %v2285 = vpack.c.b16 %v2115, %v2115
    %v2286 = vpack.c.b16 %v2116, %v2116
    %v2287 = vpack.c.b16 %v2117, %v2117
    %v2288 = vpack.c.b16 %v2118, %v2118
    %v2289 = vpack.c.b16 %v2119, %v2119
    %v2290 = vpack.c.b16 %v2120, %v2120
    %v2291 = vpack.c.b16 %v2121, %v2121
    %v2292 = vpack.c.b16 %v2122, %v2122
    %v2293 = vpack.c.b16 %v2123, %v2123
    %v2294 = vpack.c.b16 %v2124, %v2124
    %v2295 = vpack.c.b16 %v2125, %v2125
    %v2296 = vpack.c.b16 %v2126, %v2126
    %v2297 = vpack.c.b16 %v2127, %v2127
    %v2298 = vpack.c.b16 %v2128, %v2128
    %v2299 = vpack.c.b16 %v2129, %v2129
    %v2300 = vpack.c.b16 %v2130, %v2130
    %v2301 = vpack.c.b16 %v2131, %v2131
    %v2302 = vpack.c.b16 %v2132, %v2132
    %v2303 = vpack.c.b16 %v2133, %v2133
    %v2304 = vpack.c.b16 %v2134, %v2134
    %v2305 = vpack.c.b16 %v2135, %v2135
    %vm2476 = vcmask 257024
    %2477 = vst.msk [vmem:[%s3] sm:$0xf] %vm2476, %v2136
    %2478 = vst.msk [vmem:[%s3 + $0x4] sm:$0xf] %vm2476, %v2137
    %2479 = vst.msk [vmem:[%s3 + $0x8] sm:$0xf] %vm2476, %v2138
    %2480 = vst.msk [vmem:[%s3 + $0xc] sm:$0xf] %vm2476, %v2139
    %2481 = vst.msk [vmem:[%s3 + $0x10] sm:$0xf] %vm2476, %v2140
    %2482 = vst.msk [vmem:[%s3 + $0x14] sm:$0xf] %vm2476, %v2141
    %2483 = vst.msk [vmem:[%s3 + $0x18] sm:$0xf] %vm2476, %v2142
    %2484 = vst.msk [vmem:[%s3 + $0x1c] sm:$0xf] %vm2476, %v2143
    %2485 = vst.msk [vmem:[%s3 + $0x20] sm:$0xf] %vm2476, %v2144
    %2486 = vst.msk [vmem:[%s3 + $0x24] sm:$0xf] %vm2476, %v2145
    %2487 = vst.msk [vmem:[%s3 + $0x28] sm:$0xf] %vm2476, %v2146
    %2488 = vst.msk [vmem:[%s3 + $0x2c] sm:$0xf] %vm2476, %v2147
    %2489 = vst.msk [vmem:[%s3 + $0x30] sm:$0xf] %vm2476, %v2148
    %2490 = vst.msk [vmem:[%s3 + $0x34] sm:$0xf] %vm2476, %v2149
    %2491 = vst.msk [vmem:[%s3 + $0x38] sm:$0xf] %vm2476, %v2150
    %2492 = vst.msk [vmem:[%s3 + $0x3c] sm:$0xf] %vm2476, %v2151
    %2493 = vst.msk [vmem:[%s3 + $0x40] sm:$0xf] %vm2476, %v2152
    %2494 = vst.msk [vmem:[%s3 + $0x44] sm:$0xf] %vm2476, %v2153
    %2495 = vst.msk [vmem:[%s3 + $0x48] sm:$0xf] %vm2476, %v2154
    %2496 = vst.msk [vmem:[%s3 + $0x4c] sm:$0xf] %vm2476, %v2155
    %2497 = vst.msk [vmem:[%s3 + $0x50] sm:$0xf] %vm2476, %v2156
    %2498 = vst.msk [vmem:[%s3 + $0x54] sm:$0xf] %vm2476, %v2157
    %2499 = vst.msk [vmem:[%s3 + $0x58] sm:$0xf] %vm2476, %v2158
    %2500 = vst.msk [vmem:[%s3 + $0x5c] sm:$0xf] %vm2476, %v2159
    %2501 = vst.msk [vmem:[%s3 + $0x60] sm:$0xf] %vm2476, %v2160
    %2502 = vst.msk [vmem:[%s3 + $0x64] sm:$0xf] %vm2476, %v2161
    %2503 = vst.msk [vmem:[%s3 + $0x68] sm:$0xf] %vm2476, %v2162
    %2504 = vst.msk [vmem:[%s3 + $0x6c] sm:$0xf] %vm2476, %v2163
    %2505 = vst.msk [vmem:[%s3 + $0x70] sm:$0xf] %vm2476, %v2164
    %2506 = vst.msk [vmem:[%s3 + $0x74] sm:$0xf] %vm2476, %v2165
    %2507 = vst.msk [vmem:[%s3 + $0x78] sm:$0xf] %vm2476, %v2166
    %2508 = vst.msk [vmem:[%s3 + $0x7c] sm:$0xf] %vm2476, %v2167
    %2509 = vst.msk [vmem:[%s3 + $0x80] sm:$0xf] %vm2476, %v2168
    %2510 = vst.msk [vmem:[%s3 + $0x84] sm:$0xf] %vm2476, %v2169
    %2511 = vst.msk [vmem:[%s3 + $0x88] sm:$0xf] %vm2476, %v2170
    %2512 = vst.msk [vmem:[%s3 + $0x8c] sm:$0xf] %vm2476, %v2171
    %2513 = vst.msk [vmem:[%s3 + $0x90] sm:$0xf] %vm2476, %v2172
    %2514 = vst.msk [vmem:[%s3 + $0x94] sm:$0xf] %vm2476, %v2173
    %2515 = vst.msk [vmem:[%s3 + $0x98] sm:$0xf] %vm2476, %v2174
    %2516 = vst.msk [vmem:[%s3 + $0x9c] sm:$0xf] %vm2476, %v2175
    %2517 = vst.msk [vmem:[%s3 + $0xa0] sm:$0xf] %vm2476, %v2176
    %2518 = vst.msk [vmem:[%s3 + $0xa4] sm:$0xf] %vm2476, %v2177
    %2519 = vst.msk [vmem:[%s3 + $0xa8] sm:$0xf] %vm2476, %v2178
    %2520 = vst.msk [vmem:[%s3 + $0xac] sm:$0xf] %vm2476, %v2179
    %2521 = vst.msk [vmem:[%s3 + $0xb0] sm:$0xf] %vm2476, %v2180
    %2522 = vst.msk [vmem:[%s3 + $0xb4] sm:$0xf] %vm2476, %v2181
    %2523 = vst.msk [vmem:[%s3 + $0xb8] sm:$0xf] %vm2476, %v2182
    %2524 = vst.msk [vmem:[%s3 + $0xbc] sm:$0xf] %vm2476, %v2183
    %2525 = vst.msk [vmem:[%s3 + $0xc0] sm:$0xf] %vm2476, %v2184
    %2526 = vst.msk [vmem:[%s3 + $0xc4] sm:$0xf] %vm2476, %v2185
    %2527 = vst.msk [vmem:[%s3 + $0xc8] sm:$0xf] %vm2476, %v2186
    %2528 = vst.msk [vmem:[%s3 + $0xcc] sm:$0xf] %vm2476, %v2187
    %2529 = vst.msk [vmem:[%s3 + $0xd0] sm:$0xf] %vm2476, %v2188
    %2530 = vst.msk [vmem:[%s3 + $0xd4] sm:$0xf] %vm2476, %v2189
    %2531 = vst.msk [vmem:[%s3 + $0xd8] sm:$0xf] %vm2476, %v2190
    %2532 = vst.msk [vmem:[%s3 + $0xdc] sm:$0xf] %vm2476, %v2191
    %2533 = vst.msk [vmem:[%s3 + $0xe0] sm:$0xf] %vm2476, %v2192
    %2534 = vst.msk [vmem:[%s3 + $0xe4] sm:$0xf] %vm2476, %v2193
    %2535 = vst.msk [vmem:[%s3 + $0xe8] sm:$0xf] %vm2476, %v2194
    %2536 = vst.msk [vmem:[%s3 + $0xec] sm:$0xf] %vm2476, %v2195
    %2537 = vst.msk [vmem:[%s3 + $0xf0] sm:$0xf] %vm2476, %v2196
    %2538 = vst.msk [vmem:[%s3 + $0xf4] sm:$0xf] %vm2476, %v2197
    %2539 = vst.msk [vmem:[%s3 + $0xf8] sm:$0xf] %vm2476, %v2198
    %2540 = vst.msk [vmem:[%s3 + $0xfc] sm:$0xf] %vm2476, %v2199
    %2541 = vst.msk [vmem:[%s3 + $0x100] sm:$0xf] %vm2476, %v2200
    %2542 = vst.msk [vmem:[%s3 + $0x104] sm:$0xf] %vm2476, %v2201
    %2543 = vst.msk [vmem:[%s3 + $0x108] sm:$0xf] %vm2476, %v2202
    %2544 = vst.msk [vmem:[%s3 + $0x10c] sm:$0xf] %vm2476, %v2203
    %2545 = vst.msk [vmem:[%s3 + $0x110] sm:$0xf] %vm2476, %v2204
    %2546 = vst.msk [vmem:[%s3 + $0x114] sm:$0xf] %vm2476, %v2205
    %2547 = vst.msk [vmem:[%s3 + $0x118] sm:$0xf] %vm2476, %v2206
    %2548 = vst.msk [vmem:[%s3 + $0x11c] sm:$0xf] %vm2476, %v2207
    %2549 = vst.msk [vmem:[%s3 + $0x120] sm:$0xf] %vm2476, %v2208
    %2550 = vst.msk [vmem:[%s3 + $0x124] sm:$0xf] %vm2476, %v2209
    %2551 = vst.msk [vmem:[%s3 + $0x128] sm:$0xf] %vm2476, %v2210
    %2552 = vst.msk [vmem:[%s3 + $0x12c] sm:$0xf] %vm2476, %v2211
    %2553 = vst.msk [vmem:[%s3 + $0x130] sm:$0xf] %vm2476, %v2212
    %2554 = vst.msk [vmem:[%s3 + $0x134] sm:$0xf] %vm2476, %v2213
    %2555 = vst.msk [vmem:[%s3 + $0x138] sm:$0xf] %vm2476, %v2214
    %2556 = vst.msk [vmem:[%s3 + $0x13c] sm:$0xf] %vm2476, %v2215
    %2557 = vst.msk [vmem:[%s3 + $0x140] sm:$0xf] %vm2476, %v2216
    %2558 = vst.msk [vmem:[%s3 + $0x144] sm:$0xf] %vm2476, %v2217
    %2559 = vst.msk [vmem:[%s3 + $0x148] sm:$0xf] %vm2476, %v2218
    %2560 = vst.msk [vmem:[%s3 + $0x14c] sm:$0xf] %vm2476, %v2219
    %2561 = vst.msk [vmem:[%s3 + $0x150] sm:$0xf] %vm2476, %v2220
    %2562 = vst.msk [vmem:[%s3 + $0x154] sm:$0xf] %vm2476, %v2221
    %2563 = vst.msk [vmem:[%s3 + $0x158] sm:$0xf] %vm2476, %v2222
    %2564 = vst.msk [vmem:[%s3 + $0x15c] sm:$0xf] %vm2476, %v2223
    %2565 = vst.msk [vmem:[%s3 + $0x160] sm:$0xf] %vm2476, %v2224
    %2566 = vst.msk [vmem:[%s3 + $0x164] sm:$0xf] %vm2476, %v2225
    %2567 = vst.msk [vmem:[%s3 + $0x168] sm:$0xf] %vm2476, %v2226
    %2568 = vst.msk [vmem:[%s3 + $0x16c] sm:$0xf] %vm2476, %v2227
    %2569 = vst.msk [vmem:[%s3 + $0x170] sm:$0xf] %vm2476, %v2228
    %2570 = vst.msk [vmem:[%s3 + $0x174] sm:$0xf] %vm2476, %v2229
    %2571 = vst.msk [vmem:[%s3 + $0x178] sm:$0xf] %vm2476, %v2230
    %2572 = vst.msk [vmem:[%s3 + $0x17c] sm:$0xf] %vm2476, %v2231
    %2573 = vst.msk [vmem:[%s3 + $0x180] sm:$0xf] %vm2476, %v2232
    %2574 = vst.msk [vmem:[%s3 + $0x184] sm:$0xf] %vm2476, %v2233
    %2575 = vst.msk [vmem:[%s3 + $0x188] sm:$0xf] %vm2476, %v2234
    %2576 = vst.msk [vmem:[%s3 + $0x18c] sm:$0xf] %vm2476, %v2235
    %2577 = vst.msk [vmem:[%s3 + $0x190] sm:$0xf] %vm2476, %v2236
    %2578 = vst.msk [vmem:[%s3 + $0x194] sm:$0xf] %vm2476, %v2237
    %2579 = vst.msk [vmem:[%s3 + $0x198] sm:$0xf] %vm2476, %v2238
    %2580 = vst.msk [vmem:[%s3 + $0x19c] sm:$0xf] %vm2476, %v2239
    %2581 = vst.msk [vmem:[%s3 + $0x1a0] sm:$0xf] %vm2476, %v2240
    %2582 = vst.msk [vmem:[%s3 + $0x1a4] sm:$0xf] %vm2476, %v2241
    %2583 = vst.msk [vmem:[%s3 + $0x1a8] sm:$0xf] %vm2476, %v2242
    %2584 = vst.msk [vmem:[%s3 + $0x1ac] sm:$0xf] %vm2476, %v2243
    %2585 = vst.msk [vmem:[%s3 + $0x1b0] sm:$0xf] %vm2476, %v2244
    %2586 = vst.msk [vmem:[%s3 + $0x1b4] sm:$0xf] %vm2476, %v2245
    %2587 = vst.msk [vmem:[%s3 + $0x1b8] sm:$0xf] %vm2476, %v2246
    %2588 = vst.msk [vmem:[%s3 + $0x1bc] sm:$0xf] %vm2476, %v2247
    %2589 = vst.msk [vmem:[%s3 + $0x1c0] sm:$0xf] %vm2476, %v2248
    %2590 = vst.msk [vmem:[%s3 + $0x1c4] sm:$0xf] %vm2476, %v2249
    %2591 = vst.msk [vmem:[%s3 + $0x1c8] sm:$0xf] %vm2476, %v2250
    %2592 = vst.msk [vmem:[%s3 + $0x1cc] sm:$0xf] %vm2476, %v2251
    %2593 = vst.msk [vmem:[%s3 + $0x1d0] sm:$0xf] %vm2476, %v2252
    %2594 = vst.msk [vmem:[%s3 + $0x1d4] sm:$0xf] %vm2476, %v2253
    %2595 = vst.msk [vmem:[%s3 + $0x1d8] sm:$0xf] %vm2476, %v2254
    %2596 = vst.msk [vmem:[%s3 + $0x1dc] sm:$0xf] %vm2476, %v2255
    %2597 = vst.msk [vmem:[%s3 + $0x1e0] sm:$0xf] %vm2476, %v2256
    %2598 = vst.msk [vmem:[%s3 + $0x1e4] sm:$0xf] %vm2476, %v2257
    %2599 = vst.msk [vmem:[%s3 + $0x1e8] sm:$0xf] %vm2476, %v2258
    %2600 = vst.msk [vmem:[%s3 + $0x1ec] sm:$0xf] %vm2476, %v2259
    %2601 = vst.msk [vmem:[%s3 + $0x1f0] sm:$0xf] %vm2476, %v2260
    %2602 = vst.msk [vmem:[%s3 + $0x1f4] sm:$0xf] %vm2476, %v2261
    %2603 = vst.msk [vmem:[%s3 + $0x1f8] sm:$0xf] %vm2476, %v2262
    %2604 = vst.msk [vmem:[%s3 + $0x1fc] sm:$0xf] %vm2476, %v2263
    %2605 = vst.msk [vmem:[%s3 + $0x200] sm:$0xf] %vm2476, %v2264
    %2606 = vst.msk [vmem:[%s3 + $0x204] sm:$0xf] %vm2476, %v2265
    %2607 = vst.msk [vmem:[%s3 + $0x208] sm:$0xf] %vm2476, %v2266
    %2608 = vst.msk [vmem:[%s3 + $0x20c] sm:$0xf] %vm2476, %v2267
    %2609 = vst.msk [vmem:[%s3 + $0x210] sm:$0xf] %vm2476, %v2268
    %2610 = vst.msk [vmem:[%s3 + $0x214] sm:$0xf] %vm2476, %v2269
    %2611 = vst.msk [vmem:[%s3 + $0x218] sm:$0xf] %vm2476, %v2270
    %2612 = vst.msk [vmem:[%s3 + $0x21c] sm:$0xf] %vm2476, %v2271
    %2613 = vst.msk [vmem:[%s3 + $0x220] sm:$0xf] %vm2476, %v2272
    %2614 = vst.msk [vmem:[%s3 + $0x224] sm:$0xf] %vm2476, %v2273
    %2615 = vst.msk [vmem:[%s3 + $0x228] sm:$0xf] %vm2476, %v2274
    %2616 = vst.msk [vmem:[%s3 + $0x22c] sm:$0xf] %vm2476, %v2275
    %2617 = vst.msk [vmem:[%s3 + $0x230] sm:$0xf] %vm2476, %v2276
    %2618 = vst.msk [vmem:[%s3 + $0x234] sm:$0xf] %vm2476, %v2277
    %2619 = vst.msk [vmem:[%s3 + $0x238] sm:$0xf] %vm2476, %v2278
    %2620 = vst.msk [vmem:[%s3 + $0x23c] sm:$0xf] %vm2476, %v2279
    %2621 = vst.msk [vmem:[%s3 + $0x240] sm:$0xf] %vm2476, %v2280
    %2622 = vst.msk [vmem:[%s3 + $0x244] sm:$0xf] %vm2476, %v2281
    %2623 = vst.msk [vmem:[%s3 + $0x248] sm:$0xf] %vm2476, %v2282
    %2624 = vst.msk [vmem:[%s3 + $0x24c] sm:$0xf] %vm2476, %v2283
    %2625 = vst.msk [vmem:[%s3 + $0x250] sm:$0xf] %vm2476, %v2284
    %2626 = vst.msk [vmem:[%s3 + $0x254] sm:$0xf] %vm2476, %v2285
    %2627 = vst.msk [vmem:[%s3 + $0x258] sm:$0xf] %vm2476, %v2286
    %2628 = vst.msk [vmem:[%s3 + $0x25c] sm:$0xf] %vm2476, %v2287
    %2629 = vst.msk [vmem:[%s3 + $0x260] sm:$0xf] %vm2476, %v2288
    %2630 = vst.msk [vmem:[%s3 + $0x264] sm:$0xf] %vm2476, %v2289
    %2631 = vst.msk [vmem:[%s3 + $0x268] sm:$0xf] %vm2476, %v2290
    %2632 = vst.msk [vmem:[%s3 + $0x26c] sm:$0xf] %vm2476, %v2291
    %2633 = vst.msk [vmem:[%s3 + $0x270] sm:$0xf] %vm2476, %v2292
    %2634 = vst.msk [vmem:[%s3 + $0x274] sm:$0xf] %vm2476, %v2293
    %2635 = vst.msk [vmem:[%s3 + $0x278] sm:$0xf] %vm2476, %v2294
    %2636 = vst.msk [vmem:[%s3 + $0x27c] sm:$0xf] %vm2476, %v2295
    %2637 = vst.msk [vmem:[%s3 + $0x280] sm:$0xf] %vm2476, %v2296
    %2638 = vst.msk [vmem:[%s3 + $0x284] sm:$0xf] %vm2476, %v2297
    %2639 = vst.msk [vmem:[%s3 + $0x288] sm:$0xf] %vm2476, %v2298
    %2640 = vst.msk [vmem:[%s3 + $0x28c] sm:$0xf] %vm2476, %v2299
    %2641 = vst.msk [vmem:[%s3 + $0x290] sm:$0xf] %vm2476, %v2300
    %2642 = vst.msk [vmem:[%s3 + $0x294] sm:$0xf] %vm2476, %v2301
    %2643 = vst.msk [vmem:[%s3 + $0x298] sm:$0xf] %vm2476, %v2302
    %2644 = vst.msk [vmem:[%s3 + $0x29c] sm:$0xf] %vm2476, %v2303
    %2645 = vst.msk [vmem:[%s3 + $0x2a0] sm:$0xf] %vm2476, %v2304
    %2646 = vst.msk [vmem:[%s3 + $0x2a4] sm:$0xf] %vm2476, %v2305
    // Predicated region
    $region22: #{net_forward.3} parent=1 // pred_check
      _
    $region23: #{net_forward.3} parent=1 // pred_check_branch
      %2648 = sbr.rel (0) target = $region25
    $region24: #{net_forward.3} parent=1 // pred_region
      _
    $region25: #{net_forward.3} parent=1 // pred_fallthru
      _
    // Predicated region
    $region26: #{net_forward.3} parent=1 // pred_check
      _
    $region27: #{net_forward.3} parent=1 // pred_check_branch
      %2650 = sbr.rel (0) target = $region29
    $region28: #{net_forward.3} parent=1 // pred_region
      _
    $region29: #{net_forward.3} parent=1 // pred_fallthru
      _
    %2651 = vsyncpa [#allocation3], 1
    %2652 = vsyncpa [#allocation5], 1

// kernel: net_forward.4
$region0: #{net_forward.4}
  #allocation0 [shape = 'u32[]', space=smem, size = 0x4, offset = 0x4, fixed_abs, tag = 'smem constant byte address 0x4 - core index']
  #allocation1 [shape = 'u32[144,128]{1,0:T(1,128)}', space=vmem, size = 0x12000, scoped, tag = 'internal scratch']
  %s0 = inlined_call_operand.vmem [shape: bf16[1152,288], index: 0, kind: input, shape index: {}]
  %s1 = inlined_call_operand.vmem [shape: bf16[288,64], index: 1, kind: input, shape index: {}]
  %s2 = inlined_call_operand.vmem [shape: f32[1,64], index: 2, kind: input, shape index: {}]
  %s3 = inlined_call_operand.vmem [shape: bf16[288,64], index: 3, kind: output, shape index: {}]
  %s4 = sld [smem:[#allocation0]]
  $region45: #{net_forward.4} parent=0
    _
  %s6 = ssub.s32 1, %s4
  %s7 = scalar_select 0, %s6, %s4
  loop: start=0, step=1, limit=4
  $region2: #{net_forward.4} parent=0 // loop_pre_header
    _
  $region3: #{net_forward.4} parent=0 // loop_header
    %s9 = sphi 0, %s13
    %p10 = scmp.ge.s32.totalorder %s9, 4
    %s19 = sphi 0, %s21
    %s22 = sphi 0, %s19
    %s23 = sphi 0, %s22
    %s39 = sphi 0, %s23
    %s43 = sphi 0, %s43
    %s45 = sphi 0, %s43
    %s46 = sphi 0, %s45
    %s60 = sphi 0, %s46
    %s64 = sphi 0, %s64
    %s66 = sphi 0, %s64
    %s67 = sphi 0, %s66
    %s81 = sphi 0, %s67
    %s87 = sphi 0, %s89
    %s90 = sphi 0, %s87
    %s91 = sphi 0, %s90
    %s107 = sphi 0, %s91
  $region4: #{net_forward.4} parent=0 // loop_header_branch
    %12 = sbr.rel (%p10) target = $region8
  $region5: #{net_forward.4} parent=0 // loop_body
    %s14 = ssub.s32 %s9, 1
    %s15 = ssub.s32 %s9, 2
    %s16 = sadd.s32 %s9, 1
    %s17 = ssub.s32 %s9, %s16
    %p18 = scmp.eq.s32.totalorder %s17, 0
    %s20 = sadd.s32 %s19, 1
    %s21 = scalar_select %p18, %s19, %s20
    %p24 = pneg %p18
    %p25 = scmp.eq.s32.totalorder %s9, 1
    %p26 = por %p24, %p25
    %p27 = scmp.ne.s32.totalorder %s19, %s22
    %p28 = scmp.eq.s32.totalorder %s9, 0
    %p29 = por %p27, %p28
    %p30 = scmp.ne.s32.totalorder %s19, %s22
    %p31 = scmp.eq.s32.totalorder %s14, 1
    %p32 = por %p30, %p31
    %p33 = scmp.ne.s32.totalorder %s22, %s23
    %p34 = scmp.eq.s32.totalorder %s14, 0
    %p35 = por %p33, %p34
    %p36 = scmp.ne.s32.totalorder %s22, %s23
    %p37 = scmp.eq.s32.totalorder %s15, 1
    %p38 = por %p36, %p37
    %p40 = scmp.ne.s32.totalorder %s23, %s39
    %p41 = scmp.eq.s32.totalorder %s15, 0
    %p42 = por %p40, %p41
    %s44 = sadd.s32 %s43, 1
    %p47 = scmp.eq.s32.totalorder %s9, 1
    %p48 = scmp.ne.s32.totalorder %s43, %s45
    %p49 = scmp.eq.s32.totalorder %s9, 0
    %p50 = por %p48, %p49
    %p51 = scmp.ne.s32.totalorder %s43, %s45
    %p52 = scmp.eq.s32.totalorder %s14, 1
    %p53 = por %p51, %p52
    %p54 = scmp.ne.s32.totalorder %s45, %s46
    %p55 = scmp.eq.s32.totalorder %s14, 0
    %p56 = por %p54, %p55
    %p57 = scmp.ne.s32.totalorder %s45, %s46
    %p58 = scmp.eq.s32.totalorder %s15, 1
    %p59 = por %p57, %p58
    %p61 = scmp.ne.s32.totalorder %s46, %s60
    %p62 = scmp.eq.s32.totalorder %s15, 0
    %p63 = por %p61, %p62
    %s65 = sadd.s32 %s64, 1
    %p68 = scmp.eq.s32.totalorder %s9, 1
    %p69 = scmp.ne.s32.totalorder %s64, %s66
    %p70 = scmp.eq.s32.totalorder %s9, 0
    %p71 = por %p69, %p70
    %p72 = scmp.ne.s32.totalorder %s64, %s66
    %p73 = scmp.eq.s32.totalorder %s14, 1
    %p74 = por %p72, %p73
    %p75 = scmp.ne.s32.totalorder %s66, %s67
    %p76 = scmp.eq.s32.totalorder %s14, 0
    %p77 = por %p75, %p76
    %p78 = scmp.ne.s32.totalorder %s66, %s67
    %p79 = scmp.eq.s32.totalorder %s15, 1
    %p80 = por %p78, %p79
    %p82 = scmp.ne.s32.totalorder %s67, %s81
    %p83 = scmp.eq.s32.totalorder %s15, 0
    %p84 = por %p82, %p83
    %s85 = ssub.s32 %s9, %s16
    %p86 = scmp.eq.s32.totalorder %s85, 0
    %s88 = sadd.s32 %s87, 1
    %s89 = scalar_select %p86, %s87, %s88
    %p92 = pneg %p86
    %p93 = scmp.eq.s32.totalorder %s9, 1
    %p94 = por %p92, %p93
    %p95 = scmp.ne.s32.totalorder %s87, %s90
    %p96 = scmp.eq.s32.totalorder %s9, 0
    %p97 = por %p95, %p96
    %p98 = scmp.ne.s32.totalorder %s87, %s90
    %p99 = scmp.eq.s32.totalorder %s14, 1
    %p100 = por %p98, %p99
    %p101 = scmp.ne.s32.totalorder %s90, %s91
    %p102 = scmp.eq.s32.totalorder %s14, 0
    %p103 = por %p101, %p102
    %p104 = scmp.ne.s32.totalorder %s90, %s91
    %p105 = scmp.eq.s32.totalorder %s15, 1
    %p106 = por %p104, %p105
    %p108 = scmp.ne.s32.totalorder %s91, %s107
    %p109 = scmp.eq.s32.totalorder %s15, 0
    %p110 = por %p108, %p109
    %p111 = scmp.le.s32.totalorder 1, %s9
    %p112 = scmp.lt.s32.totalorder %s9, 3
    %p113 = pnand %p111, %p112
    %p114 = pneg %p113
    // Predicated region
    $region9: #{net_forward.4} parent=5 // pred_check
      _
    $region10: #{net_forward.4} parent=5 // pred_check_branch
      %116 = sbr.rel (%p113) target = $region12
    $region11: #{net_forward.4} parent=5 // pred_region
      %s117 = ssub.s32 %s9, 1
      // Predicated region
      $region13: #{net_forward.4} parent=11 // pred_check
        %p118 = pneg %p56
      $region14: #{net_forward.4} parent=11 // pred_check_branch
        %120 = sbr.rel (%p118) target = $region16
      $region15: #{net_forward.4} parent=11 // pred_region
        _
      $region16: #{net_forward.4} parent=11 // pred_fallthru
        _
      // Predicated region
      $region17: #{net_forward.4} parent=11 // pred_check
        %p121 = pneg %p77
      $region18: #{net_forward.4} parent=11 // pred_check_branch
        %123 = sbr.rel (%p121) target = $region20
      $region19: #{net_forward.4} parent=11 // pred_region
        _
      $region20: #{net_forward.4} parent=11 // pred_fallthru
        _
    $region12: #{net_forward.4} parent=5 // pred_fallthru
      _
    %p124 = scmp.lt.s32.totalorder %s9, 2
    // Predicated region
    $region21: #{net_forward.4} parent=5 // pred_check
      %p125 = pneg %p124
    $region22: #{net_forward.4} parent=5 // pred_check_branch
      %127 = sbr.rel (%p125) target = $region24
    $region23: #{net_forward.4} parent=5 // pred_region
      // Predicated region
      $region25: #{net_forward.4} parent=23 // pred_check
        %p128 = pneg %p29
      $region26: #{net_forward.4} parent=23 // pred_check_branch
        %130 = sbr.rel (%p128) target = $region28
      $region27: #{net_forward.4} parent=23 // pred_region
        %s131 = smul.u32 72, %s9
        %p132 = scmp.lt.s32.totalorder %s131, 143
        %s133 = scalar_select %p132, %s131, 143
        %s134 = smul.addr %s133, 3
        %s135 = smul.addr %s134, 4
        %s136 = scalar_lea.vmem %s0, %s135
        %s137 = smul.u32 72, %s9
      $region28: #{net_forward.4} parent=23 // pred_fallthru
        _
    $region24: #{net_forward.4} parent=5 // pred_fallthru
      _
    %p138 = scmp.le.s32.totalorder 1, %s9
    %p139 = scmp.lt.s32.totalorder %s9, 3
    %p140 = pnand %p138, %p139
    %p141 = pneg %p140
    // Predicated region
    $region29: #{net_forward.4} parent=5 // pred_check
      _
    $region30: #{net_forward.4} parent=5 // pred_check_branch
      %143 = sbr.rel (%p140) target = $region32
    $region31: #{net_forward.4} parent=5 // pred_region
      %s144 = ssub.s32 %s9, 1
      %s145 = smul.u32 72, %s14
      %p146 = scmp.lt.s32.totalorder %s145, 143
      %s147 = scalar_select %p146, %s145, 143
      %s148 = smul.addr %s147, 3
      %s149 = smul.addr %s148, 4
      %s150 = scalar_lea.vmem %s0, %s149
      %p151 = pneg %p35
      %p152 = pneg %p32
      %p153 = pneg %p56
      %p154 = pneg %p53
      %p155 = pneg %p77
      %p156 = pneg %p74
      %p157 = pneg %p103
      %p158 = pneg %p100
      %s159 = smul.u32 18, %s14
      %p160 = scmp.lt.s32.totalorder %s159, 35
      %s161 = scalar_select %p160, %s159, 35
      %s162 = smul.addr %s161, 4
      %s163 = scalar_lea.vmem %s3, %s162
      %s164 = smul.u32 72, %s14
      %p165 = scmp.lt.s32.totalorder %s164, 143
      %s166 = scalar_select %p165, %s164, 143
      %s167 = smul.addr %s166, 3
      %s168 = smul.addr %s167, 4
      %s169 = scalar_lea.vmem %s0, %s168
      %s170 = smul.u32 72, %s14
      %s171 = smul.u32 18, %s14
      %p172 = scmp.lt.s32.totalorder %s171, 35
      %s173 = scalar_select %p172, %s171, 35
      %s174 = smul.addr %s173, 4
      %s175 = scalar_lea.vmem %s3, %s174
      %s176 = smul.u32 18, %s14
      %v178 = vld [vmem:[%s169] sm:$0xff]
      %v179 = vld [vmem:[%s169 + $0x8] sm:$0xf]
      %v180 = vld [vmem:[%s169 + $0xc] sm:$0xff]
      %v181 = vld [vmem:[%s169 + $0x14] sm:$0xf]
      %v182 = vld [vmem:[%s169 + $0x18] sm:$0xff]
      %v183 = vld [vmem:[%s169 + $0x20] sm:$0xf]
      %v184 = vld [vmem:[%s169 + $0x24] sm:$0xff]
      %v185 = vld [vmem:[%s169 + $0x2c] sm:$0xf]
      %v186 = vld [vmem:[%s169 + $0x30] sm:$0xff]
      %v187 = vld [vmem:[%s169 + $0x38] sm:$0xf]
      %v188 = vld [vmem:[%s169 + $0x3c] sm:$0xff]
      %v189 = vld [vmem:[%s169 + $0x44] sm:$0xf]
      %v190 = vld [vmem:[%s169 + $0x48] sm:$0xff]
      %v191 = vld [vmem:[%s169 + $0x50] sm:$0xf]
      %v192 = vld [vmem:[%s169 + $0x54] sm:$0xff]
      %v193 = vld [vmem:[%s169 + $0x5c] sm:$0xf]
      %v194 = vld [vmem:[%s169 + $0x60] sm:$0xff]
      %v195 = vld [vmem:[%s169 + $0x68] sm:$0xf]
      %v196 = vld [vmem:[%s169 + $0x6c] sm:$0xff]
      %v197 = vld [vmem:[%s169 + $0x74] sm:$0xf]
      %v198 = vld [vmem:[%s169 + $0x78] sm:$0xff]
      %v199 = vld [vmem:[%s169 + $0x80] sm:$0xf]
      %v200 = vld [vmem:[%s169 + $0x84] sm:$0xff]
      %v201 = vld [vmem:[%s169 + $0x8c] sm:$0xf]
      %v202 = vld [vmem:[%s169 + $0x90] sm:$0xff]
      %v203 = vld [vmem:[%s169 + $0x98] sm:$0xf]
      %v204 = vld [vmem:[%s169 + $0x9c] sm:$0xff]
      %v205 = vld [vmem:[%s169 + $0xa4] sm:$0xf]
      %v206 = vld [vmem:[%s169 + $0xa8] sm:$0xff]
      %v207 = vld [vmem:[%s169 + $0xb0] sm:$0xf]
      %v208 = vld [vmem:[%s169 + $0xb4] sm:$0xff]
      %v209 = vld [vmem:[%s169 + $0xbc] sm:$0xf]
      %v210 = vld [vmem:[%s169 + $0xc0] sm:$0xff]
      %v211 = vld [vmem:[%s169 + $0xc8] sm:$0xf]
      %v212 = vld [vmem:[%s169 + $0xcc] sm:$0xff]
      %v213 = vld [vmem:[%s169 + $0xd4] sm:$0xf]
      %v214 = vld [vmem:[%s169 + $0xd8] sm:$0xff]
      %v215 = vld [vmem:[%s169 + $0xe0] sm:$0xf]
      %v216 = vld [vmem:[%s169 + $0xe4] sm:$0xff]
      %v217 = vld [vmem:[%s169 + $0xec] sm:$0xf]
      %v218 = vld [vmem:[%s169 + $0xf0] sm:$0xff]
      %v219 = vld [vmem:[%s169 + $0xf8] sm:$0xf]
      %v220 = vld [vmem:[%s169 + $0xfc] sm:$0xff]
      %v221 = vld [vmem:[%s169 + $0x104] sm:$0xf]
      %v222 = vld [vmem:[%s169 + $0x108] sm:$0xff]
      %v223 = vld [vmem:[%s169 + $0x110] sm:$0xf]
      %v224 = vld [vmem:[%s169 + $0x114] sm:$0xff]
      %v225 = vld [vmem:[%s169 + $0x11c] sm:$0xf]
      %v226 = vld [vmem:[%s169 + $0x120] sm:$0xff]
      %v227 = vld [vmem:[%s169 + $0x128] sm:$0xf]
      %v228 = vld [vmem:[%s169 + $0x12c] sm:$0xff]
      %v229 = vld [vmem:[%s169 + $0x134] sm:$0xf]
      %v230 = vld [vmem:[%s169 + $0x138] sm:$0xff]
      %v231 = vld [vmem:[%s169 + $0x140] sm:$0xf]
      %v232 = vld [vmem:[%s169 + $0x144] sm:$0xff]
      %v233 = vld [vmem:[%s169 + $0x14c] sm:$0xf]
      %v234 = vld [vmem:[%s169 + $0x150] sm:$0xff]
      %v235 = vld [vmem:[%s169 + $0x158] sm:$0xf]
      %v236 = vld [vmem:[%s169 + $0x15c] sm:$0xff]
      %v237 = vld [vmem:[%s169 + $0x164] sm:$0xf]
      %v238 = vld [vmem:[%s169 + $0x168] sm:$0xff]
      %v239 = vld [vmem:[%s169 + $0x170] sm:$0xf]
      %v240 = vld [vmem:[%s169 + $0x174] sm:$0xff]
      %v241 = vld [vmem:[%s169 + $0x17c] sm:$0xf]
      %v242 = vld [vmem:[%s169 + $0x180] sm:$0xff]
      %v243 = vld [vmem:[%s169 + $0x188] sm:$0xf]
      %v244 = vld [vmem:[%s169 + $0x18c] sm:$0xff]
      %v245 = vld [vmem:[%s169 + $0x194] sm:$0xf]
      %v246 = vld [vmem:[%s169 + $0x198] sm:$0xff]
      %v247 = vld [vmem:[%s169 + $0x1a0] sm:$0xf]
      %v248 = vld [vmem:[%s169 + $0x1a4] sm:$0xff]
      %v249 = vld [vmem:[%s169 + $0x1ac] sm:$0xf]
      %v250 = vld [vmem:[%s169 + $0x1b0] sm:$0xff]
      %v251 = vld [vmem:[%s169 + $0x1b8] sm:$0xf]
      %v252 = vld [vmem:[%s169 + $0x1bc] sm:$0xff]
      %v253 = vld [vmem:[%s169 + $0x1c4] sm:$0xf]
      %v254 = vld [vmem:[%s169 + $0x1c8] sm:$0xff]
      %v255 = vld [vmem:[%s169 + $0x1d0] sm:$0xf]
      %v256 = vld [vmem:[%s169 + $0x1d4] sm:$0xff]
      %v257 = vld [vmem:[%s169 + $0x1dc] sm:$0xf]
      %v258 = vld [vmem:[%s169 + $0x1e0] sm:$0xff]
      %v259 = vld [vmem:[%s169 + $0x1e8] sm:$0xf]
      %v260 = vld [vmem:[%s169 + $0x1ec] sm:$0xff]
      %v261 = vld [vmem:[%s169 + $0x1f4] sm:$0xf]
      %v262 = vld [vmem:[%s169 + $0x1f8] sm:$0xff]
      %v263 = vld [vmem:[%s169 + $0x200] sm:$0xf]
      %v264 = vld [vmem:[%s169 + $0x204] sm:$0xff]
      %v265 = vld [vmem:[%s169 + $0x20c] sm:$0xf]
      %v266 = vld [vmem:[%s169 + $0x210] sm:$0xff]
      %v267 = vld [vmem:[%s169 + $0x218] sm:$0xf]
      %v268 = vld [vmem:[%s169 + $0x21c] sm:$0xff]
      %v269 = vld [vmem:[%s169 + $0x224] sm:$0xf]
      %v270 = vld [vmem:[%s169 + $0x228] sm:$0xff]
      %v271 = vld [vmem:[%s169 + $0x230] sm:$0xf]
      %v272 = vld [vmem:[%s169 + $0x234] sm:$0xff]
      %v273 = vld [vmem:[%s169 + $0x23c] sm:$0xf]
      %v274 = vld [vmem:[%s169 + $0x240] sm:$0xff]
      %v275 = vld [vmem:[%s169 + $0x248] sm:$0xf]
      %v276 = vld [vmem:[%s169 + $0x24c] sm:$0xff]
      %v277 = vld [vmem:[%s169 + $0x254] sm:$0xf]
      %v278 = vld [vmem:[%s169 + $0x258] sm:$0xff]
      %v279 = vld [vmem:[%s169 + $0x260] sm:$0xf]
      %v280 = vld [vmem:[%s169 + $0x264] sm:$0xff]
      %v281 = vld [vmem:[%s169 + $0x26c] sm:$0xf]
      %v282 = vld [vmem:[%s169 + $0x270] sm:$0xff]
      %v283 = vld [vmem:[%s169 + $0x278] sm:$0xf]
      %v284 = vld [vmem:[%s169 + $0x27c] sm:$0xff]
      %v285 = vld [vmem:[%s169 + $0x284] sm:$0xf]
      %v286 = vld [vmem:[%s169 + $0x288] sm:$0xff]
      %v287 = vld [vmem:[%s169 + $0x290] sm:$0xf]
      %v288 = vld [vmem:[%s169 + $0x294] sm:$0xff]
      %v289 = vld [vmem:[%s169 + $0x29c] sm:$0xf]
      %v290 = vld [vmem:[%s169 + $0x2a0] sm:$0xff]
      %v291 = vld [vmem:[%s169 + $0x2a8] sm:$0xf]
      %v292 = vld [vmem:[%s169 + $0x2ac] sm:$0xff]
      %v293 = vld [vmem:[%s169 + $0x2b4] sm:$0xf]
      %v294 = vld [vmem:[%s169 + $0x2b8] sm:$0xff]
      %v295 = vld [vmem:[%s169 + $0x2c0] sm:$0xf]
      %v296 = vld [vmem:[%s169 + $0x2c4] sm:$0xff]
      %v297 = vld [vmem:[%s169 + $0x2cc] sm:$0xf]
      %v298 = vld [vmem:[%s169 + $0x2d0] sm:$0xff]
      %v299 = vld [vmem:[%s169 + $0x2d8] sm:$0xf]
      %v300 = vld [vmem:[%s169 + $0x2dc] sm:$0xff]
      %v301 = vld [vmem:[%s169 + $0x2e4] sm:$0xf]
      %v302 = vld [vmem:[%s169 + $0x2e8] sm:$0xff]
      %v303 = vld [vmem:[%s169 + $0x2f0] sm:$0xf]
      %v304 = vld [vmem:[%s169 + $0x2f4] sm:$0xff]
      %v305 = vld [vmem:[%s169 + $0x2fc] sm:$0xf]
      %v306 = vld [vmem:[%s169 + $0x300] sm:$0xff]
      %v307 = vld [vmem:[%s169 + $0x308] sm:$0xf]
      %v308 = vld [vmem:[%s169 + $0x30c] sm:$0xff]
      %v309 = vld [vmem:[%s169 + $0x314] sm:$0xf]
      %v310 = vld [vmem:[%s169 + $0x318] sm:$0xff]
      %v311 = vld [vmem:[%s169 + $0x320] sm:$0xf]
      %v312 = vld [vmem:[%s169 + $0x324] sm:$0xff]
      %v313 = vld [vmem:[%s169 + $0x32c] sm:$0xf]
      %v314 = vld [vmem:[%s169 + $0x330] sm:$0xff]
      %v315 = vld [vmem:[%s169 + $0x338] sm:$0xf]
      %v316 = vld [vmem:[%s169 + $0x33c] sm:$0xff]
      %v317 = vld [vmem:[%s169 + $0x344] sm:$0xf]
      %v318 = vld [vmem:[%s169 + $0x348] sm:$0xff]
      %v319 = vld [vmem:[%s169 + $0x350] sm:$0xf]
      %v320 = vld [vmem:[%s169 + $0x354] sm:$0xff]
      %v321 = vld [vmem:[%s169 + $0x35c] sm:$0xf]
      %v322 = vld [vmem:[%s1] sm:$0xf]
      %v323 = vld [vmem:[%s1 + $0x4] sm:$0xf]
      %v324 = vld [vmem:[%s1 + $0x8] sm:$0xf]
      %v325 = vld [vmem:[%s1 + $0xc] sm:$0xf]
      %v326 = vld [vmem:[%s1 + $0x10] sm:$0xf]
      %v327 = vld [vmem:[%s1 + $0x14] sm:$0xf]
      %v328 = vld [vmem:[%s1 + $0x18] sm:$0xf]
      %v329 = vld [vmem:[%s1 + $0x1c] sm:$0xf]
      %v330 = vld [vmem:[%s1 + $0x20] sm:$0xf]
      %v331 = vld [vmem:[%s1 + $0x24] sm:$0xf]
      %v332 = vld [vmem:[%s1 + $0x28] sm:$0xf]
      %v333 = vld [vmem:[%s1 + $0x2c] sm:$0xf]
      %v334 = vld [vmem:[%s1 + $0x30] sm:$0xf]
      %v335 = vld [vmem:[%s1 + $0x34] sm:$0xf]
      %v336 = vld [vmem:[%s1 + $0x38] sm:$0xf]
      %v337 = vld [vmem:[%s1 + $0x3c] sm:$0xf]
      %v338 = vld [vmem:[%s1 + $0x40] sm:$0xf]
      %v339 = vld [vmem:[%s1 + $0x44] sm:$0xf]
      %v340 = vld [vmem:[%s1 + $0x48] sm:$0xf]
      %v341 = vld [vmem:[%s1 + $0x4c] sm:$0xf]
      %v342 = vld [vmem:[%s1 + $0x50] sm:$0xf]
      %v343 = vld [vmem:[%s1 + $0x54] sm:$0xf]
      %v344 = vld [vmem:[%s1 + $0x58] sm:$0xf]
      %v345 = vld [vmem:[%s1 + $0x5c] sm:$0xf]
      %v346 = vld [vmem:[%s1 + $0x60] sm:$0xf]
      %v347 = vld [vmem:[%s1 + $0x64] sm:$0xf]
      %v348 = vld [vmem:[%s1 + $0x68] sm:$0xf]
      %v349 = vld [vmem:[%s1 + $0x6c] sm:$0xf]
      %v350 = vld [vmem:[%s1 + $0x70] sm:$0xf]
      %v351 = vld [vmem:[%s1 + $0x74] sm:$0xf]
      %v352 = vld [vmem:[%s1 + $0x78] sm:$0xf]
      %v353 = vld [vmem:[%s1 + $0x7c] sm:$0xf]
      %v354 = vld [vmem:[%s1 + $0x80] sm:$0xf]
      %v355 = vld [vmem:[%s1 + $0x84] sm:$0xf]
      %v356 = vld [vmem:[%s1 + $0x88] sm:$0xf]
      %v357 = vld [vmem:[%s1 + $0x8c] sm:$0xf]
      %v502 = vunpack.c.l.b16 %v178
      %v503 = vunpack.c.h.b16 %v178
      %v504 = vunpack.c.l.b16 %v179
      %v505 = vunpack.c.l.b16 %v180
      %v506 = vunpack.c.h.b16 %v180
      %v507 = vunpack.c.l.b16 %v181
      %v508 = vunpack.c.l.b16 %v182
      %v509 = vunpack.c.h.b16 %v182
      %v510 = vunpack.c.l.b16 %v183
      %v511 = vunpack.c.l.b16 %v184
      %v512 = vunpack.c.h.b16 %v184
      %v513 = vunpack.c.l.b16 %v185
      %v514 = vunpack.c.l.b16 %v186
      %v515 = vunpack.c.h.b16 %v186
      %v516 = vunpack.c.l.b16 %v187
      %v517 = vunpack.c.l.b16 %v188
      %v518 = vunpack.c.h.b16 %v188
      %v519 = vunpack.c.l.b16 %v189
      %v520 = vunpack.c.l.b16 %v190
      %v521 = vunpack.c.h.b16 %v190
      %v522 = vunpack.c.l.b16 %v191
      %v523 = vunpack.c.l.b16 %v192
      %v524 = vunpack.c.h.b16 %v192
      %v525 = vunpack.c.l.b16 %v193
      %v526 = vunpack.c.l.b16 %v194
      %v527 = vunpack.c.h.b16 %v194
      %v528 = vunpack.c.l.b16 %v195
      %v529 = vunpack.c.l.b16 %v196
      %v530 = vunpack.c.h.b16 %v196
      %v531 = vunpack.c.l.b16 %v197
      %v532 = vunpack.c.l.b16 %v198
      %v533 = vunpack.c.h.b16 %v198
      %v534 = vunpack.c.l.b16 %v199
      %v535 = vunpack.c.l.b16 %v200
      %v536 = vunpack.c.h.b16 %v200
      %v537 = vunpack.c.l.b16 %v201
      %v538 = vunpack.c.l.b16 %v202
      %v539 = vunpack.c.h.b16 %v202
      %v540 = vunpack.c.l.b16 %v203
      %v541 = vunpack.c.l.b16 %v204
      %v542 = vunpack.c.h.b16 %v204
      %v543 = vunpack.c.l.b16 %v205
      %v544 = vunpack.c.l.b16 %v206
      %v545 = vunpack.c.h.b16 %v206
      %v546 = vunpack.c.l.b16 %v207
      %v547 = vunpack.c.l.b16 %v208
      %v548 = vunpack.c.h.b16 %v208
      %v549 = vunpack.c.l.b16 %v209
      %v550 = vunpack.c.l.b16 %v210
      %v551 = vunpack.c.h.b16 %v210
      %v552 = vunpack.c.l.b16 %v211
      %v553 = vunpack.c.l.b16 %v212
      %v554 = vunpack.c.h.b16 %v212
      %v555 = vunpack.c.l.b16 %v213
      %v556 = vunpack.c.l.b16 %v214
      %v557 = vunpack.c.h.b16 %v214
      %v558 = vunpack.c.l.b16 %v215
      %v559 = vunpack.c.l.b16 %v216
      %v560 = vunpack.c.h.b16 %v216
      %v561 = vunpack.c.l.b16 %v217
      %v562 = vunpack.c.l.b16 %v218
      %v563 = vunpack.c.h.b16 %v218
      %v564 = vunpack.c.l.b16 %v219
      %v565 = vunpack.c.l.b16 %v220
      %v566 = vunpack.c.h.b16 %v220
      %v567 = vunpack.c.l.b16 %v221
      %v568 = vunpack.c.l.b16 %v222
      %v569 = vunpack.c.h.b16 %v222
      %v570 = vunpack.c.l.b16 %v223
      %v571 = vunpack.c.l.b16 %v224
      %v572 = vunpack.c.h.b16 %v224
      %v573 = vunpack.c.l.b16 %v225
      %v574 = vunpack.c.l.b16 %v226
      %v575 = vunpack.c.h.b16 %v226
      %v576 = vunpack.c.l.b16 %v227
      %v577 = vunpack.c.l.b16 %v228
      %v578 = vunpack.c.h.b16 %v228
      %v579 = vunpack.c.l.b16 %v229
      %v580 = vunpack.c.l.b16 %v230
      %v581 = vunpack.c.h.b16 %v230
      %v582 = vunpack.c.l.b16 %v231
      %v583 = vunpack.c.l.b16 %v232
      %v584 = vunpack.c.h.b16 %v232
      %v585 = vunpack.c.l.b16 %v233
      %v586 = vunpack.c.l.b16 %v234
      %v587 = vunpack.c.h.b16 %v234
      %v588 = vunpack.c.l.b16 %v235
      %v589 = vunpack.c.l.b16 %v236
      %v590 = vunpack.c.h.b16 %v236
      %v591 = vunpack.c.l.b16 %v237
      %v592 = vunpack.c.l.b16 %v238
      %v593 = vunpack.c.h.b16 %v238
      %v594 = vunpack.c.l.b16 %v239
      %v595 = vunpack.c.l.b16 %v240
      %v596 = vunpack.c.h.b16 %v240
      %v597 = vunpack.c.l.b16 %v241
      %v598 = vunpack.c.l.b16 %v242
      %v599 = vunpack.c.h.b16 %v242
      %v600 = vunpack.c.l.b16 %v243
      %v601 = vunpack.c.l.b16 %v244
      %v602 = vunpack.c.h.b16 %v244
      %v603 = vunpack.c.l.b16 %v245
      %v604 = vunpack.c.l.b16 %v246
      %v605 = vunpack.c.h.b16 %v246
      %v606 = vunpack.c.l.b16 %v247
      %v607 = vunpack.c.l.b16 %v248
      %v608 = vunpack.c.h.b16 %v248
      %v609 = vunpack.c.l.b16 %v249
      %v610 = vunpack.c.l.b16 %v250
      %v611 = vunpack.c.h.b16 %v250
      %v612 = vunpack.c.l.b16 %v251
      %v613 = vunpack.c.l.b16 %v252
      %v614 = vunpack.c.h.b16 %v252
      %v615 = vunpack.c.l.b16 %v253
      %v616 = vunpack.c.l.b16 %v254
      %v617 = vunpack.c.h.b16 %v254
      %v618 = vunpack.c.l.b16 %v255
      %v619 = vunpack.c.l.b16 %v256
      %v620 = vunpack.c.h.b16 %v256
      %v621 = vunpack.c.l.b16 %v257
      %v622 = vunpack.c.l.b16 %v258
      %v623 = vunpack.c.h.b16 %v258
      %v624 = vunpack.c.l.b16 %v259
      %v625 = vunpack.c.l.b16 %v260
      %v626 = vunpack.c.h.b16 %v260
      %v627 = vunpack.c.l.b16 %v261
      %v628 = vunpack.c.l.b16 %v262
      %v629 = vunpack.c.h.b16 %v262
      %v630 = vunpack.c.l.b16 %v263
      %v631 = vunpack.c.l.b16 %v264
      %v632 = vunpack.c.h.b16 %v264
      %v633 = vunpack.c.l.b16 %v265
      %v634 = vunpack.c.l.b16 %v266
      %v635 = vunpack.c.h.b16 %v266
      %v636 = vunpack.c.l.b16 %v267
      %v637 = vunpack.c.l.b16 %v268
      %v638 = vunpack.c.h.b16 %v268
      %v639 = vunpack.c.l.b16 %v269
      %v640 = vunpack.c.l.b16 %v270
      %v641 = vunpack.c.h.b16 %v270
      %v642 = vunpack.c.l.b16 %v271
      %v643 = vunpack.c.l.b16 %v272
      %v644 = vunpack.c.h.b16 %v272
      %v645 = vunpack.c.l.b16 %v273
      %v646 = vunpack.c.l.b16 %v274
      %v647 = vunpack.c.h.b16 %v274
      %v648 = vunpack.c.l.b16 %v275
      %v649 = vunpack.c.l.b16 %v276
      %v650 = vunpack.c.h.b16 %v276
      %v651 = vunpack.c.l.b16 %v277
      %v652 = vunpack.c.l.b16 %v278
      %v653 = vunpack.c.h.b16 %v278
      %v654 = vunpack.c.l.b16 %v279
      %v655 = vunpack.c.l.b16 %v280
      %v656 = vunpack.c.h.b16 %v280
      %v657 = vunpack.c.l.b16 %v281
      %v658 = vunpack.c.l.b16 %v282
      %v659 = vunpack.c.h.b16 %v282
      %v660 = vunpack.c.l.b16 %v283
      %v661 = vunpack.c.l.b16 %v284
      %v662 = vunpack.c.h.b16 %v284
      %v663 = vunpack.c.l.b16 %v285
      %v664 = vunpack.c.l.b16 %v286
      %v665 = vunpack.c.h.b16 %v286
      %v666 = vunpack.c.l.b16 %v287
      %v667 = vunpack.c.l.b16 %v288
      %v668 = vunpack.c.h.b16 %v288
      %v669 = vunpack.c.l.b16 %v289
      %v670 = vunpack.c.l.b16 %v290
      %v671 = vunpack.c.h.b16 %v290
      %v672 = vunpack.c.l.b16 %v291
      %v673 = vunpack.c.l.b16 %v292
      %v674 = vunpack.c.h.b16 %v292
      %v675 = vunpack.c.l.b16 %v293
      %v676 = vunpack.c.l.b16 %v294
      %v677 = vunpack.c.h.b16 %v294
      %v678 = vunpack.c.l.b16 %v295
      %v679 = vunpack.c.l.b16 %v296
      %v680 = vunpack.c.h.b16 %v296
      %v681 = vunpack.c.l.b16 %v297
      %v682 = vunpack.c.l.b16 %v298
      %v683 = vunpack.c.h.b16 %v298
      %v684 = vunpack.c.l.b16 %v299
      %v685 = vunpack.c.l.b16 %v300
      %v686 = vunpack.c.h.b16 %v300
      %v687 = vunpack.c.l.b16 %v301
      %v688 = vunpack.c.l.b16 %v302
      %v689 = vunpack.c.h.b16 %v302
      %v690 = vunpack.c.l.b16 %v303
      %v691 = vunpack.c.l.b16 %v304
      %v692 = vunpack.c.h.b16 %v304
      %v693 = vunpack.c.l.b16 %v305
      %v694 = vunpack.c.l.b16 %v306
      %v695 = vunpack.c.h.b16 %v306
      %v696 = vunpack.c.l.b16 %v307
      %v697 = vunpack.c.l.b16 %v308
      %v698 = vunpack.c.h.b16 %v308
      %v699 = vunpack.c.l.b16 %v309
      %v700 = vunpack.c.l.b16 %v310
      %v701 = vunpack.c.h.b16 %v310
      %v702 = vunpack.c.l.b16 %v311
      %v703 = vunpack.c.l.b16 %v312
      %v704 = vunpack.c.h.b16 %v312
      %v705 = vunpack.c.l.b16 %v313
      %v706 = vunpack.c.l.b16 %v314
      %v707 = vunpack.c.h.b16 %v314
      %v708 = vunpack.c.l.b16 %v315
      %v709 = vunpack.c.l.b16 %v316
      %v710 = vunpack.c.h.b16 %v316
      %v711 = vunpack.c.l.b16 %v317
      %v712 = vunpack.c.l.b16 %v318
      %v713 = vunpack.c.h.b16 %v318
      %v714 = vunpack.c.l.b16 %v319
      %v715 = vunpack.c.l.b16 %v320
      %v716 = vunpack.c.h.b16 %v320
      %v717 = vunpack.c.l.b16 %v321
      %v718 = vpack.c.b16 %v505, %v502
      %v719 = vpack.c.b16 %v506, %v503
      %v720 = vpack.c.b16 %v507, %v504
      %v721 = vpack.c.b16 %v511, %v508
      %v722 = vpack.c.b16 %v512, %v509
      %v723 = vpack.c.b16 %v513, %v510
      %v724 = vpack.c.b16 %v517, %v514
      %v725 = vpack.c.b16 %v518, %v515
      %v726 = vpack.c.b16 %v519, %v516
      %v727 = vpack.c.b16 %v523, %v520
      %v728 = vpack.c.b16 %v524, %v521
      %v729 = vpack.c.b16 %v525, %v522
      %v730 = vpack.c.b16 %v529, %v526
      %v731 = vpack.c.b16 %v530, %v527
      %v732 = vpack.c.b16 %v531, %v528
      %v733 = vpack.c.b16 %v535, %v532
      %v734 = vpack.c.b16 %v536, %v533
      %v735 = vpack.c.b16 %v537, %v534
      %v736 = vpack.c.b16 %v541, %v538
      %v737 = vpack.c.b16 %v542, %v539
      %v738 = vpack.c.b16 %v543, %v540
      %v739 = vpack.c.b16 %v547, %v544
      %v740 = vpack.c.b16 %v548, %v545
      %v741 = vpack.c.b16 %v549, %v546
      %v742 = vpack.c.b16 %v553, %v550
      %v743 = vpack.c.b16 %v554, %v551
      %v744 = vpack.c.b16 %v555, %v552
      %v745 = vpack.c.b16 %v559, %v556
      %v746 = vpack.c.b16 %v560, %v557
      %v747 = vpack.c.b16 %v561, %v558
      %v748 = vpack.c.b16 %v565, %v562
      %v749 = vpack.c.b16 %v566, %v563
      %v750 = vpack.c.b16 %v567, %v564
      %v751 = vpack.c.b16 %v571, %v568
      %v752 = vpack.c.b16 %v572, %v569
      %v753 = vpack.c.b16 %v573, %v570
      %v754 = vpack.c.b16 %v577, %v574
      %v755 = vpack.c.b16 %v578, %v575
      %v756 = vpack.c.b16 %v579, %v576
      %v757 = vpack.c.b16 %v583, %v580
      %v758 = vpack.c.b16 %v584, %v581
      %v759 = vpack.c.b16 %v585, %v582
      %v760 = vpack.c.b16 %v589, %v586
      %v761 = vpack.c.b16 %v590, %v587
      %v762 = vpack.c.b16 %v591, %v588
      %v763 = vpack.c.b16 %v595, %v592
      %v764 = vpack.c.b16 %v596, %v593
      %v765 = vpack.c.b16 %v597, %v594
      %v766 = vpack.c.b16 %v601, %v598
      %v767 = vpack.c.b16 %v602, %v599
      %v768 = vpack.c.b16 %v603, %v600
      %v769 = vpack.c.b16 %v607, %v604
      %v770 = vpack.c.b16 %v608, %v605
      %v771 = vpack.c.b16 %v609, %v606
      %v772 = vpack.c.b16 %v613, %v610
      %v773 = vpack.c.b16 %v614, %v611
      %v774 = vpack.c.b16 %v615, %v612
      %v775 = vpack.c.b16 %v619, %v616
      %v776 = vpack.c.b16 %v620, %v617
      %v777 = vpack.c.b16 %v621, %v618
      %v778 = vpack.c.b16 %v625, %v622
      %v779 = vpack.c.b16 %v626, %v623
      %v780 = vpack.c.b16 %v627, %v624
      %v781 = vpack.c.b16 %v631, %v628
      %v782 = vpack.c.b16 %v632, %v629
      %v783 = vpack.c.b16 %v633, %v630
      %v784 = vpack.c.b16 %v637, %v634
      %v785 = vpack.c.b16 %v638, %v635
      %v786 = vpack.c.b16 %v639, %v636
      %v787 = vpack.c.b16 %v643, %v640
      %v788 = vpack.c.b16 %v644, %v641
      %v789 = vpack.c.b16 %v645, %v642
      %v790 = vpack.c.b16 %v649, %v646
      %v791 = vpack.c.b16 %v650, %v647
      %v792 = vpack.c.b16 %v651, %v648
      %v793 = vpack.c.b16 %v655, %v652
      %v794 = vpack.c.b16 %v656, %v653
      %v795 = vpack.c.b16 %v657, %v654
      %v796 = vpack.c.b16 %v661, %v658
      %v797 = vpack.c.b16 %v662, %v659
      %v798 = vpack.c.b16 %v663, %v660
      %v799 = vpack.c.b16 %v667, %v664
      %v800 = vpack.c.b16 %v668, %v665
      %v801 = vpack.c.b16 %v669, %v666
      %v802 = vpack.c.b16 %v673, %v670
      %v803 = vpack.c.b16 %v674, %v671
      %v804 = vpack.c.b16 %v675, %v672
      %v805 = vpack.c.b16 %v679, %v676
      %v806 = vpack.c.b16 %v680, %v677
      %v807 = vpack.c.b16 %v681, %v678
      %v808 = vpack.c.b16 %v685, %v682
      %v809 = vpack.c.b16 %v686, %v683
      %v810 = vpack.c.b16 %v687, %v684
      %v811 = vpack.c.b16 %v691, %v688
      %v812 = vpack.c.b16 %v692, %v689
      %v813 = vpack.c.b16 %v693, %v690
      %v814 = vpack.c.b16 %v697, %v694
      %v815 = vpack.c.b16 %v698, %v695
      %v816 = vpack.c.b16 %v699, %v696
      %v817 = vpack.c.b16 %v703, %v700
      %v818 = vpack.c.b16 %v704, %v701
      %v819 = vpack.c.b16 %v705, %v702
      %v820 = vpack.c.b16 %v709, %v706
      %v821 = vpack.c.b16 %v710, %v707
      %v822 = vpack.c.b16 %v711, %v708
      %v823 = vpack.c.b16 %v715, %v712
      %v824 = vpack.c.b16 %v716, %v713
      %v825 = vpack.c.b16 %v717, %v714
      %v934 = vunpack.c.l.b16 %v322
      %v935 = vunpack.c.l.b16 %v323
      %v936 = vunpack.c.l.b16 %v324
      %v937 = vunpack.c.l.b16 %v325
      %v938 = vunpack.c.l.b16 %v326
      %v939 = vunpack.c.l.b16 %v327
      %v940 = vunpack.c.l.b16 %v328
      %v941 = vunpack.c.l.b16 %v329
      %v942 = vunpack.c.l.b16 %v330
      %v943 = vunpack.c.l.b16 %v331
      %v944 = vunpack.c.l.b16 %v332
      %v945 = vunpack.c.l.b16 %v333
      %v946 = vunpack.c.l.b16 %v334
      %v947 = vunpack.c.l.b16 %v335
      %v948 = vunpack.c.l.b16 %v336
      %v949 = vunpack.c.l.b16 %v337
      %v950 = vunpack.c.l.b16 %v338
      %v951 = vunpack.c.l.b16 %v339
      %v952 = vunpack.c.l.b16 %v340
      %v953 = vunpack.c.l.b16 %v341
      %v954 = vunpack.c.l.b16 %v342
      %v955 = vunpack.c.l.b16 %v343
      %v956 = vunpack.c.l.b16 %v344
      %v957 = vunpack.c.l.b16 %v345
      %v958 = vunpack.c.l.b16 %v346
      %v959 = vunpack.c.l.b16 %v347
      %v960 = vunpack.c.l.b16 %v348
      %v961 = vunpack.c.l.b16 %v349
      %v962 = vunpack.c.l.b16 %v350
      %v963 = vunpack.c.l.b16 %v351
      %v964 = vunpack.c.l.b16 %v352
      %v965 = vunpack.c.l.b16 %v353
      %v966 = vunpack.c.l.b16 %v354
      %v967 = vunpack.c.l.b16 %v355
      %v968 = vunpack.c.l.b16 %v356
      %v969 = vunpack.c.l.b16 %v357
      %v970 = vpack.c.b16 %v935, %v934
      %v971 = vpack.c.b16 %v937, %v936
      %v972 = vpack.c.b16 %v939, %v938
      %v973 = vpack.c.b16 %v941, %v940
      %v974 = vpack.c.b16 %v943, %v942
      %v975 = vpack.c.b16 %v945, %v944
      %v976 = vpack.c.b16 %v947, %v946
      %v977 = vpack.c.b16 %v949, %v948
      %v978 = vpack.c.b16 %v951, %v950
      %v979 = vpack.c.b16 %v953, %v952
      %v980 = vpack.c.b16 %v955, %v954
      %v981 = vpack.c.b16 %v957, %v956
      %v982 = vpack.c.b16 %v959, %v958
      %v983 = vpack.c.b16 %v961, %v960
      %v984 = vpack.c.b16 %v963, %v962
      %v985 = vpack.c.b16 %v965, %v964
      %v986 = vpack.c.b16 %v967, %v966
      %v987 = vpack.c.b16 %v969, %v968
      %vm1006 = vcmask 261120
      %v1008 = vsel %vm1006, %v720, 0
      %v1011 = vsel %vm1006, %v723, 0
      %v1014 = vsel %vm1006, %v726, 0
      %v1017 = vsel %vm1006, %v729, 0
      %v1020 = vsel %vm1006, %v732, 0
      %v1023 = vsel %vm1006, %v735, 0
      %v1026 = vsel %vm1006, %v738, 0
      %v1029 = vsel %vm1006, %v741, 0
      %v1032 = vsel %vm1006, %v744, 0
      %v1035 = vsel %vm1006, %v747, 0
      %v1038 = vsel %vm1006, %v750, 0
      %v1041 = vsel %vm1006, %v753, 0
      %v1044 = vsel %vm1006, %v756, 0
      %v1047 = vsel %vm1006, %v759, 0
      %v1050 = vsel %vm1006, %v762, 0
      %v1053 = vsel %vm1006, %v765, 0
      %v1056 = vsel %vm1006, %v768, 0
      %v1059 = vsel %vm1006, %v771, 0
      %v1062 = vsel %vm1006, %v774, 0
      %v1065 = vsel %vm1006, %v777, 0
      %v1068 = vsel %vm1006, %v780, 0
      %v1071 = vsel %vm1006, %v783, 0
      %v1074 = vsel %vm1006, %v786, 0
      %v1077 = vsel %vm1006, %v789, 0
      %v1080 = vsel %vm1006, %v792, 0
      %v1083 = vsel %vm1006, %v795, 0
      %v1086 = vsel %vm1006, %v798, 0
      %v1089 = vsel %vm1006, %v801, 0
      %v1092 = vsel %vm1006, %v804, 0
      %v1095 = vsel %vm1006, %v807, 0
      %v1098 = vsel %vm1006, %v810, 0
      %v1101 = vsel %vm1006, %v813, 0
      %v1104 = vsel %vm1006, %v816, 0
      %v1107 = vsel %vm1006, %v819, 0
      %v1110 = vsel %vm1006, %v822, 0
      %v1113 = vsel %vm1006, %v825, 0
      %1115 = vmatprep.subr.bf16.mxu0 0
      %1116 = vmatpush1.bf16.msra.mxu0 %v970
      %1117 = vmatprep.subr.bf16.mxu0 0
      %1118 = vmatpush1.bf16.msra.mxu0 %v971
      %1119 = vmatprep.subr.bf16.mxu0 0
      %1120 = vmatpush1.bf16.msra.mxu0 %v972
      %1121 = vmatprep.subr.bf16.mxu0 0
      %1122 = vmatpush1.bf16.msra.mxu0 %v973
      %1123 = vmatprep.subr.bf16.mxu0 0
      %1124 = vmatpush1.bf16.msra.mxu0 %v974
      %1125 = vmatprep.subr.bf16.mxu0 0
      %1126 = vmatpush1.bf16.msra.mxu0 %v975
      %1127 = vmatprep.subr.bf16.mxu0 0
      %1128 = vmatpush1.bf16.msra.mxu0 %v976
      %1129 = vmatprep.subr.bf16.mxu0 0
      %1130 = vmatpush1.bf16.msra.mxu0 %v977
      %1131 = vmatprep.subr.bf16.mxu0 0
      %1132 = vmatpush1.bf16.msra.mxu0 %v978
      %1133 = vmatprep.subr.bf16.mxu0 0
      %1134 = vmatpush1.bf16.msra.mxu0 %v979
      %1135 = vmatprep.subr.bf16.mxu0 0
      %1136 = vmatpush1.bf16.msra.mxu0 %v980
      %1137 = vmatprep.subr.bf16.mxu0 0
      %1138 = vmatpush1.bf16.msra.mxu0 %v981
      %1139 = vmatprep.subr.bf16.mxu0 0
      %1140 = vmatpush1.bf16.msra.mxu0 %v982
      %1141 = vmatprep.subr.bf16.mxu0 0
      %1142 = vmatpush1.bf16.msra.mxu0 %v983
      %1143 = vmatprep.subr.bf16.mxu0 0
      %1144 = vmatpush1.bf16.msra.mxu0 %v984
      %1145 = vmatprep.subr.bf16.mxu0 0
      %1146 = vmatpush1.bf16.msra.mxu0 %v985
      %1147 = vmatprep.mubr.bf16.mxu0 %v719
      %1148 = vmatmul.mubr.bf16.gmra.mrb[0].mxu0 %v718
      %v1149 = vpop.f32.mrb[0].mxu0
      %v1150 = vadd.f32 0.0, %v1149
      %v1151 = vpop.f32.mrb[0].mxu0
      %v1152 = vpop.f32.mrb[0].mxu0
      %v1153 = vadd.f32 0.0, %v1152
      %v1154 = vpop.f32.mrb[0].mxu0
      %1155 = vmatprep.mubr.bf16.mxu0 %v722
      %1156 = vmatmul.mubr.bf16.gmra.mrb[0].mxu0 %v721
      %v1157 = vpop.f32.mrb[0].mxu0
      %v1158 = vadd.f32 0.0, %v1157
      %v1159 = vpop.f32.mrb[0].mxu0
      %v1160 = vpop.f32.mrb[0].mxu0
      %v1161 = vadd.f32 0.0, %v1160
      %v1162 = vpop.f32.mrb[0].mxu0
      %1163 = vmatprep.mubr.bf16.mxu0 %v725
      %1164 = vmatmul.mubr.bf16.gmra.mrb[0].mxu0 %v724
      %v1165 = vpop.f32.mrb[0].mxu0
      %v1166 = vadd.f32 0.0, %v1165
      %v1167 = vpop.f32.mrb[0].mxu0
      %v1168 = vpop.f32.mrb[0].mxu0
      %v1169 = vadd.f32 0.0, %v1168
      %v1170 = vpop.f32.mrb[0].mxu0
      %1171 = vmatprep.mubr.bf16.mxu0 %v728
      %1172 = vmatmul.mubr.bf16.gmra.mrb[0].mxu0 %v727
      %v1173 = vpop.f32.mrb[0].mxu0
      %v1174 = vadd.f32 0.0, %v1173
      %v1175 = vpop.f32.mrb[0].mxu0
      %v1176 = vpop.f32.mrb[0].mxu0
      %v1177 = vadd.f32 0.0, %v1176
      %v1178 = vpop.f32.mrb[0].mxu0
      %1179 = vmatprep.mubr.bf16.mxu0 %v731
      %1180 = vmatmul.mubr.bf16.gmra.mrb[0].mxu0 %v730
      %v1181 = vpop.f32.mrb[0].mxu0
      %v1182 = vadd.f32 0.0, %v1181
      %v1183 = vpop.f32.mrb[0].mxu0
      %v1184 = vpop.f32.mrb[0].mxu0
      %v1185 = vadd.f32 0.0, %v1184
      %v1186 = vpop.f32.mrb[0].mxu0
      %1187 = vmatprep.mubr.bf16.mxu0 %v734
      %1188 = vmatmul.mubr.bf16.gmra.mrb[0].mxu0 %v733
      %v1189 = vpop.f32.mrb[0].mxu0
      %v1190 = vadd.f32 0.0, %v1189
      %v1191 = vpop.f32.mrb[0].mxu0
      %v1192 = vpop.f32.mrb[0].mxu0
      %v1193 = vadd.f32 0.0, %v1192
      %v1194 = vpop.f32.mrb[0].mxu0
      %1195 = vmatprep.mubr.bf16.mxu0 %v737
      %1196 = vmatmul.mubr.bf16.gmra.mrb[0].mxu0 %v736
      %v1197 = vpop.f32.mrb[0].mxu0
      %v1198 = vadd.f32 0.0, %v1197
      %v1199 = vpop.f32.mrb[0].mxu0
      %v1200 = vpop.f32.mrb[0].mxu0
      %v1201 = vadd.f32 0.0, %v1200
      %v1202 = vpop.f32.mrb[0].mxu0
      %1203 = vmatprep.mubr.bf16.mxu0 %v740
      %1204 = vmatmul.mubr.bf16.gmra.mrb[0].mxu0 %v739
      %v1205 = vpop.f32.mrb[0].mxu0
      %v1206 = vadd.f32 0.0, %v1205
      %v1207 = vpop.f32.mrb[0].mxu0
      %v1208 = vpop.f32.mrb[0].mxu0
      %v1209 = vadd.f32 0.0, %v1208
      %v1210 = vpop.f32.mrb[0].mxu0
      %1211 = vmatprep.mubr.bf16.mxu0 %v743
      %1212 = vmatmul.mubr.bf16.gmra.mrb[0].mxu0 %v742
      %v1213 = vpop.f32.mrb[0].mxu0
      %v1214 = vadd.f32 0.0, %v1213
      %v1215 = vpop.f32.mrb[0].mxu0
      %v1216 = vpop.f32.mrb[0].mxu0
      %v1217 = vadd.f32 0.0, %v1216
      %v1218 = vpop.f32.mrb[0].mxu0
      %1219 = vmatprep.mubr.bf16.mxu0 %v746
      %1220 = vmatmul.mubr.bf16.gmra.mrb[0].mxu0 %v745
      %v1221 = vpop.f32.mrb[0].mxu0
      %v1222 = vadd.f32 0.0, %v1221
      %v1223 = vpop.f32.mrb[0].mxu0
      %v1224 = vpop.f32.mrb[0].mxu0
      %v1225 = vadd.f32 0.0, %v1224
      %v1226 = vpop.f32.mrb[0].mxu0
      %1227 = vmatprep.mubr.bf16.mxu0 %v749
      %1228 = vmatmul.mubr.bf16.gmra.mrb[0].mxu0 %v748
      %v1229 = vpop.f32.mrb[0].mxu0
      %v1230 = vadd.f32 0.0, %v1229
      %v1231 = vpop.f32.mrb[0].mxu0
      %v1232 = vpop.f32.mrb[0].mxu0
      %v1233 = vadd.f32 0.0, %v1232
      %v1234 = vpop.f32.mrb[0].mxu0
      %1235 = vmatprep.mubr.bf16.mxu0 %v752
      %1236 = vmatmul.mubr.bf16.gmra.mrb[0].mxu0 %v751
      %v1237 = vpop.f32.mrb[0].mxu0
      %v1238 = vadd.f32 0.0, %v1237
      %v1239 = vpop.f32.mrb[0].mxu0
      %v1240 = vpop.f32.mrb[0].mxu0
      %v1241 = vadd.f32 0.0, %v1240
      %v1242 = vpop.f32.mrb[0].mxu0
      %1243 = vmatprep.mubr.bf16.mxu0 %v755
      %1244 = vmatmul.mubr.bf16.gmra.mrb[0].mxu0 %v754
      %v1245 = vpop.f32.mrb[0].mxu0
      %v1246 = vadd.f32 0.0, %v1245
      %v1247 = vpop.f32.mrb[0].mxu0
      %v1248 = vpop.f32.mrb[0].mxu0
      %v1249 = vadd.f32 0.0, %v1248
      %v1250 = vpop.f32.mrb[0].mxu0
      %1251 = vmatprep.mubr.bf16.mxu0 %v758
      %1252 = vmatmul.mubr.bf16.gmra.mrb[0].mxu0 %v757
      %v1253 = vpop.f32.mrb[0].mxu0
      %v1254 = vadd.f32 0.0, %v1253
      %v1255 = vpop.f32.mrb[0].mxu0
      %v1256 = vpop.f32.mrb[0].mxu0
      %v1257 = vadd.f32 0.0, %v1256
      %v1258 = vpop.f32.mrb[0].mxu0
      %1259 = vmatprep.mubr.bf16.mxu0 %v761
      %1260 = vmatmul.mubr.bf16.gmra.mrb[0].mxu0 %v760
      %v1261 = vpop.f32.mrb[0].mxu0
      %v1262 = vadd.f32 0.0, %v1261
      %v1263 = vpop.f32.mrb[0].mxu0
      %v1264 = vpop.f32.mrb[0].mxu0
      %v1265 = vadd.f32 0.0, %v1264
      %v1266 = vpop.f32.mrb[0].mxu0
      %1267 = vmatprep.mubr.bf16.mxu0 %v764
      %1268 = vmatmul.mubr.bf16.gmra.mrb[0].mxu0 %v763
      %v1269 = vpop.f32.mrb[0].mxu0
      %v1270 = vadd.f32 0.0, %v1269
      %v1271 = vpop.f32.mrb[0].mxu0
      %v1272 = vpop.f32.mrb[0].mxu0
      %v1273 = vadd.f32 0.0, %v1272
      %v1274 = vpop.f32.mrb[0].mxu0
      %1275 = vmatprep.mubr.bf16.mxu0 %v767
      %1276 = vmatmul.mubr.bf16.gmra.mrb[0].mxu0 %v766
      %v1277 = vpop.f32.mrb[0].mxu0
      %v1278 = vadd.f32 0.0, %v1277
      %v1279 = vpop.f32.mrb[0].mxu0
      %v1280 = vpop.f32.mrb[0].mxu0
      %v1281 = vadd.f32 0.0, %v1280
      %v1282 = vpop.f32.mrb[0].mxu0
      %1283 = vmatprep.mubr.bf16.mxu0 %v770
      %1284 = vmatmul.mubr.bf16.gmra.mrb[0].mxu0 %v769
      %v1285 = vpop.f32.mrb[0].mxu0
      %v1286 = vadd.f32 0.0, %v1285
      %v1287 = vpop.f32.mrb[0].mxu0
      %v1288 = vpop.f32.mrb[0].mxu0
      %v1289 = vadd.f32 0.0, %v1288
      %v1290 = vpop.f32.mrb[0].mxu0
      %1291 = vmatprep.mubr.bf16.mxu0 %v773
      %1292 = vmatmul.mubr.bf16.gmra.mrb[0].mxu0 %v772
      %v1293 = vpop.f32.mrb[0].mxu0
      %v1294 = vadd.f32 0.0, %v1293
      %v1295 = vpop.f32.mrb[0].mxu0
      %v1296 = vpop.f32.mrb[0].mxu0
      %v1297 = vadd.f32 0.0, %v1296
      %v1298 = vpop.f32.mrb[0].mxu0
      %1299 = vmatprep.mubr.bf16.mxu0 %v776
      %1300 = vmatmul.mubr.bf16.gmra.mrb[0].mxu0 %v775
      %v1301 = vpop.f32.mrb[0].mxu0
      %v1302 = vadd.f32 0.0, %v1301
      %v1303 = vpop.f32.mrb[0].mxu0
      %v1304 = vpop.f32.mrb[0].mxu0
      %v1305 = vadd.f32 0.0, %v1304
      %v1306 = vpop.f32.mrb[0].mxu0
      %1307 = vmatprep.mubr.bf16.mxu0 %v779
      %1308 = vmatmul.mubr.bf16.gmra.mrb[0].mxu0 %v778
      %v1309 = vpop.f32.mrb[0].mxu0
      %v1310 = vadd.f32 0.0, %v1309
      %v1311 = vpop.f32.mrb[0].mxu0
      %v1312 = vpop.f32.mrb[0].mxu0
      %v1313 = vadd.f32 0.0, %v1312
      %v1314 = vpop.f32.mrb[0].mxu0
      %1315 = vmatprep.mubr.bf16.mxu0 %v782
      %1316 = vmatmul.mubr.bf16.gmra.mrb[0].mxu0 %v781
      %v1317 = vpop.f32.mrb[0].mxu0
      %v1318 = vadd.f32 0.0, %v1317
      %v1319 = vpop.f32.mrb[0].mxu0
      %v1320 = vpop.f32.mrb[0].mxu0
      %v1321 = vadd.f32 0.0, %v1320
      %v1322 = vpop.f32.mrb[0].mxu0
      %1323 = vmatprep.mubr.bf16.mxu0 %v785
      %1324 = vmatmul.mubr.bf16.gmra.mrb[0].mxu0 %v784
      %v1325 = vpop.f32.mrb[0].mxu0
      %v1326 = vadd.f32 0.0, %v1325
      %v1327 = vpop.f32.mrb[0].mxu0
      %v1328 = vpop.f32.mrb[0].mxu0
      %v1329 = vadd.f32 0.0, %v1328
      %v1330 = vpop.f32.mrb[0].mxu0
      %1331 = vmatprep.mubr.bf16.mxu0 %v788
      %1332 = vmatmul.mubr.bf16.gmra.mrb[0].mxu0 %v787
      %v1333 = vpop.f32.mrb[0].mxu0
      %v1334 = vadd.f32 0.0, %v1333
      %v1335 = vpop.f32.mrb[0].mxu0
      %v1336 = vpop.f32.mrb[0].mxu0
      %v1337 = vadd.f32 0.0, %v1336
      %v1338 = vpop.f32.mrb[0].mxu0
      %1339 = vmatprep.mubr.bf16.mxu0 %v791
      %1340 = vmatmul.mubr.bf16.gmra.mrb[0].mxu0 %v790
      %v1341 = vpop.f32.mrb[0].mxu0
      %v1342 = vadd.f32 0.0, %v1341
      %v1343 = vpop.f32.mrb[0].mxu0
      %v1344 = vpop.f32.mrb[0].mxu0
      %v1345 = vadd.f32 0.0, %v1344
      %v1346 = vpop.f32.mrb[0].mxu0
      %1347 = vmatprep.mubr.bf16.mxu0 %v794
      %1348 = vmatmul.mubr.bf16.gmra.mrb[0].mxu0 %v793
      %v1349 = vpop.f32.mrb[0].mxu0
      %v1350 = vadd.f32 0.0, %v1349
      %v1351 = vpop.f32.mrb[0].mxu0
      %v1352 = vpop.f32.mrb[0].mxu0
      %v1353 = vadd.f32 0.0, %v1352
      %v1354 = vpop.f32.mrb[0].mxu0
      %1355 = vmatprep.mubr.bf16.mxu0 %v797
      %1356 = vmatmul.mubr.bf16.gmra.mrb[0].mxu0 %v796
      %v1357 = vpop.f32.mrb[0].mxu0
      %v1358 = vadd.f32 0.0, %v1357
      %v1359 = vpop.f32.mrb[0].mxu0
      %v1360 = vpop.f32.mrb[0].mxu0
      %v1361 = vadd.f32 0.0, %v1360
      %v1362 = vpop.f32.mrb[0].mxu0
      %1363 = vmatprep.mubr.bf16.mxu0 %v800
      %1364 = vmatmul.mubr.bf16.gmra.mrb[0].mxu0 %v799
      %v1365 = vpop.f32.mrb[0].mxu0
      %v1366 = vadd.f32 0.0, %v1365
      %v1367 = vpop.f32.mrb[0].mxu0
      %v1368 = vpop.f32.mrb[0].mxu0
      %v1369 = vadd.f32 0.0, %v1368
      %v1370 = vpop.f32.mrb[0].mxu0
      %1371 = vmatprep.mubr.bf16.mxu0 %v803
      %1372 = vmatmul.mubr.bf16.gmra.mrb[0].mxu0 %v802
      %v1373 = vpop.f32.mrb[0].mxu0
      %v1374 = vadd.f32 0.0, %v1373
      %v1375 = vpop.f32.mrb[0].mxu0
      %v1376 = vpop.f32.mrb[0].mxu0
      %v1377 = vadd.f32 0.0, %v1376
      %v1378 = vpop.f32.mrb[0].mxu0
      %1379 = vmatprep.mubr.bf16.mxu0 %v806
      %1380 = vmatmul.mubr.bf16.gmra.mrb[0].mxu0 %v805
      %v1381 = vpop.f32.mrb[0].mxu0
      %v1382 = vadd.f32 0.0, %v1381
      %v1383 = vpop.f32.mrb[0].mxu0
      %v1384 = vpop.f32.mrb[0].mxu0
      %v1385 = vadd.f32 0.0, %v1384
      %v1386 = vpop.f32.mrb[0].mxu0
      %1387 = vmatprep.mubr.bf16.mxu0 %v809
      %1388 = vmatmul.mubr.bf16.gmra.mrb[0].mxu0 %v808
      %v1389 = vpop.f32.mrb[0].mxu0
      %v1390 = vadd.f32 0.0, %v1389
      %v1391 = vpop.f32.mrb[0].mxu0
      %v1392 = vpop.f32.mrb[0].mxu0
      %v1393 = vadd.f32 0.0, %v1392
      %v1394 = vpop.f32.mrb[0].mxu0
      %1395 = vmatprep.mubr.bf16.mxu0 %v812
      %1396 = vmatmul.mubr.bf16.gmra.mrb[0].mxu0 %v811
      %v1397 = vpop.f32.mrb[0].mxu0
      %v1398 = vadd.f32 0.0, %v1397
      %v1399 = vpop.f32.mrb[0].mxu0
      %v1400 = vpop.f32.mrb[0].mxu0
      %v1401 = vadd.f32 0.0, %v1400
      %v1402 = vpop.f32.mrb[0].mxu0
      %1403 = vmatprep.mubr.bf16.mxu0 %v815
      %1404 = vmatmul.mubr.bf16.gmra.mrb[0].mxu0 %v814
      %v1405 = vpop.f32.mrb[0].mxu0
      %v1406 = vadd.f32 0.0, %v1405
      %v1407 = vpop.f32.mrb[0].mxu0
      %v1408 = vpop.f32.mrb[0].mxu0
      %v1409 = vadd.f32 0.0, %v1408
      %v1410 = vpop.f32.mrb[0].mxu0
      %1411 = vmatprep.mubr.bf16.mxu0 %v818
      %1412 = vmatmul.mubr.bf16.gmra.mrb[0].mxu0 %v817
      %v1413 = vpop.f32.mrb[0].mxu0
      %v1414 = vadd.f32 0.0, %v1413
      %v1415 = vpop.f32.mrb[0].mxu0
      %v1416 = vpop.f32.mrb[0].mxu0
      %v1417 = vadd.f32 0.0, %v1416
      %v1418 = vpop.f32.mrb[0].mxu0
      %1419 = vmatprep.mubr.bf16.mxu0 %v821
      %1420 = vmatmul.mubr.bf16.gmra.mrb[0].mxu0 %v820
      %v1421 = vpop.f32.mrb[0].mxu0
      %v1422 = vadd.f32 0.0, %v1421
      %v1423 = vpop.f32.mrb[0].mxu0
      %v1424 = vpop.f32.mrb[0].mxu0
      %v1425 = vadd.f32 0.0, %v1424
      %v1426 = vpop.f32.mrb[0].mxu0
      %1427 = vmatprep.mubr.bf16.mxu0 %v824
      %1428 = vmatmul.mubr.bf16.gmra.mrb[0].mxu0 %v823
      %v1429 = vpop.f32.mrb[0].mxu0
      %v1430 = vadd.f32 0.0, %v1429
      %v1431 = vpop.f32.mrb[0].mxu0
      %v1432 = vpop.f32.mrb[0].mxu0
      %v1433 = vadd.f32 0.0, %v1432
      %v1434 = vpop.f32.mrb[0].mxu0
      %1435 = vdwg.mxu0
      %1436 = vmatprep.subr.bf16.mxu0 0
      %1437 = vmatpush1.bf16.msra.mxu0 %v986
      %1438 = vmatprep.subr.bf16.mxu0 0
      %1439 = vmatpush1.bf16.msra.mxu0 %v987
      %1440 = vmatprep.subr.bf16.mxu0 0
      %1441 = vmatpush1.bf16.msra.mxu0 0
      %1442 = vmatprep.subr.bf16.mxu0 0
      %1443 = vmatpush1.bf16.msra.mxu0 0
      %1444 = vmatprep.subr.bf16.mxu0 0
      %1445 = vmatpush1.bf16.msra.mxu0 0
      %1446 = vmatprep.subr.bf16.mxu0 0
      %1447 = vmatpush1.bf16.msra.mxu0 0
      %1448 = vmatprep.subr.bf16.mxu0 0
      %1449 = vmatpush1.bf16.msra.mxu0 0
      %1450 = vmatprep.subr.bf16.mxu0 0
      %1451 = vmatpush1.bf16.msra.mxu0 0
      %1452 = vmatprep.subr.bf16.mxu0 0
      %1453 = vmatpush1.bf16.msra.mxu0 0
      %1454 = vmatprep.subr.bf16.mxu0 0
      %1455 = vmatpush1.bf16.msra.mxu0 0
      %1456 = vmatprep.subr.bf16.mxu0 0
      %1457 = vmatpush1.bf16.msra.mxu0 0
      %1458 = vmatprep.subr.bf16.mxu0 0
      %1459 = vmatpush1.bf16.msra.mxu0 0
      %1460 = vmatprep.subr.bf16.mxu0 0
      %1461 = vmatpush1.bf16.msra.mxu0 0
      %1462 = vmatprep.subr.bf16.mxu0 0
      %1463 = vmatpush1.bf16.msra.mxu0 0
      %1464 = vmatprep.subr.bf16.mxu0 0
      %1465 = vmatpush1.bf16.msra.mxu0 0
      %1466 = vmatprep.subr.bf16.mxu0 0
      %1467 = vmatpush1.bf16.msra.mxu0 0
      %1468 = vmatprep.mubr.bf16.mxu0 0
      %1469 = vmatmul.mubr.bf16.gmra.mrb[0].mxu0 %v1008
      %v1470 = vpop.f32.mrb[0].mxu0
      %v1471 = vadd.f32 %v1150, %v1470
      %v1472 = vpop.f32.mrb[0].mxu0
      %v1473 = vpop.f32.mrb[0].mxu0
      %v1474 = vadd.f32 %v1153, %v1473
      %v1475 = vpop.f32.mrb[0].mxu0
      %1476 = vmatprep.mubr.bf16.mxu0 0
      %1477 = vmatmul.mubr.bf16.gmra.mrb[0].mxu0 %v1011
      %v1478 = vpop.f32.mrb[0].mxu0
      %v1479 = vadd.f32 %v1158, %v1478
      %v1480 = vpop.f32.mrb[0].mxu0
      %v1481 = vpop.f32.mrb[0].mxu0
      %v1482 = vadd.f32 %v1161, %v1481
      %v1483 = vpop.f32.mrb[0].mxu0
      %1484 = vmatprep.mubr.bf16.mxu0 0
      %1485 = vmatmul.mubr.bf16.gmra.mrb[0].mxu0 %v1014
      %v1486 = vpop.f32.mrb[0].mxu0
      %v1487 = vadd.f32 %v1166, %v1486
      %v1488 = vpop.f32.mrb[0].mxu0
      %v1489 = vpop.f32.mrb[0].mxu0
      %v1490 = vadd.f32 %v1169, %v1489
      %v1491 = vpop.f32.mrb[0].mxu0
      %1492 = vmatprep.mubr.bf16.mxu0 0
      %1493 = vmatmul.mubr.bf16.gmra.mrb[0].mxu0 %v1017
      %v1494 = vpop.f32.mrb[0].mxu0
      %v1495 = vadd.f32 %v1174, %v1494
      %v1496 = vpop.f32.mrb[0].mxu0
      %v1497 = vpop.f32.mrb[0].mxu0
      %v1498 = vadd.f32 %v1177, %v1497
      %v1499 = vpop.f32.mrb[0].mxu0
      %1500 = vmatprep.mubr.bf16.mxu0 0
      %1501 = vmatmul.mubr.bf16.gmra.mrb[0].mxu0 %v1020
      %v1502 = vpop.f32.mrb[0].mxu0
      %v1503 = vadd.f32 %v1182, %v1502
      %v1504 = vpop.f32.mrb[0].mxu0
      %v1505 = vpop.f32.mrb[0].mxu0
      %v1506 = vadd.f32 %v1185, %v1505
      %v1507 = vpop.f32.mrb[0].mxu0
      %1508 = vmatprep.mubr.bf16.mxu0 0
      %1509 = vmatmul.mubr.bf16.gmra.mrb[0].mxu0 %v1023
      %v1510 = vpop.f32.mrb[0].mxu0
      %v1511 = vadd.f32 %v1190, %v1510
      %v1512 = vpop.f32.mrb[0].mxu0
      %v1513 = vpop.f32.mrb[0].mxu0
      %v1514 = vadd.f32 %v1193, %v1513
      %v1515 = vpop.f32.mrb[0].mxu0
      %1516 = vmatprep.mubr.bf16.mxu0 0
      %1517 = vmatmul.mubr.bf16.gmra.mrb[0].mxu0 %v1026
      %v1518 = vpop.f32.mrb[0].mxu0
      %v1519 = vadd.f32 %v1198, %v1518
      %v1520 = vpop.f32.mrb[0].mxu0
      %v1521 = vpop.f32.mrb[0].mxu0
      %v1522 = vadd.f32 %v1201, %v1521
      %v1523 = vpop.f32.mrb[0].mxu0
      %1524 = vmatprep.mubr.bf16.mxu0 0
      %1525 = vmatmul.mubr.bf16.gmra.mrb[0].mxu0 %v1029
      %v1526 = vpop.f32.mrb[0].mxu0
      %v1527 = vadd.f32 %v1206, %v1526
      %v1528 = vpop.f32.mrb[0].mxu0
      %v1529 = vpop.f32.mrb[0].mxu0
      %v1530 = vadd.f32 %v1209, %v1529
      %v1531 = vpop.f32.mrb[0].mxu0
      %1532 = vmatprep.mubr.bf16.mxu0 0
      %1533 = vmatmul.mubr.bf16.gmra.mrb[0].mxu0 %v1032
      %v1534 = vpop.f32.mrb[0].mxu0
      %v1535 = vadd.f32 %v1214, %v1534
      %v1536 = vpop.f32.mrb[0].mxu0
      %v1537 = vpop.f32.mrb[0].mxu0
      %v1538 = vadd.f32 %v1217, %v1537
      %v1539 = vpop.f32.mrb[0].mxu0
      %1540 = vmatprep.mubr.bf16.mxu0 0
      %1541 = vmatmul.mubr.bf16.gmra.mrb[0].mxu0 %v1035
      %v1542 = vpop.f32.mrb[0].mxu0
      %v1543 = vadd.f32 %v1222, %v1542
      %v1544 = vpop.f32.mrb[0].mxu0
      %v1545 = vpop.f32.mrb[0].mxu0
      %v1546 = vadd.f32 %v1225, %v1545
      %v1547 = vpop.f32.mrb[0].mxu0
      %1548 = vmatprep.mubr.bf16.mxu0 0
      %1549 = vmatmul.mubr.bf16.gmra.mrb[0].mxu0 %v1038
      %v1550 = vpop.f32.mrb[0].mxu0
      %v1551 = vadd.f32 %v1230, %v1550
      %v1552 = vpop.f32.mrb[0].mxu0
      %v1553 = vpop.f32.mrb[0].mxu0
      %v1554 = vadd.f32 %v1233, %v1553
      %v1555 = vpop.f32.mrb[0].mxu0
      %1556 = vmatprep.mubr.bf16.mxu0 0
      %1557 = vmatmul.mubr.bf16.gmra.mrb[0].mxu0 %v1041
      %v1558 = vpop.f32.mrb[0].mxu0
      %v1559 = vadd.f32 %v1238, %v1558
      %v1560 = vpop.f32.mrb[0].mxu0
      %v1561 = vpop.f32.mrb[0].mxu0
      %v1562 = vadd.f32 %v1241, %v1561
      %v1563 = vpop.f32.mrb[0].mxu0
      %1564 = vmatprep.mubr.bf16.mxu0 0
      %1565 = vmatmul.mubr.bf16.gmra.mrb[0].mxu0 %v1044
      %v1566 = vpop.f32.mrb[0].mxu0
      %v1567 = vadd.f32 %v1246, %v1566
      %v1568 = vpop.f32.mrb[0].mxu0
      %v1569 = vpop.f32.mrb[0].mxu0
      %v1570 = vadd.f32 %v1249, %v1569
      %v1571 = vpop.f32.mrb[0].mxu0
      %1572 = vmatprep.mubr.bf16.mxu0 0
      %1573 = vmatmul.mubr.bf16.gmra.mrb[0].mxu0 %v1047
      %v1574 = vpop.f32.mrb[0].mxu0
      %v1575 = vadd.f32 %v1254, %v1574
      %v1576 = vpop.f32.mrb[0].mxu0
      %v1577 = vpop.f32.mrb[0].mxu0
      %v1578 = vadd.f32 %v1257, %v1577
      %v1579 = vpop.f32.mrb[0].mxu0
      %1580 = vmatprep.mubr.bf16.mxu0 0
      %1581 = vmatmul.mubr.bf16.gmra.mrb[0].mxu0 %v1050
      %v1582 = vpop.f32.mrb[0].mxu0
      %v1583 = vadd.f32 %v1262, %v1582
      %v1584 = vpop.f32.mrb[0].mxu0
      %v1585 = vpop.f32.mrb[0].mxu0
      %v1586 = vadd.f32 %v1265, %v1585
      %v1587 = vpop.f32.mrb[0].mxu0
      %1588 = vmatprep.mubr.bf16.mxu0 0
      %1589 = vmatmul.mubr.bf16.gmra.mrb[0].mxu0 %v1053
      %v1590 = vpop.f32.mrb[0].mxu0
      %v1591 = vadd.f32 %v1270, %v1590
      %v1592 = vpop.f32.mrb[0].mxu0
      %v1593 = vpop.f32.mrb[0].mxu0
      %v1594 = vadd.f32 %v1273, %v1593
      %v1595 = vpop.f32.mrb[0].mxu0
      %1596 = vmatprep.mubr.bf16.mxu0 0
      %1597 = vmatmul.mubr.bf16.gmra.mrb[0].mxu0 %v1056
      %v1598 = vpop.f32.mrb[0].mxu0
      %v1599 = vadd.f32 %v1278, %v1598
      %v1600 = vpop.f32.mrb[0].mxu0
      %v1601 = vpop.f32.mrb[0].mxu0
      %v1602 = vadd.f32 %v1281, %v1601
      %v1603 = vpop.f32.mrb[0].mxu0
      %1604 = vmatprep.mubr.bf16.mxu0 0
      %1605 = vmatmul.mubr.bf16.gmra.mrb[0].mxu0 %v1059
      %v1606 = vpop.f32.mrb[0].mxu0
      %v1607 = vadd.f32 %v1286, %v1606
      %v1608 = vpop.f32.mrb[0].mxu0
      %v1609 = vpop.f32.mrb[0].mxu0
      %v1610 = vadd.f32 %v1289, %v1609
      %v1611 = vpop.f32.mrb[0].mxu0
      %1612 = vmatprep.mubr.bf16.mxu0 0
      %1613 = vmatmul.mubr.bf16.gmra.mrb[0].mxu0 %v1062
      %v1614 = vpop.f32.mrb[0].mxu0
      %v1615 = vadd.f32 %v1294, %v1614
      %v1616 = vpop.f32.mrb[0].mxu0
      %v1617 = vpop.f32.mrb[0].mxu0
      %v1618 = vadd.f32 %v1297, %v1617
      %v1619 = vpop.f32.mrb[0].mxu0
      %1620 = vmatprep.mubr.bf16.mxu0 0
      %1621 = vmatmul.mubr.bf16.gmra.mrb[0].mxu0 %v1065
      %v1622 = vpop.f32.mrb[0].mxu0
      %v1623 = vadd.f32 %v1302, %v1622
      %v1624 = vpop.f32.mrb[0].mxu0
      %v1625 = vpop.f32.mrb[0].mxu0
      %v1626 = vadd.f32 %v1305, %v1625
      %v1627 = vpop.f32.mrb[0].mxu0
      %1628 = vmatprep.mubr.bf16.mxu0 0
      %1629 = vmatmul.mubr.bf16.gmra.mrb[0].mxu0 %v1068
      %v1630 = vpop.f32.mrb[0].mxu0
      %v1631 = vadd.f32 %v1310, %v1630
      %v1632 = vpop.f32.mrb[0].mxu0
      %v1633 = vpop.f32.mrb[0].mxu0
      %v1634 = vadd.f32 %v1313, %v1633
      %v1635 = vpop.f32.mrb[0].mxu0
      %1636 = vmatprep.mubr.bf16.mxu0 0
      %1637 = vmatmul.mubr.bf16.gmra.mrb[0].mxu0 %v1071
      %v1638 = vpop.f32.mrb[0].mxu0
      %v1639 = vadd.f32 %v1318, %v1638
      %v1640 = vpop.f32.mrb[0].mxu0
      %v1641 = vpop.f32.mrb[0].mxu0
      %v1642 = vadd.f32 %v1321, %v1641
      %v1643 = vpop.f32.mrb[0].mxu0
      %1644 = vmatprep.mubr.bf16.mxu0 0
      %1645 = vmatmul.mubr.bf16.gmra.mrb[0].mxu0 %v1074
      %v1646 = vpop.f32.mrb[0].mxu0
      %v1647 = vadd.f32 %v1326, %v1646
      %v1648 = vpop.f32.mrb[0].mxu0
      %v1649 = vpop.f32.mrb[0].mxu0
      %v1650 = vadd.f32 %v1329, %v1649
      %v1651 = vpop.f32.mrb[0].mxu0
      %1652 = vmatprep.mubr.bf16.mxu0 0
      %1653 = vmatmul.mubr.bf16.gmra.mrb[0].mxu0 %v1077
      %v1654 = vpop.f32.mrb[0].mxu0
      %v1655 = vadd.f32 %v1334, %v1654
      %v1656 = vpop.f32.mrb[0].mxu0
      %v1657 = vpop.f32.mrb[0].mxu0
      %v1658 = vadd.f32 %v1337, %v1657
      %v1659 = vpop.f32.mrb[0].mxu0
      %1660 = vmatprep.mubr.bf16.mxu0 0
      %1661 = vmatmul.mubr.bf16.gmra.mrb[0].mxu0 %v1080
      %v1662 = vpop.f32.mrb[0].mxu0
      %v1663 = vadd.f32 %v1342, %v1662
      %v1664 = vpop.f32.mrb[0].mxu0
      %v1665 = vpop.f32.mrb[0].mxu0
      %v1666 = vadd.f32 %v1345, %v1665
      %v1667 = vpop.f32.mrb[0].mxu0
      %1668 = vmatprep.mubr.bf16.mxu0 0
      %1669 = vmatmul.mubr.bf16.gmra.mrb[0].mxu0 %v1083
      %v1670 = vpop.f32.mrb[0].mxu0
      %v1671 = vadd.f32 %v1350, %v1670
      %v1672 = vpop.f32.mrb[0].mxu0
      %v1673 = vpop.f32.mrb[0].mxu0
      %v1674 = vadd.f32 %v1353, %v1673
      %v1675 = vpop.f32.mrb[0].mxu0
      %1676 = vmatprep.mubr.bf16.mxu0 0
      %1677 = vmatmul.mubr.bf16.gmra.mrb[0].mxu0 %v1086
      %v1678 = vpop.f32.mrb[0].mxu0
      %v1679 = vadd.f32 %v1358, %v1678
      %v1680 = vpop.f32.mrb[0].mxu0
      %v1681 = vpop.f32.mrb[0].mxu0
      %v1682 = vadd.f32 %v1361, %v1681
      %v1683 = vpop.f32.mrb[0].mxu0
      %1684 = vmatprep.mubr.bf16.mxu0 0
      %1685 = vmatmul.mubr.bf16.gmra.mrb[0].mxu0 %v1089
      %v1686 = vpop.f32.mrb[0].mxu0
      %v1687 = vadd.f32 %v1366, %v1686
      %v1688 = vpop.f32.mrb[0].mxu0
      %v1689 = vpop.f32.mrb[0].mxu0
      %v1690 = vadd.f32 %v1369, %v1689
      %v1691 = vpop.f32.mrb[0].mxu0
      %1692 = vmatprep.mubr.bf16.mxu0 0
      %1693 = vmatmul.mubr.bf16.gmra.mrb[0].mxu0 %v1092
      %v1694 = vpop.f32.mrb[0].mxu0
      %v1695 = vadd.f32 %v1374, %v1694
      %v1696 = vpop.f32.mrb[0].mxu0
      %v1697 = vpop.f32.mrb[0].mxu0
      %v1698 = vadd.f32 %v1377, %v1697
      %v1699 = vpop.f32.mrb[0].mxu0
      %1700 = vmatprep.mubr.bf16.mxu0 0
      %1701 = vmatmul.mubr.bf16.gmra.mrb[0].mxu0 %v1095
      %v1702 = vpop.f32.mrb[0].mxu0
      %v1703 = vadd.f32 %v1382, %v1702
      %v1704 = vpop.f32.mrb[0].mxu0
      %v1705 = vpop.f32.mrb[0].mxu0
      %v1706 = vadd.f32 %v1385, %v1705
      %v1707 = vpop.f32.mrb[0].mxu0
      %1708 = vmatprep.mubr.bf16.mxu0 0
      %1709 = vmatmul.mubr.bf16.gmra.mrb[0].mxu0 %v1098
      %v1710 = vpop.f32.mrb[0].mxu0
      %v1711 = vadd.f32 %v1390, %v1710
      %v1712 = vpop.f32.mrb[0].mxu0
      %v1713 = vpop.f32.mrb[0].mxu0
      %v1714 = vadd.f32 %v1393, %v1713
      %v1715 = vpop.f32.mrb[0].mxu0
      %1716 = vmatprep.mubr.bf16.mxu0 0
      %1717 = vmatmul.mubr.bf16.gmra.mrb[0].mxu0 %v1101
      %v1718 = vpop.f32.mrb[0].mxu0
      %v1719 = vadd.f32 %v1398, %v1718
      %v1720 = vpop.f32.mrb[0].mxu0
      %v1721 = vpop.f32.mrb[0].mxu0
      %v1722 = vadd.f32 %v1401, %v1721
      %v1723 = vpop.f32.mrb[0].mxu0
      %1724 = vmatprep.mubr.bf16.mxu0 0
      %1725 = vmatmul.mubr.bf16.gmra.mrb[0].mxu0 %v1104
      %v1726 = vpop.f32.mrb[0].mxu0
      %v1727 = vadd.f32 %v1406, %v1726
      %v1728 = vpop.f32.mrb[0].mxu0
      %v1729 = vpop.f32.mrb[0].mxu0
      %v1730 = vadd.f32 %v1409, %v1729
      %v1731 = vpop.f32.mrb[0].mxu0
      %1732 = vmatprep.mubr.bf16.mxu0 0
      %1733 = vmatmul.mubr.bf16.gmra.mrb[0].mxu0 %v1107
      %v1734 = vpop.f32.mrb[0].mxu0
      %v1735 = vadd.f32 %v1414, %v1734
      %v1736 = vpop.f32.mrb[0].mxu0
      %v1737 = vpop.f32.mrb[0].mxu0
      %v1738 = vadd.f32 %v1417, %v1737
      %v1739 = vpop.f32.mrb[0].mxu0
      %1740 = vmatprep.mubr.bf16.mxu0 0
      %1741 = vmatmul.mubr.bf16.gmra.mrb[0].mxu0 %v1110
      %v1742 = vpop.f32.mrb[0].mxu0
      %v1743 = vadd.f32 %v1422, %v1742
      %v1744 = vpop.f32.mrb[0].mxu0
      %v1745 = vpop.f32.mrb[0].mxu0
      %v1746 = vadd.f32 %v1425, %v1745
      %v1747 = vpop.f32.mrb[0].mxu0
      %1748 = vmatprep.mubr.bf16.mxu0 0
      %1749 = vmatmul.mubr.bf16.gmra.mrb[0].mxu0 %v1113
      %v1750 = vpop.f32.mrb[0].mxu0
      %v1751 = vadd.f32 %v1430, %v1750
      %v1752 = vpop.f32.mrb[0].mxu0
      %v1753 = vpop.f32.mrb[0].mxu0
      %v1754 = vadd.f32 %v1433, %v1753
      %v1755 = vpop.f32.mrb[0].mxu0
      %1756 = vdwg.mxu0
      %v1757 = vmax.f32 %v1471, %v1543
      %v1758 = vmax.f32 %v1474, %v1546
      %v1759 = vmax.f32 %v1479, %v1551
      %v1760 = vmax.f32 %v1482, %v1554
      %v1761 = vmax.f32 %v1487, %v1559
      %v1762 = vmax.f32 %v1490, %v1562
      %v1763 = vmax.f32 %v1495, %v1567
      %v1764 = vmax.f32 %v1498, %v1570
      %v1765 = vmax.f32 %v1503, %v1575
      %v1766 = vmax.f32 %v1506, %v1578
      %v1767 = vmax.f32 %v1511, %v1583
      %v1768 = vmax.f32 %v1514, %v1586
      %v1769 = vmax.f32 %v1519, %v1591
      %v1770 = vmax.f32 %v1522, %v1594
      %v1771 = vmax.f32 %v1527, %v1599
      %v1772 = vmax.f32 %v1530, %v1602
      %v1773 = vmax.f32 %v1535, %v1607
      %v1774 = vmax.f32 %v1538, %v1610
      %v1775 = vmax.f32 %v1615, %v1687
      %v1776 = vmax.f32 %v1618, %v1690
      %v1777 = vmax.f32 %v1623, %v1695
      %v1778 = vmax.f32 %v1626, %v1698
      %v1779 = vmax.f32 %v1631, %v1703
      %v1780 = vmax.f32 %v1634, %v1706
      %v1781 = vmax.f32 %v1639, %v1711
      %v1782 = vmax.f32 %v1642, %v1714
      %v1783 = vmax.f32 %v1647, %v1719
      %v1784 = vmax.f32 %v1650, %v1722
      %v1785 = vmax.f32 %v1655, %v1727
      %v1786 = vmax.f32 %v1658, %v1730
      %v1787 = vmax.f32 %v1663, %v1735
      %v1788 = vmax.f32 %v1666, %v1738
      %v1789 = vmax.f32 %v1671, %v1743
      %v1790 = vmax.f32 %v1674, %v1746
      %v1791 = vmax.f32 %v1679, %v1751
      %v1792 = vmax.f32 %v1682, %v1754
      %v1793 = vmax.f32 %v1757, %v1775
      %v1794 = vmax.f32 %v1758, %v1776
      %v1795 = vmax.f32 %v1759, %v1777
      %v1796 = vmax.f32 %v1760, %v1778
      %v1797 = vmax.f32 %v1761, %v1779
      %v1798 = vmax.f32 %v1762, %v1780
      %v1799 = vmax.f32 %v1763, %v1781
      %v1800 = vmax.f32 %v1764, %v1782
      %v1801 = vmax.f32 %v1765, %v1783
      %v1802 = vmax.f32 %v1766, %v1784
      %v1803 = vmax.f32 %v1767, %v1785
      %v1804 = vmax.f32 %v1768, %v1786
      %v1805 = vmax.f32 %v1769, %v1787
      %v1806 = vmax.f32 %v1770, %v1788
      %v1807 = vmax.f32 %v1771, %v1789
      %v1808 = vmax.f32 %v1772, %v1790
      %v1809 = vmax.f32 %v1773, %v1791
      %v1810 = vmax.f32 %v1774, %v1792
      %v1811 = vld [vmem:[%s2] sm:$0x1]
      %v1813 = vlaneseq
      %v1814 = vshrl.u32 %v1813, 7
      %v1815 = vsub.s32 0, %v1814
      %v1816 = vrot.slane %v1811, %v1815
      %v1818 = vadd.f32 %v1793, %v1816
      %v1819 = vadd.f32 %v1794, %v1816
      %v1820 = vadd.f32 %v1795, %v1816
      %v1821 = vadd.f32 %v1796, %v1816
      %v1822 = vadd.f32 %v1797, %v1816
      %v1823 = vadd.f32 %v1798, %v1816
      %v1824 = vadd.f32 %v1799, %v1816
      %v1825 = vadd.f32 %v1800, %v1816
      %v1826 = vadd.f32 %v1801, %v1816
      %v1827 = vadd.f32 %v1802, %v1816
      %v1828 = vadd.f32 %v1803, %v1816
      %v1829 = vadd.f32 %v1804, %v1816
      %v1830 = vadd.f32 %v1805, %v1816
      %v1831 = vadd.f32 %v1806, %v1816
      %v1832 = vadd.f32 %v1807, %v1816
      %v1833 = vadd.f32 %v1808, %v1816
      %v1834 = vadd.f32 %v1809, %v1816
      %v1835 = vadd.f32 %v1810, %v1816
      %v1836 = vmax.f32 %v1818, 0.0
      %v1837 = vmax.f32 %v1819, 0.0
      %v1838 = vmax.f32 %v1820, 0.0
      %v1839 = vmax.f32 %v1821, 0.0
      %v1840 = vmax.f32 %v1822, 0.0
      %v1841 = vmax.f32 %v1823, 0.0
      %v1842 = vmax.f32 %v1824, 0.0
      %v1843 = vmax.f32 %v1825, 0.0
      %v1844 = vmax.f32 %v1826, 0.0
      %v1845 = vmax.f32 %v1827, 0.0
      %v1846 = vmax.f32 %v1828, 0.0
      %v1847 = vmax.f32 %v1829, 0.0
      %v1848 = vmax.f32 %v1830, 0.0
      %v1849 = vmax.f32 %v1831, 0.0
      %v1850 = vmax.f32 %v1832, 0.0
      %v1851 = vmax.f32 %v1833, 0.0
      %v1852 = vmax.f32 %v1834, 0.0
      %v1853 = vmax.f32 %v1835, 0.0
      %v1854 = vpack.c.bf16 %v1837, %v1836
      %v1855 = vpack.c.bf16 %v1839, %v1838
      %v1856 = vpack.c.bf16 %v1841, %v1840
      %v1857 = vpack.c.bf16 %v1843, %v1842
      %v1858 = vpack.c.bf16 %v1845, %v1844
      %v1859 = vpack.c.bf16 %v1847, %v1846
      %v1860 = vpack.c.bf16 %v1849, %v1848
      %v1861 = vpack.c.bf16 %v1851, %v1850
      %v1862 = vpack.c.bf16 %v1853, %v1852
      %v1872 = vunpack.c.l.b16 %v1854
      %v1873 = vunpack.c.h.b16 %v1854
      %v1874 = vunpack.c.l.b16 %v1855
      %v1875 = vunpack.c.h.b16 %v1855
      %v1876 = vunpack.c.l.b16 %v1856
      %v1877 = vunpack.c.h.b16 %v1856
      %v1878 = vunpack.c.l.b16 %v1857
      %v1879 = vunpack.c.h.b16 %v1857
      %v1880 = vunpack.c.l.b16 %v1858
      %v1881 = vunpack.c.h.b16 %v1858
      %v1882 = vunpack.c.l.b16 %v1859
      %v1883 = vunpack.c.h.b16 %v1859
      %v1884 = vunpack.c.l.b16 %v1860
      %v1885 = vunpack.c.h.b16 %v1860
      %v1886 = vunpack.c.l.b16 %v1861
      %v1887 = vunpack.c.h.b16 %v1861
      %v1888 = vunpack.c.l.b16 %v1862
      %v1889 = vunpack.c.h.b16 %v1862
      %v1890 = vpack.c.b16 %v1872, %v1872
      %v1891 = vpack.c.b16 %v1873, %v1873
      %v1892 = vpack.c.b16 %v1874, %v1874
      %v1893 = vpack.c.b16 %v1875, %v1875
      %v1894 = vpack.c.b16 %v1876, %v1876
      %v1895 = vpack.c.b16 %v1877, %v1877
      %v1896 = vpack.c.b16 %v1878, %v1878
      %v1897 = vpack.c.b16 %v1879, %v1879
      %v1898 = vpack.c.b16 %v1880, %v1880
      %v1899 = vpack.c.b16 %v1881, %v1881
      %v1900 = vpack.c.b16 %v1882, %v1882
      %v1901 = vpack.c.b16 %v1883, %v1883
      %v1902 = vpack.c.b16 %v1884, %v1884
      %v1903 = vpack.c.b16 %v1885, %v1885
      %v1904 = vpack.c.b16 %v1886, %v1886
      %v1905 = vpack.c.b16 %v1887, %v1887
      %v1906 = vpack.c.b16 %v1888, %v1888
      %v1907 = vpack.c.b16 %v1889, %v1889
      %vm1926 = vcmask 519168
      %1927 = vst.msk [vmem:[%s175] sm:$0xf] %vm1926, %v1890
      %1928 = vst.msk [vmem:[%s175 + $0x4] sm:$0xf] %vm1926, %v1891
      %1929 = vst.msk [vmem:[%s175 + $0x8] sm:$0xf] %vm1926, %v1892
      %1930 = vst.msk [vmem:[%s175 + $0xc] sm:$0xf] %vm1926, %v1893
      %1931 = vst.msk [vmem:[%s175 + $0x10] sm:$0xf] %vm1926, %v1894
      %1932 = vst.msk [vmem:[%s175 + $0x14] sm:$0xf] %vm1926, %v1895
      %1933 = vst.msk [vmem:[%s175 + $0x18] sm:$0xf] %vm1926, %v1896
      %1934 = vst.msk [vmem:[%s175 + $0x1c] sm:$0xf] %vm1926, %v1897
      %1935 = vst.msk [vmem:[%s175 + $0x20] sm:$0xf] %vm1926, %v1898
      %1936 = vst.msk [vmem:[%s175 + $0x24] sm:$0xf] %vm1926, %v1899
      %1937 = vst.msk [vmem:[%s175 + $0x28] sm:$0xf] %vm1926, %v1900
      %1938 = vst.msk [vmem:[%s175 + $0x2c] sm:$0xf] %vm1926, %v1901
      %1939 = vst.msk [vmem:[%s175 + $0x30] sm:$0xf] %vm1926, %v1902
      %1940 = vst.msk [vmem:[%s175 + $0x34] sm:$0xf] %vm1926, %v1903
      %1941 = vst.msk [vmem:[%s175 + $0x38] sm:$0xf] %vm1926, %v1904
      %1942 = vst.msk [vmem:[%s175 + $0x3c] sm:$0xf] %vm1926, %v1905
      %1943 = vst.msk [vmem:[%s175 + $0x40] sm:$0xf] %vm1926, %v1906
      %1944 = vst.msk [vmem:[%s175 + $0x44] sm:$0xf] %vm1926, %v1907
      %s1945 = smul.u32 18, %s14
      %p1946 = scmp.lt.s32.totalorder %s1945, 35
      %s1947 = scalar_select %p1946, %s1945, 35
      %s1948 = smul.addr %s1947, 4
      %s1949 = scalar_lea.vmem %s3, %s1948
      // Predicated region
      $region33: #{net_forward.4} parent=31 // pred_check
        %p1950 = pneg %p100
      $region34: #{net_forward.4} parent=31 // pred_check_branch
        %1952 = sbr.rel (%p1950) target = $region36
      $region35: #{net_forward.4} parent=31 // pred_region
        %s1953 = smul.u32 18, %s14
      $region36: #{net_forward.4} parent=31 // pred_fallthru
        _
    $region32: #{net_forward.4} parent=5 // pred_fallthru
      _
    %p1954 = scmp.le.s32.totalorder 2, %s9
    // Predicated region
    $region37: #{net_forward.4} parent=5 // pred_check
      %p1955 = pneg %p1954
    $region38: #{net_forward.4} parent=5 // pred_check_branch
      %1957 = sbr.rel (%p1955) target = $region40
    $region39: #{net_forward.4} parent=5 // pred_region
      %s1958 = ssub.s32 %s9, 2
      // Predicated region
      $region41: #{net_forward.4} parent=39 // pred_check
        %p1959 = pneg %p106
      $region42: #{net_forward.4} parent=39 // pred_check_branch
        %1961 = sbr.rel (%p1959) target = $region44
      $region43: #{net_forward.4} parent=39 // pred_region
        %s1962 = smul.u32 18, %s15
        %p1963 = scmp.lt.s32.totalorder %s1962, 35
        %s1964 = scalar_select %p1963, %s1962, 35
        %s1965 = smul.addr %s1964, 4
        %s1966 = scalar_lea.vmem %s3, %s1965
      $region44: #{net_forward.4} parent=39 // pred_fallthru
        _
    $region40: #{net_forward.4} parent=5 // pred_fallthru
      _
  $region6: #{net_forward.4} parent=0 // loop_footer
    %s13 = sadd.s32 1, %s9
  $region7: #{net_forward.4} parent=0 // loop_footer_branch
    %8 = sbr.rel target = $region3
  $region8: #{net_forward.4} parent=0 // loop_exit
    _

// kernel: net_forward.5
$region0: #{net_forward.5}
  #allocation0 [shape = 'u32[]', space=smem, size = 0x4, offset = 0x4, fixed_abs, tag = 'smem constant byte address 0x4 - core index']
  #allocation1 [shape = 'u32[144,128]{1,0:T(1,128)}', space=vmem, size = 0x12000, scoped, tag = 'internal scratch']
  #allocation2 [shape = 'f32[16,128]{1,0:T(8,128)}', space=vmem, size = 0x2000, scoped, tag = 'scratch operand']
  %s0 = inlined_call_operand.vmem [shape: bf16[16,9216], index: 0, kind: input, shape index: {}]
  %s1 = inlined_call_operand.vmem [shape: bf16[9216,128], index: 1, kind: input, shape index: {}]
  %s2 = inlined_call_operand.vmem [shape: f32[1,128], index: 2, kind: input, shape index: {}]
  %s3 = inlined_call_operand.vmem [shape: bf16[128,10], index: 3, kind: input, shape index: {}]
  %s4 = inlined_call_operand.vmem [shape: f32[1,10], index: 4, kind: input, shape index: {}]
  %s5 = inlined_call_operand.vmem [shape: f32[16,10], index: 5, kind: output, shape index: {}]
  %s6 = sld [smem:[#allocation0]]
  $region84: #{net_forward.5} parent=0
    _
  %s8 = ssub.s32 1, %s6
  %s9 = scalar_select 0, %s8, %s6
  $region1: #{net_forward.5} parent=0
    #allocation3 [shape = 'u8[294912]{0}', space=vmem, size = 0x48000, scoped, tag = 'input window, operand 0']
    loop: start=0, step=1, limit=4
    $region2: #{net_forward.5} parent=1 // loop_pre_header
      _
    $region3: #{net_forward.5} parent=1 // loop_header
      %s11 = sphi 0, %s15
      %p12 = scmp.ge.s32.totalorder %s11, 4
      %s18 = sphi 0, %s30
      %s19 = sphi 0, %s26
      %s20 = sphi 0, %s18
      %s21 = sphi 0, %s19
      %s22 = sphi 0, %s20
      %s23 = sphi 0, %s21
      %s35 = sphi 0, %s37
      %s38 = sphi 0, %s35
      %s39 = sphi 0, %s38
      %s55 = sphi 0, %s39
      %s61 = sphi 0, %s63
      %s64 = sphi 0, %s61
      %s65 = sphi 0, %s64
      %s81 = sphi 0, %s65
      %s85 = sphi 0, %s85
      %s87 = sphi 0, %s85
      %s88 = sphi 0, %s87
      %s102 = sphi 0, %s88
      %s106 = sphi 0, %s106
      %s108 = sphi 0, %s106
      %s109 = sphi 0, %s108
      %s123 = sphi 0, %s109
      %s127 = sphi 0, %s127
      %s129 = sphi 0, %s127
      %s130 = sphi 0, %s129
      %s144 = sphi 0, %s130
      %s150 = sphi 0, %s152
      %s153 = sphi 0, %s150
      %s154 = sphi 0, %s153
      %s170 = sphi 0, %s154
    $region4: #{net_forward.5} parent=1 // loop_header_branch
      %14 = sbr.rel (%p12) target = $region8
    $region5: #{net_forward.5} parent=1 // loop_body
      %s16 = ssub.s32 %s11, 1
      %s17 = ssub.s32 %s11, 2
      %s24 = sadd.s32 1, %s19
      %p25 = scmp.ge.s32.totalorder %s24, 2
      %s26 = scalar_select %p25, 0, %s24
      %s27 = sadd.s32 1, %s18
      %s28 = scalar_select %p25, %s27, %s18
      %p29 = scmp.ge.s32.totalorder %s28, 1
      %s30 = scalar_select %p29, 0, %s28
      %s31 = ssub.s32 %s18, %s30
      %s32 = ssub.s32 %s19, %s26
      %s33 = sor.u32 %s31, %s32
      %p34 = scmp.eq.s32.totalorder %s33, 0
      %s36 = sadd.s32 %s35, 1
      %s37 = scalar_select %p34, %s35, %s36
      %p40 = pneg %p34
      %p41 = scmp.eq.s32.totalorder %s11, 1
      %p42 = por %p40, %p41
      %p43 = scmp.ne.s32.totalorder %s35, %s38
      %p44 = scmp.eq.s32.totalorder %s11, 0
      %p45 = por %p43, %p44
      %p46 = scmp.ne.s32.totalorder %s35, %s38
      %p47 = scmp.eq.s32.totalorder %s16, 1
      %p48 = por %p46, %p47
      %p49 = scmp.ne.s32.totalorder %s38, %s39
      %p50 = scmp.eq.s32.totalorder %s16, 0
      %p51 = por %p49, %p50
      %p52 = scmp.ne.s32.totalorder %s38, %s39
      %p53 = scmp.eq.s32.totalorder %s17, 1
      %p54 = por %p52, %p53
      %p56 = scmp.ne.s32.totalorder %s39, %s55
      %p57 = scmp.eq.s32.totalorder %s17, 0
      %p58 = por %p56, %p57
      %s59 = ssub.s32 %s19, %s26
      %p60 = scmp.eq.s32.totalorder %s59, 0
      %s62 = sadd.s32 %s61, 1
      %s63 = scalar_select %p60, %s61, %s62
      %p66 = pneg %p60
      %p67 = scmp.eq.s32.totalorder %s11, 1
      %p68 = por %p66, %p67
      %p69 = scmp.ne.s32.totalorder %s61, %s64
      %p70 = scmp.eq.s32.totalorder %s11, 0
      %p71 = por %p69, %p70
      %p72 = scmp.ne.s32.totalorder %s61, %s64
      %p73 = scmp.eq.s32.totalorder %s16, 1
      %p74 = por %p72, %p73
      %p75 = scmp.ne.s32.totalorder %s64, %s65
      %p76 = scmp.eq.s32.totalorder %s16, 0
      %p77 = por %p75, %p76
      %p78 = scmp.ne.s32.totalorder %s64, %s65
      %p79 = scmp.eq.s32.totalorder %s17, 1
      %p80 = por %p78, %p79
      %p82 = scmp.ne.s32.totalorder %s65, %s81
      %p83 = scmp.eq.s32.totalorder %s17, 0
      %p84 = por %p82, %p83
      %s86 = sadd.s32 %s85, 1
      %p89 = scmp.eq.s32.totalorder %s11, 1
      %p90 = scmp.ne.s32.totalorder %s85, %s87
      %p91 = scmp.eq.s32.totalorder %s11, 0
      %p92 = por %p90, %p91
      %p93 = scmp.ne.s32.totalorder %s85, %s87
      %p94 = scmp.eq.s32.totalorder %s16, 1
      %p95 = por %p93, %p94
      %p96 = scmp.ne.s32.totalorder %s87, %s88
      %p97 = scmp.eq.s32.totalorder %s16, 0
      %p98 = por %p96, %p97
      %p99 = scmp.ne.s32.totalorder %s87, %s88
      %p100 = scmp.eq.s32.totalorder %s17, 1
      %p101 = por %p99, %p100
      %p103 = scmp.ne.s32.totalorder %s88, %s102
      %p104 = scmp.eq.s32.totalorder %s17, 0
      %p105 = por %p103, %p104
      %s107 = sadd.s32 %s106, 1
      %p110 = scmp.eq.s32.totalorder %s11, 1
      %p111 = scmp.ne.s32.totalorder %s106, %s108
      %p112 = scmp.eq.s32.totalorder %s11, 0
      %p113 = por %p111, %p112
      %p114 = scmp.ne.s32.totalorder %s106, %s108
      %p115 = scmp.eq.s32.totalorder %s16, 1
      %p116 = por %p114, %p115
      %p117 = scmp.ne.s32.totalorder %s108, %s109
      %p118 = scmp.eq.s32.totalorder %s16, 0
      %p119 = por %p117, %p118
      %p120 = scmp.ne.s32.totalorder %s108, %s109
      %p121 = scmp.eq.s32.totalorder %s17, 1
      %p122 = por %p120, %p121
      %p124 = scmp.ne.s32.totalorder %s109, %s123
      %p125 = scmp.eq.s32.totalorder %s17, 0
      %p126 = por %p124, %p125
      %s128 = sadd.s32 %s127, 1
      %p131 = scmp.eq.s32.totalorder %s11, 1
      %p132 = scmp.ne.s32.totalorder %s127, %s129
      %p133 = scmp.eq.s32.totalorder %s11, 0
      %p134 = por %p132, %p133
      %p135 = scmp.ne.s32.totalorder %s127, %s129
      %p136 = scmp.eq.s32.totalorder %s16, 1
      %p137 = por %p135, %p136
      %p138 = scmp.ne.s32.totalorder %s129, %s130
      %p139 = scmp.eq.s32.totalorder %s16, 0
      %p140 = por %p138, %p139
      %p141 = scmp.ne.s32.totalorder %s129, %s130
      %p142 = scmp.eq.s32.totalorder %s17, 1
      %p143 = por %p141, %p142
      %p145 = scmp.ne.s32.totalorder %s130, %s144
      %p146 = scmp.eq.s32.totalorder %s17, 0
      %p147 = por %p145, %p146
      %s148 = ssub.s32 %s18, %s30
      %p149 = scmp.eq.s32.totalorder %s148, 0
      %s151 = sadd.s32 %s150, 1
      %s152 = scalar_select %p149, %s150, %s151
      %p155 = pneg %p149
      %p156 = scmp.eq.s32.totalorder %s11, 1
      %p157 = por %p155, %p156
      %p158 = scmp.ne.s32.totalorder %s150, %s153
      %p159 = scmp.eq.s32.totalorder %s11, 0
      %p160 = por %p158, %p159
      %p161 = scmp.ne.s32.totalorder %s150, %s153
      %p162 = scmp.eq.s32.totalorder %s16, 1
      %p163 = por %p161, %p162
      %p164 = scmp.ne.s32.totalorder %s153, %s154
      %p165 = scmp.eq.s32.totalorder %s16, 0
      %p166 = por %p164, %p165
      %p167 = scmp.ne.s32.totalorder %s153, %s154
      %p168 = scmp.eq.s32.totalorder %s17, 1
      %p169 = por %p167, %p168
      %p171 = scmp.ne.s32.totalorder %s154, %s170
      %p172 = scmp.eq.s32.totalorder %s17, 0
      %p173 = por %p171, %p172
      %p174 = scmp.le.s32.totalorder 1, %s11
      %p175 = scmp.lt.s32.totalorder %s11, 3
      %p176 = pnand %p174, %p175
      %p177 = pneg %p176
      // Predicated region
      $region9: #{net_forward.5} parent=5 // pred_check
        _
      $region10: #{net_forward.5} parent=5 // pred_check_branch
        %179 = sbr.rel (%p176) target = $region12
      $region11: #{net_forward.5} parent=5 // pred_region
        %s180 = ssub.s32 %s11, 1
        // Predicated region
        $region13: #{net_forward.5} parent=11 // pred_check
          %p181 = pneg %p98
        $region14: #{net_forward.5} parent=11 // pred_check_branch
          %183 = sbr.rel (%p181) target = $region16
        $region15: #{net_forward.5} parent=11 // pred_region
          _
        $region16: #{net_forward.5} parent=11 // pred_fallthru
          _
        // Predicated region
        $region17: #{net_forward.5} parent=11 // pred_check
          %p184 = pneg %p119
        $region18: #{net_forward.5} parent=11 // pred_check_branch
          %186 = sbr.rel (%p184) target = $region20
        $region19: #{net_forward.5} parent=11 // pred_region
          _
        $region20: #{net_forward.5} parent=11 // pred_fallthru
          _
        // Predicated region
        $region21: #{net_forward.5} parent=11 // pred_check
          %p187 = pneg %p140
        $region22: #{net_forward.5} parent=11 // pred_check_branch
          %189 = sbr.rel (%p187) target = $region24
        $region23: #{net_forward.5} parent=11 // pred_region
          _
        $region24: #{net_forward.5} parent=11 // pred_fallthru
          _
      $region12: #{net_forward.5} parent=5 // pred_fallthru
        _
      %p190 = scmp.lt.s32.totalorder %s11, 2
      // Predicated region
      $region25: #{net_forward.5} parent=5 // pred_check
        %p191 = pneg %p190
      $region26: #{net_forward.5} parent=5 // pred_check_branch
        %193 = sbr.rel (%p191) target = $region28
      $region27: #{net_forward.5} parent=5 // pred_region
        // Predicated region
        $region29: #{net_forward.5} parent=27 // pred_check
          %p194 = pneg %p45
        $region30: #{net_forward.5} parent=27 // pred_check_branch
          %196 = sbr.rel (%p194) target = $region32
        $region31: #{net_forward.5} parent=27 // pred_region
          %s197 = sand.u32 %s35, 1
          %s198 = sand.u32 %s35, 1
          %s199 = smul.addr %s198, 288
          %s200 = scalar_lea.vmem [#allocation3], %s199
          %s201 = smul.u32 2, %s18
          %s202 = smul.u32 36, %s19
          %s203 = smul.addr %s201, 72
          %s204 = sadd.s32 %s202, %s203
          %s205 = smul.addr %s204, 4
          %s206 = scalar_lea.vmem %s0, %s205
          // Predicated region
          $region33: #{net_forward.5} parent=31 // pred_check
            _
          $region34: #{net_forward.5} parent=31 // pred_check_branch
            %208 = sbr.rel (0) target = $region36
          $region35: #{net_forward.5} parent=31 // pred_region
            // Predicated region
            $region37: #{net_forward.5} parent=35 // pred_check
              _
            $region38: #{net_forward.5} parent=35 // pred_check_branch
              %210 = sbr.rel (0) target = $region40
            $region39: #{net_forward.5} parent=35 // pred_region
              loop: start=0, step=1, limit=1
              $region41: #{net_forward.5} parent=39 // loop_pre_header
                _
              $region42: #{net_forward.5} parent=39 // loop_header
                %s212 = sphi 0, %s216
                %p213 = scmp.ge.s32.totalorder %s212, 1
                %s217 = sphi %s206, %s206
                %s218 = sphi %s200, %s200
              $region43: #{net_forward.5} parent=39 // loop_header_branch
                %215 = sbr.rel (%p213) target = $region47
              $region44: #{net_forward.5} parent=39 // loop_body
                %v219 = vld [vmem:[%s217] sm:$0xff]
                %220 = vst [vmem:[%s218] sm:$0xff] %v219
                %v221 = vld [vmem:[%s217 + $0x8] sm:$0xff]
                %222 = vst [vmem:[%s218 + $0x8] sm:$0xff] %v221
                %v223 = vld [vmem:[%s217 + $0x10] sm:$0xff]
                %224 = vst [vmem:[%s218 + $0x10] sm:$0xff] %v223
                %v225 = vld [vmem:[%s217 + $0x18] sm:$0xff]
                %226 = vst [vmem:[%s218 + $0x18] sm:$0xff] %v225
                %v227 = vld [vmem:[%s217 + $0x20] sm:$0xff]
                %228 = vst [vmem:[%s218 + $0x20] sm:$0xff] %v227
                %v229 = vld [vmem:[%s217 + $0x28] sm:$0xff]
                %230 = vst [vmem:[%s218 + $0x28] sm:$0xff] %v229
                %v231 = vld [vmem:[%s217 + $0x30] sm:$0xff]
                %232 = vst [vmem:[%s218 + $0x30] sm:$0xff] %v231
                %v233 = vld [vmem:[%s217 + $0x38] sm:$0xff]
                %234 = vst [vmem:[%s218 + $0x38] sm:$0xff] %v233
                %v235 = vld [vmem:[%s217 + $0x40] sm:$0xff]
                %236 = vst [vmem:[%s218 + $0x40] sm:$0xff] %v235
                %v237 = vld [vmem:[%s217 + $0x48] sm:$0xff]
                %238 = vst [vmem:[%s218 + $0x48] sm:$0xff] %v237
                %v239 = vld [vmem:[%s217 + $0x50] sm:$0xff]
                %240 = vst [vmem:[%s218 + $0x50] sm:$0xff] %v239
                %v241 = vld [vmem:[%s217 + $0x58] sm:$0xff]
                %242 = vst [vmem:[%s218 + $0x58] sm:$0xff] %v241
                %v243 = vld [vmem:[%s217 + $0x60] sm:$0xff]
                %244 = vst [vmem:[%s218 + $0x60] sm:$0xff] %v243
                %v245 = vld [vmem:[%s217 + $0x68] sm:$0xff]
                %246 = vst [vmem:[%s218 + $0x68] sm:$0xff] %v245
                %v247 = vld [vmem:[%s217 + $0x70] sm:$0xff]
                %248 = vst [vmem:[%s218 + $0x70] sm:$0xff] %v247
                %v249 = vld [vmem:[%s217 + $0x78] sm:$0xff]
                %250 = vst [vmem:[%s218 + $0x78] sm:$0xff] %v249
                %v251 = vld [vmem:[%s217 + $0x80] sm:$0xff]
                %252 = vst [vmem:[%s218 + $0x80] sm:$0xff] %v251
                %v253 = vld [vmem:[%s217 + $0x88] sm:$0xff]
                %254 = vst [vmem:[%s218 + $0x88] sm:$0xff] %v253
                %v255 = vld [vmem:[%s217 + $0x120] sm:$0xff]
                %256 = vst [vmem:[%s218 + $0x90] sm:$0xff] %v255
                %v257 = vld [vmem:[%s217 + $0x128] sm:$0xff]
                %258 = vst [vmem:[%s218 + $0x98] sm:$0xff] %v257
                %v259 = vld [vmem:[%s217 + $0x130] sm:$0xff]
                %260 = vst [vmem:[%s218 + $0xa0] sm:$0xff] %v259
                %v261 = vld [vmem:[%s217 + $0x138] sm:$0xff]
                %262 = vst [vmem:[%s218 + $0xa8] sm:$0xff] %v261
                %v263 = vld [vmem:[%s217 + $0x140] sm:$0xff]
                %264 = vst [vmem:[%s218 + $0xb0] sm:$0xff] %v263
                %v265 = vld [vmem:[%s217 + $0x148] sm:$0xff]
                %266 = vst [vmem:[%s218 + $0xb8] sm:$0xff] %v265
                %v267 = vld [vmem:[%s217 + $0x150] sm:$0xff]
                %268 = vst [vmem:[%s218 + $0xc0] sm:$0xff] %v267
                %v269 = vld [vmem:[%s217 + $0x158] sm:$0xff]
                %270 = vst [vmem:[%s218 + $0xc8] sm:$0xff] %v269
                %v271 = vld [vmem:[%s217 + $0x160] sm:$0xff]
                %272 = vst [vmem:[%s218 + $0xd0] sm:$0xff] %v271
                %v273 = vld [vmem:[%s217 + $0x168] sm:$0xff]
                %274 = vst [vmem:[%s218 + $0xd8] sm:$0xff] %v273
                %v275 = vld [vmem:[%s217 + $0x170] sm:$0xff]
                %276 = vst [vmem:[%s218 + $0xe0] sm:$0xff] %v275
                %v277 = vld [vmem:[%s217 + $0x178] sm:$0xff]
                %278 = vst [vmem:[%s218 + $0xe8] sm:$0xff] %v277
                %v279 = vld [vmem:[%s217 + $0x180] sm:$0xff]
                %280 = vst [vmem:[%s218 + $0xf0] sm:$0xff] %v279
                %v281 = vld [vmem:[%s217 + $0x188] sm:$0xff]
                %282 = vst [vmem:[%s218 + $0xf8] sm:$0xff] %v281
                %v283 = vld [vmem:[%s217 + $0x190] sm:$0xff]
                %284 = vst [vmem:[%s218 + $0x100] sm:$0xff] %v283
                %v285 = vld [vmem:[%s217 + $0x198] sm:$0xff]
                %286 = vst [vmem:[%s218 + $0x108] sm:$0xff] %v285
                %v287 = vld [vmem:[%s217 + $0x1a0] sm:$0xff]
                %288 = vst [vmem:[%s218 + $0x110] sm:$0xff] %v287
                %v289 = vld [vmem:[%s217 + $0x1a8] sm:$0xff]
                %290 = vst [vmem:[%s218 + $0x118] sm:$0xff] %v289
              $region45: #{net_forward.5} parent=39 // loop_footer
                %s216 = sadd.s32 1, %s212
              $region46: #{net_forward.5} parent=39 // loop_footer_branch
                %211 = sbr.rel target = $region42
              $region47: #{net_forward.5} parent=39 // loop_exit
                _
            $region40: #{net_forward.5} parent=35 // pred_fallthru
              _
            // Predicated region
            $region48: #{net_forward.5} parent=35 // pred_check
              _
            $region49: #{net_forward.5} parent=35 // pred_check_branch
              %292 = sbr.rel target = $region51
            $region50: #{net_forward.5} parent=35 // pred_region
              _
            $region51: #{net_forward.5} parent=35 // pred_fallthru
              _
          $region36: #{net_forward.5} parent=31 // pred_fallthru
            _
          %293 = vnop
        $region32: #{net_forward.5} parent=27 // pred_fallthru
          _
        // Predicated region
        $region52: #{net_forward.5} parent=27 // pred_check
          %p294 = pneg %p71
        $region53: #{net_forward.5} parent=27 // pred_check_branch
          %296 = sbr.rel (%p294) target = $region55
        $region54: #{net_forward.5} parent=27 // pred_region
          %s297 = smul.u32 576, %s19
          %p298 = scmp.lt.s32.totalorder %s297, 1151
          %s299 = scalar_select %p298, %s297, 1151
          %s300 = smul.addr %s299, 4
          %s301 = scalar_lea.vmem %s1, %s300
          %s302 = smul.u32 576, %s19
        $region55: #{net_forward.5} parent=27 // pred_fallthru
          _
      $region28: #{net_forward.5} parent=5 // pred_fallthru
        _
      %p303 = scmp.le.s32.totalorder 1, %s11
      %p304 = scmp.lt.s32.totalorder %s11, 3
      %p305 = pnand %p303, %p304
      %p306 = pneg %p305
      // Predicated region
      $region56: #{net_forward.5} parent=5 // pred_check
        _
      $region57: #{net_forward.5} parent=5 // pred_check_branch
        %308 = sbr.rel (%p305) target = $region59
      $region58: #{net_forward.5} parent=5 // pred_region
        %s309 = ssub.s32 %s11, 1
        %s310 = sand.u32 %s38, 1
        %s311 = sand.u32 %s38, 1
        %s312 = smul.addr %s311, 288
        %s313 = scalar_lea.vmem [#allocation3], %s312
        // Predicated region
        $region60: #{net_forward.5} parent=58 // pred_check
          %p314 = pneg %p51
        $region61: #{net_forward.5} parent=58 // pred_check_branch
          %316 = sbr.rel (%p314) target = $region63
        $region62: #{net_forward.5} parent=58 // pred_region
          _
        $region63: #{net_forward.5} parent=58 // pred_fallthru
          _
        %s317 = sand.u32 %s38, 1
        %s318 = sand.u32 %s38, 1
        %s319 = smul.addr %s318, 288
        %s320 = scalar_lea.vmem [#allocation3], %s319
        %p321 = pneg %p51
        %p322 = pneg %p48
        %s323 = smul.u32 576, %s21
        %p324 = scmp.lt.s32.totalorder %s323, 1151
        %s325 = scalar_select %p324, %s323, 1151
        %s326 = smul.addr %s325, 4
        %s327 = scalar_lea.vmem %s1, %s326
        %p328 = pneg %p77
        %p329 = pneg %p74
        %p330 = pneg %p98
        %p331 = pneg %p95
        %p332 = pneg %p119
        %p333 = pneg %p116
        %p334 = pneg %p140
        %p335 = pneg %p137
        %p336 = pneg %p166
        %p337 = pneg %p163
        %s338 = smul.u32 2, %s20
        %p339 = scmp.lt.s32.totalorder %s338, 1
        %s340 = scalar_select %p339, %s338, 1
        %s341 = smul.addr %s340, 8
        %s342 = scalar_lea.vmem %s5, %s341
        %s343 = smul.u32 2, %s20
        %s344 = smul.u32 36, %s21
        %s345 = smul.u32 576, %s21
        %p346 = scmp.lt.s32.totalorder %s345, 1151
        %s347 = scalar_select %p346, %s345, 1151
        %s348 = smul.addr %s347, 4
        %s349 = scalar_lea.vmem %s1, %s348
        %s350 = smul.u32 576, %s21
        %s351 = smul.u32 2, %s20
        %p352 = scmp.lt.s32.totalorder %s351, 1
        %s353 = scalar_select %p352, %s351, 1
        %s354 = smul.addr %s353, 8
        %s355 = scalar_lea.vmem %s5, %s354
        %s356 = smul.u32 2, %s20
        %p358 = scmp.eq.s32.totalorder %s21, 0
        // Predicated region
        $region64: #{net_forward.5} parent=58 // pred_check
          %p359 = pneg %p358
        $region65: #{net_forward.5} parent=58 // pred_check_branch
          %361 = sbr.rel (%p359) target = $region67
        $region66: #{net_forward.5} parent=58 // pred_region
          %362 = vst [vmem:[#allocation2] sm:$0xff] 0.0
          %363 = vst [vmem:[#allocation2 + $0x8] sm:$0xff] 0.0
        $region67: #{net_forward.5} parent=58 // pred_fallthru
          _
        %v364 = vld [vmem:[#allocation2] sm:$0xff]
        %v365 = vld [vmem:[#allocation2 + $0x8] sm:$0xff]
        %v366 = vld [vmem:[%s313] sm:$0xff]
        %v367 = vld [vmem:[%s313 + $0x8] sm:$0xff]
        %v368 = vld [vmem:[%s313 + $0x10] sm:$0xff]
        %v369 = vld [vmem:[%s313 + $0x18] sm:$0xff]
        %v370 = vld [vmem:[%s313 + $0x20] sm:$0xff]
        %v371 = vld [vmem:[%s313 + $0x28] sm:$0xff]
        %v372 = vld [vmem:[%s313 + $0x30] sm:$0xff]
        %v373 = vld [vmem:[%s313 + $0x38] sm:$0xff]
        %v374 = vld [vmem:[%s313 + $0x40] sm:$0xff]
        %v375 = vld [vmem:[%s313 + $0x48] sm:$0xff]
        %v376 = vld [vmem:[%s313 + $0x50] sm:$0xff]
        %v377 = vld [vmem:[%s313 + $0x58] sm:$0xff]
        %v378 = vld [vmem:[%s313 + $0x60] sm:$0xff]
        %v379 = vld [vmem:[%s313 + $0x68] sm:$0xff]
        %v380 = vld [vmem:[%s313 + $0x70] sm:$0xff]
        %v381 = vld [vmem:[%s313 + $0x78] sm:$0xff]
        %v382 = vld [vmem:[%s313 + $0x80] sm:$0xff]
        %v383 = vld [vmem:[%s313 + $0x88] sm:$0xff]
        %v384 = vld [vmem:[%s313 + $0x90] sm:$0xff]
        %v385 = vld [vmem:[%s313 + $0x98] sm:$0xff]
        %v386 = vld [vmem:[%s313 + $0xa0] sm:$0xff]
        %v387 = vld [vmem:[%s313 + $0xa8] sm:$0xff]
        %v388 = vld [vmem:[%s313 + $0xb0] sm:$0xff]
        %v389 = vld [vmem:[%s313 + $0xb8] sm:$0xff]
        %v390 = vld [vmem:[%s313 + $0xc0] sm:$0xff]
        %v391 = vld [vmem:[%s313 + $0xc8] sm:$0xff]
        %v392 = vld [vmem:[%s313 + $0xd0] sm:$0xff]
        %v393 = vld [vmem:[%s313 + $0xd8] sm:$0xff]
        %v394 = vld [vmem:[%s313 + $0xe0] sm:$0xff]
        %v395 = vld [vmem:[%s313 + $0xe8] sm:$0xff]
        %v396 = vld [vmem:[%s313 + $0xf0] sm:$0xff]
        %v397 = vld [vmem:[%s313 + $0xf8] sm:$0xff]
        %v398 = vld [vmem:[%s313 + $0x100] sm:$0xff]
        %v399 = vld [vmem:[%s313 + $0x108] sm:$0xff]
        %v400 = vld [vmem:[%s313 + $0x110] sm:$0xff]
        %v401 = vld [vmem:[%s313 + $0x118] sm:$0xff]
        %v402 = vld [vmem:[%s349] sm:$0xf]
        %v403 = vld [vmem:[%s349 + $0x4] sm:$0xf]
        %v404 = vld [vmem:[%s349 + $0x8] sm:$0xf]
        %v405 = vld [vmem:[%s349 + $0xc] sm:$0xf]
        %v406 = vld [vmem:[%s349 + $0x10] sm:$0xf]
        %v407 = vld [vmem:[%s349 + $0x14] sm:$0xf]
        %v408 = vld [vmem:[%s349 + $0x18] sm:$0xf]
        %v409 = vld [vmem:[%s349 + $0x1c] sm:$0xf]
        %v410 = vld [vmem:[%s349 + $0x20] sm:$0xf]
        %v411 = vld [vmem:[%s349 + $0x24] sm:$0xf]
        %v412 = vld [vmem:[%s349 + $0x28] sm:$0xf]
        %v413 = vld [vmem:[%s349 + $0x2c] sm:$0xf]
        %v414 = vld [vmem:[%s349 + $0x30] sm:$0xf]
        %v415 = vld [vmem:[%s349 + $0x34] sm:$0xf]
        %v416 = vld [vmem:[%s349 + $0x38] sm:$0xf]
        %v417 = vld [vmem:[%s349 + $0x3c] sm:$0xf]
        %v418 = vld [vmem:[%s349 + $0x40] sm:$0xf]
        %v419 = vld [vmem:[%s349 + $0x44] sm:$0xf]
        %v420 = vld [vmem:[%s349 + $0x48] sm:$0xf]
        %v421 = vld [vmem:[%s349 + $0x4c] sm:$0xf]
        %v422 = vld [vmem:[%s349 + $0x50] sm:$0xf]
        %v423 = vld [vmem:[%s349 + $0x54] sm:$0xf]
        %v424 = vld [vmem:[%s349 + $0x58] sm:$0xf]
        %v425 = vld [vmem:[%s349 + $0x5c] sm:$0xf]
        %v426 = vld [vmem:[%s349 + $0x60] sm:$0xf]
        %v427 = vld [vmem:[%s349 + $0x64] sm:$0xf]
        %v428 = vld [vmem:[%s349 + $0x68] sm:$0xf]
        %v429 = vld [vmem:[%s349 + $0x6c] sm:$0xf]
        %v430 = vld [vmem:[%s349 + $0x70] sm:$0xf]
        %v431 = vld [vmem:[%s349 + $0x74] sm:$0xf]
        %v432 = vld [vmem:[%s349 + $0x78] sm:$0xf]
        %v433 = vld [vmem:[%s349 + $0x7c] sm:$0xf]
        %v434 = vld [vmem:[%s349 + $0x80] sm:$0xf]
        %v435 = vld [vmem:[%s349 + $0x84] sm:$0xf]
        %v436 = vld [vmem:[%s349 + $0x88] sm:$0xf]
        %v437 = vld [vmem:[%s349 + $0x8c] sm:$0xf]
        %v438 = vld [vmem:[%s349 + $0x90] sm:$0xf]
        %v439 = vld [vmem:[%s349 + $0x94] sm:$0xf]
        %v440 = vld [vmem:[%s349 + $0x98] sm:$0xf]
        %v441 = vld [vmem:[%s349 + $0x9c] sm:$0xf]
        %v442 = vld [vmem:[%s349 + $0xa0] sm:$0xf]
        %v443 = vld [vmem:[%s349 + $0xa4] sm:$0xf]
        %v444 = vld [vmem:[%s349 + $0xa8] sm:$0xf]
        %v445 = vld [vmem:[%s349 + $0xac] sm:$0xf]
        %v446 = vld [vmem:[%s349 + $0xb0] sm:$0xf]
        %v447 = vld [vmem:[%s349 + $0xb4] sm:$0xf]
        %v448 = vld [vmem:[%s349 + $0xb8] sm:$0xf]
        %v449 = vld [vmem:[%s349 + $0xbc] sm:$0xf]
        %v450 = vld [vmem:[%s349 + $0xc0] sm:$0xf]
        %v451 = vld [vmem:[%s349 + $0xc4] sm:$0xf]
        %v452 = vld [vmem:[%s349 + $0xc8] sm:$0xf]
        %v453 = vld [vmem:[%s349 + $0xcc] sm:$0xf]
        %v454 = vld [vmem:[%s349 + $0xd0] sm:$0xf]
        %v455 = vld [vmem:[%s349 + $0xd4] sm:$0xf]
        %v456 = vld [vmem:[%s349 + $0xd8] sm:$0xf]
        %v457 = vld [vmem:[%s349 + $0xdc] sm:$0xf]
        %v458 = vld [vmem:[%s349 + $0xe0] sm:$0xf]
        %v459 = vld [vmem:[%s349 + $0xe4] sm:$0xf]
        %v460 = vld [vmem:[%s349 + $0xe8] sm:$0xf]
        %v461 = vld [vmem:[%s349 + $0xec] sm:$0xf]
        %v462 = vld [vmem:[%s349 + $0xf0] sm:$0xf]
        %v463 = vld [vmem:[%s349 + $0xf4] sm:$0xf]
        %v464 = vld [vmem:[%s349 + $0xf8] sm:$0xf]
        %v465 = vld [vmem:[%s349 + $0xfc] sm:$0xf]
        %v466 = vld [vmem:[%s349 + $0x100] sm:$0xf]
        %v467 = vld [vmem:[%s349 + $0x104] sm:$0xf]
        %v468 = vld [vmem:[%s349 + $0x108] sm:$0xf]
        %v469 = vld [vmem:[%s349 + $0x10c] sm:$0xf]
        %v470 = vld [vmem:[%s349 + $0x110] sm:$0xf]
        %v471 = vld [vmem:[%s349 + $0x114] sm:$0xf]
        %v472 = vld [vmem:[%s349 + $0x118] sm:$0xf]
        %v473 = vld [vmem:[%s349 + $0x11c] sm:$0xf]
        %v474 = vld [vmem:[%s349 + $0x120] sm:$0xf]
        %v475 = vld [vmem:[%s349 + $0x124] sm:$0xf]
        %v476 = vld [vmem:[%s349 + $0x128] sm:$0xf]
        %v477 = vld [vmem:[%s349 + $0x12c] sm:$0xf]
        %v478 = vld [vmem:[%s349 + $0x130] sm:$0xf]
        %v479 = vld [vmem:[%s349 + $0x134] sm:$0xf]
        %v480 = vld [vmem:[%s349 + $0x138] sm:$0xf]
        %v481 = vld [vmem:[%s349 + $0x13c] sm:$0xf]
        %v482 = vld [vmem:[%s349 + $0x140] sm:$0xf]
        %v483 = vld [vmem:[%s349 + $0x144] sm:$0xf]
        %v484 = vld [vmem:[%s349 + $0x148] sm:$0xf]
        %v485 = vld [vmem:[%s349 + $0x14c] sm:$0xf]
        %v486 = vld [vmem:[%s349 + $0x150] sm:$0xf]
        %v487 = vld [vmem:[%s349 + $0x154] sm:$0xf]
        %v488 = vld [vmem:[%s349 + $0x158] sm:$0xf]
        %v489 = vld [vmem:[%s349 + $0x15c] sm:$0xf]
        %v490 = vld [vmem:[%s349 + $0x160] sm:$0xf]
        %v491 = vld [vmem:[%s349 + $0x164] sm:$0xf]
        %v492 = vld [vmem:[%s349 + $0x168] sm:$0xf]
        %v493 = vld [vmem:[%s349 + $0x16c] sm:$0xf]
        %v494 = vld [vmem:[%s349 + $0x170] sm:$0xf]
        %v495 = vld [vmem:[%s349 + $0x174] sm:$0xf]
        %v496 = vld [vmem:[%s349 + $0x178] sm:$0xf]
        %v497 = vld [vmem:[%s349 + $0x17c] sm:$0xf]
        %v498 = vld [vmem:[%s349 + $0x180] sm:$0xf]
        %v499 = vld [vmem:[%s349 + $0x184] sm:$0xf]
        %v500 = vld [vmem:[%s349 + $0x188] sm:$0xf]
        %v501 = vld [vmem:[%s349 + $0x18c] sm:$0xf]
        %v502 = vld [vmem:[%s349 + $0x190] sm:$0xf]
        %v503 = vld [vmem:[%s349 + $0x194] sm:$0xf]
        %v504 = vld [vmem:[%s349 + $0x198] sm:$0xf]
        %v505 = vld [vmem:[%s349 + $0x19c] sm:$0xf]
        %v506 = vld [vmem:[%s349 + $0x1a0] sm:$0xf]
        %v507 = vld [vmem:[%s349 + $0x1a4] sm:$0xf]
        %v508 = vld [vmem:[%s349 + $0x1a8] sm:$0xf]
        %v509 = vld [vmem:[%s349 + $0x1ac] sm:$0xf]
        %v510 = vld [vmem:[%s349 + $0x1b0] sm:$0xf]
        %v511 = vld [vmem:[%s349 + $0x1b4] sm:$0xf]
        %v512 = vld [vmem:[%s349 + $0x1b8] sm:$0xf]
        %v513 = vld [vmem:[%s349 + $0x1bc] sm:$0xf]
        %v514 = vld [vmem:[%s349 + $0x1c0] sm:$0xf]
        %v515 = vld [vmem:[%s349 + $0x1c4] sm:$0xf]
        %v516 = vld [vmem:[%s349 + $0x1c8] sm:$0xf]
        %v517 = vld [vmem:[%s349 + $0x1cc] sm:$0xf]
        %v518 = vld [vmem:[%s349 + $0x1d0] sm:$0xf]
        %v519 = vld [vmem:[%s349 + $0x1d4] sm:$0xf]
        %v520 = vld [vmem:[%s349 + $0x1d8] sm:$0xf]
        %v521 = vld [vmem:[%s349 + $0x1dc] sm:$0xf]
        %v522 = vld [vmem:[%s349 + $0x1e0] sm:$0xf]
        %v523 = vld [vmem:[%s349 + $0x1e4] sm:$0xf]
        %v524 = vld [vmem:[%s349 + $0x1e8] sm:$0xf]
        %v525 = vld [vmem:[%s349 + $0x1ec] sm:$0xf]
        %v526 = vld [vmem:[%s349 + $0x1f0] sm:$0xf]
        %v527 = vld [vmem:[%s349 + $0x1f4] sm:$0xf]
        %v528 = vld [vmem:[%s349 + $0x1f8] sm:$0xf]
        %v529 = vld [vmem:[%s349 + $0x1fc] sm:$0xf]
        %v530 = vld [vmem:[%s349 + $0x200] sm:$0xf]
        %v531 = vld [vmem:[%s349 + $0x204] sm:$0xf]
        %v532 = vld [vmem:[%s349 + $0x208] sm:$0xf]
        %v533 = vld [vmem:[%s349 + $0x20c] sm:$0xf]
        %v534 = vld [vmem:[%s349 + $0x210] sm:$0xf]
        %v535 = vld [vmem:[%s349 + $0x214] sm:$0xf]
        %v536 = vld [vmem:[%s349 + $0x218] sm:$0xf]
        %v537 = vld [vmem:[%s349 + $0x21c] sm:$0xf]
        %v538 = vld [vmem:[%s349 + $0x220] sm:$0xf]
        %v539 = vld [vmem:[%s349 + $0x224] sm:$0xf]
        %v540 = vld [vmem:[%s349 + $0x228] sm:$0xf]
        %v541 = vld [vmem:[%s349 + $0x22c] sm:$0xf]
        %v542 = vld [vmem:[%s349 + $0x230] sm:$0xf]
        %v543 = vld [vmem:[%s349 + $0x234] sm:$0xf]
        %v544 = vld [vmem:[%s349 + $0x238] sm:$0xf]
        %v545 = vld [vmem:[%s349 + $0x23c] sm:$0xf]
        %v546 = vld [vmem:[%s349 + $0x240] sm:$0xf]
        %v547 = vld [vmem:[%s349 + $0x244] sm:$0xf]
        %v548 = vld [vmem:[%s349 + $0x248] sm:$0xf]
        %v549 = vld [vmem:[%s349 + $0x24c] sm:$0xf]
        %v550 = vld [vmem:[%s349 + $0x250] sm:$0xf]
        %v551 = vld [vmem:[%s349 + $0x254] sm:$0xf]
        %v552 = vld [vmem:[%s349 + $0x258] sm:$0xf]
        %v553 = vld [vmem:[%s349 + $0x25c] sm:$0xf]
        %v554 = vld [vmem:[%s349 + $0x260] sm:$0xf]
        %v555 = vld [vmem:[%s349 + $0x264] sm:$0xf]
        %v556 = vld [vmem:[%s349 + $0x268] sm:$0xf]
        %v557 = vld [vmem:[%s349 + $0x26c] sm:$0xf]
        %v558 = vld [vmem:[%s349 + $0x270] sm:$0xf]
        %v559 = vld [vmem:[%s349 + $0x274] sm:$0xf]
        %v560 = vld [vmem:[%s349 + $0x278] sm:$0xf]
        %v561 = vld [vmem:[%s349 + $0x27c] sm:$0xf]
        %v562 = vld [vmem:[%s349 + $0x280] sm:$0xf]
        %v563 = vld [vmem:[%s349 + $0x284] sm:$0xf]
        %v564 = vld [vmem:[%s349 + $0x288] sm:$0xf]
        %v565 = vld [vmem:[%s349 + $0x28c] sm:$0xf]
        %v566 = vld [vmem:[%s349 + $0x290] sm:$0xf]
        %v567 = vld [vmem:[%s349 + $0x294] sm:$0xf]
        %v568 = vld [vmem:[%s349 + $0x298] sm:$0xf]
        %v569 = vld [vmem:[%s349 + $0x29c] sm:$0xf]
        %v570 = vld [vmem:[%s349 + $0x2a0] sm:$0xf]
        %v571 = vld [vmem:[%s349 + $0x2a4] sm:$0xf]
        %v572 = vld [vmem:[%s349 + $0x2a8] sm:$0xf]
        %v573 = vld [vmem:[%s349 + $0x2ac] sm:$0xf]
        %v574 = vld [vmem:[%s349 + $0x2b0] sm:$0xf]
        %v575 = vld [vmem:[%s349 + $0x2b4] sm:$0xf]
        %v576 = vld [vmem:[%s349 + $0x2b8] sm:$0xf]
        %v577 = vld [vmem:[%s349 + $0x2bc] sm:$0xf]
        %v578 = vld [vmem:[%s349 + $0x2c0] sm:$0xf]
        %v579 = vld [vmem:[%s349 + $0x2c4] sm:$0xf]
        %v580 = vld [vmem:[%s349 + $0x2c8] sm:$0xf]
        %v581 = vld [vmem:[%s349 + $0x2cc] sm:$0xf]
        %v582 = vld [vmem:[%s349 + $0x2d0] sm:$0xf]
        %v583 = vld [vmem:[%s349 + $0x2d4] sm:$0xf]
        %v584 = vld [vmem:[%s349 + $0x2d8] sm:$0xf]
        %v585 = vld [vmem:[%s349 + $0x2dc] sm:$0xf]
        %v586 = vld [vmem:[%s349 + $0x2e0] sm:$0xf]
        %v587 = vld [vmem:[%s349 + $0x2e4] sm:$0xf]
        %v588 = vld [vmem:[%s349 + $0x2e8] sm:$0xf]
        %v589 = vld [vmem:[%s349 + $0x2ec] sm:$0xf]
        %v590 = vld [vmem:[%s349 + $0x2f0] sm:$0xf]
        %v591 = vld [vmem:[%s349 + $0x2f4] sm:$0xf]
        %v592 = vld [vmem:[%s349 + $0x2f8] sm:$0xf]
        %v593 = vld [vmem:[%s349 + $0x2fc] sm:$0xf]
        %v594 = vld [vmem:[%s349 + $0x300] sm:$0xf]
        %v595 = vld [vmem:[%s349 + $0x304] sm:$0xf]
        %v596 = vld [vmem:[%s349 + $0x308] sm:$0xf]
        %v597 = vld [vmem:[%s349 + $0x30c] sm:$0xf]
        %v598 = vld [vmem:[%s349 + $0x310] sm:$0xf]
        %v599 = vld [vmem:[%s349 + $0x314] sm:$0xf]
        %v600 = vld [vmem:[%s349 + $0x318] sm:$0xf]
        %v601 = vld [vmem:[%s349 + $0x31c] sm:$0xf]
        %v602 = vld [vmem:[%s349 + $0x320] sm:$0xf]
        %v603 = vld [vmem:[%s349 + $0x324] sm:$0xf]
        %v604 = vld [vmem:[%s349 + $0x328] sm:$0xf]
        %v605 = vld [vmem:[%s349 + $0x32c] sm:$0xf]
        %v606 = vld [vmem:[%s349 + $0x330] sm:$0xf]
        %v607 = vld [vmem:[%s349 + $0x334] sm:$0xf]
        %v608 = vld [vmem:[%s349 + $0x338] sm:$0xf]
        %v609 = vld [vmem:[%s349 + $0x33c] sm:$0xf]
        %v610 = vld [vmem:[%s349 + $0x340] sm:$0xf]
        %v611 = vld [vmem:[%s349 + $0x344] sm:$0xf]
        %v612 = vld [vmem:[%s349 + $0x348] sm:$0xf]
        %v613 = vld [vmem:[%s349 + $0x34c] sm:$0xf]
        %v614 = vld [vmem:[%s349 + $0x350] sm:$0xf]
        %v615 = vld [vmem:[%s349 + $0x354] sm:$0xf]
        %v616 = vld [vmem:[%s349 + $0x358] sm:$0xf]
        %v617 = vld [vmem:[%s349 + $0x35c] sm:$0xf]
        %v618 = vld [vmem:[%s349 + $0x360] sm:$0xf]
        %v619 = vld [vmem:[%s349 + $0x364] sm:$0xf]
        %v620 = vld [vmem:[%s349 + $0x368] sm:$0xf]
        %v621 = vld [vmem:[%s349 + $0x36c] sm:$0xf]
        %v622 = vld [vmem:[%s349 + $0x370] sm:$0xf]
        %v623 = vld [vmem:[%s349 + $0x374] sm:$0xf]
        %v624 = vld [vmem:[%s349 + $0x378] sm:$0xf]
        %v625 = vld [vmem:[%s349 + $0x37c] sm:$0xf]
        %v626 = vld [vmem:[%s349 + $0x380] sm:$0xf]
        %v627 = vld [vmem:[%s349 + $0x384] sm:$0xf]
        %v628 = vld [vmem:[%s349 + $0x388] sm:$0xf]
        %v629 = vld [vmem:[%s349 + $0x38c] sm:$0xf]
        %v630 = vld [vmem:[%s349 + $0x390] sm:$0xf]
        %v631 = vld [vmem:[%s349 + $0x394] sm:$0xf]
        %v632 = vld [vmem:[%s349 + $0x398] sm:$0xf]
        %v633 = vld [vmem:[%s349 + $0x39c] sm:$0xf]
        %v634 = vld [vmem:[%s349 + $0x3a0] sm:$0xf]
        %v635 = vld [vmem:[%s349 + $0x3a4] sm:$0xf]
        %v636 = vld [vmem:[%s349 + $0x3a8] sm:$0xf]
        %v637 = vld [vmem:[%s349 + $0x3ac] sm:$0xf]
        %v638 = vld [vmem:[%s349 + $0x3b0] sm:$0xf]
        %v639 = vld [vmem:[%s349 + $0x3b4] sm:$0xf]
        %v640 = vld [vmem:[%s349 + $0x3b8] sm:$0xf]
        %v641 = vld [vmem:[%s349 + $0x3bc] sm:$0xf]
        %v642 = vld [vmem:[%s349 + $0x3c0] sm:$0xf]
        %v643 = vld [vmem:[%s349 + $0x3c4] sm:$0xf]
        %v644 = vld [vmem:[%s349 + $0x3c8] sm:$0xf]
        %v645 = vld [vmem:[%s349 + $0x3cc] sm:$0xf]
        %v646 = vld [vmem:[%s349 + $0x3d0] sm:$0xf]
        %v647 = vld [vmem:[%s349 + $0x3d4] sm:$0xf]
        %v648 = vld [vmem:[%s349 + $0x3d8] sm:$0xf]
        %v649 = vld [vmem:[%s349 + $0x3dc] sm:$0xf]
        %v650 = vld [vmem:[%s349 + $0x3e0] sm:$0xf]
        %v651 = vld [vmem:[%s349 + $0x3e4] sm:$0xf]
        %v652 = vld [vmem:[%s349 + $0x3e8] sm:$0xf]
        %v653 = vld [vmem:[%s349 + $0x3ec] sm:$0xf]
        %v654 = vld [vmem:[%s349 + $0x3f0] sm:$0xf]
        %v655 = vld [vmem:[%s349 + $0x3f4] sm:$0xf]
        %v656 = vld [vmem:[%s349 + $0x3f8] sm:$0xf]
        %v657 = vld [vmem:[%s349 + $0x3fc] sm:$0xf]
        %v658 = vld [vmem:[%s349 + $0x400] sm:$0xf]
        %v659 = vld [vmem:[%s349 + $0x404] sm:$0xf]
        %v660 = vld [vmem:[%s349 + $0x408] sm:$0xf]
        %v661 = vld [vmem:[%s349 + $0x40c] sm:$0xf]
        %v662 = vld [vmem:[%s349 + $0x410] sm:$0xf]
        %v663 = vld [vmem:[%s349 + $0x414] sm:$0xf]
        %v664 = vld [vmem:[%s349 + $0x418] sm:$0xf]
        %v665 = vld [vmem:[%s349 + $0x41c] sm:$0xf]
        %v666 = vld [vmem:[%s349 + $0x420] sm:$0xf]
        %v667 = vld [vmem:[%s349 + $0x424] sm:$0xf]
        %v668 = vld [vmem:[%s349 + $0x428] sm:$0xf]
        %v669 = vld [vmem:[%s349 + $0x42c] sm:$0xf]
        %v670 = vld [vmem:[%s349 + $0x430] sm:$0xf]
        %v671 = vld [vmem:[%s349 + $0x434] sm:$0xf]
        %v672 = vld [vmem:[%s349 + $0x438] sm:$0xf]
        %v673 = vld [vmem:[%s349 + $0x43c] sm:$0xf]
        %v674 = vld [vmem:[%s349 + $0x440] sm:$0xf]
        %v675 = vld [vmem:[%s349 + $0x444] sm:$0xf]
        %v676 = vld [vmem:[%s349 + $0x448] sm:$0xf]
        %v677 = vld [vmem:[%s349 + $0x44c] sm:$0xf]
        %v678 = vld [vmem:[%s349 + $0x450] sm:$0xf]
        %v679 = vld [vmem:[%s349 + $0x454] sm:$0xf]
        %v680 = vld [vmem:[%s349 + $0x458] sm:$0xf]
        %v681 = vld [vmem:[%s349 + $0x45c] sm:$0xf]
        %v682 = vld [vmem:[%s349 + $0x460] sm:$0xf]
        %v683 = vld [vmem:[%s349 + $0x464] sm:$0xf]
        %v684 = vld [vmem:[%s349 + $0x468] sm:$0xf]
        %v685 = vld [vmem:[%s349 + $0x46c] sm:$0xf]
        %v686 = vld [vmem:[%s349 + $0x470] sm:$0xf]
        %v687 = vld [vmem:[%s349 + $0x474] sm:$0xf]
        %v688 = vld [vmem:[%s349 + $0x478] sm:$0xf]
        %v689 = vld [vmem:[%s349 + $0x47c] sm:$0xf]
        %v690 = vld [vmem:[%s349 + $0x480] sm:$0xf]
        %v691 = vld [vmem:[%s349 + $0x484] sm:$0xf]
        %v692 = vld [vmem:[%s349 + $0x488] sm:$0xf]
        %v693 = vld [vmem:[%s349 + $0x48c] sm:$0xf]
        %v694 = vld [vmem:[%s349 + $0x490] sm:$0xf]
        %v695 = vld [vmem:[%s349 + $0x494] sm:$0xf]
        %v696 = vld [vmem:[%s349 + $0x498] sm:$0xf]
        %v697 = vld [vmem:[%s349 + $0x49c] sm:$0xf]
        %v698 = vld [vmem:[%s349 + $0x4a0] sm:$0xf]
        %v699 = vld [vmem:[%s349 + $0x4a4] sm:$0xf]
        %v700 = vld [vmem:[%s349 + $0x4a8] sm:$0xf]
        %v701 = vld [vmem:[%s349 + $0x4ac] sm:$0xf]
        %v702 = vld [vmem:[%s349 + $0x4b0] sm:$0xf]
        %v703 = vld [vmem:[%s349 + $0x4b4] sm:$0xf]
        %v704 = vld [vmem:[%s349 + $0x4b8] sm:$0xf]
        %v705 = vld [vmem:[%s349 + $0x4bc] sm:$0xf]
        %v706 = vld [vmem:[%s349 + $0x4c0] sm:$0xf]
        %v707 = vld [vmem:[%s349 + $0x4c4] sm:$0xf]
        %v708 = vld [vmem:[%s349 + $0x4c8] sm:$0xf]
        %v709 = vld [vmem:[%s349 + $0x4cc] sm:$0xf]
        %v710 = vld [vmem:[%s349 + $0x4d0] sm:$0xf]
        %v711 = vld [vmem:[%s349 + $0x4d4] sm:$0xf]
        %v712 = vld [vmem:[%s349 + $0x4d8] sm:$0xf]
        %v713 = vld [vmem:[%s349 + $0x4dc] sm:$0xf]
        %v714 = vld [vmem:[%s349 + $0x4e0] sm:$0xf]
        %v715 = vld [vmem:[%s349 + $0x4e4] sm:$0xf]
        %v716 = vld [vmem:[%s349 + $0x4e8] sm:$0xf]
        %v717 = vld [vmem:[%s349 + $0x4ec] sm:$0xf]
        %v718 = vld [vmem:[%s349 + $0x4f0] sm:$0xf]
        %v719 = vld [vmem:[%s349 + $0x4f4] sm:$0xf]
        %v720 = vld [vmem:[%s349 + $0x4f8] sm:$0xf]
        %v721 = vld [vmem:[%s349 + $0x4fc] sm:$0xf]
        %v722 = vld [vmem:[%s349 + $0x500] sm:$0xf]
        %v723 = vld [vmem:[%s349 + $0x504] sm:$0xf]
        %v724 = vld [vmem:[%s349 + $0x508] sm:$0xf]
        %v725 = vld [vmem:[%s349 + $0x50c] sm:$0xf]
        %v726 = vld [vmem:[%s349 + $0x510] sm:$0xf]
        %v727 = vld [vmem:[%s349 + $0x514] sm:$0xf]
        %v728 = vld [vmem:[%s349 + $0x518] sm:$0xf]
        %v729 = vld [vmem:[%s349 + $0x51c] sm:$0xf]
        %v730 = vld [vmem:[%s349 + $0x520] sm:$0xf]
        %v731 = vld [vmem:[%s349 + $0x524] sm:$0xf]
        %v732 = vld [vmem:[%s349 + $0x528] sm:$0xf]
        %v733 = vld [vmem:[%s349 + $0x52c] sm:$0xf]
        %v734 = vld [vmem:[%s349 + $0x530] sm:$0xf]
        %v735 = vld [vmem:[%s349 + $0x534] sm:$0xf]
        %v736 = vld [vmem:[%s349 + $0x538] sm:$0xf]
        %v737 = vld [vmem:[%s349 + $0x53c] sm:$0xf]
        %v738 = vld [vmem:[%s349 + $0x540] sm:$0xf]
        %v739 = vld [vmem:[%s349 + $0x544] sm:$0xf]
        %v740 = vld [vmem:[%s349 + $0x548] sm:$0xf]
        %v741 = vld [vmem:[%s349 + $0x54c] sm:$0xf]
        %v742 = vld [vmem:[%s349 + $0x550] sm:$0xf]
        %v743 = vld [vmem:[%s349 + $0x554] sm:$0xf]
        %v744 = vld [vmem:[%s349 + $0x558] sm:$0xf]
        %v745 = vld [vmem:[%s349 + $0x55c] sm:$0xf]
        %v746 = vld [vmem:[%s349 + $0x560] sm:$0xf]
        %v747 = vld [vmem:[%s349 + $0x564] sm:$0xf]
        %v748 = vld [vmem:[%s349 + $0x568] sm:$0xf]
        %v749 = vld [vmem:[%s349 + $0x56c] sm:$0xf]
        %v750 = vld [vmem:[%s349 + $0x570] sm:$0xf]
        %v751 = vld [vmem:[%s349 + $0x574] sm:$0xf]
        %v752 = vld [vmem:[%s349 + $0x578] sm:$0xf]
        %v753 = vld [vmem:[%s349 + $0x57c] sm:$0xf]
        %v754 = vld [vmem:[%s349 + $0x580] sm:$0xf]
        %v755 = vld [vmem:[%s349 + $0x584] sm:$0xf]
        %v756 = vld [vmem:[%s349 + $0x588] sm:$0xf]
        %v757 = vld [vmem:[%s349 + $0x58c] sm:$0xf]
        %v758 = vld [vmem:[%s349 + $0x590] sm:$0xf]
        %v759 = vld [vmem:[%s349 + $0x594] sm:$0xf]
        %v760 = vld [vmem:[%s349 + $0x598] sm:$0xf]
        %v761 = vld [vmem:[%s349 + $0x59c] sm:$0xf]
        %v762 = vld [vmem:[%s349 + $0x5a0] sm:$0xf]
        %v763 = vld [vmem:[%s349 + $0x5a4] sm:$0xf]
        %v764 = vld [vmem:[%s349 + $0x5a8] sm:$0xf]
        %v765 = vld [vmem:[%s349 + $0x5ac] sm:$0xf]
        %v766 = vld [vmem:[%s349 + $0x5b0] sm:$0xf]
        %v767 = vld [vmem:[%s349 + $0x5b4] sm:$0xf]
        %v768 = vld [vmem:[%s349 + $0x5b8] sm:$0xf]
        %v769 = vld [vmem:[%s349 + $0x5bc] sm:$0xf]
        %v770 = vld [vmem:[%s349 + $0x5c0] sm:$0xf]
        %v771 = vld [vmem:[%s349 + $0x5c4] sm:$0xf]
        %v772 = vld [vmem:[%s349 + $0x5c8] sm:$0xf]
        %v773 = vld [vmem:[%s349 + $0x5cc] sm:$0xf]
        %v774 = vld [vmem:[%s349 + $0x5d0] sm:$0xf]
        %v775 = vld [vmem:[%s349 + $0x5d4] sm:$0xf]
        %v776 = vld [vmem:[%s349 + $0x5d8] sm:$0xf]
        %v777 = vld [vmem:[%s349 + $0x5dc] sm:$0xf]
        %v778 = vld [vmem:[%s349 + $0x5e0] sm:$0xf]
        %v779 = vld [vmem:[%s349 + $0x5e4] sm:$0xf]
        %v780 = vld [vmem:[%s349 + $0x5e8] sm:$0xf]
        %v781 = vld [vmem:[%s349 + $0x5ec] sm:$0xf]
        %v782 = vld [vmem:[%s349 + $0x5f0] sm:$0xf]
        %v783 = vld [vmem:[%s349 + $0x5f4] sm:$0xf]
        %v784 = vld [vmem:[%s349 + $0x5f8] sm:$0xf]
        %v785 = vld [vmem:[%s349 + $0x5fc] sm:$0xf]
        %v786 = vld [vmem:[%s349 + $0x600] sm:$0xf]
        %v787 = vld [vmem:[%s349 + $0x604] sm:$0xf]
        %v788 = vld [vmem:[%s349 + $0x608] sm:$0xf]
        %v789 = vld [vmem:[%s349 + $0x60c] sm:$0xf]
        %v790 = vld [vmem:[%s349 + $0x610] sm:$0xf]
        %v791 = vld [vmem:[%s349 + $0x614] sm:$0xf]
        %v792 = vld [vmem:[%s349 + $0x618] sm:$0xf]
        %v793 = vld [vmem:[%s349 + $0x61c] sm:$0xf]
        %v794 = vld [vmem:[%s349 + $0x620] sm:$0xf]
        %v795 = vld [vmem:[%s349 + $0x624] sm:$0xf]
        %v796 = vld [vmem:[%s349 + $0x628] sm:$0xf]
        %v797 = vld [vmem:[%s349 + $0x62c] sm:$0xf]
        %v798 = vld [vmem:[%s349 + $0x630] sm:$0xf]
        %v799 = vld [vmem:[%s349 + $0x634] sm:$0xf]
        %v800 = vld [vmem:[%s349 + $0x638] sm:$0xf]
        %v801 = vld [vmem:[%s349 + $0x63c] sm:$0xf]
        %v802 = vld [vmem:[%s349 + $0x640] sm:$0xf]
        %v803 = vld [vmem:[%s349 + $0x644] sm:$0xf]
        %v804 = vld [vmem:[%s349 + $0x648] sm:$0xf]
        %v805 = vld [vmem:[%s349 + $0x64c] sm:$0xf]
        %v806 = vld [vmem:[%s349 + $0x650] sm:$0xf]
        %v807 = vld [vmem:[%s349 + $0x654] sm:$0xf]
        %v808 = vld [vmem:[%s349 + $0x658] sm:$0xf]
        %v809 = vld [vmem:[%s349 + $0x65c] sm:$0xf]
        %v810 = vld [vmem:[%s349 + $0x660] sm:$0xf]
        %v811 = vld [vmem:[%s349 + $0x664] sm:$0xf]
        %v812 = vld [vmem:[%s349 + $0x668] sm:$0xf]
        %v813 = vld [vmem:[%s349 + $0x66c] sm:$0xf]
        %v814 = vld [vmem:[%s349 + $0x670] sm:$0xf]
        %v815 = vld [vmem:[%s349 + $0x674] sm:$0xf]
        %v816 = vld [vmem:[%s349 + $0x678] sm:$0xf]
        %v817 = vld [vmem:[%s349 + $0x67c] sm:$0xf]
        %v818 = vld [vmem:[%s349 + $0x680] sm:$0xf]
        %v819 = vld [vmem:[%s349 + $0x684] sm:$0xf]
        %v820 = vld [vmem:[%s349 + $0x688] sm:$0xf]
        %v821 = vld [vmem:[%s349 + $0x68c] sm:$0xf]
        %v822 = vld [vmem:[%s349 + $0x690] sm:$0xf]
        %v823 = vld [vmem:[%s349 + $0x694] sm:$0xf]
        %v824 = vld [vmem:[%s349 + $0x698] sm:$0xf]
        %v825 = vld [vmem:[%s349 + $0x69c] sm:$0xf]
        %v826 = vld [vmem:[%s349 + $0x6a0] sm:$0xf]
        %v827 = vld [vmem:[%s349 + $0x6a4] sm:$0xf]
        %v828 = vld [vmem:[%s349 + $0x6a8] sm:$0xf]
        %v829 = vld [vmem:[%s349 + $0x6ac] sm:$0xf]
        %v830 = vld [vmem:[%s349 + $0x6b0] sm:$0xf]
        %v831 = vld [vmem:[%s349 + $0x6b4] sm:$0xf]
        %v832 = vld [vmem:[%s349 + $0x6b8] sm:$0xf]
        %v833 = vld [vmem:[%s349 + $0x6bc] sm:$0xf]
        %v834 = vld [vmem:[%s349 + $0x6c0] sm:$0xf]
        %v835 = vld [vmem:[%s349 + $0x6c4] sm:$0xf]
        %v836 = vld [vmem:[%s349 + $0x6c8] sm:$0xf]
        %v837 = vld [vmem:[%s349 + $0x6cc] sm:$0xf]
        %v838 = vld [vmem:[%s349 + $0x6d0] sm:$0xf]
        %v839 = vld [vmem:[%s349 + $0x6d4] sm:$0xf]
        %v840 = vld [vmem:[%s349 + $0x6d8] sm:$0xf]
        %v841 = vld [vmem:[%s349 + $0x6dc] sm:$0xf]
        %v842 = vld [vmem:[%s349 + $0x6e0] sm:$0xf]
        %v843 = vld [vmem:[%s349 + $0x6e4] sm:$0xf]
        %v844 = vld [vmem:[%s349 + $0x6e8] sm:$0xf]
        %v845 = vld [vmem:[%s349 + $0x6ec] sm:$0xf]
        %v846 = vld [vmem:[%s349 + $0x6f0] sm:$0xf]
        %v847 = vld [vmem:[%s349 + $0x6f4] sm:$0xf]
        %v848 = vld [vmem:[%s349 + $0x6f8] sm:$0xf]
        %v849 = vld [vmem:[%s349 + $0x6fc] sm:$0xf]
        %v850 = vld [vmem:[%s349 + $0x700] sm:$0xf]
        %v851 = vld [vmem:[%s349 + $0x704] sm:$0xf]
        %v852 = vld [vmem:[%s349 + $0x708] sm:$0xf]
        %v853 = vld [vmem:[%s349 + $0x70c] sm:$0xf]
        %v854 = vld [vmem:[%s349 + $0x710] sm:$0xf]
        %v855 = vld [vmem:[%s349 + $0x714] sm:$0xf]
        %v856 = vld [vmem:[%s349 + $0x718] sm:$0xf]
        %v857 = vld [vmem:[%s349 + $0x71c] sm:$0xf]
        %v858 = vld [vmem:[%s349 + $0x720] sm:$0xf]
        %v859 = vld [vmem:[%s349 + $0x724] sm:$0xf]
        %v860 = vld [vmem:[%s349 + $0x728] sm:$0xf]
        %v861 = vld [vmem:[%s349 + $0x72c] sm:$0xf]
        %v862 = vld [vmem:[%s349 + $0x730] sm:$0xf]
        %v863 = vld [vmem:[%s349 + $0x734] sm:$0xf]
        %v864 = vld [vmem:[%s349 + $0x738] sm:$0xf]
        %v865 = vld [vmem:[%s349 + $0x73c] sm:$0xf]
        %v866 = vld [vmem:[%s349 + $0x740] sm:$0xf]
        %v867 = vld [vmem:[%s349 + $0x744] sm:$0xf]
        %v868 = vld [vmem:[%s349 + $0x748] sm:$0xf]
        %v869 = vld [vmem:[%s349 + $0x74c] sm:$0xf]
        %v870 = vld [vmem:[%s349 + $0x750] sm:$0xf]
        %v871 = vld [vmem:[%s349 + $0x754] sm:$0xf]
        %v872 = vld [vmem:[%s349 + $0x758] sm:$0xf]
        %v873 = vld [vmem:[%s349 + $0x75c] sm:$0xf]
        %v874 = vld [vmem:[%s349 + $0x760] sm:$0xf]
        %v875 = vld [vmem:[%s349 + $0x764] sm:$0xf]
        %v876 = vld [vmem:[%s349 + $0x768] sm:$0xf]
        %v877 = vld [vmem:[%s349 + $0x76c] sm:$0xf]
        %v878 = vld [vmem:[%s349 + $0x770] sm:$0xf]
        %v879 = vld [vmem:[%s349 + $0x774] sm:$0xf]
        %v880 = vld [vmem:[%s349 + $0x778] sm:$0xf]
        %v881 = vld [vmem:[%s349 + $0x77c] sm:$0xf]
        %v882 = vld [vmem:[%s349 + $0x780] sm:$0xf]
        %v883 = vld [vmem:[%s349 + $0x784] sm:$0xf]
        %v884 = vld [vmem:[%s349 + $0x788] sm:$0xf]
        %v885 = vld [vmem:[%s349 + $0x78c] sm:$0xf]
        %v886 = vld [vmem:[%s349 + $0x790] sm:$0xf]
        %v887 = vld [vmem:[%s349 + $0x794] sm:$0xf]
        %v888 = vld [vmem:[%s349 + $0x798] sm:$0xf]
        %v889 = vld [vmem:[%s349 + $0x79c] sm:$0xf]
        %v890 = vld [vmem:[%s349 + $0x7a0] sm:$0xf]
        %v891 = vld [vmem:[%s349 + $0x7a4] sm:$0xf]
        %v892 = vld [vmem:[%s349 + $0x7a8] sm:$0xf]
        %v893 = vld [vmem:[%s349 + $0x7ac] sm:$0xf]
        %v894 = vld [vmem:[%s349 + $0x7b0] sm:$0xf]
        %v895 = vld [vmem:[%s349 + $0x7b4] sm:$0xf]
        %v896 = vld [vmem:[%s349 + $0x7b8] sm:$0xf]
        %v897 = vld [vmem:[%s349 + $0x7bc] sm:$0xf]
        %v898 = vld [vmem:[%s349 + $0x7c0] sm:$0xf]
        %v899 = vld [vmem:[%s349 + $0x7c4] sm:$0xf]
        %v900 = vld [vmem:[%s349 + $0x7c8] sm:$0xf]
        %v901 = vld [vmem:[%s349 + $0x7cc] sm:$0xf]
        %v902 = vld [vmem:[%s349 + $0x7d0] sm:$0xf]
        %v903 = vld [vmem:[%s349 + $0x7d4] sm:$0xf]
        %v904 = vld [vmem:[%s349 + $0x7d8] sm:$0xf]
        %v905 = vld [vmem:[%s349 + $0x7dc] sm:$0xf]
        %v906 = vld [vmem:[%s349 + $0x7e0] sm:$0xf]
        %v907 = vld [vmem:[%s349 + $0x7e4] sm:$0xf]
        %v908 = vld [vmem:[%s349 + $0x7e8] sm:$0xf]
        %v909 = vld [vmem:[%s349 + $0x7ec] sm:$0xf]
        %v910 = vld [vmem:[%s349 + $0x7f0] sm:$0xf]
        %v911 = vld [vmem:[%s349 + $0x7f4] sm:$0xf]
        %v912 = vld [vmem:[%s349 + $0x7f8] sm:$0xf]
        %v913 = vld [vmem:[%s349 + $0x7fc] sm:$0xf]
        %v914 = vld [vmem:[%s349 + $0x800] sm:$0xf]
        %v915 = vld [vmem:[%s349 + $0x804] sm:$0xf]
        %v916 = vld [vmem:[%s349 + $0x808] sm:$0xf]
        %v917 = vld [vmem:[%s349 + $0x80c] sm:$0xf]
        %v918 = vld [vmem:[%s349 + $0x810] sm:$0xf]
        %v919 = vld [vmem:[%s349 + $0x814] sm:$0xf]
        %v920 = vld [vmem:[%s349 + $0x818] sm:$0xf]
        %v921 = vld [vmem:[%s349 + $0x81c] sm:$0xf]
        %v922 = vld [vmem:[%s349 + $0x820] sm:$0xf]
        %v923 = vld [vmem:[%s349 + $0x824] sm:$0xf]
        %v924 = vld [vmem:[%s349 + $0x828] sm:$0xf]
        %v925 = vld [vmem:[%s349 + $0x82c] sm:$0xf]
        %v926 = vld [vmem:[%s349 + $0x830] sm:$0xf]
        %v927 = vld [vmem:[%s349 + $0x834] sm:$0xf]
        %v928 = vld [vmem:[%s349 + $0x838] sm:$0xf]
        %v929 = vld [vmem:[%s349 + $0x83c] sm:$0xf]
        %v930 = vld [vmem:[%s349 + $0x840] sm:$0xf]
        %v931 = vld [vmem:[%s349 + $0x844] sm:$0xf]
        %v932 = vld [vmem:[%s349 + $0x848] sm:$0xf]
        %v933 = vld [vmem:[%s349 + $0x84c] sm:$0xf]
        %v934 = vld [vmem:[%s349 + $0x850] sm:$0xf]
        %v935 = vld [vmem:[%s349 + $0x854] sm:$0xf]
        %v936 = vld [vmem:[%s349 + $0x858] sm:$0xf]
        %v937 = vld [vmem:[%s349 + $0x85c] sm:$0xf]
        %v938 = vld [vmem:[%s349 + $0x860] sm:$0xf]
        %v939 = vld [vmem:[%s349 + $0x864] sm:$0xf]
        %v940 = vld [vmem:[%s349 + $0x868] sm:$0xf]
        %v941 = vld [vmem:[%s349 + $0x86c] sm:$0xf]
        %v942 = vld [vmem:[%s349 + $0x870] sm:$0xf]
        %v943 = vld [vmem:[%s349 + $0x874] sm:$0xf]
        %v944 = vld [vmem:[%s349 + $0x878] sm:$0xf]
        %v945 = vld [vmem:[%s349 + $0x87c] sm:$0xf]
        %v946 = vld [vmem:[%s349 + $0x880] sm:$0xf]
        %v947 = vld [vmem:[%s349 + $0x884] sm:$0xf]
        %v948 = vld [vmem:[%s349 + $0x888] sm:$0xf]
        %v949 = vld [vmem:[%s349 + $0x88c] sm:$0xf]
        %v950 = vld [vmem:[%s349 + $0x890] sm:$0xf]
        %v951 = vld [vmem:[%s349 + $0x894] sm:$0xf]
        %v952 = vld [vmem:[%s349 + $0x898] sm:$0xf]
        %v953 = vld [vmem:[%s349 + $0x89c] sm:$0xf]
        %v954 = vld [vmem:[%s349 + $0x8a0] sm:$0xf]
        %v955 = vld [vmem:[%s349 + $0x8a4] sm:$0xf]
        %v956 = vld [vmem:[%s349 + $0x8a8] sm:$0xf]
        %v957 = vld [vmem:[%s349 + $0x8ac] sm:$0xf]
        %v958 = vld [vmem:[%s349 + $0x8b0] sm:$0xf]
        %v959 = vld [vmem:[%s349 + $0x8b4] sm:$0xf]
        %v960 = vld [vmem:[%s349 + $0x8b8] sm:$0xf]
        %v961 = vld [vmem:[%s349 + $0x8bc] sm:$0xf]
        %v962 = vld [vmem:[%s349 + $0x8c0] sm:$0xf]
        %v963 = vld [vmem:[%s349 + $0x8c4] sm:$0xf]
        %v964 = vld [vmem:[%s349 + $0x8c8] sm:$0xf]
        %v965 = vld [vmem:[%s349 + $0x8cc] sm:$0xf]
        %v966 = vld [vmem:[%s349 + $0x8d0] sm:$0xf]
        %v967 = vld [vmem:[%s349 + $0x8d4] sm:$0xf]
        %v968 = vld [vmem:[%s349 + $0x8d8] sm:$0xf]
        %v969 = vld [vmem:[%s349 + $0x8dc] sm:$0xf]
        %v970 = vld [vmem:[%s349 + $0x8e0] sm:$0xf]
        %v971 = vld [vmem:[%s349 + $0x8e4] sm:$0xf]
        %v972 = vld [vmem:[%s349 + $0x8e8] sm:$0xf]
        %v973 = vld [vmem:[%s349 + $0x8ec] sm:$0xf]
        %v974 = vld [vmem:[%s349 + $0x8f0] sm:$0xf]
        %v975 = vld [vmem:[%s349 + $0x8f4] sm:$0xf]
        %v976 = vld [vmem:[%s349 + $0x8f8] sm:$0xf]
        %v977 = vld [vmem:[%s349 + $0x8fc] sm:$0xf]
        %v1014 = vunpack.c.l.b16 %v366
        %v1015 = vunpack.c.h.b16 %v366
        %v1016 = vunpack.c.l.b16 %v367
        %v1017 = vunpack.c.h.b16 %v367
        %v1018 = vunpack.c.l.b16 %v368
        %v1019 = vunpack.c.h.b16 %v368
        %v1020 = vunpack.c.l.b16 %v369
        %v1021 = vunpack.c.h.b16 %v369
        %v1022 = vunpack.c.l.b16 %v370
        %v1023 = vunpack.c.h.b16 %v370
        %v1024 = vunpack.c.l.b16 %v371
        %v1025 = vunpack.c.h.b16 %v371
        %v1026 = vunpack.c.l.b16 %v372
        %v1027 = vunpack.c.h.b16 %v372
        %v1028 = vunpack.c.l.b16 %v373
        %v1029 = vunpack.c.h.b16 %v373
        %v1030 = vunpack.c.l.b16 %v374
        %v1031 = vunpack.c.h.b16 %v374
        %v1032 = vunpack.c.l.b16 %v375
        %v1033 = vunpack.c.h.b16 %v375
        %v1034 = vunpack.c.l.b16 %v376
        %v1035 = vunpack.c.h.b16 %v376
        %v1036 = vunpack.c.l.b16 %v377
        %v1037 = vunpack.c.h.b16 %v377
        %v1038 = vunpack.c.l.b16 %v378
        %v1039 = vunpack.c.h.b16 %v378
        %v1040 = vunpack.c.l.b16 %v379
        %v1041 = vunpack.c.h.b16 %v379
        %v1042 = vunpack.c.l.b16 %v380
        %v1043 = vunpack.c.h.b16 %v380
        %v1044 = vunpack.c.l.b16 %v381
        %v1045 = vunpack.c.h.b16 %v381
        %v1046 = vunpack.c.l.b16 %v382
        %v1047 = vunpack.c.h.b16 %v382
        %v1048 = vunpack.c.l.b16 %v383
        %v1049 = vunpack.c.h.b16 %v383
        %v1050 = vunpack.c.l.b16 %v384
        %v1051 = vunpack.c.h.b16 %v384
        %v1052 = vunpack.c.l.b16 %v385
        %v1053 = vunpack.c.h.b16 %v385
        %v1054 = vunpack.c.l.b16 %v386
        %v1055 = vunpack.c.h.b16 %v386
        %v1056 = vunpack.c.l.b16 %v387
        %v1057 = vunpack.c.h.b16 %v387
        %v1058 = vunpack.c.l.b16 %v388
        %v1059 = vunpack.c.h.b16 %v388
        %v1060 = vunpack.c.l.b16 %v389
        %v1061 = vunpack.c.h.b16 %v389
        %v1062 = vunpack.c.l.b16 %v390
        %v1063 = vunpack.c.h.b16 %v390
        %v1064 = vunpack.c.l.b16 %v391
        %v1065 = vunpack.c.h.b16 %v391
        %v1066 = vunpack.c.l.b16 %v392
        %v1067 = vunpack.c.h.b16 %v392
        %v1068 = vunpack.c.l.b16 %v393
        %v1069 = vunpack.c.h.b16 %v393
        %v1070 = vunpack.c.l.b16 %v394
        %v1071 = vunpack.c.h.b16 %v394
        %v1072 = vunpack.c.l.b16 %v395
        %v1073 = vunpack.c.h.b16 %v395
        %v1074 = vunpack.c.l.b16 %v396
        %v1075 = vunpack.c.h.b16 %v396
        %v1076 = vunpack.c.l.b16 %v397
        %v1077 = vunpack.c.h.b16 %v397
        %v1078 = vunpack.c.l.b16 %v398
        %v1079 = vunpack.c.h.b16 %v398
        %v1080 = vunpack.c.l.b16 %v399
        %v1081 = vunpack.c.h.b16 %v399
        %v1082 = vunpack.c.l.b16 %v400
        %v1083 = vunpack.c.h.b16 %v400
        %v1084 = vunpack.c.l.b16 %v401
        %v1085 = vunpack.c.h.b16 %v401
        %v1086 = vpack.c.b16 %v1050, %v1014
        %v1087 = vpack.c.b16 %v1051, %v1015
        %v1088 = vpack.c.b16 %v1052, %v1016
        %v1089 = vpack.c.b16 %v1053, %v1017
        %v1090 = vpack.c.b16 %v1054, %v1018
        %v1091 = vpack.c.b16 %v1055, %v1019
        %v1092 = vpack.c.b16 %v1056, %v1020
        %v1093 = vpack.c.b16 %v1057, %v1021
        %v1094 = vpack.c.b16 %v1058, %v1022
        %v1095 = vpack.c.b16 %v1059, %v1023
        %v1096 = vpack.c.b16 %v1060, %v1024
        %v1097 = vpack.c.b16 %v1061, %v1025
        %v1098 = vpack.c.b16 %v1062, %v1026
        %v1099 = vpack.c.b16 %v1063, %v1027
        %v1100 = vpack.c.b16 %v1064, %v1028
        %v1101 = vpack.c.b16 %v1065, %v1029
        %v1102 = vpack.c.b16 %v1066, %v1030
        %v1103 = vpack.c.b16 %v1067, %v1031
        %v1104 = vpack.c.b16 %v1068, %v1032
        %v1105 = vpack.c.b16 %v1069, %v1033
        %v1106 = vpack.c.b16 %v1070, %v1034
        %v1107 = vpack.c.b16 %v1071, %v1035
        %v1108 = vpack.c.b16 %v1072, %v1036
        %v1109 = vpack.c.b16 %v1073, %v1037
        %v1110 = vpack.c.b16 %v1074, %v1038
        %v1111 = vpack.c.b16 %v1075, %v1039
        %v1112 = vpack.c.b16 %v1076, %v1040
        %v1113 = vpack.c.b16 %v1077, %v1041
        %v1114 = vpack.c.b16 %v1078, %v1042
        %v1115 = vpack.c.b16 %v1079, %v1043
        %v1116 = vpack.c.b16 %v1080, %v1044
        %v1117 = vpack.c.b16 %v1081, %v1045
        %v1118 = vpack.c.b16 %v1082, %v1046
        %v1119 = vpack.c.b16 %v1083, %v1047
        %v1120 = vpack.c.b16 %v1084, %v1048
        %v1121 = vpack.c.b16 %v1085, %v1049
        %v1734 = vunpack.c.l.b16 %v402
        %v1735 = vunpack.c.l.b16 %v403
        %v1736 = vunpack.c.l.b16 %v404
        %v1737 = vunpack.c.l.b16 %v405
        %v1738 = vunpack.c.l.b16 %v406
        %v1739 = vunpack.c.l.b16 %v407
        %v1740 = vunpack.c.l.b16 %v408
        %v1741 = vunpack.c.l.b16 %v409
        %v1742 = vunpack.c.l.b16 %v410
        %v1743 = vunpack.c.l.b16 %v411
        %v1744 = vunpack.c.l.b16 %v412
        %v1745 = vunpack.c.l.b16 %v413
        %v1746 = vunpack.c.l.b16 %v414
        %v1747 = vunpack.c.l.b16 %v415
        %v1748 = vunpack.c.l.b16 %v416
        %v1749 = vunpack.c.l.b16 %v417
        %v1750 = vunpack.c.l.b16 %v418
        %v1751 = vunpack.c.l.b16 %v419
        %v1752 = vunpack.c.l.b16 %v420
        %v1753 = vunpack.c.l.b16 %v421
        %v1754 = vunpack.c.l.b16 %v422
        %v1755 = vunpack.c.l.b16 %v423
        %v1756 = vunpack.c.l.b16 %v424
        %v1757 = vunpack.c.l.b16 %v425
        %v1758 = vunpack.c.l.b16 %v426
        %v1759 = vunpack.c.l.b16 %v427
        %v1760 = vunpack.c.l.b16 %v428
        %v1761 = vunpack.c.l.b16 %v429
        %v1762 = vunpack.c.l.b16 %v430
        %v1763 = vunpack.c.l.b16 %v431
        %v1764 = vunpack.c.l.b16 %v432
        %v1765 = vunpack.c.l.b16 %v433
        %v1766 = vunpack.c.l.b16 %v434
        %v1767 = vunpack.c.l.b16 %v435
        %v1768 = vunpack.c.l.b16 %v436
        %v1769 = vunpack.c.l.b16 %v437
        %v1770 = vunpack.c.l.b16 %v438
        %v1771 = vunpack.c.l.b16 %v439
        %v1772 = vunpack.c.l.b16 %v440
        %v1773 = vunpack.c.l.b16 %v441
        %v1774 = vunpack.c.l.b16 %v442
        %v1775 = vunpack.c.l.b16 %v443
        %v1776 = vunpack.c.l.b16 %v444
        %v1777 = vunpack.c.l.b16 %v445
        %v1778 = vunpack.c.l.b16 %v446
        %v1779 = vunpack.c.l.b16 %v447
        %v1780 = vunpack.c.l.b16 %v448
        %v1781 = vunpack.c.l.b16 %v449
        %v1782 = vunpack.c.l.b16 %v450
        %v1783 = vunpack.c.l.b16 %v451
        %v1784 = vunpack.c.l.b16 %v452
        %v1785 = vunpack.c.l.b16 %v453
        %v1786 = vunpack.c.l.b16 %v454
        %v1787 = vunpack.c.l.b16 %v455
        %v1788 = vunpack.c.l.b16 %v456
        %v1789 = vunpack.c.l.b16 %v457
        %v1790 = vunpack.c.l.b16 %v458
        %v1791 = vunpack.c.l.b16 %v459
        %v1792 = vunpack.c.l.b16 %v460
        %v1793 = vunpack.c.l.b16 %v461
        %v1794 = vunpack.c.l.b16 %v462
        %v1795 = vunpack.c.l.b16 %v463
        %v1796 = vunpack.c.l.b16 %v464
        %v1797 = vunpack.c.l.b16 %v465
        %v1798 = vunpack.c.l.b16 %v466
        %v1799 = vunpack.c.l.b16 %v467
        %v1800 = vunpack.c.l.b16 %v468
        %v1801 = vunpack.c.l.b16 %v469
        %v1802 = vunpack.c.l.b16 %v470
        %v1803 = vunpack.c.l.b16 %v471
        %v1804 = vunpack.c.l.b16 %v472
        %v1805 = vunpack.c.l.b16 %v473
        %v1806 = vunpack.c.l.b16 %v474
        %v1807 = vunpack.c.l.b16 %v475
        %v1808 = vunpack.c.l.b16 %v476
        %v1809 = vunpack.c.l.b16 %v477
        %v1810 = vunpack.c.l.b16 %v478
        %v1811 = vunpack.c.l.b16 %v479
        %v1812 = vunpack.c.l.b16 %v480
        %v1813 = vunpack.c.l.b16 %v481
        %v1814 = vunpack.c.l.b16 %v482
        %v1815 = vunpack.c.l.b16 %v483
        %v1816 = vunpack.c.l.b16 %v484
        %v1817 = vunpack.c.l.b16 %v485
        %v1818 = vunpack.c.l.b16 %v486
        %v1819 = vunpack.c.l.b16 %v487
        %v1820 = vunpack.c.l.b16 %v488
        %v1821 = vunpack.c.l.b16 %v489
        %v1822 = vunpack.c.l.b16 %v490
        %v1823 = vunpack.c.l.b16 %v491
        %v1824 = vunpack.c.l.b16 %v492
        %v1825 = vunpack.c.l.b16 %v493
        %v1826 = vunpack.c.l.b16 %v494
        %v1827 = vunpack.c.l.b16 %v495
        %v1828 = vunpack.c.l.b16 %v496
        %v1829 = vunpack.c.l.b16 %v497
        %v1830 = vunpack.c.l.b16 %v498
        %v1831 = vunpack.c.l.b16 %v499
        %v1832 = vunpack.c.l.b16 %v500
        %v1833 = vunpack.c.l.b16 %v501
        %v1834 = vunpack.c.l.b16 %v502
        %v1835 = vunpack.c.l.b16 %v503
        %v1836 = vunpack.c.l.b16 %v504
        %v1837 = vunpack.c.l.b16 %v505
        %v1838 = vunpack.c.l.b16 %v506
        %v1839 = vunpack.c.l.b16 %v507
        %v1840 = vunpack.c.l.b16 %v508
        %v1841 = vunpack.c.l.b16 %v509
        %v1842 = vunpack.c.l.b16 %v510
        %v1843 = vunpack.c.l.b16 %v511
        %v1844 = vunpack.c.l.b16 %v512
        %v1845 = vunpack.c.l.b16 %v513
        %v1846 = vunpack.c.l.b16 %v514
        %v1847 = vunpack.c.l.b16 %v515
        %v1848 = vunpack.c.l.b16 %v516
        %v1849 = vunpack.c.l.b16 %v517
        %v1850 = vunpack.c.l.b16 %v518
        %v1851 = vunpack.c.l.b16 %v519
        %v1852 = vunpack.c.l.b16 %v520
        %v1853 = vunpack.c.l.b16 %v521
        %v1854 = vunpack.c.l.b16 %v522
        %v1855 = vunpack.c.l.b16 %v523
        %v1856 = vunpack.c.l.b16 %v524
        %v1857 = vunpack.c.l.b16 %v525
        %v1858 = vunpack.c.l.b16 %v526
        %v1859 = vunpack.c.l.b16 %v527
        %v1860 = vunpack.c.l.b16 %v528
        %v1861 = vunpack.c.l.b16 %v529
        %v1862 = vunpack.c.l.b16 %v530
        %v1863 = vunpack.c.l.b16 %v531
        %v1864 = vunpack.c.l.b16 %v532
        %v1865 = vunpack.c.l.b16 %v533
        %v1866 = vunpack.c.l.b16 %v534
        %v1867 = vunpack.c.l.b16 %v535
        %v1868 = vunpack.c.l.b16 %v536
        %v1869 = vunpack.c.l.b16 %v537
        %v1870 = vunpack.c.l.b16 %v538
        %v1871 = vunpack.c.l.b16 %v539
        %v1872 = vunpack.c.l.b16 %v540
        %v1873 = vunpack.c.l.b16 %v541
        %v1874 = vunpack.c.l.b16 %v542
        %v1875 = vunpack.c.l.b16 %v543
        %v1876 = vunpack.c.l.b16 %v544
        %v1877 = vunpack.c.l.b16 %v545
        %v1878 = vunpack.c.l.b16 %v546
        %v1879 = vunpack.c.l.b16 %v547
        %v1880 = vunpack.c.l.b16 %v548
        %v1881 = vunpack.c.l.b16 %v549
        %v1882 = vunpack.c.l.b16 %v550
        %v1883 = vunpack.c.l.b16 %v551
        %v1884 = vunpack.c.l.b16 %v552
        %v1885 = vunpack.c.l.b16 %v553
        %v1886 = vunpack.c.l.b16 %v554
        %v1887 = vunpack.c.l.b16 %v555
        %v1888 = vunpack.c.l.b16 %v556
        %v1889 = vunpack.c.l.b16 %v557
        %v1890 = vunpack.c.l.b16 %v558
        %v1891 = vunpack.c.l.b16 %v559
        %v1892 = vunpack.c.l.b16 %v560
        %v1893 = vunpack.c.l.b16 %v561
        %v1894 = vunpack.c.l.b16 %v562
        %v1895 = vunpack.c.l.b16 %v563
        %v1896 = vunpack.c.l.b16 %v564
        %v1897 = vunpack.c.l.b16 %v565
        %v1898 = vunpack.c.l.b16 %v566
        %v1899 = vunpack.c.l.b16 %v567
        %v1900 = vunpack.c.l.b16 %v568
        %v1901 = vunpack.c.l.b16 %v569
        %v1902 = vunpack.c.l.b16 %v570
        %v1903 = vunpack.c.l.b16 %v571
        %v1904 = vunpack.c.l.b16 %v572
        %v1905 = vunpack.c.l.b16 %v573
        %v1906 = vunpack.c.l.b16 %v574
        %v1907 = vunpack.c.l.b16 %v575
        %v1908 = vunpack.c.l.b16 %v576
        %v1909 = vunpack.c.l.b16 %v577
        %v1910 = vunpack.c.l.b16 %v578
        %v1911 = vunpack.c.l.b16 %v579
        %v1912 = vunpack.c.l.b16 %v580
        %v1913 = vunpack.c.l.b16 %v581
        %v1914 = vunpack.c.l.b16 %v582
        %v1915 = vunpack.c.l.b16 %v583
        %v1916 = vunpack.c.l.b16 %v584
        %v1917 = vunpack.c.l.b16 %v585
        %v1918 = vunpack.c.l.b16 %v586
        %v1919 = vunpack.c.l.b16 %v587
        %v1920 = vunpack.c.l.b16 %v588
        %v1921 = vunpack.c.l.b16 %v589
        %v1922 = vunpack.c.l.b16 %v590
        %v1923 = vunpack.c.l.b16 %v591
        %v1924 = vunpack.c.l.b16 %v592
        %v1925 = vunpack.c.l.b16 %v593
        %v1926 = vunpack.c.l.b16 %v594
        %v1927 = vunpack.c.l.b16 %v595
        %v1928 = vunpack.c.l.b16 %v596
        %v1929 = vunpack.c.l.b16 %v597
        %v1930 = vunpack.c.l.b16 %v598
        %v1931 = vunpack.c.l.b16 %v599
        %v1932 = vunpack.c.l.b16 %v600
        %v1933 = vunpack.c.l.b16 %v601
        %v1934 = vunpack.c.l.b16 %v602
        %v1935 = vunpack.c.l.b16 %v603
        %v1936 = vunpack.c.l.b16 %v604
        %v1937 = vunpack.c.l.b16 %v605
        %v1938 = vunpack.c.l.b16 %v606
        %v1939 = vunpack.c.l.b16 %v607
        %v1940 = vunpack.c.l.b16 %v608
        %v1941 = vunpack.c.l.b16 %v609
        %v1942 = vunpack.c.l.b16 %v610
        %v1943 = vunpack.c.l.b16 %v611
        %v1944 = vunpack.c.l.b16 %v612
        %v1945 = vunpack.c.l.b16 %v613
        %v1946 = vunpack.c.l.b16 %v614
        %v1947 = vunpack.c.l.b16 %v615
        %v1948 = vunpack.c.l.b16 %v616
        %v1949 = vunpack.c.l.b16 %v617
        %v1950 = vunpack.c.l.b16 %v618
        %v1951 = vunpack.c.l.b16 %v619
        %v1952 = vunpack.c.l.b16 %v620
        %v1953 = vunpack.c.l.b16 %v621
        %v1954 = vunpack.c.l.b16 %v622
        %v1955 = vunpack.c.l.b16 %v623
        %v1956 = vunpack.c.l.b16 %v624
        %v1957 = vunpack.c.l.b16 %v625
        %v1958 = vunpack.c.l.b16 %v626
        %v1959 = vunpack.c.l.b16 %v627
        %v1960 = vunpack.c.l.b16 %v628
        %v1961 = vunpack.c.l.b16 %v629
        %v1962 = vunpack.c.l.b16 %v630
        %v1963 = vunpack.c.l.b16 %v631
        %v1964 = vunpack.c.l.b16 %v632
        %v1965 = vunpack.c.l.b16 %v633
        %v1966 = vunpack.c.l.b16 %v634
        %v1967 = vunpack.c.l.b16 %v635
        %v1968 = vunpack.c.l.b16 %v636
        %v1969 = vunpack.c.l.b16 %v637
        %v1970 = vunpack.c.l.b16 %v638
        %v1971 = vunpack.c.l.b16 %v639
        %v1972 = vunpack.c.l.b16 %v640
        %v1973 = vunpack.c.l.b16 %v641
        %v1974 = vunpack.c.l.b16 %v642
        %v1975 = vunpack.c.l.b16 %v643
        %v1976 = vunpack.c.l.b16 %v644
        %v1977 = vunpack.c.l.b16 %v645
        %v1978 = vunpack.c.l.b16 %v646
        %v1979 = vunpack.c.l.b16 %v647
        %v1980 = vunpack.c.l.b16 %v648
        %v1981 = vunpack.c.l.b16 %v649
        %v1982 = vunpack.c.l.b16 %v650
        %v1983 = vunpack.c.l.b16 %v651
        %v1984 = vunpack.c.l.b16 %v652
        %v1985 = vunpack.c.l.b16 %v653
        %v1986 = vunpack.c.l.b16 %v654
        %v1987 = vunpack.c.l.b16 %v655
        %v1988 = vunpack.c.l.b16 %v656
        %v1989 = vunpack.c.l.b16 %v657
        %v1990 = vunpack.c.l.b16 %v658
        %v1991 = vunpack.c.l.b16 %v659
        %v1992 = vunpack.c.l.b16 %v660
        %v1993 = vunpack.c.l.b16 %v661
        %v1994 = vunpack.c.l.b16 %v662
        %v1995 = vunpack.c.l.b16 %v663
        %v1996 = vunpack.c.l.b16 %v664
        %v1997 = vunpack.c.l.b16 %v665
        %v1998 = vunpack.c.l.b16 %v666
        %v1999 = vunpack.c.l.b16 %v667
        %v2000 = vunpack.c.l.b16 %v668
        %v2001 = vunpack.c.l.b16 %v669
        %v2002 = vunpack.c.l.b16 %v670
        %v2003 = vunpack.c.l.b16 %v671
        %v2004 = vunpack.c.l.b16 %v672
        %v2005 = vunpack.c.l.b16 %v673
        %v2006 = vunpack.c.l.b16 %v674
        %v2007 = vunpack.c.l.b16 %v675
        %v2008 = vunpack.c.l.b16 %v676
        %v2009 = vunpack.c.l.b16 %v677
        %v2010 = vunpack.c.l.b16 %v678
        %v2011 = vunpack.c.l.b16 %v679
        %v2012 = vunpack.c.l.b16 %v680
        %v2013 = vunpack.c.l.b16 %v681
        %v2014 = vunpack.c.l.b16 %v682
        %v2015 = vunpack.c.l.b16 %v683
        %v2016 = vunpack.c.l.b16 %v684
        %v2017 = vunpack.c.l.b16 %v685
        %v2018 = vunpack.c.l.b16 %v686
        %v2019 = vunpack.c.l.b16 %v687
        %v2020 = vunpack.c.l.b16 %v688
        %v2021 = vunpack.c.l.b16 %v689
        %v2022 = vunpack.c.l.b16 %v690
        %v2023 = vunpack.c.l.b16 %v691
        %v2024 = vunpack.c.l.b16 %v692
        %v2025 = vunpack.c.l.b16 %v693
        %v2026 = vunpack.c.l.b16 %v694
        %v2027 = vunpack.c.l.b16 %v695
        %v2028 = vunpack.c.l.b16 %v696
        %v2029 = vunpack.c.l.b16 %v697
        %v2030 = vunpack.c.l.b16 %v698
        %v2031 = vunpack.c.l.b16 %v699
        %v2032 = vunpack.c.l.b16 %v700
        %v2033 = vunpack.c.l.b16 %v701
        %v2034 = vunpack.c.l.b16 %v702
        %v2035 = vunpack.c.l.b16 %v703
        %v2036 = vunpack.c.l.b16 %v704
        %v2037 = vunpack.c.l.b16 %v705
        %v2038 = vunpack.c.l.b16 %v706
        %v2039 = vunpack.c.l.b16 %v707
        %v2040 = vunpack.c.l.b16 %v708
        %v2041 = vunpack.c.l.b16 %v709
        %v2042 = vunpack.c.l.b16 %v710
        %v2043 = vunpack.c.l.b16 %v711
        %v2044 = vunpack.c.l.b16 %v712
        %v2045 = vunpack.c.l.b16 %v713
        %v2046 = vunpack.c.l.b16 %v714
        %v2047 = vunpack.c.l.b16 %v715
        %v2048 = vunpack.c.l.b16 %v716
        %v2049 = vunpack.c.l.b16 %v717
        %v2050 = vunpack.c.l.b16 %v718
        %v2051 = vunpack.c.l.b16 %v719
        %v2052 = vunpack.c.l.b16 %v720
        %v2053 = vunpack.c.l.b16 %v721
        %v2054 = vunpack.c.l.b16 %v722
        %v2055 = vunpack.c.l.b16 %v723
        %v2056 = vunpack.c.l.b16 %v724
        %v2057 = vunpack.c.l.b16 %v725
        %v2058 = vunpack.c.l.b16 %v726
        %v2059 = vunpack.c.l.b16 %v727
        %v2060 = vunpack.c.l.b16 %v728
        %v2061 = vunpack.c.l.b16 %v729
        %v2062 = vunpack.c.l.b16 %v730
        %v2063 = vunpack.c.l.b16 %v731
        %v2064 = vunpack.c.l.b16 %v732
        %v2065 = vunpack.c.l.b16 %v733
        %v2066 = vunpack.c.l.b16 %v734
        %v2067 = vunpack.c.l.b16 %v735
        %v2068 = vunpack.c.l.b16 %v736
        %v2069 = vunpack.c.l.b16 %v737
        %v2070 = vunpack.c.l.b16 %v738
        %v2071 = vunpack.c.l.b16 %v739
        %v2072 = vunpack.c.l.b16 %v740
        %v2073 = vunpack.c.l.b16 %v741
        %v2074 = vunpack.c.l.b16 %v742
        %v2075 = vunpack.c.l.b16 %v743
        %v2076 = vunpack.c.l.b16 %v744
        %v2077 = vunpack.c.l.b16 %v745
        %v2078 = vunpack.c.l.b16 %v746
        %v2079 = vunpack.c.l.b16 %v747
        %v2080 = vunpack.c.l.b16 %v748
        %v2081 = vunpack.c.l.b16 %v749
        %v2082 = vunpack.c.l.b16 %v750
        %v2083 = vunpack.c.l.b16 %v751
        %v2084 = vunpack.c.l.b16 %v752
        %v2085 = vunpack.c.l.b16 %v753
        %v2086 = vunpack.c.l.b16 %v754
        %v2087 = vunpack.c.l.b16 %v755
        %v2088 = vunpack.c.l.b16 %v756
        %v2089 = vunpack.c.l.b16 %v757
        %v2090 = vunpack.c.l.b16 %v758
        %v2091 = vunpack.c.l.b16 %v759
        %v2092 = vunpack.c.l.b16 %v760
        %v2093 = vunpack.c.l.b16 %v761
        %v2094 = vunpack.c.l.b16 %v762
        %v2095 = vunpack.c.l.b16 %v763
        %v2096 = vunpack.c.l.b16 %v764
        %v2097 = vunpack.c.l.b16 %v765
        %v2098 = vunpack.c.l.b16 %v766
        %v2099 = vunpack.c.l.b16 %v767
        %v2100 = vunpack.c.l.b16 %v768
        %v2101 = vunpack.c.l.b16 %v769
        %v2102 = vunpack.c.l.b16 %v770
        %v2103 = vunpack.c.l.b16 %v771
        %v2104 = vunpack.c.l.b16 %v772
        %v2105 = vunpack.c.l.b16 %v773
        %v2106 = vunpack.c.l.b16 %v774
        %v2107 = vunpack.c.l.b16 %v775
        %v2108 = vunpack.c.l.b16 %v776
        %v2109 = vunpack.c.l.b16 %v777
        %v2110 = vunpack.c.l.b16 %v778
        %v2111 = vunpack.c.l.b16 %v779
        %v2112 = vunpack.c.l.b16 %v780
        %v2113 = vunpack.c.l.b16 %v781
        %v2114 = vunpack.c.l.b16 %v782
        %v2115 = vunpack.c.l.b16 %v783
        %v2116 = vunpack.c.l.b16 %v784
        %v2117 = vunpack.c.l.b16 %v785
        %v2118 = vunpack.c.l.b16 %v786
        %v2119 = vunpack.c.l.b16 %v787
        %v2120 = vunpack.c.l.b16 %v788
        %v2121 = vunpack.c.l.b16 %v789
        %v2122 = vunpack.c.l.b16 %v790
        %v2123 = vunpack.c.l.b16 %v791
        %v2124 = vunpack.c.l.b16 %v792
        %v2125 = vunpack.c.l.b16 %v793
        %v2126 = vunpack.c.l.b16 %v794
        %v2127 = vunpack.c.l.b16 %v795
        %v2128 = vunpack.c.l.b16 %v796
        %v2129 = vunpack.c.l.b16 %v797
        %v2130 = vunpack.c.l.b16 %v798
        %v2131 = vunpack.c.l.b16 %v799
        %v2132 = vunpack.c.l.b16 %v800
        %v2133 = vunpack.c.l.b16 %v801
        %v2134 = vunpack.c.l.b16 %v802
        %v2135 = vunpack.c.l.b16 %v803
        %v2136 = vunpack.c.l.b16 %v804
        %v2137 = vunpack.c.l.b16 %v805
        %v2138 = vunpack.c.l.b16 %v806
        %v2139 = vunpack.c.l.b16 %v807
        %v2140 = vunpack.c.l.b16 %v808
        %v2141 = vunpack.c.l.b16 %v809
        %v2142 = vunpack.c.l.b16 %v810
        %v2143 = vunpack.c.l.b16 %v811
        %v2144 = vunpack.c.l.b16 %v812
        %v2145 = vunpack.c.l.b16 %v813
        %v2146 = vunpack.c.l.b16 %v814
        %v2147 = vunpack.c.l.b16 %v815
        %v2148 = vunpack.c.l.b16 %v816
        %v2149 = vunpack.c.l.b16 %v817
        %v2150 = vunpack.c.l.b16 %v818
        %v2151 = vunpack.c.l.b16 %v819
        %v2152 = vunpack.c.l.b16 %v820
        %v2153 = vunpack.c.l.b16 %v821
        %v2154 = vunpack.c.l.b16 %v822
        %v2155 = vunpack.c.l.b16 %v823
        %v2156 = vunpack.c.l.b16 %v824
        %v2157 = vunpack.c.l.b16 %v825
        %v2158 = vunpack.c.l.b16 %v826
        %v2159 = vunpack.c.l.b16 %v827
        %v2160 = vunpack.c.l.b16 %v828
        %v2161 = vunpack.c.l.b16 %v829
        %v2162 = vunpack.c.l.b16 %v830
        %v2163 = vunpack.c.l.b16 %v831
        %v2164 = vunpack.c.l.b16 %v832
        %v2165 = vunpack.c.l.b16 %v833
        %v2166 = vunpack.c.l.b16 %v834
        %v2167 = vunpack.c.l.b16 %v835
        %v2168 = vunpack.c.l.b16 %v836
        %v2169 = vunpack.c.l.b16 %v837
        %v2170 = vunpack.c.l.b16 %v838
        %v2171 = vunpack.c.l.b16 %v839
        %v2172 = vunpack.c.l.b16 %v840
        %v2173 = vunpack.c.l.b16 %v841
        %v2174 = vunpack.c.l.b16 %v842
        %v2175 = vunpack.c.l.b16 %v843
        %v2176 = vunpack.c.l.b16 %v844
        %v2177 = vunpack.c.l.b16 %v845
        %v2178 = vunpack.c.l.b16 %v846
        %v2179 = vunpack.c.l.b16 %v847
        %v2180 = vunpack.c.l.b16 %v848
        %v2181 = vunpack.c.l.b16 %v849
        %v2182 = vunpack.c.l.b16 %v850
        %v2183 = vunpack.c.l.b16 %v851
        %v2184 = vunpack.c.l.b16 %v852
        %v2185 = vunpack.c.l.b16 %v853
        %v2186 = vunpack.c.l.b16 %v854
        %v2187 = vunpack.c.l.b16 %v855
        %v2188 = vunpack.c.l.b16 %v856
        %v2189 = vunpack.c.l.b16 %v857
        %v2190 = vunpack.c.l.b16 %v858
        %v2191 = vunpack.c.l.b16 %v859
        %v2192 = vunpack.c.l.b16 %v860
        %v2193 = vunpack.c.l.b16 %v861
        %v2194 = vunpack.c.l.b16 %v862
        %v2195 = vunpack.c.l.b16 %v863
        %v2196 = vunpack.c.l.b16 %v864
        %v2197 = vunpack.c.l.b16 %v865
        %v2198 = vunpack.c.l.b16 %v866
        %v2199 = vunpack.c.l.b16 %v867
        %v2200 = vunpack.c.l.b16 %v868
        %v2201 = vunpack.c.l.b16 %v869
        %v2202 = vunpack.c.l.b16 %v870
        %v2203 = vunpack.c.l.b16 %v871
        %v2204 = vunpack.c.l.b16 %v872
        %v2205 = vunpack.c.l.b16 %v873
        %v2206 = vunpack.c.l.b16 %v874
        %v2207 = vunpack.c.l.b16 %v875
        %v2208 = vunpack.c.l.b16 %v876
        %v2209 = vunpack.c.l.b16 %v877
        %v2210 = vunpack.c.l.b16 %v878
        %v2211 = vunpack.c.l.b16 %v879
        %v2212 = vunpack.c.l.b16 %v880
        %v2213 = vunpack.c.l.b16 %v881
        %v2214 = vunpack.c.l.b16 %v882
        %v2215 = vunpack.c.l.b16 %v883
        %v2216 = vunpack.c.l.b16 %v884
        %v2217 = vunpack.c.l.b16 %v885
        %v2218 = vunpack.c.l.b16 %v886
        %v2219 = vunpack.c.l.b16 %v887
        %v2220 = vunpack.c.l.b16 %v888
        %v2221 = vunpack.c.l.b16 %v889
        %v2222 = vunpack.c.l.b16 %v890
        %v2223 = vunpack.c.l.b16 %v891
        %v2224 = vunpack.c.l.b16 %v892
        %v2225 = vunpack.c.l.b16 %v893
        %v2226 = vunpack.c.l.b16 %v894
        %v2227 = vunpack.c.l.b16 %v895
        %v2228 = vunpack.c.l.b16 %v896
        %v2229 = vunpack.c.l.b16 %v897
        %v2230 = vunpack.c.l.b16 %v898
        %v2231 = vunpack.c.l.b16 %v899
        %v2232 = vunpack.c.l.b16 %v900
        %v2233 = vunpack.c.l.b16 %v901
        %v2234 = vunpack.c.l.b16 %v902
        %v2235 = vunpack.c.l.b16 %v903
        %v2236 = vunpack.c.l.b16 %v904
        %v2237 = vunpack.c.l.b16 %v905
        %v2238 = vunpack.c.l.b16 %v906
        %v2239 = vunpack.c.l.b16 %v907
        %v2240 = vunpack.c.l.b16 %v908
        %v2241 = vunpack.c.l.b16 %v909
        %v2242 = vunpack.c.l.b16 %v910
        %v2243 = vunpack.c.l.b16 %v911
        %v2244 = vunpack.c.l.b16 %v912
        %v2245 = vunpack.c.l.b16 %v913
        %v2246 = vunpack.c.l.b16 %v914
        %v2247 = vunpack.c.l.b16 %v915
        %v2248 = vunpack.c.l.b16 %v916
        %v2249 = vunpack.c.l.b16 %v917
        %v2250 = vunpack.c.l.b16 %v918
        %v2251 = vunpack.c.l.b16 %v919
        %v2252 = vunpack.c.l.b16 %v920
        %v2253 = vunpack.c.l.b16 %v921
        %v2254 = vunpack.c.l.b16 %v922
        %v2255 = vunpack.c.l.b16 %v923
        %v2256 = vunpack.c.l.b16 %v924
        %v2257 = vunpack.c.l.b16 %v925
        %v2258 = vunpack.c.l.b16 %v926
        %v2259 = vunpack.c.l.b16 %v927
        %v2260 = vunpack.c.l.b16 %v928
        %v2261 = vunpack.c.l.b16 %v929
        %v2262 = vunpack.c.l.b16 %v930
        %v2263 = vunpack.c.l.b16 %v931
        %v2264 = vunpack.c.l.b16 %v932
        %v2265 = vunpack.c.l.b16 %v933
        %v2266 = vunpack.c.l.b16 %v934
        %v2267 = vunpack.c.l.b16 %v935
        %v2268 = vunpack.c.l.b16 %v936
        %v2269 = vunpack.c.l.b16 %v937
        %v2270 = vunpack.c.l.b16 %v938
        %v2271 = vunpack.c.l.b16 %v939
        %v2272 = vunpack.c.l.b16 %v940
        %v2273 = vunpack.c.l.b16 %v941
        %v2274 = vunpack.c.l.b16 %v942
        %v2275 = vunpack.c.l.b16 %v943
        %v2276 = vunpack.c.l.b16 %v944
        %v2277 = vunpack.c.l.b16 %v945
        %v2278 = vunpack.c.l.b16 %v946
        %v2279 = vunpack.c.l.b16 %v947
        %v2280 = vunpack.c.l.b16 %v948
        %v2281 = vunpack.c.l.b16 %v949
        %v2282 = vunpack.c.l.b16 %v950
        %v2283 = vunpack.c.l.b16 %v951
        %v2284 = vunpack.c.l.b16 %v952
        %v2285 = vunpack.c.l.b16 %v953
        %v2286 = vunpack.c.l.b16 %v954
        %v2287 = vunpack.c.l.b16 %v955
        %v2288 = vunpack.c.l.b16 %v956
        %v2289 = vunpack.c.l.b16 %v957
        %v2290 = vunpack.c.l.b16 %v958
        %v2291 = vunpack.c.l.b16 %v959
        %v2292 = vunpack.c.l.b16 %v960
        %v2293 = vunpack.c.l.b16 %v961
        %v2294 = vunpack.c.l.b16 %v962
        %v2295 = vunpack.c.l.b16 %v963
        %v2296 = vunpack.c.l.b16 %v964
        %v2297 = vunpack.c.l.b16 %v965
        %v2298 = vunpack.c.l.b16 %v966
        %v2299 = vunpack.c.l.b16 %v967
        %v2300 = vunpack.c.l.b16 %v968
        %v2301 = vunpack.c.l.b16 %v969
        %v2302 = vunpack.c.l.b16 %v970
        %v2303 = vunpack.c.l.b16 %v971
        %v2304 = vunpack.c.l.b16 %v972
        %v2305 = vunpack.c.l.b16 %v973
        %v2306 = vunpack.c.l.b16 %v974
        %v2307 = vunpack.c.l.b16 %v975
        %v2308 = vunpack.c.l.b16 %v976
        %v2309 = vunpack.c.l.b16 %v977
        %v2310 = vpack.c.b16 %v1735, %v1734
        %v2311 = vpack.c.b16 %v1737, %v1736
        %v2312 = vpack.c.b16 %v1739, %v1738
        %v2313 = vpack.c.b16 %v1741, %v1740
        %v2314 = vpack.c.b16 %v1743, %v1742
        %v2315 = vpack.c.b16 %v1745, %v1744
        %v2316 = vpack.c.b16 %v1747, %v1746
        %v2317 = vpack.c.b16 %v1749, %v1748
        %v2318 = vpack.c.b16 %v1751, %v1750
        %v2319 = vpack.c.b16 %v1753, %v1752
        %v2320 = vpack.c.b16 %v1755, %v1754
        %v2321 = vpack.c.b16 %v1757, %v1756
        %v2322 = vpack.c.b16 %v1759, %v1758
        %v2323 = vpack.c.b16 %v1761, %v1760
        %v2324 = vpack.c.b16 %v1763, %v1762
        %v2325 = vpack.c.b16 %v1765, %v1764
        %v2326 = vpack.c.b16 %v1767, %v1766
        %v2327 = vpack.c.b16 %v1769, %v1768
        %v2328 = vpack.c.b16 %v1771, %v1770
        %v2329 = vpack.c.b16 %v1773, %v1772
        %v2330 = vpack.c.b16 %v1775, %v1774
        %v2331 = vpack.c.b16 %v1777, %v1776
        %v2332 = vpack.c.b16 %v1779, %v1778
        %v2333 = vpack.c.b16 %v1781, %v1780
        %v2334 = vpack.c.b16 %v1783, %v1782
        %v2335 = vpack.c.b16 %v1785, %v1784
        %v2336 = vpack.c.b16 %v1787, %v1786
        %v2337 = vpack.c.b16 %v1789, %v1788
        %v2338 = vpack.c.b16 %v1791, %v1790
        %v2339 = vpack.c.b16 %v1793, %v1792
        %v2340 = vpack.c.b16 %v1795, %v1794
        %v2341 = vpack.c.b16 %v1797, %v1796
        %v2342 = vpack.c.b16 %v1799, %v1798
        %v2343 = vpack.c.b16 %v1801, %v1800
        %v2344 = vpack.c.b16 %v1803, %v1802
        %v2345 = vpack.c.b16 %v1805, %v1804
        %v2346 = vpack.c.b16 %v1807, %v1806
        %v2347 = vpack.c.b16 %v1809, %v1808
        %v2348 = vpack.c.b16 %v1811, %v1810
        %v2349 = vpack.c.b16 %v1813, %v1812
        %v2350 = vpack.c.b16 %v1815, %v1814
        %v2351 = vpack.c.b16 %v1817, %v1816
        %v2352 = vpack.c.b16 %v1819, %v1818
        %v2353 = vpack.c.b16 %v1821, %v1820
        %v2354 = vpack.c.b16 %v1823, %v1822
        %v2355 = vpack.c.b16 %v1825, %v1824
        %v2356 = vpack.c.b16 %v1827, %v1826
        %v2357 = vpack.c.b16 %v1829, %v1828
        %v2358 = vpack.c.b16 %v1831, %v1830
        %v2359 = vpack.c.b16 %v1833, %v1832
        %v2360 = vpack.c.b16 %v1835, %v1834
        %v2361 = vpack.c.b16 %v1837, %v1836
        %v2362 = vpack.c.b16 %v1839, %v1838
        %v2363 = vpack.c.b16 %v1841, %v1840
        %v2364 = vpack.c.b16 %v1843, %v1842
        %v2365 = vpack.c.b16 %v1845, %v1844
        %v2366 = vpack.c.b16 %v1847, %v1846
        %v2367 = vpack.c.b16 %v1849, %v1848
        %v2368 = vpack.c.b16 %v1851, %v1850
        %v2369 = vpack.c.b16 %v1853, %v1852
        %v2370 = vpack.c.b16 %v1855, %v1854
        %v2371 = vpack.c.b16 %v1857, %v1856
        %v2372 = vpack.c.b16 %v1859, %v1858
        %v2373 = vpack.c.b16 %v1861, %v1860
        %v2374 = vpack.c.b16 %v1863, %v1862
        %v2375 = vpack.c.b16 %v1865, %v1864
        %v2376 = vpack.c.b16 %v1867, %v1866
        %v2377 = vpack.c.b16 %v1869, %v1868
        %v2378 = vpack.c.b16 %v1871, %v1870
        %v2379 = vpack.c.b16 %v1873, %v1872
        %v2380 = vpack.c.b16 %v1875, %v1874
        %v2381 = vpack.c.b16 %v1877, %v1876
        %v2382 = vpack.c.b16 %v1879, %v1878
        %v2383 = vpack.c.b16 %v1881, %v1880
        %v2384 = vpack.c.b16 %v1883, %v1882
        %v2385 = vpack.c.b16 %v1885, %v1884
        %v2386 = vpack.c.b16 %v1887, %v1886
        %v2387 = vpack.c.b16 %v1889, %v1888
        %v2388 = vpack.c.b16 %v1891, %v1890
        %v2389 = vpack.c.b16 %v1893, %v1892
        %v2390 = vpack.c.b16 %v1895, %v1894
        %v2391 = vpack.c.b16 %v1897, %v1896
        %v2392 = vpack.c.b16 %v1899, %v1898
        %v2393 = vpack.c.b16 %v1901, %v1900
        %v2394 = vpack.c.b16 %v1903, %v1902
        %v2395 = vpack.c.b16 %v1905, %v1904
        %v2396 = vpack.c.b16 %v1907, %v1906
        %v2397 = vpack.c.b16 %v1909, %v1908
        %v2398 = vpack.c.b16 %v1911, %v1910
        %v2399 = vpack.c.b16 %v1913, %v1912
        %v2400 = vpack.c.b16 %v1915, %v1914
        %v2401 = vpack.c.b16 %v1917, %v1916
        %v2402 = vpack.c.b16 %v1919, %v1918
        %v2403 = vpack.c.b16 %v1921, %v1920
        %v2404 = vpack.c.b16 %v1923, %v1922
        %v2405 = vpack.c.b16 %v1925, %v1924
        %v2406 = vpack.c.b16 %v1927, %v1926
        %v2407 = vpack.c.b16 %v1929, %v1928
        %v2408 = vpack.c.b16 %v1931, %v1930
        %v2409 = vpack.c.b16 %v1933, %v1932
        %v2410 = vpack.c.b16 %v1935, %v1934
        %v2411 = vpack.c.b16 %v1937, %v1936
        %v2412 = vpack.c.b16 %v1939, %v1938
        %v2413 = vpack.c.b16 %v1941, %v1940
        %v2414 = vpack.c.b16 %v1943, %v1942
        %v2415 = vpack.c.b16 %v1945, %v1944
        %v2416 = vpack.c.b16 %v1947, %v1946
        %v2417 = vpack.c.b16 %v1949, %v1948
        %v2418 = vpack.c.b16 %v1951, %v1950
        %v2419 = vpack.c.b16 %v1953, %v1952
        %v2420 = vpack.c.b16 %v1955, %v1954
        %v2421 = vpack.c.b16 %v1957, %v1956
        %v2422 = vpack.c.b16 %v1959, %v1958
        %v2423 = vpack.c.b16 %v1961, %v1960
        %v2424 = vpack.c.b16 %v1963, %v1962
        %v2425 = vpack.c.b16 %v1965, %v1964
        %v2426 = vpack.c.b16 %v1967, %v1966
        %v2427 = vpack.c.b16 %v1969, %v1968
        %v2428 = vpack.c.b16 %v1971, %v1970
        %v2429 = vpack.c.b16 %v1973, %v1972
        %v2430 = vpack.c.b16 %v1975, %v1974
        %v2431 = vpack.c.b16 %v1977, %v1976
        %v2432 = vpack.c.b16 %v1979, %v1978
        %v2433 = vpack.c.b16 %v1981, %v1980
        %v2434 = vpack.c.b16 %v1983, %v1982
        %v2435 = vpack.c.b16 %v1985, %v1984
        %v2436 = vpack.c.b16 %v1987, %v1986
        %v2437 = vpack.c.b16 %v1989, %v1988
        %v2438 = vpack.c.b16 %v1991, %v1990
        %v2439 = vpack.c.b16 %v1993, %v1992
        %v2440 = vpack.c.b16 %v1995, %v1994
        %v2441 = vpack.c.b16 %v1997, %v1996
        %v2442 = vpack.c.b16 %v1999, %v1998
        %v2443 = vpack.c.b16 %v2001, %v2000
        %v2444 = vpack.c.b16 %v2003, %v2002
        %v2445 = vpack.c.b16 %v2005, %v2004
        %v2446 = vpack.c.b16 %v2007, %v2006
        %v2447 = vpack.c.b16 %v2009, %v2008
        %v2448 = vpack.c.b16 %v2011, %v2010
        %v2449 = vpack.c.b16 %v2013, %v2012
        %v2450 = vpack.c.b16 %v2015, %v2014
        %v2451 = vpack.c.b16 %v2017, %v2016
        %v2452 = vpack.c.b16 %v2019, %v2018
        %v2453 = vpack.c.b16 %v2021, %v2020
        %v2454 = vpack.c.b16 %v2023, %v2022
        %v2455 = vpack.c.b16 %v2025, %v2024
        %v2456 = vpack.c.b16 %v2027, %v2026
        %v2457 = vpack.c.b16 %v2029, %v2028
        %v2458 = vpack.c.b16 %v2031, %v2030
        %v2459 = vpack.c.b16 %v2033, %v2032
        %v2460 = vpack.c.b16 %v2035, %v2034
        %v2461 = vpack.c.b16 %v2037, %v2036
        %v2462 = vpack.c.b16 %v2039, %v2038
        %v2463 = vpack.c.b16 %v2041, %v2040
        %v2464 = vpack.c.b16 %v2043, %v2042
        %v2465 = vpack.c.b16 %v2045, %v2044
        %v2466 = vpack.c.b16 %v2047, %v2046
        %v2467 = vpack.c.b16 %v2049, %v2048
        %v2468 = vpack.c.b16 %v2051, %v2050
        %v2469 = vpack.c.b16 %v2053, %v2052
        %v2470 = vpack.c.b16 %v2055, %v2054
        %v2471 = vpack.c.b16 %v2057, %v2056
        %v2472 = vpack.c.b16 %v2059, %v2058
        %v2473 = vpack.c.b16 %v2061, %v2060
        %v2474 = vpack.c.b16 %v2063, %v2062
        %v2475 = vpack.c.b16 %v2065, %v2064
        %v2476 = vpack.c.b16 %v2067, %v2066
        %v2477 = vpack.c.b16 %v2069, %v2068
        %v2478 = vpack.c.b16 %v2071, %v2070
        %v2479 = vpack.c.b16 %v2073, %v2072
        %v2480 = vpack.c.b16 %v2075, %v2074
        %v2481 = vpack.c.b16 %v2077, %v2076
        %v2482 = vpack.c.b16 %v2079, %v2078
        %v2483 = vpack.c.b16 %v2081, %v2080
        %v2484 = vpack.c.b16 %v2083, %v2082
        %v2485 = vpack.c.b16 %v2085, %v2084
        %v2486 = vpack.c.b16 %v2087, %v2086
        %v2487 = vpack.c.b16 %v2089, %v2088
        %v2488 = vpack.c.b16 %v2091, %v2090
        %v2489 = vpack.c.b16 %v2093, %v2092
        %v2490 = vpack.c.b16 %v2095, %v2094
        %v2491 = vpack.c.b16 %v2097, %v2096
        %v2492 = vpack.c.b16 %v2099, %v2098
        %v2493 = vpack.c.b16 %v2101, %v2100
        %v2494 = vpack.c.b16 %v2103, %v2102
        %v2495 = vpack.c.b16 %v2105, %v2104
        %v2496 = vpack.c.b16 %v2107, %v2106
        %v2497 = vpack.c.b16 %v2109, %v2108
        %v2498 = vpack.c.b16 %v2111, %v2110
        %v2499 = vpack.c.b16 %v2113, %v2112
        %v2500 = vpack.c.b16 %v2115, %v2114
        %v2501 = vpack.c.b16 %v2117, %v2116
        %v2502 = vpack.c.b16 %v2119, %v2118
        %v2503 = vpack.c.b16 %v2121, %v2120
        %v2504 = vpack.c.b16 %v2123, %v2122
        %v2505 = vpack.c.b16 %v2125, %v2124
        %v2506 = vpack.c.b16 %v2127, %v2126
        %v2507 = vpack.c.b16 %v2129, %v2128
        %v2508 = vpack.c.b16 %v2131, %v2130
        %v2509 = vpack.c.b16 %v2133, %v2132
        %v2510 = vpack.c.b16 %v2135, %v2134
        %v2511 = vpack.c.b16 %v2137, %v2136
        %v2512 = vpack.c.b16 %v2139, %v2138
        %v2513 = vpack.c.b16 %v2141, %v2140
        %v2514 = vpack.c.b16 %v2143, %v2142
        %v2515 = vpack.c.b16 %v2145, %v2144
        %v2516 = vpack.c.b16 %v2147, %v2146
        %v2517 = vpack.c.b16 %v2149, %v2148
        %v2518 = vpack.c.b16 %v2151, %v2150
        %v2519 = vpack.c.b16 %v2153, %v2152
        %v2520 = vpack.c.b16 %v2155, %v2154
        %v2521 = vpack.c.b16 %v2157, %v2156
        %v2522 = vpack.c.b16 %v2159, %v2158
        %v2523 = vpack.c.b16 %v2161, %v2160
        %v2524 = vpack.c.b16 %v2163, %v2162
        %v2525 = vpack.c.b16 %v2165, %v2164
        %v2526 = vpack.c.b16 %v2167, %v2166
        %v2527 = vpack.c.b16 %v2169, %v2168
        %v2528 = vpack.c.b16 %v2171, %v2170
        %v2529 = vpack.c.b16 %v2173, %v2172
        %v2530 = vpack.c.b16 %v2175, %v2174
        %v2531 = vpack.c.b16 %v2177, %v2176
        %v2532 = vpack.c.b16 %v2179, %v2178
        %v2533 = vpack.c.b16 %v2181, %v2180
        %v2534 = vpack.c.b16 %v2183, %v2182
        %v2535 = vpack.c.b16 %v2185, %v2184
        %v2536 = vpack.c.b16 %v2187, %v2186
        %v2537 = vpack.c.b16 %v2189, %v2188
        %v2538 = vpack.c.b16 %v2191, %v2190
        %v2539 = vpack.c.b16 %v2193, %v2192
        %v2540 = vpack.c.b16 %v2195, %v2194
        %v2541 = vpack.c.b16 %v2197, %v2196
        %v2542 = vpack.c.b16 %v2199, %v2198
        %v2543 = vpack.c.b16 %v2201, %v2200
        %v2544 = vpack.c.b16 %v2203, %v2202
        %v2545 = vpack.c.b16 %v2205, %v2204
        %v2546 = vpack.c.b16 %v2207, %v2206
        %v2547 = vpack.c.b16 %v2209, %v2208
        %v2548 = vpack.c.b16 %v2211, %v2210
        %v2549 = vpack.c.b16 %v2213, %v2212
        %v2550 = vpack.c.b16 %v2215, %v2214
        %v2551 = vpack.c.b16 %v2217, %v2216
        %v2552 = vpack.c.b16 %v2219, %v2218
        %v2553 = vpack.c.b16 %v2221, %v2220
        %v2554 = vpack.c.b16 %v2223, %v2222
        %v2555 = vpack.c.b16 %v2225, %v2224
        %v2556 = vpack.c.b16 %v2227, %v2226
        %v2557 = vpack.c.b16 %v2229, %v2228
        %v2558 = vpack.c.b16 %v2231, %v2230
        %v2559 = vpack.c.b16 %v2233, %v2232
        %v2560 = vpack.c.b16 %v2235, %v2234
        %v2561 = vpack.c.b16 %v2237, %v2236
        %v2562 = vpack.c.b16 %v2239, %v2238
        %v2563 = vpack.c.b16 %v2241, %v2240
        %v2564 = vpack.c.b16 %v2243, %v2242
        %v2565 = vpack.c.b16 %v2245, %v2244
        %v2566 = vpack.c.b16 %v2247, %v2246
        %v2567 = vpack.c.b16 %v2249, %v2248
        %v2568 = vpack.c.b16 %v2251, %v2250
        %v2569 = vpack.c.b16 %v2253, %v2252
        %v2570 = vpack.c.b16 %v2255, %v2254
        %v2571 = vpack.c.b16 %v2257, %v2256
        %v2572 = vpack.c.b16 %v2259, %v2258
        %v2573 = vpack.c.b16 %v2261, %v2260
        %v2574 = vpack.c.b16 %v2263, %v2262
        %v2575 = vpack.c.b16 %v2265, %v2264
        %v2576 = vpack.c.b16 %v2267, %v2266
        %v2577 = vpack.c.b16 %v2269, %v2268
        %v2578 = vpack.c.b16 %v2271, %v2270
        %v2579 = vpack.c.b16 %v2273, %v2272
        %v2580 = vpack.c.b16 %v2275, %v2274
        %v2581 = vpack.c.b16 %v2277, %v2276
        %v2582 = vpack.c.b16 %v2279, %v2278
        %v2583 = vpack.c.b16 %v2281, %v2280
        %v2584 = vpack.c.b16 %v2283, %v2282
        %v2585 = vpack.c.b16 %v2285, %v2284
        %v2586 = vpack.c.b16 %v2287, %v2286
        %v2587 = vpack.c.b16 %v2289, %v2288
        %v2588 = vpack.c.b16 %v2291, %v2290
        %v2589 = vpack.c.b16 %v2293, %v2292
        %v2590 = vpack.c.b16 %v2295, %v2294
        %v2591 = vpack.c.b16 %v2297, %v2296
        %v2592 = vpack.c.b16 %v2299, %v2298
        %v2593 = vpack.c.b16 %v2301, %v2300
        %v2594 = vpack.c.b16 %v2303, %v2302
        %v2595 = vpack.c.b16 %v2305, %v2304
        %v2596 = vpack.c.b16 %v2307, %v2306
        %v2597 = vpack.c.b16 %v2309, %v2308
        %2886 = vmatprep.subr.bf16.mxu0 0
        %2887 = vmatpush1.bf16.msra.mxu0 %v2310
        %2888 = vmatprep.subr.bf16.mxu0 0
        %2889 = vmatpush1.bf16.msra.mxu0 %v2311
        %2890 = vmatprep.subr.bf16.mxu0 0
        %2891 = vmatpush1.bf16.msra.mxu0 %v2312
        %2892 = vmatprep.subr.bf16.mxu0 0
        %2893 = vmatpush1.bf16.msra.mxu0 %v2313
        %2894 = vmatprep.subr.bf16.mxu0 0
        %2895 = vmatpush1.bf16.msra.mxu0 %v2314
        %2896 = vmatprep.subr.bf16.mxu0 0
        %2897 = vmatpush1.bf16.msra.mxu0 %v2315
        %2898 = vmatprep.subr.bf16.mxu0 0
        %2899 = vmatpush1.bf16.msra.mxu0 %v2316
        %2900 = vmatprep.subr.bf16.mxu0 0
        %2901 = vmatpush1.bf16.msra.mxu0 %v2317
        %2902 = vmatprep.subr.bf16.mxu0 0
        %2903 = vmatpush1.bf16.msra.mxu0 %v2318
        %2904 = vmatprep.subr.bf16.mxu0 0
        %2905 = vmatpush1.bf16.msra.mxu0 %v2319
        %2906 = vmatprep.subr.bf16.mxu0 0
        %2907 = vmatpush1.bf16.msra.mxu0 %v2320
        %2908 = vmatprep.subr.bf16.mxu0 0
        %2909 = vmatpush1.bf16.msra.mxu0 %v2321
        %2910 = vmatprep.subr.bf16.mxu0 0
        %2911 = vmatpush1.bf16.msra.mxu0 %v2322
        %2912 = vmatprep.subr.bf16.mxu0 0
        %2913 = vmatpush1.bf16.msra.mxu0 %v2323
        %2914 = vmatprep.subr.bf16.mxu0 0
        %2915 = vmatpush1.bf16.msra.mxu0 %v2324
        %2916 = vmatprep.subr.bf16.mxu0 0
        %2917 = vmatpush1.bf16.msra.mxu0 %v2325
        %2918 = vmatprep.mubr.bf16.mxu0 %v1087
        %2919 = vmatmul.mubr.bf16.gmra.mrb[0].mxu0 %v1086
        %v2920 = vpop.f32.mrb[0].mxu0
        %v2921 = vadd.f32 0.0, %v2920
        %v2922 = vpop.f32.mrb[0].mxu0
        %v2923 = vpop.f32.mrb[0].mxu0
        %v2924 = vadd.f32 0.0, %v2923
        %v2925 = vpop.f32.mrb[0].mxu0
        %2926 = vdwg.mxu0
        %2927 = vmatprep.subr.bf16.mxu0 0
        %2928 = vmatpush1.bf16.msra.mxu0 %v2326
        %2929 = vmatprep.subr.bf16.mxu0 0
        %2930 = vmatpush1.bf16.msra.mxu0 %v2327
        %2931 = vmatprep.subr.bf16.mxu0 0
        %2932 = vmatpush1.bf16.msra.mxu0 %v2328
        %2933 = vmatprep.subr.bf16.mxu0 0
        %2934 = vmatpush1.bf16.msra.mxu0 %v2329
        %2935 = vmatprep.subr.bf16.mxu0 0
        %2936 = vmatpush1.bf16.msra.mxu0 %v2330
        %2937 = vmatprep.subr.bf16.mxu0 0
        %2938 = vmatpush1.bf16.msra.mxu0 %v2331
        %2939 = vmatprep.subr.bf16.mxu0 0
        %2940 = vmatpush1.bf16.msra.mxu0 %v2332
        %2941 = vmatprep.subr.bf16.mxu0 0
        %2942 = vmatpush1.bf16.msra.mxu0 %v2333
        %2943 = vmatprep.subr.bf16.mxu0 0
        %2944 = vmatpush1.bf16.msra.mxu0 %v2334
        %2945 = vmatprep.subr.bf16.mxu0 0
        %2946 = vmatpush1.bf16.msra.mxu0 %v2335
        %2947 = vmatprep.subr.bf16.mxu0 0
        %2948 = vmatpush1.bf16.msra.mxu0 %v2336
        %2949 = vmatprep.subr.bf16.mxu0 0
        %2950 = vmatpush1.bf16.msra.mxu0 %v2337
        %2951 = vmatprep.subr.bf16.mxu0 0
        %2952 = vmatpush1.bf16.msra.mxu0 %v2338
        %2953 = vmatprep.subr.bf16.mxu0 0
        %2954 = vmatpush1.bf16.msra.mxu0 %v2339
        %2955 = vmatprep.subr.bf16.mxu0 0
        %2956 = vmatpush1.bf16.msra.mxu0 %v2340
        %2957 = vmatprep.subr.bf16.mxu0 0
        %2958 = vmatpush1.bf16.msra.mxu0 %v2341
        %2959 = vmatprep.mubr.bf16.mxu0 %v1089
        %2960 = vmatmul.mubr.bf16.gmra.mrb[0].mxu0 %v1088
        %v2961 = vpop.f32.mrb[0].mxu0
        %v2962 = vadd.f32 %v2921, %v2961
        %v2963 = vpop.f32.mrb[0].mxu0
        %v2964 = vpop.f32.mrb[0].mxu0
        %v2965 = vadd.f32 %v2924, %v2964
        %v2966 = vpop.f32.mrb[0].mxu0
        %2967 = vdwg.mxu0
        %2968 = vmatprep.subr.bf16.mxu0 0
        %2969 = vmatpush1.bf16.msra.mxu0 %v2342
        %2970 = vmatprep.subr.bf16.mxu0 0
        %2971 = vmatpush1.bf16.msra.mxu0 %v2343
        %2972 = vmatprep.subr.bf16.mxu0 0
        %2973 = vmatpush1.bf16.msra.mxu0 %v2344
        %2974 = vmatprep.subr.bf16.mxu0 0
        %2975 = vmatpush1.bf16.msra.mxu0 %v2345
        %2976 = vmatprep.subr.bf16.mxu0 0
        %2977 = vmatpush1.bf16.msra.mxu0 %v2346
        %2978 = vmatprep.subr.bf16.mxu0 0
        %2979 = vmatpush1.bf16.msra.mxu0 %v2347
        %2980 = vmatprep.subr.bf16.mxu0 0
        %2981 = vmatpush1.bf16.msra.mxu0 %v2348
        %2982 = vmatprep.subr.bf16.mxu0 0
        %2983 = vmatpush1.bf16.msra.mxu0 %v2349
        %2984 = vmatprep.subr.bf16.mxu0 0
        %2985 = vmatpush1.bf16.msra.mxu0 %v2350
        %2986 = vmatprep.subr.bf16.mxu0 0
        %2987 = vmatpush1.bf16.msra.mxu0 %v2351
        %2988 = vmatprep.subr.bf16.mxu0 0
        %2989 = vmatpush1.bf16.msra.mxu0 %v2352
        %2990 = vmatprep.subr.bf16.mxu0 0
        %2991 = vmatpush1.bf16.msra.mxu0 %v2353
        %2992 = vmatprep.subr.bf16.mxu0 0
        %2993 = vmatpush1.bf16.msra.mxu0 %v2354
        %2994 = vmatprep.subr.bf16.mxu0 0
        %2995 = vmatpush1.bf16.msra.mxu0 %v2355
        %2996 = vmatprep.subr.bf16.mxu0 0
        %2997 = vmatpush1.bf16.msra.mxu0 %v2356
        %2998 = vmatprep.subr.bf16.mxu0 0
        %2999 = vmatpush1.bf16.msra.mxu0 %v2357
        %3000 = vmatprep.mubr.bf16.mxu0 %v1091
        %3001 = vmatmul.mubr.bf16.gmra.mrb[0].mxu0 %v1090
        %v3002 = vpop.f32.mrb[0].mxu0
        %v3003 = vadd.f32 %v2962, %v3002
        %v3004 = vpop.f32.mrb[0].mxu0
        %v3005 = vpop.f32.mrb[0].mxu0
        %v3006 = vadd.f32 %v2965, %v3005
        %v3007 = vpop.f32.mrb[0].mxu0
        %3008 = vdwg.mxu0
        %3009 = vmatprep.subr.bf16.mxu0 0
        %3010 = vmatpush1.bf16.msra.mxu0 %v2358
        %3011 = vmatprep.subr.bf16.mxu0 0
        %3012 = vmatpush1.bf16.msra.mxu0 %v2359
        %3013 = vmatprep.subr.bf16.mxu0 0
        %3014 = vmatpush1.bf16.msra.mxu0 %v2360
        %3015 = vmatprep.subr.bf16.mxu0 0
        %3016 = vmatpush1.bf16.msra.mxu0 %v2361
        %3017 = vmatprep.subr.bf16.mxu0 0
        %3018 = vmatpush1.bf16.msra.mxu0 %v2362
        %3019 = vmatprep.subr.bf16.mxu0 0
        %3020 = vmatpush1.bf16.msra.mxu0 %v2363
        %3021 = vmatprep.subr.bf16.mxu0 0
        %3022 = vmatpush1.bf16.msra.mxu0 %v2364
        %3023 = vmatprep.subr.bf16.mxu0 0
        %3024 = vmatpush1.bf16.msra.mxu0 %v2365
        %3025 = vmatprep.subr.bf16.mxu0 0
        %3026 = vmatpush1.bf16.msra.mxu0 %v2366
        %3027 = vmatprep.subr.bf16.mxu0 0
        %3028 = vmatpush1.bf16.msra.mxu0 %v2367
        %3029 = vmatprep.subr.bf16.mxu0 0
        %3030 = vmatpush1.bf16.msra.mxu0 %v2368
        %3031 = vmatprep.subr.bf16.mxu0 0
        %3032 = vmatpush1.bf16.msra.mxu0 %v2369
        %3033 = vmatprep.subr.bf16.mxu0 0
        %3034 = vmatpush1.bf16.msra.mxu0 %v2370
        %3035 = vmatprep.subr.bf16.mxu0 0
        %3036 = vmatpush1.bf16.msra.mxu0 %v2371
        %3037 = vmatprep.subr.bf16.mxu0 0
        %3038 = vmatpush1.bf16.msra.mxu0 %v2372
        %3039 = vmatprep.subr.bf16.mxu0 0
        %3040 = vmatpush1.bf16.msra.mxu0 %v2373
        %3041 = vmatprep.mubr.bf16.mxu0 %v1093
        %3042 = vmatmul.mubr.bf16.gmra.mrb[0].mxu0 %v1092
        %v3043 = vpop.f32.mrb[0].mxu0
        %v3044 = vadd.f32 %v3003, %v3043
        %v3045 = vpop.f32.mrb[0].mxu0
        %v3046 = vpop.f32.mrb[0].mxu0
        %v3047 = vadd.f32 %v3006, %v3046
        %v3048 = vpop.f32.mrb[0].mxu0
        %3049 = vdwg.mxu0
        %3050 = vmatprep.subr.bf16.mxu0 0
        %3051 = vmatpush1.bf16.msra.mxu0 %v2374
        %3052 = vmatprep.subr.bf16.mxu0 0
        %3053 = vmatpush1.bf16.msra.mxu0 %v2375
        %3054 = vmatprep.subr.bf16.mxu0 0
        %3055 = vmatpush1.bf16.msra.mxu0 %v2376
        %3056 = vmatprep.subr.bf16.mxu0 0
        %3057 = vmatpush1.bf16.msra.mxu0 %v2377
        %3058 = vmatprep.subr.bf16.mxu0 0
        %3059 = vmatpush1.bf16.msra.mxu0 %v2378
        %3060 = vmatprep.subr.bf16.mxu0 0
        %3061 = vmatpush1.bf16.msra.mxu0 %v2379
        %3062 = vmatprep.subr.bf16.mxu0 0
        %3063 = vmatpush1.bf16.msra.mxu0 %v2380
        %3064 = vmatprep.subr.bf16.mxu0 0
        %3065 = vmatpush1.bf16.msra.mxu0 %v2381
        %3066 = vmatprep.subr.bf16.mxu0 0
        %3067 = vmatpush1.bf16.msra.mxu0 %v2382
        %3068 = vmatprep.subr.bf16.mxu0 0
        %3069 = vmatpush1.bf16.msra.mxu0 %v2383
        %3070 = vmatprep.subr.bf16.mxu0 0
        %3071 = vmatpush1.bf16.msra.mxu0 %v2384
        %3072 = vmatprep.subr.bf16.mxu0 0
        %3073 = vmatpush1.bf16.msra.mxu0 %v2385
        %3074 = vmatprep.subr.bf16.mxu0 0
        %3075 = vmatpush1.bf16.msra.mxu0 %v2386
        %3076 = vmatprep.subr.bf16.mxu0 0
        %3077 = vmatpush1.bf16.msra.mxu0 %v2387
        %3078 = vmatprep.subr.bf16.mxu0 0
        %3079 = vmatpush1.bf16.msra.mxu0 %v2388
        %3080 = vmatprep.subr.bf16.mxu0 0
        %3081 = vmatpush1.bf16.msra.mxu0 %v2389
        %3082 = vmatprep.mubr.bf16.mxu0 %v1095
        %3083 = vmatmul.mubr.bf16.gmra.mrb[0].mxu0 %v1094
        %v3084 = vpop.f32.mrb[0].mxu0
        %v3085 = vadd.f32 %v3044, %v3084
        %v3086 = vpop.f32.mrb[0].mxu0
        %v3087 = vpop.f32.mrb[0].mxu0
        %v3088 = vadd.f32 %v3047, %v3087
        %v3089 = vpop.f32.mrb[0].mxu0
        %3090 = vdwg.mxu0
        %3091 = vmatprep.subr.bf16.mxu0 0
        %3092 = vmatpush1.bf16.msra.mxu0 %v2390
        %3093 = vmatprep.subr.bf16.mxu0 0
        %3094 = vmatpush1.bf16.msra.mxu0 %v2391
        %3095 = vmatprep.subr.bf16.mxu0 0
        %3096 = vmatpush1.bf16.msra.mxu0 %v2392
        %3097 = vmatprep.subr.bf16.mxu0 0
        %3098 = vmatpush1.bf16.msra.mxu0 %v2393
        %3099 = vmatprep.subr.bf16.mxu0 0
        %3100 = vmatpush1.bf16.msra.mxu0 %v2394
        %3101 = vmatprep.subr.bf16.mxu0 0
        %3102 = vmatpush1.bf16.msra.mxu0 %v2395
        %3103 = vmatprep.subr.bf16.mxu0 0
        %3104 = vmatpush1.bf16.msra.mxu0 %v2396
        %3105 = vmatprep.subr.bf16.mxu0 0
        %3106 = vmatpush1.bf16.msra.mxu0 %v2397
        %3107 = vmatprep.subr.bf16.mxu0 0
        %3108 = vmatpush1.bf16.msra.mxu0 %v2398
        %3109 = vmatprep.subr.bf16.mxu0 0
        %3110 = vmatpush1.bf16.msra.mxu0 %v2399
        %3111 = vmatprep.subr.bf16.mxu0 0
        %3112 = vmatpush1.bf16.msra.mxu0 %v2400
        %3113 = vmatprep.subr.bf16.mxu0 0
        %3114 = vmatpush1.bf16.msra.mxu0 %v2401
        %3115 = vmatprep.subr.bf16.mxu0 0
        %3116 = vmatpush1.bf16.msra.mxu0 %v2402
        %3117 = vmatprep.subr.bf16.mxu0 0
        %3118 = vmatpush1.bf16.msra.mxu0 %v2403
        %3119 = vmatprep.subr.bf16.mxu0 0
        %3120 = vmatpush1.bf16.msra.mxu0 %v2404
        %3121 = vmatprep.subr.bf16.mxu0 0
        %3122 = vmatpush1.bf16.msra.mxu0 %v2405
        %3123 = vmatprep.mubr.bf16.mxu0 %v1097
        %3124 = vmatmul.mubr.bf16.gmra.mrb[0].mxu0 %v1096
        %v3125 = vpop.f32.mrb[0].mxu0
        %v3126 = vadd.f32 %v3085, %v3125
        %v3127 = vpop.f32.mrb[0].mxu0
        %v3128 = vpop.f32.mrb[0].mxu0
        %v3129 = vadd.f32 %v3088, %v3128
        %v3130 = vpop.f32.mrb[0].mxu0
        %3131 = vdwg.mxu0
        %3132 = vmatprep.subr.bf16.mxu0 0
        %3133 = vmatpush1.bf16.msra.mxu0 %v2406
        %3134 = vmatprep.subr.bf16.mxu0 0
        %3135 = vmatpush1.bf16.msra.mxu0 %v2407
        %3136 = vmatprep.subr.bf16.mxu0 0
        %3137 = vmatpush1.bf16.msra.mxu0 %v2408
        %3138 = vmatprep.subr.bf16.mxu0 0
        %3139 = vmatpush1.bf16.msra.mxu0 %v2409
        %3140 = vmatprep.subr.bf16.mxu0 0
        %3141 = vmatpush1.bf16.msra.mxu0 %v2410
        %3142 = vmatprep.subr.bf16.mxu0 0
        %3143 = vmatpush1.bf16.msra.mxu0 %v2411
        %3144 = vmatprep.subr.bf16.mxu0 0
        %3145 = vmatpush1.bf16.msra.mxu0 %v2412
        %3146 = vmatprep.subr.bf16.mxu0 0
        %3147 = vmatpush1.bf16.msra.mxu0 %v2413
        %3148 = vmatprep.subr.bf16.mxu0 0
        %3149 = vmatpush1.bf16.msra.mxu0 %v2414
        %3150 = vmatprep.subr.bf16.mxu0 0
        %3151 = vmatpush1.bf16.msra.mxu0 %v2415
        %3152 = vmatprep.subr.bf16.mxu0 0
        %3153 = vmatpush1.bf16.msra.mxu0 %v2416
        %3154 = vmatprep.subr.bf16.mxu0 0
        %3155 = vmatpush1.bf16.msra.mxu0 %v2417
        %3156 = vmatprep.subr.bf16.mxu0 0
        %3157 = vmatpush1.bf16.msra.mxu0 %v2418
        %3158 = vmatprep.subr.bf16.mxu0 0
        %3159 = vmatpush1.bf16.msra.mxu0 %v2419
        %3160 = vmatprep.subr.bf16.mxu0 0
        %3161 = vmatpush1.bf16.msra.mxu0 %v2420
        %3162 = vmatprep.subr.bf16.mxu0 0
        %3163 = vmatpush1.bf16.msra.mxu0 %v2421
        %3164 = vmatprep.mubr.bf16.mxu0 %v1099
        %3165 = vmatmul.mubr.bf16.gmra.mrb[0].mxu0 %v1098
        %v3166 = vpop.f32.mrb[0].mxu0
        %v3167 = vadd.f32 %v3126, %v3166
        %v3168 = vpop.f32.mrb[0].mxu0
        %v3169 = vpop.f32.mrb[0].mxu0
        %v3170 = vadd.f32 %v3129, %v3169
        %v3171 = vpop.f32.mrb[0].mxu0
        %3172 = vdwg.mxu0
        %3173 = vmatprep.subr.bf16.mxu0 0
        %3174 = vmatpush1.bf16.msra.mxu0 %v2422
        %3175 = vmatprep.subr.bf16.mxu0 0
        %3176 = vmatpush1.bf16.msra.mxu0 %v2423
        %3177 = vmatprep.subr.bf16.mxu0 0
        %3178 = vmatpush1.bf16.msra.mxu0 %v2424
        %3179 = vmatprep.subr.bf16.mxu0 0
        %3180 = vmatpush1.bf16.msra.mxu0 %v2425
        %3181 = vmatprep.subr.bf16.mxu0 0
        %3182 = vmatpush1.bf16.msra.mxu0 %v2426
        %3183 = vmatprep.subr.bf16.mxu0 0
        %3184 = vmatpush1.bf16.msra.mxu0 %v2427
        %3185 = vmatprep.subr.bf16.mxu0 0
        %3186 = vmatpush1.bf16.msra.mxu0 %v2428
        %3187 = vmatprep.subr.bf16.mxu0 0
        %3188 = vmatpush1.bf16.msra.mxu0 %v2429
        %3189 = vmatprep.subr.bf16.mxu0 0
        %3190 = vmatpush1.bf16.msra.mxu0 %v2430
        %3191 = vmatprep.subr.bf16.mxu0 0
        %3192 = vmatpush1.bf16.msra.mxu0 %v2431
        %3193 = vmatprep.subr.bf16.mxu0 0
        %3194 = vmatpush1.bf16.msra.mxu0 %v2432
        %3195 = vmatprep.subr.bf16.mxu0 0
        %3196 = vmatpush1.bf16.msra.mxu0 %v2433
        %3197 = vmatprep.subr.bf16.mxu0 0
        %3198 = vmatpush1.bf16.msra.mxu0 %v2434
        %3199 = vmatprep.subr.bf16.mxu0 0
        %3200 = vmatpush1.bf16.msra.mxu0 %v2435
        %3201 = vmatprep.subr.bf16.mxu0 0
        %3202 = vmatpush1.bf16.msra.mxu0 %v2436
        %3203 = vmatprep.subr.bf16.mxu0 0
        %3204 = vmatpush1.bf16.msra.mxu0 %v2437
        %3205 = vmatprep.mubr.bf16.mxu0 %v1101
        %3206 = vmatmul.mubr.bf16.gmra.mrb[0].mxu0 %v1100
        %v3207 = vpop.f32.mrb[0].mxu0
        %v3208 = vadd.f32 %v3167, %v3207
        %v3209 = vpop.f32.mrb[0].mxu0
        %v3210 = vpop.f32.mrb[0].mxu0
        %v3211 = vadd.f32 %v3170, %v3210
        %v3212 = vpop.f32.mrb[0].mxu0
        %3213 = vdwg.mxu0
        %3214 = vmatprep.subr.bf16.mxu0 0
        %3215 = vmatpush1.bf16.msra.mxu0 %v2438
        %3216 = vmatprep.subr.bf16.mxu0 0
        %3217 = vmatpush1.bf16.msra.mxu0 %v2439
        %3218 = vmatprep.subr.bf16.mxu0 0
        %3219 = vmatpush1.bf16.msra.mxu0 %v2440
        %3220 = vmatprep.subr.bf16.mxu0 0
        %3221 = vmatpush1.bf16.msra.mxu0 %v2441
        %3222 = vmatprep.subr.bf16.mxu0 0
        %3223 = vmatpush1.bf16.msra.mxu0 %v2442
        %3224 = vmatprep.subr.bf16.mxu0 0
        %3225 = vmatpush1.bf16.msra.mxu0 %v2443
        %3226 = vmatprep.subr.bf16.mxu0 0
        %3227 = vmatpush1.bf16.msra.mxu0 %v2444
        %3228 = vmatprep.subr.bf16.mxu0 0
        %3229 = vmatpush1.bf16.msra.mxu0 %v2445
        %3230 = vmatprep.subr.bf16.mxu0 0
        %3231 = vmatpush1.bf16.msra.mxu0 %v2446
        %3232 = vmatprep.subr.bf16.mxu0 0
        %3233 = vmatpush1.bf16.msra.mxu0 %v2447
        %3234 = vmatprep.subr.bf16.mxu0 0
        %3235 = vmatpush1.bf16.msra.mxu0 %v2448
        %3236 = vmatprep.subr.bf16.mxu0 0
        %3237 = vmatpush1.bf16.msra.mxu0 %v2449
        %3238 = vmatprep.subr.bf16.mxu0 0
        %3239 = vmatpush1.bf16.msra.mxu0 %v2450
        %3240 = vmatprep.subr.bf16.mxu0 0
        %3241 = vmatpush1.bf16.msra.mxu0 %v2451
        %3242 = vmatprep.subr.bf16.mxu0 0
        %3243 = vmatpush1.bf16.msra.mxu0 %v2452
        %3244 = vmatprep.subr.bf16.mxu0 0
        %3245 = vmatpush1.bf16.msra.mxu0 %v2453
        %3246 = vmatprep.mubr.bf16.mxu0 %v1103
        %3247 = vmatmul.mubr.bf16.gmra.mrb[0].mxu0 %v1102
        %v3248 = vpop.f32.mrb[0].mxu0
        %v3249 = vadd.f32 %v3208, %v3248
        %v3250 = vpop.f32.mrb[0].mxu0
        %v3251 = vpop.f32.mrb[0].mxu0
        %v3252 = vadd.f32 %v3211, %v3251
        %v3253 = vpop.f32.mrb[0].mxu0
        %3254 = vdwg.mxu0
        %3255 = vmatprep.subr.bf16.mxu0 0
        %3256 = vmatpush1.bf16.msra.mxu0 %v2454
        %3257 = vmatprep.subr.bf16.mxu0 0
        %3258 = vmatpush1.bf16.msra.mxu0 %v2455
        %3259 = vmatprep.subr.bf16.mxu0 0
        %3260 = vmatpush1.bf16.msra.mxu0 %v2456
        %3261 = vmatprep.subr.bf16.mxu0 0
        %3262 = vmatpush1.bf16.msra.mxu0 %v2457
        %3263 = vmatprep.subr.bf16.mxu0 0
        %3264 = vmatpush1.bf16.msra.mxu0 %v2458
        %3265 = vmatprep.subr.bf16.mxu0 0
        %3266 = vmatpush1.bf16.msra.mxu0 %v2459
        %3267 = vmatprep.subr.bf16.mxu0 0
        %3268 = vmatpush1.bf16.msra.mxu0 %v2460
        %3269 = vmatprep.subr.bf16.mxu0 0
        %3270 = vmatpush1.bf16.msra.mxu0 %v2461
        %3271 = vmatprep.subr.bf16.mxu0 0
        %3272 = vmatpush1.bf16.msra.mxu0 %v2462
        %3273 = vmatprep.subr.bf16.mxu0 0
        %3274 = vmatpush1.bf16.msra.mxu0 %v2463
        %3275 = vmatprep.subr.bf16.mxu0 0
        %3276 = vmatpush1.bf16.msra.mxu0 %v2464
        %3277 = vmatprep.subr.bf16.mxu0 0
        %3278 = vmatpush1.bf16.msra.mxu0 %v2465
        %3279 = vmatprep.subr.bf16.mxu0 0
        %3280 = vmatpush1.bf16.msra.mxu0 %v2466
        %3281 = vmatprep.subr.bf16.mxu0 0
        %3282 = vmatpush1.bf16.msra.mxu0 %v2467
        %3283 = vmatprep.subr.bf16.mxu0 0
        %3284 = vmatpush1.bf16.msra.mxu0 %v2468
        %3285 = vmatprep.subr.bf16.mxu0 0
        %3286 = vmatpush1.bf16.msra.mxu0 %v2469
        %3287 = vmatprep.mubr.bf16.mxu0 %v1105
        %3288 = vmatmul.mubr.bf16.gmra.mrb[0].mxu0 %v1104
        %v3289 = vpop.f32.mrb[0].mxu0
        %v3290 = vadd.f32 %v3249, %v3289
        %v3291 = vpop.f32.mrb[0].mxu0
        %v3292 = vpop.f32.mrb[0].mxu0
        %v3293 = vadd.f32 %v3252, %v3292
        %v3294 = vpop.f32.mrb[0].mxu0
        %3295 = vdwg.mxu0
        %3296 = vmatprep.subr.bf16.mxu0 0
        %3297 = vmatpush1.bf16.msra.mxu0 %v2470
        %3298 = vmatprep.subr.bf16.mxu0 0
        %3299 = vmatpush1.bf16.msra.mxu0 %v2471
        %3300 = vmatprep.subr.bf16.mxu0 0
        %3301 = vmatpush1.bf16.msra.mxu0 %v2472
        %3302 = vmatprep.subr.bf16.mxu0 0
        %3303 = vmatpush1.bf16.msra.mxu0 %v2473
        %3304 = vmatprep.subr.bf16.mxu0 0
        %3305 = vmatpush1.bf16.msra.mxu0 %v2474
        %3306 = vmatprep.subr.bf16.mxu0 0
        %3307 = vmatpush1.bf16.msra.mxu0 %v2475
        %3308 = vmatprep.subr.bf16.mxu0 0
        %3309 = vmatpush1.bf16.msra.mxu0 %v2476
        %3310 = vmatprep.subr.bf16.mxu0 0
        %3311 = vmatpush1.bf16.msra.mxu0 %v2477
        %3312 = vmatprep.subr.bf16.mxu0 0
        %3313 = vmatpush1.bf16.msra.mxu0 %v2478
        %3314 = vmatprep.subr.bf16.mxu0 0
        %3315 = vmatpush1.bf16.msra.mxu0 %v2479
        %3316 = vmatprep.subr.bf16.mxu0 0
        %3317 = vmatpush1.bf16.msra.mxu0 %v2480
        %3318 = vmatprep.subr.bf16.mxu0 0
        %3319 = vmatpush1.bf16.msra.mxu0 %v2481
        %3320 = vmatprep.subr.bf16.mxu0 0
        %3321 = vmatpush1.bf16.msra.mxu0 %v2482
        %3322 = vmatprep.subr.bf16.mxu0 0
        %3323 = vmatpush1.bf16.msra.mxu0 %v2483
        %3324 = vmatprep.subr.bf16.mxu0 0
        %3325 = vmatpush1.bf16.msra.mxu0 %v2484
        %3326 = vmatprep.subr.bf16.mxu0 0
        %3327 = vmatpush1.bf16.msra.mxu0 %v2485
        %3328 = vmatprep.mubr.bf16.mxu0 %v1107
        %3329 = vmatmul.mubr.bf16.gmra.mrb[0].mxu0 %v1106
        %v3330 = vpop.f32.mrb[0].mxu0
        %v3331 = vadd.f32 %v3290, %v3330
        %v3332 = vpop.f32.mrb[0].mxu0
        %v3333 = vpop.f32.mrb[0].mxu0
        %v3334 = vadd.f32 %v3293, %v3333
        %v3335 = vpop.f32.mrb[0].mxu0
        %3336 = vdwg.mxu0
        %3337 = vmatprep.subr.bf16.mxu0 0
        %3338 = vmatpush1.bf16.msra.mxu0 %v2486
        %3339 = vmatprep.subr.bf16.mxu0 0
        %3340 = vmatpush1.bf16.msra.mxu0 %v2487
        %3341 = vmatprep.subr.bf16.mxu0 0
        %3342 = vmatpush1.bf16.msra.mxu0 %v2488
        %3343 = vmatprep.subr.bf16.mxu0 0
        %3344 = vmatpush1.bf16.msra.mxu0 %v2489
        %3345 = vmatprep.subr.bf16.mxu0 0
        %3346 = vmatpush1.bf16.msra.mxu0 %v2490
        %3347 = vmatprep.subr.bf16.mxu0 0
        %3348 = vmatpush1.bf16.msra.mxu0 %v2491
        %3349 = vmatprep.subr.bf16.mxu0 0
        %3350 = vmatpush1.bf16.msra.mxu0 %v2492
        %3351 = vmatprep.subr.bf16.mxu0 0
        %3352 = vmatpush1.bf16.msra.mxu0 %v2493
        %3353 = vmatprep.subr.bf16.mxu0 0
        %3354 = vmatpush1.bf16.msra.mxu0 %v2494
        %3355 = vmatprep.subr.bf16.mxu0 0
        %3356 = vmatpush1.bf16.msra.mxu0 %v2495
        %3357 = vmatprep.subr.bf16.mxu0 0
        %3358 = vmatpush1.bf16.msra.mxu0 %v2496
        %3359 = vmatprep.subr.bf16.mxu0 0
        %3360 = vmatpush1.bf16.msra.mxu0 %v2497
        %3361 = vmatprep.subr.bf16.mxu0 0
        %3362 = vmatpush1.bf16.msra.mxu0 %v2498
        %3363 = vmatprep.subr.bf16.mxu0 0
        %3364 = vmatpush1.bf16.msra.mxu0 %v2499
        %3365 = vmatprep.subr.bf16.mxu0 0
        %3366 = vmatpush1.bf16.msra.mxu0 %v2500
        %3367 = vmatprep.subr.bf16.mxu0 0
        %3368 = vmatpush1.bf16.msra.mxu0 %v2501
        %3369 = vmatprep.mubr.bf16.mxu0 %v1109
        %3370 = vmatmul.mubr.bf16.gmra.mrb[0].mxu0 %v1108
        %v3371 = vpop.f32.mrb[0].mxu0
        %v3372 = vadd.f32 %v3331, %v3371
        %v3373 = vpop.f32.mrb[0].mxu0
        %v3374 = vpop.f32.mrb[0].mxu0
        %v3375 = vadd.f32 %v3334, %v3374
        %v3376 = vpop.f32.mrb[0].mxu0
        %3377 = vdwg.mxu0
        %3378 = vmatprep.subr.bf16.mxu0 0
        %3379 = vmatpush1.bf16.msra.mxu0 %v2502
        %3380 = vmatprep.subr.bf16.mxu0 0
        %3381 = vmatpush1.bf16.msra.mxu0 %v2503
        %3382 = vmatprep.subr.bf16.mxu0 0
        %3383 = vmatpush1.bf16.msra.mxu0 %v2504
        %3384 = vmatprep.subr.bf16.mxu0 0
        %3385 = vmatpush1.bf16.msra.mxu0 %v2505
        %3386 = vmatprep.subr.bf16.mxu0 0
        %3387 = vmatpush1.bf16.msra.mxu0 %v2506
        %3388 = vmatprep.subr.bf16.mxu0 0
        %3389 = vmatpush1.bf16.msra.mxu0 %v2507
        %3390 = vmatprep.subr.bf16.mxu0 0
        %3391 = vmatpush1.bf16.msra.mxu0 %v2508
        %3392 = vmatprep.subr.bf16.mxu0 0
        %3393 = vmatpush1.bf16.msra.mxu0 %v2509
        %3394 = vmatprep.subr.bf16.mxu0 0
        %3395 = vmatpush1.bf16.msra.mxu0 %v2510
        %3396 = vmatprep.subr.bf16.mxu0 0
        %3397 = vmatpush1.bf16.msra.mxu0 %v2511
        %3398 = vmatprep.subr.bf16.mxu0 0
        %3399 = vmatpush1.bf16.msra.mxu0 %v2512
        %3400 = vmatprep.subr.bf16.mxu0 0
        %3401 = vmatpush1.bf16.msra.mxu0 %v2513
        %3402 = vmatprep.subr.bf16.mxu0 0
        %3403 = vmatpush1.bf16.msra.mxu0 %v2514
        %3404 = vmatprep.subr.bf16.mxu0 0
        %3405 = vmatpush1.bf16.msra.mxu0 %v2515
        %3406 = vmatprep.subr.bf16.mxu0 0
        %3407 = vmatpush1.bf16.msra.mxu0 %v2516
        %3408 = vmatprep.subr.bf16.mxu0 0
        %3409 = vmatpush1.bf16.msra.mxu0 %v2517
        %3410 = vmatprep.mubr.bf16.mxu0 %v1111
        %3411 = vmatmul.mubr.bf16.gmra.mrb[0].mxu0 %v1110
        %v3412 = vpop.f32.mrb[0].mxu0
        %v3413 = vadd.f32 %v3372, %v3412
        %v3414 = vpop.f32.mrb[0].mxu0
        %v3415 = vpop.f32.mrb[0].mxu0
        %v3416 = vadd.f32 %v3375, %v3415
        %v3417 = vpop.f32.mrb[0].mxu0
        %3418 = vdwg.mxu0
        %3419 = vmatprep.subr.bf16.mxu0 0
        %3420 = vmatpush1.bf16.msra.mxu0 %v2518
        %3421 = vmatprep.subr.bf16.mxu0 0
        %3422 = vmatpush1.bf16.msra.mxu0 %v2519
        %3423 = vmatprep.subr.bf16.mxu0 0
        %3424 = vmatpush1.bf16.msra.mxu0 %v2520
        %3425 = vmatprep.subr.bf16.mxu0 0
        %3426 = vmatpush1.bf16.msra.mxu0 %v2521
        %3427 = vmatprep.subr.bf16.mxu0 0
        %3428 = vmatpush1.bf16.msra.mxu0 %v2522
        %3429 = vmatprep.subr.bf16.mxu0 0
        %3430 = vmatpush1.bf16.msra.mxu0 %v2523
        %3431 = vmatprep.subr.bf16.mxu0 0
        %3432 = vmatpush1.bf16.msra.mxu0 %v2524
        %3433 = vmatprep.subr.bf16.mxu0 0
        %3434 = vmatpush1.bf16.msra.mxu0 %v2525
        %3435 = vmatprep.subr.bf16.mxu0 0
        %3436 = vmatpush1.bf16.msra.mxu0 %v2526
        %3437 = vmatprep.subr.bf16.mxu0 0
        %3438 = vmatpush1.bf16.msra.mxu0 %v2527
        %3439 = vmatprep.subr.bf16.mxu0 0
        %3440 = vmatpush1.bf16.msra.mxu0 %v2528
        %3441 = vmatprep.subr.bf16.mxu0 0
        %3442 = vmatpush1.bf16.msra.mxu0 %v2529
        %3443 = vmatprep.subr.bf16.mxu0 0
        %3444 = vmatpush1.bf16.msra.mxu0 %v2530
        %3445 = vmatprep.subr.bf16.mxu0 0
        %3446 = vmatpush1.bf16.msra.mxu0 %v2531
        %3447 = vmatprep.subr.bf16.mxu0 0
        %3448 = vmatpush1.bf16.msra.mxu0 %v2532
        %3449 = vmatprep.subr.bf16.mxu0 0
        %3450 = vmatpush1.bf16.msra.mxu0 %v2533
        %3451 = vmatprep.mubr.bf16.mxu0 %v1113
        %3452 = vmatmul.mubr.bf16.gmra.mrb[0].mxu0 %v1112
        %v3453 = vpop.f32.mrb[0].mxu0
        %v3454 = vadd.f32 %v3413, %v3453
        %v3455 = vpop.f32.mrb[0].mxu0
        %v3456 = vpop.f32.mrb[0].mxu0
        %v3457 = vadd.f32 %v3416, %v3456
        %v3458 = vpop.f32.mrb[0].mxu0
        %3459 = vdwg.mxu0
        %3460 = vmatprep.subr.bf16.mxu0 0
        %3461 = vmatpush1.bf16.msra.mxu0 %v2534
        %3462 = vmatprep.subr.bf16.mxu0 0
        %3463 = vmatpush1.bf16.msra.mxu0 %v2535
        %3464 = vmatprep.subr.bf16.mxu0 0
        %3465 = vmatpush1.bf16.msra.mxu0 %v2536
        %3466 = vmatprep.subr.bf16.mxu0 0
        %3467 = vmatpush1.bf16.msra.mxu0 %v2537
        %3468 = vmatprep.subr.bf16.mxu0 0
        %3469 = vmatpush1.bf16.msra.mxu0 %v2538
        %3470 = vmatprep.subr.bf16.mxu0 0
        %3471 = vmatpush1.bf16.msra.mxu0 %v2539
        %3472 = vmatprep.subr.bf16.mxu0 0
        %3473 = vmatpush1.bf16.msra.mxu0 %v2540
        %3474 = vmatprep.subr.bf16.mxu0 0
        %3475 = vmatpush1.bf16.msra.mxu0 %v2541
        %3476 = vmatprep.subr.bf16.mxu0 0
        %3477 = vmatpush1.bf16.msra.mxu0 %v2542
        %3478 = vmatprep.subr.bf16.mxu0 0
        %3479 = vmatpush1.bf16.msra.mxu0 %v2543
        %3480 = vmatprep.subr.bf16.mxu0 0
        %3481 = vmatpush1.bf16.msra.mxu0 %v2544
        %3482 = vmatprep.subr.bf16.mxu0 0
        %3483 = vmatpush1.bf16.msra.mxu0 %v2545
        %3484 = vmatprep.subr.bf16.mxu0 0
        %3485 = vmatpush1.bf16.msra.mxu0 %v2546
        %3486 = vmatprep.subr.bf16.mxu0 0
        %3487 = vmatpush1.bf16.msra.mxu0 %v2547
        %3488 = vmatprep.subr.bf16.mxu0 0
        %3489 = vmatpush1.bf16.msra.mxu0 %v2548
        %3490 = vmatprep.subr.bf16.mxu0 0
        %3491 = vmatpush1.bf16.msra.mxu0 %v2549
        %3492 = vmatprep.mubr.bf16.mxu0 %v1115
        %3493 = vmatmul.mubr.bf16.gmra.mrb[0].mxu0 %v1114
        %v3494 = vpop.f32.mrb[0].mxu0
        %v3495 = vadd.f32 %v3454, %v3494
        %v3496 = vpop.f32.mrb[0].mxu0
        %v3497 = vpop.f32.mrb[0].mxu0
        %v3498 = vadd.f32 %v3457, %v3497
        %v3499 = vpop.f32.mrb[0].mxu0
        %3500 = vdwg.mxu0
        %3501 = vmatprep.subr.bf16.mxu0 0
        %3502 = vmatpush1.bf16.msra.mxu0 %v2550
        %3503 = vmatprep.subr.bf16.mxu0 0
        %3504 = vmatpush1.bf16.msra.mxu0 %v2551
        %3505 = vmatprep.subr.bf16.mxu0 0
        %3506 = vmatpush1.bf16.msra.mxu0 %v2552
        %3507 = vmatprep.subr.bf16.mxu0 0
        %3508 = vmatpush1.bf16.msra.mxu0 %v2553
        %3509 = vmatprep.subr.bf16.mxu0 0
        %3510 = vmatpush1.bf16.msra.mxu0 %v2554
        %3511 = vmatprep.subr.bf16.mxu0 0
        %3512 = vmatpush1.bf16.msra.mxu0 %v2555
        %3513 = vmatprep.subr.bf16.mxu0 0
        %3514 = vmatpush1.bf16.msra.mxu0 %v2556
        %3515 = vmatprep.subr.bf16.mxu0 0
        %3516 = vmatpush1.bf16.msra.mxu0 %v2557
        %3517 = vmatprep.subr.bf16.mxu0 0
        %3518 = vmatpush1.bf16.msra.mxu0 %v2558
        %3519 = vmatprep.subr.bf16.mxu0 0
        %3520 = vmatpush1.bf16.msra.mxu0 %v2559
        %3521 = vmatprep.subr.bf16.mxu0 0
        %3522 = vmatpush1.bf16.msra.mxu0 %v2560
        %3523 = vmatprep.subr.bf16.mxu0 0
        %3524 = vmatpush1.bf16.msra.mxu0 %v2561
        %3525 = vmatprep.subr.bf16.mxu0 0
        %3526 = vmatpush1.bf16.msra.mxu0 %v2562
        %3527 = vmatprep.subr.bf16.mxu0 0
        %3528 = vmatpush1.bf16.msra.mxu0 %v2563
        %3529 = vmatprep.subr.bf16.mxu0 0
        %3530 = vmatpush1.bf16.msra.mxu0 %v2564
        %3531 = vmatprep.subr.bf16.mxu0 0
        %3532 = vmatpush1.bf16.msra.mxu0 %v2565
        %3533 = vmatprep.mubr.bf16.mxu0 %v1117
        %3534 = vmatmul.mubr.bf16.gmra.mrb[0].mxu0 %v1116
        %v3535 = vpop.f32.mrb[0].mxu0
        %v3536 = vadd.f32 %v3495, %v3535
        %v3537 = vpop.f32.mrb[0].mxu0
        %v3538 = vpop.f32.mrb[0].mxu0
        %v3539 = vadd.f32 %v3498, %v3538
        %v3540 = vpop.f32.mrb[0].mxu0
        %3541 = vdwg.mxu0
        %3542 = vmatprep.subr.bf16.mxu0 0
        %3543 = vmatpush1.bf16.msra.mxu0 %v2566
        %3544 = vmatprep.subr.bf16.mxu0 0
        %3545 = vmatpush1.bf16.msra.mxu0 %v2567
        %3546 = vmatprep.subr.bf16.mxu0 0
        %3547 = vmatpush1.bf16.msra.mxu0 %v2568
        %3548 = vmatprep.subr.bf16.mxu0 0
        %3549 = vmatpush1.bf16.msra.mxu0 %v2569
        %3550 = vmatprep.subr.bf16.mxu0 0
        %3551 = vmatpush1.bf16.msra.mxu0 %v2570
        %3552 = vmatprep.subr.bf16.mxu0 0
        %3553 = vmatpush1.bf16.msra.mxu0 %v2571
        %3554 = vmatprep.subr.bf16.mxu0 0
        %3555 = vmatpush1.bf16.msra.mxu0 %v2572
        %3556 = vmatprep.subr.bf16.mxu0 0
        %3557 = vmatpush1.bf16.msra.mxu0 %v2573
        %3558 = vmatprep.subr.bf16.mxu0 0
        %3559 = vmatpush1.bf16.msra.mxu0 %v2574
        %3560 = vmatprep.subr.bf16.mxu0 0
        %3561 = vmatpush1.bf16.msra.mxu0 %v2575
        %3562 = vmatprep.subr.bf16.mxu0 0
        %3563 = vmatpush1.bf16.msra.mxu0 %v2576
        %3564 = vmatprep.subr.bf16.mxu0 0
        %3565 = vmatpush1.bf16.msra.mxu0 %v2577
        %3566 = vmatprep.subr.bf16.mxu0 0
        %3567 = vmatpush1.bf16.msra.mxu0 %v2578
        %3568 = vmatprep.subr.bf16.mxu0 0
        %3569 = vmatpush1.bf16.msra.mxu0 %v2579
        %3570 = vmatprep.subr.bf16.mxu0 0
        %3571 = vmatpush1.bf16.msra.mxu0 %v2580
        %3572 = vmatprep.subr.bf16.mxu0 0
        %3573 = vmatpush1.bf16.msra.mxu0 %v2581
        %3574 = vmatprep.mubr.bf16.mxu0 %v1119
        %3575 = vmatmul.mubr.bf16.gmra.mrb[0].mxu0 %v1118
        %v3576 = vpop.f32.mrb[0].mxu0
        %v3577 = vadd.f32 %v3536, %v3576
        %v3578 = vpop.f32.mrb[0].mxu0
        %v3579 = vpop.f32.mrb[0].mxu0
        %v3580 = vadd.f32 %v3539, %v3579
        %v3581 = vpop.f32.mrb[0].mxu0
        %3582 = vdwg.mxu0
        %3583 = vmatprep.subr.bf16.mxu0 0
        %3584 = vmatpush1.bf16.msra.mxu0 %v2582
        %3585 = vmatprep.subr.bf16.mxu0 0
        %3586 = vmatpush1.bf16.msra.mxu0 %v2583
        %3587 = vmatprep.subr.bf16.mxu0 0
        %3588 = vmatpush1.bf16.msra.mxu0 %v2584
        %3589 = vmatprep.subr.bf16.mxu0 0
        %3590 = vmatpush1.bf16.msra.mxu0 %v2585
        %3591 = vmatprep.subr.bf16.mxu0 0
        %3592 = vmatpush1.bf16.msra.mxu0 %v2586
        %3593 = vmatprep.subr.bf16.mxu0 0
        %3594 = vmatpush1.bf16.msra.mxu0 %v2587
        %3595 = vmatprep.subr.bf16.mxu0 0
        %3596 = vmatpush1.bf16.msra.mxu0 %v2588
        %3597 = vmatprep.subr.bf16.mxu0 0
        %3598 = vmatpush1.bf16.msra.mxu0 %v2589
        %3599 = vmatprep.subr.bf16.mxu0 0
        %3600 = vmatpush1.bf16.msra.mxu0 %v2590
        %3601 = vmatprep.subr.bf16.mxu0 0
        %3602 = vmatpush1.bf16.msra.mxu0 %v2591
        %3603 = vmatprep.subr.bf16.mxu0 0
        %3604 = vmatpush1.bf16.msra.mxu0 %v2592
        %3605 = vmatprep.subr.bf16.mxu0 0
        %3606 = vmatpush1.bf16.msra.mxu0 %v2593
        %3607 = vmatprep.subr.bf16.mxu0 0
        %3608 = vmatpush1.bf16.msra.mxu0 %v2594
        %3609 = vmatprep.subr.bf16.mxu0 0
        %3610 = vmatpush1.bf16.msra.mxu0 %v2595
        %3611 = vmatprep.subr.bf16.mxu0 0
        %3612 = vmatpush1.bf16.msra.mxu0 %v2596
        %3613 = vmatprep.subr.bf16.mxu0 0
        %3614 = vmatpush1.bf16.msra.mxu0 %v2597
        %3615 = vmatprep.mubr.bf16.mxu0 %v1121
        %3616 = vmatmul.mubr.bf16.gmra.mrb[0].mxu0 %v1120
        %v3617 = vpop.f32.mrb[0].mxu0
        %v3618 = vadd.f32 %v3577, %v3617
        %v3619 = vpop.f32.mrb[0].mxu0
        %v3620 = vpop.f32.mrb[0].mxu0
        %v3621 = vadd.f32 %v3580, %v3620
        %v3622 = vpop.f32.mrb[0].mxu0
        %3623 = vdwg.mxu0
        %v3624 = vadd.f32 %v364, %v3618
        %v3625 = vadd.f32 %v365, %v3621
        %3626 = vst [vmem:[#allocation2] sm:$0xff] %v3624
        %3627 = vst [vmem:[#allocation2 + $0x8] sm:$0xff] %v3625
        %p3628 = scmp.eq.s32.totalorder %s21, 1
        // Predicated region
        $region68: #{net_forward.5} parent=58 // pred_check
          %p3629 = pneg %p3628
        $region69: #{net_forward.5} parent=58 // pred_check_branch
          %3631 = sbr.rel (%p3629) target = $region71
        $region70: #{net_forward.5} parent=58 // pred_region
          %v3632 = vld [vmem:[#allocation2] sm:$0xff]
          %v3633 = vld [vmem:[#allocation2 + $0x8] sm:$0xff]
          %v3634 = vld [vmem:[%s2] sm:$0x1]
          %v3636 = vlaneseq
          %v3637 = vshrl.u32 %v3636, 7
          %v3638 = vsub.s32 0, %v3637
          %v3639 = vrot.slane %v3634, %v3638
          %v3641 = vadd.f32 %v3632, %v3639
          %v3642 = vadd.f32 %v3633, %v3639
          %v3643 = vmax.f32 %v3641, 0.0
          %v3644 = vmax.f32 %v3642, 0.0
          %v3645 = vpack.c.bf16 %v3644, %v3643
          %v3646 = vld [vmem:[%s3] sm:$0xf]
          %v3647 = vld [vmem:[%s3 + $0x4] sm:$0xf]
          %v3648 = vld [vmem:[%s3 + $0x8] sm:$0xf]
          %v3649 = vld [vmem:[%s3 + $0xc] sm:$0xf]
          %v3650 = vld [vmem:[%s3 + $0x10] sm:$0xf]
          %v3651 = vld [vmem:[%s3 + $0x14] sm:$0xf]
          %v3652 = vld [vmem:[%s3 + $0x18] sm:$0xf]
          %v3653 = vld [vmem:[%s3 + $0x1c] sm:$0xf]
          %v3654 = vld [vmem:[%s3 + $0x20] sm:$0xf]
          %v3655 = vld [vmem:[%s3 + $0x24] sm:$0xf]
          %v3656 = vld [vmem:[%s3 + $0x28] sm:$0xf]
          %v3657 = vld [vmem:[%s3 + $0x2c] sm:$0xf]
          %v3658 = vld [vmem:[%s3 + $0x30] sm:$0xf]
          %v3659 = vld [vmem:[%s3 + $0x34] sm:$0xf]
          %v3660 = vld [vmem:[%s3 + $0x38] sm:$0xf]
          %v3661 = vld [vmem:[%s3 + $0x3c] sm:$0xf]
          %v3662 = vld [vmem:[%s4] sm:$0x1]
          %v3664 = vlaneseq
          %v3665 = vshrl.u32 %v3664, 7
          %v3666 = vsub.s32 0, %v3665
          %v3667 = vrot.slane %v3662, %v3666
          %v3685 = vunpack.c.l.b16 %v3646
          %v3686 = vunpack.c.l.b16 %v3647
          %v3687 = vunpack.c.l.b16 %v3648
          %v3688 = vunpack.c.l.b16 %v3649
          %v3689 = vunpack.c.l.b16 %v3650
          %v3690 = vunpack.c.l.b16 %v3651
          %v3691 = vunpack.c.l.b16 %v3652
          %v3692 = vunpack.c.l.b16 %v3653
          %v3693 = vunpack.c.l.b16 %v3654
          %v3694 = vunpack.c.l.b16 %v3655
          %v3695 = vunpack.c.l.b16 %v3656
          %v3696 = vunpack.c.l.b16 %v3657
          %v3697 = vunpack.c.l.b16 %v3658
          %v3698 = vunpack.c.l.b16 %v3659
          %v3699 = vunpack.c.l.b16 %v3660
          %v3700 = vunpack.c.l.b16 %v3661
          %v3701 = vpack.c.b16 %v3686, %v3685
          %v3702 = vpack.c.b16 %v3688, %v3687
          %v3703 = vpack.c.b16 %v3690, %v3689
          %v3704 = vpack.c.b16 %v3692, %v3691
          %v3705 = vpack.c.b16 %v3694, %v3693
          %v3706 = vpack.c.b16 %v3696, %v3695
          %v3707 = vpack.c.b16 %v3698, %v3697
          %v3708 = vpack.c.b16 %v3700, %v3699
          %3717 = vmatprep.subr.bf16.mxu0 0
          %3718 = vmatpush1.bf16.msra.mxu0 %v3701
          %3719 = vmatprep.subr.bf16.mxu0 0
          %3720 = vmatpush1.bf16.msra.mxu0 %v3702
          %3721 = vmatprep.subr.bf16.mxu0 0
          %3722 = vmatpush1.bf16.msra.mxu0 %v3703
          %3723 = vmatprep.subr.bf16.mxu0 0
          %3724 = vmatpush1.bf16.msra.mxu0 %v3704
          %3725 = vmatprep.subr.bf16.mxu0 0
          %3726 = vmatpush1.bf16.msra.mxu0 %v3705
          %3727 = vmatprep.subr.bf16.mxu0 0
          %3728 = vmatpush1.bf16.msra.mxu0 %v3706
          %3729 = vmatprep.subr.bf16.mxu0 0
          %3730 = vmatpush1.bf16.msra.mxu0 %v3707
          %3731 = vmatprep.subr.bf16.mxu0 0
          %3732 = vmatpush1.bf16.msra.mxu0 %v3708
          %3733 = vmatprep.subr.bf16.mxu0 0
          %3734 = vmatpush1.bf16.msra.mxu0 0
          %3735 = vmatprep.subr.bf16.mxu0 0
          %3736 = vmatpush1.bf16.msra.mxu0 0
          %3737 = vmatprep.subr.bf16.mxu0 0
          %3738 = vmatpush1.bf16.msra.mxu0 0
          %3739 = vmatprep.subr.bf16.mxu0 0
          %3740 = vmatpush1.bf16.msra.mxu0 0
          %3741 = vmatprep.subr.bf16.mxu0 0
          %3742 = vmatpush1.bf16.msra.mxu0 0
          %3743 = vmatprep.subr.bf16.mxu0 0
          %3744 = vmatpush1.bf16.msra.mxu0 0
          %3745 = vmatprep.subr.bf16.mxu0 0
          %3746 = vmatpush1.bf16.msra.mxu0 0
          %3747 = vmatprep.subr.bf16.mxu0 0
          %3748 = vmatpush1.bf16.msra.mxu0 0
          %3749 = vmatprep.mubr.bf16.mxu0 0
          %3750 = vmatmul.mubr.bf16.gmra.mrb[0].mxu0 %v3645
          %v3751 = vpop.f32.mrb[0].mxu0
          %v3752 = vadd.f32 %v3667, %v3751
          %v3753 = vpop.f32.mrb[0].mxu0
          %v3754 = vpop.f32.mrb[0].mxu0
          %v3755 = vadd.f32 %v3667, %v3754
          %v3756 = vpop.f32.mrb[0].mxu0
          %3757 = vdwg.mxu0
          %vm3758 = vcmask 80896
          %v3759 = vsel %vm3758, %v3752, -inf
          %3760 = vmax.xlane.f32.xlu0 %v3759
          %v3761 = vpop.xlane.xlu0 %3760
          %v3762 = vsel %vm3758, %v3755, -inf
          %3763 = vmax.xlane.f32.xlu0 %v3762
          %v3764 = vpop.xlane.xlu0 %3763
          %v3765 = vsub.f32 %v3752, %v3761
          %v3766 = vsub.f32 %v3755, %v3764
          %v3767 = vmul.f32 %v3765, 1.442695
          %v3768 = vpow.pop %v3767
          %v3769 = vmul.f32 %v3766, 1.442695
          %v3770 = vpow.pop %v3769
          %v3771 = vsel %vm3758, %v3768, 0.0
          %3772 = vadd.xlane.f32.xlu0 %v3771
          %v3773 = vpop.xlane.xlu0 %3772
          %v3774 = vsel %vm3758, %v3770, 0.0
          %3775 = vadd.xlane.f32.xlu0 %v3774
          %v3776 = vpop.xlane.xlu0 %3775
          %v3777 = vlog2.pop %v3773
          %v3778 = vmul.f32 %v3777, 0.6931472
          %v3779 = vlog2.pop %v3776
          %v3780 = vmul.f32 %v3779, 0.6931472
          %v3781 = vsub.f32 %v3765, %v3778
          %v3782 = vsub.f32 %v3766, %v3780
          %3783 = vst.msk [vmem:[%s355] sm:$0xff] %vm3758, %v3781
          %3784 = vst.msk [vmem:[%s355 + $0x8] sm:$0xff] %vm3758, %v3782
        $region71: #{net_forward.5} parent=58 // pred_fallthru
          _
        %s3785 = smul.u32 2, %s20
        %p3786 = scmp.lt.s32.totalorder %s3785, 1
        %s3787 = scalar_select %p3786, %s3785, 1
        %s3788 = smul.addr %s3787, 8
        %s3789 = scalar_lea.vmem %s5, %s3788
        // Predicated region
        $region72: #{net_forward.5} parent=58 // pred_check
          %p3790 = pneg %p163
        $region73: #{net_forward.5} parent=58 // pred_check_branch
          %3792 = sbr.rel (%p3790) target = $region75
        $region74: #{net_forward.5} parent=58 // pred_region
          %s3793 = smul.u32 2, %s20
        $region75: #{net_forward.5} parent=58 // pred_fallthru
          _
        // Predicated region
        $region76: #{net_forward.5} parent=58 // pred_check
          %p3794 = pneg %p163
        $region77: #{net_forward.5} parent=58 // pred_check_branch
          %3796 = sbr.rel (%p3794) target = $region79
        $region78: #{net_forward.5} parent=58 // pred_region
          %s3797 = smul.u32 2, %s20
          %p3798 = scmp.lt.s32.totalorder %s3797, 1
          %s3799 = scalar_select %p3798, %s3797, 1
          %s3800 = smul.addr %s3799, 8
          %s3801 = scalar_lea.vmem %s5, %s3800
        $region79: #{net_forward.5} parent=58 // pred_fallthru
          _
      $region59: #{net_forward.5} parent=5 // pred_fallthru
        _
      %p3802 = scmp.le.s32.totalorder 2, %s11
      // Predicated region
      $region80: #{net_forward.5} parent=5 // pred_check
        %p3803 = pneg %p3802
      $region81: #{net_forward.5} parent=5 // pred_check_branch
        %3805 = sbr.rel (%p3803) target = $region83
      $region82: #{net_forward.5} parent=5 // pred_region
        %s3806 = ssub.s32 %s11, 2
      $region83: #{net_forward.5} parent=5 // pred_fallthru
        _
    $region6: #{net_forward.5} parent=1 // loop_footer
      %s15 = sadd.s32 1, %s11
    $region7: #{net_forward.5} parent=1 // loop_footer_branch
      %10 = sbr.rel target = $region3
    $region8: #{net_forward.5} parent=1 // loop_exit
      _

</llo_original>
